<compile_context>
chip_gen: v5e
topology: v5e:2x2
jax: 0.10.0
libtpu: 0.0.40
codegen_flags: <defaults>
</compile_context>

<pallas_src>
import jax
import jax.numpy as jnp
from jax.experimental import pallas as pl
from jax.experimental.pallas import tpu as pltpu

IMAGE_SIZE = 16     # original module uses image_size = 100; small demo shape
NUM_CLASSES = 10    # TODO(synk): len(yss_dictionary)==0 in the source is a degenerate
                    # output width; use 10 spoken-digit classes instead.
CLASS_PAD = 128     # classes padded to one full lane group for a dense HBM store


# ----------------------------------------------------------------------------
# Single fused kernel: conv1+ReLU+pool -> conv2+ReLU+pool -> fc1 -> fc2
#                      -> log-softmax, one batch tile per grid step.
# ----------------------------------------------------------------------------
def fused_forward_kernel(x_ref, w1_ref, b1_ref, w2_ref, b2_ref,
                         wf1_ref, bf1_ref, wf2_ref, bf2_ref,
                         o_ref, xp_ref, x2p_ref):
    NB, S, _, _ = x_ref.shape
    KH, KW = w1_ref.shape[0], w1_ref.shape[1]
    PAD = (KH - 1) // 2
    C1 = w1_ref.shape[-1]
    C2 = w2_ref.shape[-1]
    S2, S4 = S // 2, S // 4
    SS = wf1_ref.shape[-1]

    # ---- Stage 0: SAME padding (k=5, p=2) into VMEM scratch (no HBM pad copy).
    xp_ref[...] = jnp.zeros_like(xp_ref)
    xp_ref[:, PAD:PAD + S, PAD:PAD + S, :] = x_ref[...]
    xp = xp_ref[...]                                   # (NB, S+4, S+4, 1)

    # ---- Stage 1: Conv2d(1 -> C1, 5x5) + bias + ReLU on the VPU.
    # Cin == 1, so each tap is a broadcasted multiply-add; this replaces the
    # 25 rank-1 (K=1) MXU matmuls of the unfused version.
    w1 = w1_ref[...]                                   # (5, 5, 1, C1) f32
    acc1 = jnp.zeros((NB * S * S, C1), jnp.float32)
    for ky in range(KH):
        for kx in range(KW):
            tap = xp[:, ky:ky + S, kx:kx + S, :].reshape(NB * S * S, 1)
            acc1 = acc1 + tap * w1[ky, kx]             # (M,1) * (1,C1) VPU FMA
    a1 = jnp.maximum(acc1 + b1_ref[...], 0.0)          # (NB*S*S, C1)

    # ---- Stage 2: MaxPool 2x2 / stride 2 (rows are (n, h, w)-major; the lane
    # (channel) dim is untouched by the reshape).
    p1 = jnp.max(jnp.max(a1.reshape(NB * S2, 2, S2, 2, C1), axis=3), axis=1)

    # ---- Stage 3: SAME padding of the pooled map for conv2 (VMEM scratch).
    x2p_ref[...] = jnp.zeros_like(x2p_ref)
    x2p_ref[:, PAD:PAD + S2, PAD:PAD + S2, :] = p1.reshape(NB, S2, S2, C1)
    x2p = x2p_ref[...]                                 # (NB, S2+4, S2+4, C1)

    # ---- Stage 4: Conv2d(C1 -> C2, 5x5) as 25 MXU tap-matmuls (K=C1),
    # bf16 inputs, f32 accumulation.
    w2 = w2_ref[...]                                   # (5, 5, C1, C2) bf16
    acc2 = jnp.zeros((NB * S2 * S2, C2), jnp.float32)
    for ky in range(KH):
        for kx in range(KW):
            patch = x2p[:, ky:ky + S2, kx:kx + S2, :].reshape(NB * S2 * S2, C1)
            acc2 = acc2 + jnp.dot(patch.astype(w2.dtype), w2[ky, kx],
                                  preferred_element_type=jnp.float32)
    a2 = jnp.maximum(acc2 + b2_ref[...], 0.0)          # (NB*S2*S2, C2)

    # ---- Stage 5: MaxPool 2x2 / stride 2.
    p2 = jnp.max(jnp.max(a2.reshape(NB * S4, 2, S4, 2, C2), axis=3), axis=1)
    p2 = p2.reshape(NB, S4, S4, C2)

    # ---- Stage 6: Linear(C2*S4*S4 -> S*S).  fc1_w was pre-permuted to NHWC
    # row order, so Flatten becomes a sum of per-position matmuls: no runtime
    # NCHW transpose and no lane-merging reshape in the kernel.
    wf1 = wf1_ref[...]                                 # (S4, S4, C2, SS) bf16
    h1 = jnp.zeros((NB, SS), jnp.float32)
    for i in range(S4):
        for j in range(S4):
            h1 = h1 + jnp.dot(p2[:, i, j, :].astype(wf1.dtype), wf1[i, j],
                              preferred_element_type=jnp.float32)
    h1 = h1 + bf1_ref[...]

    # ---- Stage 7: Linear(S*S -> 128-padded classes) + LogSoftmax.
    # Padded class columns have zero weight and -1e30 bias -> exp() == 0, so
    # the softmax over the real classes is exact; the wrapper slices them off.
    wf2 = wf2_ref[...]                                 # (SS, CLASS_PAD) bf16
    logits = jnp.dot(h1.astype(wf2.dtype), wf2,
                     preferred_element_type=jnp.float32) + bf2_ref[...]
    m = jnp.max(logits, axis=1, keepdims=True)
    s = logits - m
    lse = jnp.log(jnp.sum(jnp.exp(s), axis=1, keepdims=True))
    o_ref[:, 0, :] = (s - lse).astype(o_ref.dtype)


# ----------------------------------------------------------------------------
# Wrapper: one pallas_call for the whole forward pass.
# ----------------------------------------------------------------------------
def model_forward(x, kp, *, num_classes=NUM_CLASSES, batch_block=1):
    N, S, _ = x.shape
    assert S % 4 == 0, "two MaxPool(2,2) stages require image_size % 4 == 0"
    assert N % batch_block == 0, "batch must be divisible by batch_block"
    NB = batch_block
    C1 = kp["conv1_w"].shape[-1]
    C2 = kp["conv2_w"].shape[-1]
    S2, S4 = S // 2, S // 4
    SS = kp["fc1_w"].shape[-1]
    CP = kp["fc2_w"].shape[-1]
    PAD = (kp["conv1_w"].shape[0] - 1) // 2

    x4 = x[..., None]                                  # NHWC with Cin = 1

    flops = 2 * N * (25 * S * S * C1
                     + 25 * S2 * S2 * C1 * C2
                     + S4 * S4 * C2 * SS
                     + SS * CP)
    bytes_accessed = int(x4.size * 4
                         + sum(int(v.size) * v.dtype.itemsize for v in kp.values())
                         + N * CP * 4)
    cost = pl.CostEstimate(flops=int(flops),
                           transcendentals=int(N * (CP + 1)),
                           bytes_accessed=bytes_accessed)

    out = pl.pallas_call(
        fused_forward_kernel,
        out_shape=jax.ShapeDtypeStruct((N, 1, CP), jnp.float32),
        grid=(N // NB,),
        in_specs=[
            pl.BlockSpec((NB, S, S, 1), lambda n: (n, 0, 0, 0)),
            pl.BlockSpec(kp["conv1_w"].shape, lambda n: (0, 0, 0, 0)),
            pl.BlockSpec(kp["conv1_b"].shape, lambda n: (0, 0)),
            pl.BlockSpec(kp["conv2_w"].shape, lambda n: (0, 0, 0, 0)),
            pl.BlockSpec(kp["conv2_b"].shape, lambda n: (0, 0)),
            pl.BlockSpec(kp["fc1_w"].shape, lambda n: (0, 0, 0, 0)),
            pl.BlockSpec(kp["fc1_b"].shape, lambda n: (0, 0)),
            pl.BlockSpec(kp["fc2_w"].shape, lambda n: (0, 0)),
            pl.BlockSpec(kp["fc2_b"].shape, lambda n: (0, 0)),
        ],
        out_specs=pl.BlockSpec((NB, 1, CP), lambda n: (n, 0, 0)),
        scratch_shapes=[
            pltpu.VMEM((NB, S + 2 * PAD, S + 2 * PAD, 1), jnp.float32),
            pltpu.VMEM((NB, S2 + 2 * PAD, S2 + 2 * PAD, C1), jnp.float32),
        ],
        compiler_params=pltpu.CompilerParams(dimension_semantics=("parallel",)),
        cost_estimate=cost,
    )(x4, kp["conv1_w"], kp["conv1_b"], kp["conv2_w"], kp["conv2_b"],
      kp["fc1_w"], kp["fc1_b"], kp["fc2_w"], kp["fc2_b"])

    return out[:, 0, :num_classes]


# ----------------------------------------------------------------------------
# One-time parameter preparation (offline weight permutation / padding / bf16).
# Canonical params: conv HWIO, fc (in, out), with fc1's `in` in NCHW flatten
# order exactly as PyTorch's Flatten produces it.
# ----------------------------------------------------------------------------
def prepare_params(p, image_size=IMAGE_SIZE, num_classes=NUM_CLASSES,
                   class_pad=CLASS_PAD):
    S4 = image_size // 4
    C2 = p["conv2_w"].shape[-1]
    SS = p["fc1_w"].shape[-1]
    # fc1: permute rows from NCHW (c, h, w) to NHWC (h, w, c) once, offline.
    wf1 = p["fc1_w"].reshape(C2, S4, S4, SS).transpose(1, 2, 0, 3)
    # fc2: pad the class dim to 128 lanes; padded columns get zero weight and
    # a -1e30 bias so they contribute exactly 0 to the softmax.
    wf2 = jnp.zeros((SS, class_pad), jnp.float32).at[:, :num_classes].set(p["fc2_w"])
    bf2 = jnp.full((1, class_pad), -1e30, jnp.float32).at[0, :num_classes].set(p["fc2_b"])
    return {
        "conv1_w": p["conv1_w"].astype(jnp.float32),        # (5,5,1,C1) VPU path
        "conv1_b": p["conv1_b"].reshape(1, -1).astype(jnp.float32),
        "conv2_w": p["conv2_w"].astype(jnp.bfloat16),        # (5,5,C1,C2)
        "conv2_b": p["conv2_b"].reshape(1, -1).astype(jnp.float32),
        "fc1_w": wf1.astype(jnp.bfloat16),                   # (S4,S4,C2,SS)
        "fc1_b": p["fc1_b"].reshape(1, -1).astype(jnp.float32),
        "fc2_w": wf2.astype(jnp.bfloat16),                   # (SS, 128)
        "fc2_b": bf2,                                        # (1, 128), pad=-1e30
    }


# ----------------------------------------------------------------------------
# Pure-JAX f32 reference (PyTorch semantics: NCHW conv, NCHW flatten).
# ----------------------------------------------------------------------------
def reference_forward(x, p):
    hp = jax.lax.Precision.HIGHEST
    xn = x[:, None, :, :]                                    # NCHW

    def conv(a, w, b):
        out = jax.lax.conv_general_dilated(
            a, w, window_strides=(1, 1), padding="SAME",
            dimension_numbers=("NCHW", "HWIO", "NCHW"), precision=hp)
        return out + b[None, :, None, None]

    h = jnp.maximum(conv(xn, p["conv1_w"], p["conv1_b"]), 0.0)
    h = jax.lax.reduce_window(h, -jnp.inf, jax.lax.max,
                              (1, 1, 2, 2), (1, 1, 2, 2), "VALID")
    h = jnp.maximum(conv(h, p["conv2_w"], p["conv2_b"]), 0.0)
    h = jax.lax.reduce_window(h, -jnp.inf, jax.lax.max,
                              (1, 1, 2, 2), (1, 1, 2, 2), "VALID")
    flat = h.reshape(h.shape[0], -1)                         # NCHW flatten
    h1 = jnp.dot(flat, p["fc1_w"], precision=hp) + p["fc1_b"]
    logits = jnp.dot(h1, p["fc2_w"], precision=hp) + p["fc2_b"]
    return jax.nn.log_softmax(logits, axis=1)


if __name__ == "__main__":
    S = IMAGE_SIZE
    key = jax.random.PRNGKey(0)
    kx, *kp = jax.random.split(key, 9)

    params = {
        "conv1_w": 0.10 * jax.random.normal(kp[0], (5, 5, 1, 20), jnp.float32),
        "conv1_b": 0.10 * jax.random.normal(kp[1], (20,), jnp.float32),
        "conv2_w": 0.05 * jax.random.normal(kp[2], (5, 5, 20, 50), jnp.float32),
        "conv2_b": 0.10 * jax.random.normal(kp[3], (50,), jnp.float32),
        "fc1_w": 0.02 * jax.random.normal(kp[4], (50 * (S // 4) ** 2, S * S), jnp.float32),
        "fc1_b": 0.10 * jax.random.normal(kp[5], (S * S,), jnp.float32),
        "fc2_w": 0.05 * jax.random.normal(kp[6], (S * S, NUM_CLASSES), jnp.float32),
        "fc2_b": 0.10 * jax.random.normal(kp[7], (NUM_CLASSES,), jnp.float32),
    }
    x = jax.random.normal(kx, (2, S, S), jnp.float32)

    kernel_params = prepare_params(params)
    fwd = jax.jit(lambda xx, pp: model_forward(xx, pp, batch_block=1))
    out = jax.block_until_ready(fwd(x, kernel_params))

    ref = reference_forward(x, params)
    assert out.shape == (2, NUM_CLASSES), out.shape
    assert bool(jnp.all(jnp.isfinite(out)))
    # Kernel uses bf16 weights (f32 accumulation); reference is f32 HIGHEST,
    # hence the slightly loosened tolerance.
    assert bool(jnp.allclose(out, ref, atol=3e-2, rtol=3e-2)), (out, ref)
    print("KERNEL_OK")
</pallas_src>

<mosaic_0001>
module attributes {stable_mosaic.version = 11 : i64} {
  func.func @fused_forward_kernel(%arg0: i32, %arg1: memref<1x16x16x1xf32, #tpu.memory_space<vmem>>, %arg2: memref<5x5x1x20xf32, #tpu.memory_space<vmem>>, %arg3: memref<1x20xf32, #tpu.memory_space<vmem>>, %arg4: memref<5x5x20x50xbf16, #tpu.memory_space<vmem>>, %arg5: memref<1x50xf32, #tpu.memory_space<vmem>>, %arg6: memref<4x4x50x256xbf16, #tpu.memory_space<vmem>>, %arg7: memref<1x256xf32, #tpu.memory_space<vmem>>, %arg8: memref<256x128xbf16, #tpu.memory_space<vmem>>, %arg9: memref<1x128xf32, #tpu.memory_space<vmem>>, %arg10: memref<1x1x128xf32, #tpu.memory_space<vmem>>, %arg11: memref<1x20x20x1xf32, #tpu.memory_space<vmem>>, %arg12: memref<1x12x12x20xf32, #tpu.memory_space<vmem>>) attributes {dimension_semantics = [#tpu.dimension_semantics<parallel>], iteration_bounds = array<i64: 2>, scalar_prefetch = 0 : i64, scratch_operands = 2 : i64, tpu.core_type = #tpu.core_type<tc>, window_params = [{transform_indices = @transform_0, window_bounds = array<i64: 1, 16, 16, 1>}, {pipeline_mode = #tpu.pipeline_mode<synchronous>, transform_indices = @transform_1, window_bounds = array<i64: 5, 5, 1, 20>}, {pipeline_mode = #tpu.pipeline_mode<synchronous>, transform_indices = @transform_2, window_bounds = array<i64: 1, 20>}, {pipeline_mode = #tpu.pipeline_mode<synchronous>, transform_indices = @transform_3, window_bounds = array<i64: 5, 5, 20, 50>}, {pipeline_mode = #tpu.pipeline_mode<synchronous>, transform_indices = @transform_4, window_bounds = array<i64: 1, 50>}, {pipeline_mode = #tpu.pipeline_mode<synchronous>, transform_indices = @transform_5, window_bounds = array<i64: 4, 4, 50, 256>}, {pipeline_mode = #tpu.pipeline_mode<synchronous>, transform_indices = @transform_6, window_bounds = array<i64: 1, 256>}, {pipeline_mode = #tpu.pipeline_mode<synchronous>, transform_indices = @transform_7, window_bounds = array<i64: 256, 128>}, {pipeline_mode = #tpu.pipeline_mode<synchronous>, transform_indices = @transform_8, window_bounds = array<i64: 1, 128>}, {transform_indices = @transform_9, window_bounds = array<i64: 1, 1, 128>}]} {
    %cst = arith.constant 0.000000e+00 : f32
    %0 = vector.broadcast %cst : f32 to vector<1x20x20x1xf32>
    %c0 = arith.constant 0 : index
    %c0_0 = arith.constant 0 : index
    %c0_1 = arith.constant 0 : index
    %c0_2 = arith.constant 0 : index
    %1 = vector.load %arg11[%c0, %c0_0, %c0_1, %c0_2] : memref<1x20x20x1xf32, #tpu.memory_space<vmem>>, vector<1x20x20x1xf32>
    tpu.vector_store %arg11[%c0, %c0_0, %c0_1, %c0_2], %0 {strides = array<i32>} : memref<1x20x20x1xf32, #tpu.memory_space<vmem>>, vector<1x20x20x1xf32>,
    %c0_3 = arith.constant 0 : index
    %c0_4 = arith.constant 0 : index
    %c0_5 = arith.constant 0 : index
    %c0_6 = arith.constant 0 : index
    %2 = vector.load %arg1[%c0_3, %c0_4, %c0_5, %c0_6] : memref<1x16x16x1xf32, #tpu.memory_space<vmem>>, vector<1x16x16x1xf32>
    %c0_7 = arith.constant 0 : index
    %c2 = arith.constant 2 : index
    %c2_8 = arith.constant 2 : index
    %c0_9 = arith.constant 0 : index
    %3 = vector.load %arg11[%c0_7, %c2, %c2_8, %c0_9] : memref<1x20x20x1xf32, #tpu.memory_space<vmem>>, vector<1x16x16x1xf32>
    tpu.vector_store %arg11[%c0_7, %c2, %c2_8, %c0_9], %2 {strides = array<i32>} : memref<1x20x20x1xf32, #tpu.memory_space<vmem>>, vector<1x16x16x1xf32>,
    %c0_10 = arith.constant 0 : index
    %c0_11 = arith.constant 0 : index
    %c0_12 = arith.constant 0 : index
    %c0_13 = arith.constant 0 : index
    %4 = vector.load %arg11[%c0_10, %c0_11, %c0_12, %c0_13] : memref<1x20x20x1xf32, #tpu.memory_space<vmem>>, vector<1x20x20x1xf32>
    %c0_14 = arith.constant 0 : index
    %c0_15 = arith.constant 0 : index
    %c0_16 = arith.constant 0 : index
    %c0_17 = arith.constant 0 : index
    %5 = vector.load %arg2[%c0_14, %c0_15, %c0_16, %c0_17] : memref<5x5x1x20xf32, #tpu.memory_space<vmem>>, vector<5x5x1x20xf32>
    %cst_18 = arith.constant 0.000000e+00 : f32
    %6 = vector.broadcast %cst_18 : f32 to vector<256x20xf32>
    %7 = vector.extract_strided_slice %4 {offsets = [0, 0, 0, 0], sizes = [1, 16, 16, 1], strides = [1, 1, 1, 1]} : vector<1x20x20x1xf32> to vector<1x16x16x1xf32>
    %8 = vector.shape_cast %7 : vector<1x16x16x1xf32> to vector<256x1xf32>
    %9 = vector.extract_strided_slice %5 {offsets = [0, 0, 0, 0], sizes = [1, 1, 1, 20], strides = [1, 1, 1, 1]} : vector<5x5x1x20xf32> to vector<1x1x1x20xf32>
    %10 = vector.shape_cast %9 : vector<1x1x1x20xf32> to vector<1x20xf32>
    %11 = vector.broadcast %8 : vector<256x1xf32> to vector<256x20xf32>
    %12 = vector.broadcast %10 : vector<1x20xf32> to vector<256x20xf32>
    %13 = arith.mulf %11, %12 : vector<256x20xf32>
    %14 = arith.addf %6, %13 : vector<256x20xf32>
    %15 = vector.extract_strided_slice %4 {offsets = [0, 0, 1, 0], sizes = [1, 16, 16, 1], strides = [1, 1, 1, 1]} : vector<1x20x20x1xf32> to vector<1x16x16x1xf32>
    %16 = vector.shape_cast %15 : vector<1x16x16x1xf32> to vector<256x1xf32>
    %17 = vector.extract_strided_slice %5 {offsets = [0, 1, 0, 0], sizes = [1, 1, 1, 20], strides = [1, 1, 1, 1]} : vector<5x5x1x20xf32> to vector<1x1x1x20xf32>
    %18 = vector.shape_cast %17 : vector<1x1x1x20xf32> to vector<1x20xf32>
    %19 = vector.broadcast %16 : vector<256x1xf32> to vector<256x20xf32>
    %20 = vector.broadcast %18 : vector<1x20xf32> to vector<256x20xf32>
    %21 = arith.mulf %19, %20 : vector<256x20xf32>
    %22 = arith.addf %14, %21 : vector<256x20xf32>
    %23 = vector.extract_strided_slice %4 {offsets = [0, 0, 2, 0], sizes = [1, 16, 16, 1], strides = [1, 1, 1, 1]} : vector<1x20x20x1xf32> to vector<1x16x16x1xf32>
    %24 = vector.shape_cast %23 : vector<1x16x16x1xf32> to vector<256x1xf32>
    %25 = vector.extract_strided_slice %5 {offsets = [0, 2, 0, 0], sizes = [1, 1, 1, 20], strides = [1, 1, 1, 1]} : vector<5x5x1x20xf32> to vector<1x1x1x20xf32>
    %26 = vector.shape_cast %25 : vector<1x1x1x20xf32> to vector<1x20xf32>
    %27 = vector.broadcast %24 : vector<256x1xf32> to vector<256x20xf32>
    %28 = vector.broadcast %26 : vector<1x20xf32> to vector<256x20xf32>
    %29 = arith.mulf %27, %28 : vector<256x20xf32>
    %30 = arith.addf %22, %29 : vector<256x20xf32>
    %31 = vector.extract_strided_slice %4 {offsets = [0, 0, 3, 0], sizes = [1, 16, 16, 1], strides = [1, 1, 1, 1]} : vector<1x20x20x1xf32> to vector<1x16x16x1xf32>
    %32 = vector.shape_cast %31 : vector<1x16x16x1xf32> to vector<256x1xf32>
    %33 = vector.extract_strided_slice %5 {offsets = [0, 3, 0, 0], sizes = [1, 1, 1, 20], strides = [1, 1, 1, 1]} : vector<5x5x1x20xf32> to vector<1x1x1x20xf32>
    %34 = vector.shape_cast %33 : vector<1x1x1x20xf32> to vector<1x20xf32>
    %35 = vector.broadcast %32 : vector<256x1xf32> to vector<256x20xf32>
    %36 = vector.broadcast %34 : vector<1x20xf32> to vector<256x20xf32>
    %37 = arith.mulf %35, %36 : vector<256x20xf32>
    %38 = arith.addf %30, %37 : vector<256x20xf32>
    %39 = vector.extract_strided_slice %4 {offsets = [0, 0, 4, 0], sizes = [1, 16, 16, 1], strides = [1, 1, 1, 1]} : vector<1x20x20x1xf32> to vector<1x16x16x1xf32>
    %40 = vector.shape_cast %39 : vector<1x16x16x1xf32> to vector<256x1xf32>
    %41 = vector.extract_strided_slice %5 {offsets = [0, 4, 0, 0], sizes = [1, 1, 1, 20], strides = [1, 1, 1, 1]} : vector<5x5x1x20xf32> to vector<1x1x1x20xf32>
    %42 = vector.shape_cast %41 : vector<1x1x1x20xf32> to vector<1x20xf32>
    %43 = vector.broadcast %40 : vector<256x1xf32> to vector<256x20xf32>
    %44 = vector.broadcast %42 : vector<1x20xf32> to vector<256x20xf32>
    %45 = arith.mulf %43, %44 : vector<256x20xf32>
    %46 = arith.addf %38, %45 : vector<256x20xf32>
    %47 = vector.extract_strided_slice %4 {offsets = [0, 1, 0, 0], sizes = [1, 16, 16, 1], strides = [1, 1, 1, 1]} : vector<1x20x20x1xf32> to vector<1x16x16x1xf32>
    %48 = vector.shape_cast %47 : vector<1x16x16x1xf32> to vector<256x1xf32>
    %49 = vector.extract_strided_slice %5 {offsets = [1, 0, 0, 0], sizes = [1, 1, 1, 20], strides = [1, 1, 1, 1]} : vector<5x5x1x20xf32> to vector<1x1x1x20xf32>
    %50 = vector.shape_cast %49 : vector<1x1x1x20xf32> to vector<1x20xf32>
    %51 = vector.broadcast %48 : vector<256x1xf32> to vector<256x20xf32>
    %52 = vector.broadcast %50 : vector<1x20xf32> to vector<256x20xf32>
    %53 = arith.mulf %51, %52 : vector<256x20xf32>
    %54 = arith.addf %46, %53 : vector<256x20xf32>
    %55 = vector.extract_strided_slice %4 {offsets = [0, 1, 1, 0], sizes = [1, 16, 16, 1], strides = [1, 1, 1, 1]} : vector<1x20x20x1xf32> to vector<1x16x16x1xf32>
    %56 = vector.shape_cast %55 : vector<1x16x16x1xf32> to vector<256x1xf32>
    %57 = vector.extract_strided_slice %5 {offsets = [1, 1, 0, 0], sizes = [1, 1, 1, 20], strides = [1, 1, 1, 1]} : vector<5x5x1x20xf32> to vector<1x1x1x20xf32>
    %58 = vector.shape_cast %57 : vector<1x1x1x20xf32> to vector<1x20xf32>
    %59 = vector.broadcast %56 : vector<256x1xf32> to vector<256x20xf32>
    %60 = vector.broadcast %58 : vector<1x20xf32> to vector<256x20xf32>
    %61 = arith.mulf %59, %60 : vector<256x20xf32>
    %62 = arith.addf %54, %61 : vector<256x20xf32>
    %63 = vector.extract_strided_slice %4 {offsets = [0, 1, 2, 0], sizes = [1, 16, 16, 1], strides = [1, 1, 1, 1]} : vector<1x20x20x1xf32> to vector<1x16x16x1xf32>
    %64 = vector.shape_cast %63 : vector<1x16x16x1xf32> to vector<256x1xf32>
    %65 = vector.extract_strided_slice %5 {offsets = [1, 2, 0, 0], sizes = [1, 1, 1, 20], strides = [1, 1, 1, 1]} : vector<5x5x1x20xf32> to vector<1x1x1x20xf32>
    %66 = vector.shape_cast %65 : vector<1x1x1x20xf32> to vector<1x20xf32>
    %67 = vector.broadcast %64 : vector<256x1xf32> to vector<256x20xf32>
    %68 = vector.broadcast %66 : vector<1x20xf32> to vector<256x20xf32>
    %69 = arith.mulf %67, %68 : vector<256x20xf32>
    %70 = arith.addf %62, %69 : vector<256x20xf32>
    %71 = vector.extract_strided_slice %4 {offsets = [0, 1, 3, 0], sizes = [1, 16, 16, 1], strides = [1, 1, 1, 1]} : vector<1x20x20x1xf32> to vector<1x16x16x1xf32>
    %72 = vector.shape_cast %71 : vector<1x16x16x1xf32> to vector<256x1xf32>
    %73 = vector.extract_strided_slice %5 {offsets = [1, 3, 0, 0], sizes = [1, 1, 1, 20], strides = [1, 1, 1, 1]} : vector<5x5x1x20xf32> to vector<1x1x1x20xf32>
    %74 = vector.shape_cast %73 : vector<1x1x1x20xf32> to vector<1x20xf32>
    %75 = vector.broadcast %72 : vector<256x1xf32> to vector<256x20xf32>
    %76 = vector.broadcast %74 : vector<1x20xf32> to vector<256x20xf32>
    %77 = arith.mulf %75, %76 : vector<256x20xf32>
    %78 = arith.addf %70, %77 : vector<256x20xf32>
    %79 = vector.extract_strided_slice %4 {offsets = [0, 1, 4, 0], sizes = [1, 16, 16, 1], strides = [1, 1, 1, 1]} : vector<1x20x20x1xf32> to vector<1x16x16x1xf32>
    %80 = vector.shape_cast %79 : vector<1x16x16x1xf32> to vector<256x1xf32>
    %81 = vector.extract_strided_slice %5 {offsets = [1, 4, 0, 0], sizes = [1, 1, 1, 20], strides = [1, 1, 1, 1]} : vector<5x5x1x20xf32> to vector<1x1x1x20xf32>
    %82 = vector.shape_cast %81 : vector<1x1x1x20xf32> to vector<1x20xf32>
    %83 = vector.broadcast %80 : vector<256x1xf32> to vector<256x20xf32>
    %84 = vector.broadcast %82 : vector<1x20xf32> to vector<256x20xf32>
    %85 = arith.mulf %83, %84 : vector<256x20xf32>
    %86 = arith.addf %78, %85 : vector<256x20xf32>
    %87 = vector.extract_strided_slice %4 {offsets = [0, 2, 0, 0], sizes = [1, 16, 16, 1], strides = [1, 1, 1, 1]} : vector<1x20x20x1xf32> to vector<1x16x16x1xf32>
    %88 = vector.shape_cast %87 : vector<1x16x16x1xf32> to vector<256x1xf32>
    %89 = vector.extract_strided_slice %5 {offsets = [2, 0, 0, 0], sizes = [1, 1, 1, 20], strides = [1, 1, 1, 1]} : vector<5x5x1x20xf32> to vector<1x1x1x20xf32>
    %90 = vector.shape_cast %89 : vector<1x1x1x20xf32> to vector<1x20xf32>
    %91 = vector.broadcast %88 : vector<256x1xf32> to vector<256x20xf32>
    %92 = vector.broadcast %90 : vector<1x20xf32> to vector<256x20xf32>
    %93 = arith.mulf %91, %92 : vector<256x20xf32>
    %94 = arith.addf %86, %93 : vector<256x20xf32>
    %95 = vector.extract_strided_slice %4 {offsets = [0, 2, 1, 0], sizes = [1, 16, 16, 1], strides = [1, 1, 1, 1]} : vector<1x20x20x1xf32> to vector<1x16x16x1xf32>
    %96 = vector.shape_cast %95 : vector<1x16x16x1xf32> to vector<256x1xf32>
    %97 = vector.extract_strided_slice %5 {offsets = [2, 1, 0, 0], sizes = [1, 1, 1, 20], strides = [1, 1, 1, 1]} : vector<5x5x1x20xf32> to vector<1x1x1x20xf32>
    %98 = vector.shape_cast %97 : vector<1x1x1x20xf32> to vector<1x20xf32>
    %99 = vector.broadcast %96 : vector<256x1xf32> to vector<256x20xf32>
    %100 = vector.broadcast %98 : vector<1x20xf32> to vector<256x20xf32>
    %101 = arith.mulf %99, %100 : vector<256x20xf32>
    %102 = arith.addf %94, %101 : vector<256x20xf32>
    %103 = vector.extract_strided_slice %4 {offsets = [0, 2, 2, 0], sizes = [1, 16, 16, 1], strides = [1, 1, 1, 1]} : vector<1x20x20x1xf32> to vector<1x16x16x1xf32>
    %104 = vector.shape_cast %103 : vector<1x16x16x1xf32> to vector<256x1xf32>
    %105 = vector.extract_strided_slice %5 {offsets = [2, 2, 0, 0], sizes = [1, 1, 1, 20], strides = [1, 1, 1, 1]} : vector<5x5x1x20xf32> to vector<1x1x1x20xf32>
    %106 = vector.shape_cast %105 : vector<1x1x1x20xf32> to vector<1x20xf32>
    %107 = vector.broadcast %104 : vector<256x1xf32> to vector<256x20xf32>
    %108 = vector.broadcast %106 : vector<1x20xf32> to vector<256x20xf32>
    %109 = arith.mulf %107, %108 : vector<256x20xf32>
    %110 = arith.addf %102, %109 : vector<256x20xf32>
    %111 = vector.extract_strided_slice %4 {offsets = [0, 2, 3, 0], sizes = [1, 16, 16, 1], strides = [1, 1, 1, 1]} : vector<1x20x20x1xf32> to vector<1x16x16x1xf32>
    %112 = vector.shape_cast %111 : vector<1x16x16x1xf32> to vector<256x1xf32>
    %113 = vector.extract_strided_slice %5 {offsets = [2, 3, 0, 0], sizes = [1, 1, 1, 20], strides = [1, 1, 1, 1]} : vector<5x5x1x20xf32> to vector<1x1x1x20xf32>
    %114 = vector.shape_cast %113 : vector<1x1x1x20xf32> to vector<1x20xf32>
    %115 = vector.broadcast %112 : vector<256x1xf32> to vector<256x20xf32>
    %116 = vector.broadcast %114 : vector<1x20xf32> to vector<256x20xf32>
    %117 = arith.mulf %115, %116 : vector<256x20xf32>
    %118 = arith.addf %110, %117 : vector<256x20xf32>
    %119 = vector.extract_strided_slice %4 {offsets = [0, 2, 4, 0], sizes = [1, 16, 16, 1], strides = [1, 1, 1, 1]} : vector<1x20x20x1xf32> to vector<1x16x16x1xf32>
    %120 = vector.shape_cast %119 : vector<1x16x16x1xf32> to vector<256x1xf32>
    %121 = vector.extract_strided_slice %5 {offsets = [2, 4, 0, 0], sizes = [1, 1, 1, 20], strides = [1, 1, 1, 1]} : vector<5x5x1x20xf32> to vector<1x1x1x20xf32>
    %122 = vector.shape_cast %121 : vector<1x1x1x20xf32> to vector<1x20xf32>
    %123 = vector.broadcast %120 : vector<256x1xf32> to vector<256x20xf32>
    %124 = vector.broadcast %122 : vector<1x20xf32> to vector<256x20xf32>
    %125 = arith.mulf %123, %124 : vector<256x20xf32>
    %126 = arith.addf %118, %125 : vector<256x20xf32>
    %127 = vector.extract_strided_slice %4 {offsets = [0, 3, 0, 0], sizes = [1, 16, 16, 1], strides = [1, 1, 1, 1]} : vector<1x20x20x1xf32> to vector<1x16x16x1xf32>
    %128 = vector.shape_cast %127 : vector<1x16x16x1xf32> to vector<256x1xf32>
    %129 = vector.extract_strided_slice %5 {offsets = [3, 0, 0, 0], sizes = [1, 1, 1, 20], strides = [1, 1, 1, 1]} : vector<5x5x1x20xf32> to vector<1x1x1x20xf32>
    %130 = vector.shape_cast %129 : vector<1x1x1x20xf32> to vector<1x20xf32>
    %131 = vector.broadcast %128 : vector<256x1xf32> to vector<256x20xf32>
    %132 = vector.broadcast %130 : vector<1x20xf32> to vector<256x20xf32>
    %133 = arith.mulf %131, %132 : vector<256x20xf32>
    %134 = arith.addf %126, %133 : vector<256x20xf32>
    %135 = vector.extract_strided_slice %4 {offsets = [0, 3, 1, 0], sizes = [1, 16, 16, 1], strides = [1, 1, 1, 1]} : vector<1x20x20x1xf32> to vector<1x16x16x1xf32>
    %136 = vector.shape_cast %135 : vector<1x16x16x1xf32> to vector<256x1xf32>
    %137 = vector.extract_strided_slice %5 {offsets = [3, 1, 0, 0], sizes = [1, 1, 1, 20], strides = [1, 1, 1, 1]} : vector<5x5x1x20xf32> to vector<1x1x1x20xf32>
    %138 = vector.shape_cast %137 : vector<1x1x1x20xf32> to vector<1x20xf32>
    %139 = vector.broadcast %136 : vector<256x1xf32> to vector<256x20xf32>
    %140 = vector.broadcast %138 : vector<1x20xf32> to vector<256x20xf32>
    %141 = arith.mulf %139, %140 : vector<256x20xf32>
    %142 = arith.addf %134, %141 : vector<256x20xf32>
    %143 = vector.extract_strided_slice %4 {offsets = [0, 3, 2, 0], sizes = [1, 16, 16, 1], strides = [1, 1, 1, 1]} : vector<1x20x20x1xf32> to vector<1x16x16x1xf32>
    %144 = vector.shape_cast %143 : vector<1x16x16x1xf32> to vector<256x1xf32>
    %145 = vector.extract_strided_slice %5 {offsets = [3, 2, 0, 0], sizes = [1, 1, 1, 20], strides = [1, 1, 1, 1]} : vector<5x5x1x20xf32> to vector<1x1x1x20xf32>
    %146 = vector.shape_cast %145 : vector<1x1x1x20xf32> to vector<1x20xf32>
    %147 = vector.broadcast %144 : vector<256x1xf32> to vector<256x20xf32>
    %148 = vector.broadcast %146 : vector<1x20xf32> to vector<256x20xf32>
    %149 = arith.mulf %147, %148 : vector<256x20xf32>
    %150 = arith.addf %142, %149 : vector<256x20xf32>
    %151 = vector.extract_strided_slice %4 {offsets = [0, 3, 3, 0], sizes = [1, 16, 16, 1], strides = [1, 1, 1, 1]} : vector<1x20x20x1xf32> to vector<1x16x16x1xf32>
    %152 = vector.shape_cast %151 : vector<1x16x16x1xf32> to vector<256x1xf32>
    %153 = vector.extract_strided_slice %5 {offsets = [3, 3, 0, 0], sizes = [1, 1, 1, 20], strides = [1, 1, 1, 1]} : vector<5x5x1x20xf32> to vector<1x1x1x20xf32>
    %154 = vector.shape_cast %153 : vector<1x1x1x20xf32> to vector<1x20xf32>
    %155 = vector.broadcast %152 : vector<256x1xf32> to vector<256x20xf32>
    %156 = vector.broadcast %154 : vector<1x20xf32> to vector<256x20xf32>
    %157 = arith.mulf %155, %156 : vector<256x20xf32>
    %158 = arith.addf %150, %157 : vector<256x20xf32>
    %159 = vector.extract_strided_slice %4 {offsets = [0, 3, 4, 0], sizes = [1, 16, 16, 1], strides = [1, 1, 1, 1]} : vector<1x20x20x1xf32> to vector<1x16x16x1xf32>
    %160 = vector.shape_cast %159 : vector<1x16x16x1xf32> to vector<256x1xf32>
    %161 = vector.extract_strided_slice %5 {offsets = [3, 4, 0, 0], sizes = [1, 1, 1, 20], strides = [1, 1, 1, 1]} : vector<5x5x1x20xf32> to vector<1x1x1x20xf32>
    %162 = vector.shape_cast %161 : vector<1x1x1x20xf32> to vector<1x20xf32>
    %163 = vector.broadcast %160 : vector<256x1xf32> to vector<256x20xf32>
    %164 = vector.broadcast %162 : vector<1x20xf32> to vector<256x20xf32>
    %165 = arith.mulf %163, %164 : vector<256x20xf32>
    %166 = arith.addf %158, %165 : vector<256x20xf32>
    %167 = vector.extract_strided_slice %4 {offsets = [0, 4, 0, 0], sizes = [1, 16, 16, 1], strides = [1, 1, 1, 1]} : vector<1x20x20x1xf32> to vector<1x16x16x1xf32>
    %168 = vector.shape_cast %167 : vector<1x16x16x1xf32> to vector<256x1xf32>
    %169 = vector.extract_strided_slice %5 {offsets = [4, 0, 0, 0], sizes = [1, 1, 1, 20], strides = [1, 1, 1, 1]} : vector<5x5x1x20xf32> to vector<1x1x1x20xf32>
    %170 = vector.shape_cast %169 : vector<1x1x1x20xf32> to vector<1x20xf32>
    %171 = vector.broadcast %168 : vector<256x1xf32> to vector<256x20xf32>
    %172 = vector.broadcast %170 : vector<1x20xf32> to vector<256x20xf32>
    %173 = arith.mulf %171, %172 : vector<256x20xf32>
    %174 = arith.addf %166, %173 : vector<256x20xf32>
    %175 = vector.extract_strided_slice %4 {offsets = [0, 4, 1, 0], sizes = [1, 16, 16, 1], strides = [1, 1, 1, 1]} : vector<1x20x20x1xf32> to vector<1x16x16x1xf32>
    %176 = vector.shape_cast %175 : vector<1x16x16x1xf32> to vector<256x1xf32>
    %177 = vector.extract_strided_slice %5 {offsets = [4, 1, 0, 0], sizes = [1, 1, 1, 20], strides = [1, 1, 1, 1]} : vector<5x5x1x20xf32> to vector<1x1x1x20xf32>
    %178 = vector.shape_cast %177 : vector<1x1x1x20xf32> to vector<1x20xf32>
    %179 = vector.broadcast %176 : vector<256x1xf32> to vector<256x20xf32>
    %180 = vector.broadcast %178 : vector<1x20xf32> to vector<256x20xf32>
    %181 = arith.mulf %179, %180 : vector<256x20xf32>
    %182 = arith.addf %174, %181 : vector<256x20xf32>
    %183 = vector.extract_strided_slice %4 {offsets = [0, 4, 2, 0], sizes = [1, 16, 16, 1], strides = [1, 1, 1, 1]} : vector<1x20x20x1xf32> to vector<1x16x16x1xf32>
    %184 = vector.shape_cast %183 : vector<1x16x16x1xf32> to vector<256x1xf32>
    %185 = vector.extract_strided_slice %5 {offsets = [4, 2, 0, 0], sizes = [1, 1, 1, 20], strides = [1, 1, 1, 1]} : vector<5x5x1x20xf32> to vector<1x1x1x20xf32>
    %186 = vector.shape_cast %185 : vector<1x1x1x20xf32> to vector<1x20xf32>
    %187 = vector.broadcast %184 : vector<256x1xf32> to vector<256x20xf32>
    %188 = vector.broadcast %186 : vector<1x20xf32> to vector<256x20xf32>
    %189 = arith.mulf %187, %188 : vector<256x20xf32>
    %190 = arith.addf %182, %189 : vector<256x20xf32>
    %191 = vector.extract_strided_slice %4 {offsets = [0, 4, 3, 0], sizes = [1, 16, 16, 1], strides = [1, 1, 1, 1]} : vector<1x20x20x1xf32> to vector<1x16x16x1xf32>
    %192 = vector.shape_cast %191 : vector<1x16x16x1xf32> to vector<256x1xf32>
    %193 = vector.extract_strided_slice %5 {offsets = [4, 3, 0, 0], sizes = [1, 1, 1, 20], strides = [1, 1, 1, 1]} : vector<5x5x1x20xf32> to vector<1x1x1x20xf32>
    %194 = vector.shape_cast %193 : vector<1x1x1x20xf32> to vector<1x20xf32>
    %195 = vector.broadcast %192 : vector<256x1xf32> to vector<256x20xf32>
    %196 = vector.broadcast %194 : vector<1x20xf32> to vector<256x20xf32>
    %197 = arith.mulf %195, %196 : vector<256x20xf32>
    %198 = arith.addf %190, %197 : vector<256x20xf32>
    %199 = vector.extract_strided_slice %4 {offsets = [0, 4, 4, 0], sizes = [1, 16, 16, 1], strides = [1, 1, 1, 1]} : vector<1x20x20x1xf32> to vector<1x16x16x1xf32>
    %200 = vector.shape_cast %199 : vector<1x16x16x1xf32> to vector<256x1xf32>
    %201 = vector.extract_strided_slice %5 {offsets = [4, 4, 0, 0], sizes = [1, 1, 1, 20], strides = [1, 1, 1, 1]} : vector<5x5x1x20xf32> to vector<1x1x1x20xf32>
    %202 = vector.shape_cast %201 : vector<1x1x1x20xf32> to vector<1x20xf32>
    %203 = vector.broadcast %200 : vector<256x1xf32> to vector<256x20xf32>
    %204 = vector.broadcast %202 : vector<1x20xf32> to vector<256x20xf32>
    %205 = arith.mulf %203, %204 : vector<256x20xf32>
    %206 = arith.addf %198, %205 : vector<256x20xf32>
    %c0_19 = arith.constant 0 : index
    %c0_20 = arith.constant 0 : index
    %207 = vector.load %arg3[%c0_19, %c0_20] : memref<1x20xf32, #tpu.memory_space<vmem>>, vector<1x20xf32>
    %208 = vector.broadcast %207 : vector<1x20xf32> to vector<256x20xf32>
    %209 = arith.addf %206, %208 : vector<256x20xf32>
    %cst_21 = arith.constant 0.000000e+00 : f32
    %210 = vector.broadcast %cst_21 : f32 to vector<256x20xf32>
    %211 = arith.maximumf %209, %210 : vector<256x20xf32>
    %212 = vector.shape_cast %211 : vector<256x20xf32> to vector<8x2x8x2x20xf32>
    %cst_22 = arith.constant dense<0xFF800000> : vector<8x2x8x20xf32>
    %213 = vector.multi_reduction <maximumf>, %212, %cst_22 [3] : vector<8x2x8x2x20xf32> to vector<8x2x8x20xf32>
    %cst_23 = arith.constant dense<0xFF800000> : vector<8x8x20xf32>
    %214 = vector.multi_reduction <maximumf>, %213, %cst_23 [1] : vector<8x2x8x20xf32> to vector<8x8x20xf32>
    %cst_24 = arith.constant 0.000000e+00 : f32
    %215 = vector.broadcast %cst_24 : f32 to vector<1x12x12x20xf32>
    %c0_25 = arith.constant 0 : index
    %c0_26 = arith.constant 0 : index
    %c0_27 = arith.constant 0 : index
    %c0_28 = arith.constant 0 : index
    %216 = vector.load %arg12[%c0_25, %c0_26, %c0_27, %c0_28] : memref<1x12x12x20xf32, #tpu.memory_space<vmem>>, vector<1x12x12x20xf32>
    tpu.vector_store %arg12[%c0_25, %c0_26, %c0_27, %c0_28], %215 {strides = array<i32>} : memref<1x12x12x20xf32, #tpu.memory_space<vmem>>, vector<1x12x12x20xf32>,
    %217 = vector.shape_cast %214 : vector<8x8x20xf32> to vector<1x8x8x20xf32>
    %c0_29 = arith.constant 0 : index
    %c2_30 = arith.constant 2 : index
    %c2_31 = arith.constant 2 : index
    %c0_32 = arith.constant 0 : index
    %218 = vector.load %arg12[%c0_29, %c2_30, %c2_31, %c0_32] : memref<1x12x12x20xf32, #tpu.memory_space<vmem>>, vector<1x8x8x20xf32>
    tpu.vector_store %arg12[%c0_29, %c2_30, %c2_31, %c0_32], %217 {strides = array<i32>} : memref<1x12x12x20xf32, #tpu.memory_space<vmem>>, vector<1x8x8x20xf32>,
    %c0_33 = arith.constant 0 : index
    %c0_34 = arith.constant 0 : index
    %c0_35 = arith.constant 0 : index
    %c0_36 = arith.constant 0 : index
    %219 = vector.load %arg12[%c0_33, %c0_34, %c0_35, %c0_36] : memref<1x12x12x20xf32, #tpu.memory_space<vmem>>, vector<1x12x12x20xf32>
    %c0_37 = arith.constant 0 : index
    %c0_38 = arith.constant 0 : index
    %c0_39 = arith.constant 0 : index
    %c0_40 = arith.constant 0 : index
    %220 = vector.load %arg4[%c0_37, %c0_38, %c0_39, %c0_40] : memref<5x5x20x50xbf16, #tpu.memory_space<vmem>>, vector<5x5x20x50xbf16>
    %cst_41 = arith.constant 0.000000e+00 : f32
    %221 = vector.broadcast %cst_41 : f32 to vector<64x50xf32>
    %222 = vector.extract_strided_slice %219 {offsets = [0, 0, 0, 0], sizes = [1, 8, 8, 20], strides = [1, 1, 1, 1]} : vector<1x12x12x20xf32> to vector<1x8x8x20xf32>
    %223 = vector.shape_cast %222 : vector<1x8x8x20xf32> to vector<64x20xf32>
    %224 = arith.truncf %223 : vector<64x20xf32> to vector<64x20xbf16>
    %225 = vector.extract_strided_slice %220 {offsets = [0, 0, 0, 0], sizes = [1, 1, 20, 50], strides = [1, 1, 1, 1]} : vector<5x5x20x50xbf16> to vector<1x1x20x50xbf16>
    %226 = vector.shape_cast %225 : vector<1x1x20x50xbf16> to vector<20x50xbf16>
    %cst_42 = arith.constant dense<0.000000e+00> : vector<64x50xf32>
    %227 = tpu.matmul %224, %226, %cst_42 {dimension_numbers = #tpu.dot_dimension_numbers<[1], [0], [0], [1], [0, 0, 1, 1], [], []>} : vector<64x20xbf16>, vector<20x50xbf16>, vector<64x50xf32> -> vector<64x50xf32>
    %228 = arith.addf %221, %227 : vector<64x50xf32>
    %229 = vector.extract_strided_slice %219 {offsets = [0, 0, 1, 0], sizes = [1, 8, 8, 20], strides = [1, 1, 1, 1]} : vector<1x12x12x20xf32> to vector<1x8x8x20xf32>
    %230 = vector.shape_cast %229 : vector<1x8x8x20xf32> to vector<64x20xf32>
    %231 = arith.truncf %230 : vector<64x20xf32> to vector<64x20xbf16>
    %232 = vector.extract_strided_slice %220 {offsets = [0, 1, 0, 0], sizes = [1, 1, 20, 50], strides = [1, 1, 1, 1]} : vector<5x5x20x50xbf16> to vector<1x1x20x50xbf16>
    %233 = vector.shape_cast %232 : vector<1x1x20x50xbf16> to vector<20x50xbf16>
    %cst_43 = arith.constant dense<0.000000e+00> : vector<64x50xf32>
    %234 = tpu.matmul %231, %233, %cst_43 {dimension_numbers = #tpu.dot_dimension_numbers<[1], [0], [0], [1], [0, 0, 1, 1], [], []>} : vector<64x20xbf16>, vector<20x50xbf16>, vector<64x50xf32> -> vector<64x50xf32>
    %235 = arith.addf %228, %234 : vector<64x50xf32>
    %236 = vector.extract_strided_slice %219 {offsets = [0, 0, 2, 0], sizes = [1, 8, 8, 20], strides = [1, 1, 1, 1]} : vector<1x12x12x20xf32> to vector<1x8x8x20xf32>
    %237 = vector.shape_cast %236 : vector<1x8x8x20xf32> to vector<64x20xf32>
    %238 = arith.truncf %237 : vector<64x20xf32> to vector<64x20xbf16>
    %239 = vector.extract_strided_slice %220 {offsets = [0, 2, 0, 0], sizes = [1, 1, 20, 50], strides = [1, 1, 1, 1]} : vector<5x5x20x50xbf16> to vector<1x1x20x50xbf16>
    %240 = vector.shape_cast %239 : vector<1x1x20x50xbf16> to vector<20x50xbf16>
    %cst_44 = arith.constant dense<0.000000e+00> : vector<64x50xf32>
    %241 = tpu.matmul %238, %240, %cst_44 {dimension_numbers = #tpu.dot_dimension_numbers<[1], [0], [0], [1], [0, 0, 1, 1], [], []>} : vector<64x20xbf16>, vector<20x50xbf16>, vector<64x50xf32> -> vector<64x50xf32>
    %242 = arith.addf %235, %241 : vector<64x50xf32>
    %243 = vector.extract_strided_slice %219 {offsets = [0, 0, 3, 0], sizes = [1, 8, 8, 20], strides = [1, 1, 1, 1]} : vector<1x12x12x20xf32> to vector<1x8x8x20xf32>
    %244 = vector.shape_cast %243 : vector<1x8x8x20xf32> to vector<64x20xf32>
    %245 = arith.truncf %244 : vector<64x20xf32> to vector<64x20xbf16>
    %246 = vector.extract_strided_slice %220 {offsets = [0, 3, 0, 0], sizes = [1, 1, 20, 50], strides = [1, 1, 1, 1]} : vector<5x5x20x50xbf16> to vector<1x1x20x50xbf16>
    %247 = vector.shape_cast %246 : vector<1x1x20x50xbf16> to vector<20x50xbf16>
    %cst_45 = arith.constant dense<0.000000e+00> : vector<64x50xf32>
    %248 = tpu.matmul %245, %247, %cst_45 {dimension_numbers = #tpu.dot_dimension_numbers<[1], [0], [0], [1], [0, 0, 1, 1], [], []>} : vector<64x20xbf16>, vector<20x50xbf16>, vector<64x50xf32> -> vector<64x50xf32>
    %249 = arith.addf %242, %248 : vector<64x50xf32>
    %250 = vector.extract_strided_slice %219 {offsets = [0, 0, 4, 0], sizes = [1, 8, 8, 20], strides = [1, 1, 1, 1]} : vector<1x12x12x20xf32> to vector<1x8x8x20xf32>
    %251 = vector.shape_cast %250 : vector<1x8x8x20xf32> to vector<64x20xf32>
    %252 = arith.truncf %251 : vector<64x20xf32> to vector<64x20xbf16>
    %253 = vector.extract_strided_slice %220 {offsets = [0, 4, 0, 0], sizes = [1, 1, 20, 50], strides = [1, 1, 1, 1]} : vector<5x5x20x50xbf16> to vector<1x1x20x50xbf16>
    %254 = vector.shape_cast %253 : vector<1x1x20x50xbf16> to vector<20x50xbf16>
    %cst_46 = arith.constant dense<0.000000e+00> : vector<64x50xf32>
    %255 = tpu.matmul %252, %254, %cst_46 {dimension_numbers = #tpu.dot_dimension_numbers<[1], [0], [0], [1], [0, 0, 1, 1], [], []>} : vector<64x20xbf16>, vector<20x50xbf16>, vector<64x50xf32> -> vector<64x50xf32>
    %256 = arith.addf %249, %255 : vector<64x50xf32>
    %257 = vector.extract_strided_slice %219 {offsets = [0, 1, 0, 0], sizes = [1, 8, 8, 20], strides = [1, 1, 1, 1]} : vector<1x12x12x20xf32> to vector<1x8x8x20xf32>
    %258 = vector.shape_cast %257 : vector<1x8x8x20xf32> to vector<64x20xf32>
    %259 = arith.truncf %258 : vector<64x20xf32> to vector<64x20xbf16>
    %260 = vector.extract_strided_slice %220 {offsets = [1, 0, 0, 0], sizes = [1, 1, 20, 50], strides = [1, 1, 1, 1]} : vector<5x5x20x50xbf16> to vector<1x1x20x50xbf16>
    %261 = vector.shape_cast %260 : vector<1x1x20x50xbf16> to vector<20x50xbf16>
    %cst_47 = arith.constant dense<0.000000e+00> : vector<64x50xf32>
    %262 = tpu.matmul %259, %261, %cst_47 {dimension_numbers = #tpu.dot_dimension_numbers<[1], [0], [0], [1], [0, 0, 1, 1], [], []>} : vector<64x20xbf16>, vector<20x50xbf16>, vector<64x50xf32> -> vector<64x50xf32>
    %263 = arith.addf %256, %262 : vector<64x50xf32>
    %264 = vector.extract_strided_slice %219 {offsets = [0, 1, 1, 0], sizes = [1, 8, 8, 20], strides = [1, 1, 1, 1]} : vector<1x12x12x20xf32> to vector<1x8x8x20xf32>
    %265 = vector.shape_cast %264 : vector<1x8x8x20xf32> to vector<64x20xf32>
    %266 = arith.truncf %265 : vector<64x20xf32> to vector<64x20xbf16>
    %267 = vector.extract_strided_slice %220 {offsets = [1, 1, 0, 0], sizes = [1, 1, 20, 50], strides = [1, 1, 1, 1]} : vector<5x5x20x50xbf16> to vector<1x1x20x50xbf16>
    %268 = vector.shape_cast %267 : vector<1x1x20x50xbf16> to vector<20x50xbf16>
    %cst_48 = arith.constant dense<0.000000e+00> : vector<64x50xf32>
    %269 = tpu.matmul %266, %268, %cst_48 {dimension_numbers = #tpu.dot_dimension_numbers<[1], [0], [0], [1], [0, 0, 1, 1], [], []>} : vector<64x20xbf16>, vector<20x50xbf16>, vector<64x50xf32> -> vector<64x50xf32>
    %270 = arith.addf %263, %269 : vector<64x50xf32>
    %271 = vector.extract_strided_slice %219 {offsets = [0, 1, 2, 0], sizes = [1, 8, 8, 20], strides = [1, 1, 1, 1]} : vector<1x12x12x20xf32> to vector<1x8x8x20xf32>
    %272 = vector.shape_cast %271 : vector<1x8x8x20xf32> to vector<64x20xf32>
    %273 = arith.truncf %272 : vector<64x20xf32> to vector<64x20xbf16>
    %274 = vector.extract_strided_slice %220 {offsets = [1, 2, 0, 0], sizes = [1, 1, 20, 50], strides = [1, 1, 1, 1]} : vector<5x5x20x50xbf16> to vector<1x1x20x50xbf16>
    %275 = vector.shape_cast %274 : vector<1x1x20x50xbf16> to vector<20x50xbf16>
    %cst_49 = arith.constant dense<0.000000e+00> : vector<64x50xf32>
    %276 = tpu.matmul %273, %275, %cst_49 {dimension_numbers = #tpu.dot_dimension_numbers<[1], [0], [0], [1], [0, 0, 1, 1], [], []>} : vector<64x20xbf16>, vector<20x50xbf16>, vector<64x50xf32> -> vector<64x50xf32>
    %277 = arith.addf %270, %276 : vector<64x50xf32>
    %278 = vector.extract_strided_slice %219 {offsets = [0, 1, 3, 0], sizes = [1, 8, 8, 20], strides = [1, 1, 1, 1]} : vector<1x12x12x20xf32> to vector<1x8x8x20xf32>
    %279 = vector.shape_cast %278 : vector<1x8x8x20xf32> to vector<64x20xf32>
    %280 = arith.truncf %279 : vector<64x20xf32> to vector<64x20xbf16>
    %281 = vector.extract_strided_slice %220 {offsets = [1, 3, 0, 0], sizes = [1, 1, 20, 50], strides = [1, 1, 1, 1]} : vector<5x5x20x50xbf16> to vector<1x1x20x50xbf16>
    %282 = vector.shape_cast %281 : vector<1x1x20x50xbf16> to vector<20x50xbf16>
    %cst_50 = arith.constant dense<0.000000e+00> : vector<64x50xf32>
    %283 = tpu.matmul %280, %282, %cst_50 {dimension_numbers = #tpu.dot_dimension_numbers<[1], [0], [0], [1], [0, 0, 1, 1], [], []>} : vector<64x20xbf16>, vector<20x50xbf16>, vector<64x50xf32> -> vector<64x50xf32>
    %284 = arith.addf %277, %283 : vector<64x50xf32>
    %285 = vector.extract_strided_slice %219 {offsets = [0, 1, 4, 0], sizes = [1, 8, 8, 20], strides = [1, 1, 1, 1]} : vector<1x12x12x20xf32> to vector<1x8x8x20xf32>
    %286 = vector.shape_cast %285 : vector<1x8x8x20xf32> to vector<64x20xf32>
    %287 = arith.truncf %286 : vector<64x20xf32> to vector<64x20xbf16>
    %288 = vector.extract_strided_slice %220 {offsets = [1, 4, 0, 0], sizes = [1, 1, 20, 50], strides = [1, 1, 1, 1]} : vector<5x5x20x50xbf16> to vector<1x1x20x50xbf16>
    %289 = vector.shape_cast %288 : vector<1x1x20x50xbf16> to vector<20x50xbf16>
    %cst_51 = arith.constant dense<0.000000e+00> : vector<64x50xf32>
    %290 = tpu.matmul %287, %289, %cst_51 {dimension_numbers = #tpu.dot_dimension_numbers<[1], [0], [0], [1], [0, 0, 1, 1], [], []>} : vector<64x20xbf16>, vector<20x50xbf16>, vector<64x50xf32> -> vector<64x50xf32>
    %291 = arith.addf %284, %290 : vector<64x50xf32>
    %292 = vector.extract_strided_slice %219 {offsets = [0, 2, 0, 0], sizes = [1, 8, 8, 20], strides = [1, 1, 1, 1]} : vector<1x12x12x20xf32> to vector<1x8x8x20xf32>
    %293 = vector.shape_cast %292 : vector<1x8x8x20xf32> to vector<64x20xf32>
    %294 = arith.truncf %293 : vector<64x20xf32> to vector<64x20xbf16>
    %295 = vector.extract_strided_slice %220 {offsets = [2, 0, 0, 0], sizes = [1, 1, 20, 50], strides = [1, 1, 1, 1]} : vector<5x5x20x50xbf16> to vector<1x1x20x50xbf16>
    %296 = vector.shape_cast %295 : vector<1x1x20x50xbf16> to vector<20x50xbf16>
    %cst_52 = arith.constant dense<0.000000e+00> : vector<64x50xf32>
    %297 = tpu.matmul %294, %296, %cst_52 {dimension_numbers = #tpu.dot_dimension_numbers<[1], [0], [0], [1], [0, 0, 1, 1], [], []>} : vector<64x20xbf16>, vector<20x50xbf16>, vector<64x50xf32> -> vector<64x50xf32>
    %298 = arith.addf %291, %297 : vector<64x50xf32>
    %299 = vector.extract_strided_slice %219 {offsets = [0, 2, 1, 0], sizes = [1, 8, 8, 20], strides = [1, 1, 1, 1]} : vector<1x12x12x20xf32> to vector<1x8x8x20xf32>
    %300 = vector.shape_cast %299 : vector<1x8x8x20xf32> to vector<64x20xf32>
    %301 = arith.truncf %300 : vector<64x20xf32> to vector<64x20xbf16>
    %302 = vector.extract_strided_slice %220 {offsets = [2, 1, 0, 0], sizes = [1, 1, 20, 50], strides = [1, 1, 1, 1]} : vector<5x5x20x50xbf16> to vector<1x1x20x50xbf16>
    %303 = vector.shape_cast %302 : vector<1x1x20x50xbf16> to vector<20x50xbf16>
    %cst_53 = arith.constant dense<0.000000e+00> : vector<64x50xf32>
    %304 = tpu.matmul %301, %303, %cst_53 {dimension_numbers = #tpu.dot_dimension_numbers<[1], [0], [0], [1], [0, 0, 1, 1], [], []>} : vector<64x20xbf16>, vector<20x50xbf16>, vector<64x50xf32> -> vector<64x50xf32>
    %305 = arith.addf %298, %304 : vector<64x50xf32>
    %306 = vector.extract_strided_slice %219 {offsets = [0, 2, 2, 0], sizes = [1, 8, 8, 20], strides = [1, 1, 1, 1]} : vector<1x12x12x20xf32> to vector<1x8x8x20xf32>
    %307 = vector.shape_cast %306 : vector<1x8x8x20xf32> to vector<64x20xf32>
    %308 = arith.truncf %307 : vector<64x20xf32> to vector<64x20xbf16>
    %309 = vector.extract_strided_slice %220 {offsets = [2, 2, 0, 0], sizes = [1, 1, 20, 50], strides = [1, 1, 1, 1]} : vector<5x5x20x50xbf16> to vector<1x1x20x50xbf16>
    %310 = vector.shape_cast %309 : vector<1x1x20x50xbf16> to vector<20x50xbf16>
    %cst_54 = arith.constant dense<0.000000e+00> : vector<64x50xf32>
    %311 = tpu.matmul %308, %310, %cst_54 {dimension_numbers = #tpu.dot_dimension_numbers<[1], [0], [0], [1], [0, 0, 1, 1], [], []>} : vector<64x20xbf16>, vector<20x50xbf16>, vector<64x50xf32> -> vector<64x50xf32>
    %312 = arith.addf %305, %311 : vector<64x50xf32>
    %313 = vector.extract_strided_slice %219 {offsets = [0, 2, 3, 0], sizes = [1, 8, 8, 20], strides = [1, 1, 1, 1]} : vector<1x12x12x20xf32> to vector<1x8x8x20xf32>
    %314 = vector.shape_cast %313 : vector<1x8x8x20xf32> to vector<64x20xf32>
    %315 = arith.truncf %314 : vector<64x20xf32> to vector<64x20xbf16>
    %316 = vector.extract_strided_slice %220 {offsets = [2, 3, 0, 0], sizes = [1, 1, 20, 50], strides = [1, 1, 1, 1]} : vector<5x5x20x50xbf16> to vector<1x1x20x50xbf16>
    %317 = vector.shape_cast %316 : vector<1x1x20x50xbf16> to vector<20x50xbf16>
    %cst_55 = arith.constant dense<0.000000e+00> : vector<64x50xf32>
    %318 = tpu.matmul %315, %317, %cst_55 {dimension_numbers = #tpu.dot_dimension_numbers<[1], [0], [0], [1], [0, 0, 1, 1], [], []>} : vector<64x20xbf16>, vector<20x50xbf16>, vector<64x50xf32> -> vector<64x50xf32>
    %319 = arith.addf %312, %318 : vector<64x50xf32>
    %320 = vector.extract_strided_slice %219 {offsets = [0, 2, 4, 0], sizes = [1, 8, 8, 20], strides = [1, 1, 1, 1]} : vector<1x12x12x20xf32> to vector<1x8x8x20xf32>
    %321 = vector.shape_cast %320 : vector<1x8x8x20xf32> to vector<64x20xf32>
    %322 = arith.truncf %321 : vector<64x20xf32> to vector<64x20xbf16>
    %323 = vector.extract_strided_slice %220 {offsets = [2, 4, 0, 0], sizes = [1, 1, 20, 50], strides = [1, 1, 1, 1]} : vector<5x5x20x50xbf16> to vector<1x1x20x50xbf16>
    %324 = vector.shape_cast %323 : vector<1x1x20x50xbf16> to vector<20x50xbf16>
    %cst_56 = arith.constant dense<0.000000e+00> : vector<64x50xf32>
    %325 = tpu.matmul %322, %324, %cst_56 {dimension_numbers = #tpu.dot_dimension_numbers<[1], [0], [0], [1], [0, 0, 1, 1], [], []>} : vector<64x20xbf16>, vector<20x50xbf16>, vector<64x50xf32> -> vector<64x50xf32>
    %326 = arith.addf %319, %325 : vector<64x50xf32>
    %327 = vector.extract_strided_slice %219 {offsets = [0, 3, 0, 0], sizes = [1, 8, 8, 20], strides = [1, 1, 1, 1]} : vector<1x12x12x20xf32> to vector<1x8x8x20xf32>
    %328 = vector.shape_cast %327 : vector<1x8x8x20xf32> to vector<64x20xf32>
    %329 = arith.truncf %328 : vector<64x20xf32> to vector<64x20xbf16>
    %330 = vector.extract_strided_slice %220 {offsets = [3, 0, 0, 0], sizes = [1, 1, 20, 50], strides = [1, 1, 1, 1]} : vector<5x5x20x50xbf16> to vector<1x1x20x50xbf16>
    %331 = vector.shape_cast %330 : vector<1x1x20x50xbf16> to vector<20x50xbf16>
    %cst_57 = arith.constant dense<0.000000e+00> : vector<64x50xf32>
    %332 = tpu.matmul %329, %331, %cst_57 {dimension_numbers = #tpu.dot_dimension_numbers<[1], [0], [0], [1], [0, 0, 1, 1], [], []>} : vector<64x20xbf16>, vector<20x50xbf16>, vector<64x50xf32> -> vector<64x50xf32>
    %333 = arith.addf %326, %332 : vector<64x50xf32>
    %334 = vector.extract_strided_slice %219 {offsets = [0, 3, 1, 0], sizes = [1, 8, 8, 20], strides = [1, 1, 1, 1]} : vector<1x12x12x20xf32> to vector<1x8x8x20xf32>
    %335 = vector.shape_cast %334 : vector<1x8x8x20xf32> to vector<64x20xf32>
    %336 = arith.truncf %335 : vector<64x20xf32> to vector<64x20xbf16>
    %337 = vector.extract_strided_slice %220 {offsets = [3, 1, 0, 0], sizes = [1, 1, 20, 50], strides = [1, 1, 1, 1]} : vector<5x5x20x50xbf16> to vector<1x1x20x50xbf16>
    %338 = vector.shape_cast %337 : vector<1x1x20x50xbf16> to vector<20x50xbf16>
    %cst_58 = arith.constant dense<0.000000e+00> : vector<64x50xf32>
    %339 = tpu.matmul %336, %338, %cst_58 {dimension_numbers = #tpu.dot_dimension_numbers<[1], [0], [0], [1], [0, 0, 1, 1], [], []>} : vector<64x20xbf16>, vector<20x50xbf16>, vector<64x50xf32> -> vector<64x50xf32>
    %340 = arith.addf %333, %339 : vector<64x50xf32>
    %341 = vector.extract_strided_slice %219 {offsets = [0, 3, 2, 0], sizes = [1, 8, 8, 20], strides = [1, 1, 1, 1]} : vector<1x12x12x20xf32> to vector<1x8x8x20xf32>
    %342 = vector.shape_cast %341 : vector<1x8x8x20xf32> to vector<64x20xf32>
    %343 = arith.truncf %342 : vector<64x20xf32> to vector<64x20xbf16>
    %344 = vector.extract_strided_slice %220 {offsets = [3, 2, 0, 0], sizes = [1, 1, 20, 50], strides = [1, 1, 1, 1]} : vector<5x5x20x50xbf16> to vector<1x1x20x50xbf16>
    %345 = vector.shape_cast %344 : vector<1x1x20x50xbf16> to vector<20x50xbf16>
    %cst_59 = arith.constant dense<0.000000e+00> : vector<64x50xf32>
    %346 = tpu.matmul %343, %345, %cst_59 {dimension_numbers = #tpu.dot_dimension_numbers<[1], [0], [0], [1], [0, 0, 1, 1], [], []>} : vector<64x20xbf16>, vector<20x50xbf16>, vector<64x50xf32> -> vector<64x50xf32>
    %347 = arith.addf %340, %346 : vector<64x50xf32>
    %348 = vector.extract_strided_slice %219 {offsets = [0, 3, 3, 0], sizes = [1, 8, 8, 20], strides = [1, 1, 1, 1]} : vector<1x12x12x20xf32> to vector<1x8x8x20xf32>
    %349 = vector.shape_cast %348 : vector<1x8x8x20xf32> to vector<64x20xf32>
    %350 = arith.truncf %349 : vector<64x20xf32> to vector<64x20xbf16>
    %351 = vector.extract_strided_slice %220 {offsets = [3, 3, 0, 0], sizes = [1, 1, 20, 50], strides = [1, 1, 1, 1]} : vector<5x5x20x50xbf16> to vector<1x1x20x50xbf16>
    %352 = vector.shape_cast %351 : vector<1x1x20x50xbf16> to vector<20x50xbf16>
    %cst_60 = arith.constant dense<0.000000e+00> : vector<64x50xf32>
    %353 = tpu.matmul %350, %352, %cst_60 {dimension_numbers = #tpu.dot_dimension_numbers<[1], [0], [0], [1], [0, 0, 1, 1], [], []>} : vector<64x20xbf16>, vector<20x50xbf16>, vector<64x50xf32> -> vector<64x50xf32>
    %354 = arith.addf %347, %353 : vector<64x50xf32>
    %355 = vector.extract_strided_slice %219 {offsets = [0, 3, 4, 0], sizes = [1, 8, 8, 20], strides = [1, 1, 1, 1]} : vector<1x12x12x20xf32> to vector<1x8x8x20xf32>
    %356 = vector.shape_cast %355 : vector<1x8x8x20xf32> to vector<64x20xf32>
    %357 = arith.truncf %356 : vector<64x20xf32> to vector<64x20xbf16>
    %358 = vector.extract_strided_slice %220 {offsets = [3, 4, 0, 0], sizes = [1, 1, 20, 50], strides = [1, 1, 1, 1]} : vector<5x5x20x50xbf16> to vector<1x1x20x50xbf16>
    %359 = vector.shape_cast %358 : vector<1x1x20x50xbf16> to vector<20x50xbf16>
    %cst_61 = arith.constant dense<0.000000e+00> : vector<64x50xf32>
    %360 = tpu.matmul %357, %359, %cst_61 {dimension_numbers = #tpu.dot_dimension_numbers<[1], [0], [0], [1], [0, 0, 1, 1], [], []>} : vector<64x20xbf16>, vector<20x50xbf16>, vector<64x50xf32> -> vector<64x50xf32>
    %361 = arith.addf %354, %360 : vector<64x50xf32>
    %362 = vector.extract_strided_slice %219 {offsets = [0, 4, 0, 0], sizes = [1, 8, 8, 20], strides = [1, 1, 1, 1]} : vector<1x12x12x20xf32> to vector<1x8x8x20xf32>
    %363 = vector.shape_cast %362 : vector<1x8x8x20xf32> to vector<64x20xf32>
    %364 = arith.truncf %363 : vector<64x20xf32> to vector<64x20xbf16>
    %365 = vector.extract_strided_slice %220 {offsets = [4, 0, 0, 0], sizes = [1, 1, 20, 50], strides = [1, 1, 1, 1]} : vector<5x5x20x50xbf16> to vector<1x1x20x50xbf16>
    %366 = vector.shape_cast %365 : vector<1x1x20x50xbf16> to vector<20x50xbf16>
    %cst_62 = arith.constant dense<0.000000e+00> : vector<64x50xf32>
    %367 = tpu.matmul %364, %366, %cst_62 {dimension_numbers = #tpu.dot_dimension_numbers<[1], [0], [0], [1], [0, 0, 1, 1], [], []>} : vector<64x20xbf16>, vector<20x50xbf16>, vector<64x50xf32> -> vector<64x50xf32>
    %368 = arith.addf %361, %367 : vector<64x50xf32>
    %369 = vector.extract_strided_slice %219 {offsets = [0, 4, 1, 0], sizes = [1, 8, 8, 20], strides = [1, 1, 1, 1]} : vector<1x12x12x20xf32> to vector<1x8x8x20xf32>
    %370 = vector.shape_cast %369 : vector<1x8x8x20xf32> to vector<64x20xf32>
    %371 = arith.truncf %370 : vector<64x20xf32> to vector<64x20xbf16>
    %372 = vector.extract_strided_slice %220 {offsets = [4, 1, 0, 0], sizes = [1, 1, 20, 50], strides = [1, 1, 1, 1]} : vector<5x5x20x50xbf16> to vector<1x1x20x50xbf16>
    %373 = vector.shape_cast %372 : vector<1x1x20x50xbf16> to vector<20x50xbf16>
    %cst_63 = arith.constant dense<0.000000e+00> : vector<64x50xf32>
    %374 = tpu.matmul %371, %373, %cst_63 {dimension_numbers = #tpu.dot_dimension_numbers<[1], [0], [0], [1], [0, 0, 1, 1], [], []>} : vector<64x20xbf16>, vector<20x50xbf16>, vector<64x50xf32> -> vector<64x50xf32>
    %375 = arith.addf %368, %374 : vector<64x50xf32>
    %376 = vector.extract_strided_slice %219 {offsets = [0, 4, 2, 0], sizes = [1, 8, 8, 20], strides = [1, 1, 1, 1]} : vector<1x12x12x20xf32> to vector<1x8x8x20xf32>
    %377 = vector.shape_cast %376 : vector<1x8x8x20xf32> to vector<64x20xf32>
    %378 = arith.truncf %377 : vector<64x20xf32> to vector<64x20xbf16>
    %379 = vector.extract_strided_slice %220 {offsets = [4, 2, 0, 0], sizes = [1, 1, 20, 50], strides = [1, 1, 1, 1]} : vector<5x5x20x50xbf16> to vector<1x1x20x50xbf16>
    %380 = vector.shape_cast %379 : vector<1x1x20x50xbf16> to vector<20x50xbf16>
    %cst_64 = arith.constant dense<0.000000e+00> : vector<64x50xf32>
    %381 = tpu.matmul %378, %380, %cst_64 {dimension_numbers = #tpu.dot_dimension_numbers<[1], [0], [0], [1], [0, 0, 1, 1], [], []>} : vector<64x20xbf16>, vector<20x50xbf16>, vector<64x50xf32> -> vector<64x50xf32>
    %382 = arith.addf %375, %381 : vector<64x50xf32>
    %383 = vector.extract_strided_slice %219 {offsets = [0, 4, 3, 0], sizes = [1, 8, 8, 20], strides = [1, 1, 1, 1]} : vector<1x12x12x20xf32> to vector<1x8x8x20xf32>
    %384 = vector.shape_cast %383 : vector<1x8x8x20xf32> to vector<64x20xf32>
    %385 = arith.truncf %384 : vector<64x20xf32> to vector<64x20xbf16>
    %386 = vector.extract_strided_slice %220 {offsets = [4, 3, 0, 0], sizes = [1, 1, 20, 50], strides = [1, 1, 1, 1]} : vector<5x5x20x50xbf16> to vector<1x1x20x50xbf16>
    %387 = vector.shape_cast %386 : vector<1x1x20x50xbf16> to vector<20x50xbf16>
    %cst_65 = arith.constant dense<0.000000e+00> : vector<64x50xf32>
    %388 = tpu.matmul %385, %387, %cst_65 {dimension_numbers = #tpu.dot_dimension_numbers<[1], [0], [0], [1], [0, 0, 1, 1], [], []>} : vector<64x20xbf16>, vector<20x50xbf16>, vector<64x50xf32> -> vector<64x50xf32>
    %389 = arith.addf %382, %388 : vector<64x50xf32>
    %390 = vector.extract_strided_slice %219 {offsets = [0, 4, 4, 0], sizes = [1, 8, 8, 20], strides = [1, 1, 1, 1]} : vector<1x12x12x20xf32> to vector<1x8x8x20xf32>
    %391 = vector.shape_cast %390 : vector<1x8x8x20xf32> to vector<64x20xf32>
    %392 = arith.truncf %391 : vector<64x20xf32> to vector<64x20xbf16>
    %393 = vector.extract_strided_slice %220 {offsets = [4, 4, 0, 0], sizes = [1, 1, 20, 50], strides = [1, 1, 1, 1]} : vector<5x5x20x50xbf16> to vector<1x1x20x50xbf16>
    %394 = vector.shape_cast %393 : vector<1x1x20x50xbf16> to vector<20x50xbf16>
    %cst_66 = arith.constant dense<0.000000e+00> : vector<64x50xf32>
    %395 = tpu.matmul %392, %394, %cst_66 {dimension_numbers = #tpu.dot_dimension_numbers<[1], [0], [0], [1], [0, 0, 1, 1], [], []>} : vector<64x20xbf16>, vector<20x50xbf16>, vector<64x50xf32> -> vector<64x50xf32>
    %396 = arith.addf %389, %395 : vector<64x50xf32>
    %c0_67 = arith.constant 0 : index
    %c0_68 = arith.constant 0 : index
    %397 = vector.load %arg5[%c0_67, %c0_68] : memref<1x50xf32, #tpu.memory_space<vmem>>, vector<1x50xf32>
    %398 = vector.broadcast %397 : vector<1x50xf32> to vector<64x50xf32>
    %399 = arith.addf %396, %398 : vector<64x50xf32>
    %cst_69 = arith.constant 0.000000e+00 : f32
    %400 = vector.broadcast %cst_69 : f32 to vector<64x50xf32>
    %401 = arith.maximumf %399, %400 : vector<64x50xf32>
    %402 = vector.shape_cast %401 : vector<64x50xf32> to vector<4x2x4x2x50xf32>
    %cst_70 = arith.constant dense<0xFF800000> : vector<4x2x4x50xf32>
    %403 = vector.multi_reduction <maximumf>, %402, %cst_70 [3] : vector<4x2x4x2x50xf32> to vector<4x2x4x50xf32>
    %cst_71 = arith.constant dense<0xFF800000> : vector<4x4x50xf32>
    %404 = vector.multi_reduction <maximumf>, %403, %cst_71 [1] : vector<4x2x4x50xf32> to vector<4x4x50xf32>
    %405 = vector.shape_cast %404 : vector<4x4x50xf32> to vector<1x4x4x50xf32>
    %c0_72 = arith.constant 0 : index
    %c0_73 = arith.constant 0 : index
    %c0_74 = arith.constant 0 : index
    %c0_75 = arith.constant 0 : index
    %406 = vector.load %arg6[%c0_72, %c0_73, %c0_74, %c0_75] : memref<4x4x50x256xbf16, #tpu.memory_space<vmem>>, vector<4x4x50x256xbf16>
    %cst_76 = arith.constant 0.000000e+00 : f32
    %407 = vector.broadcast %cst_76 : f32 to vector<1x256xf32>
    %408 = vector.extract_strided_slice %405 {offsets = [0, 0, 0, 0], sizes = [1, 1, 1, 50], strides = [1, 1, 1, 1]} : vector<1x4x4x50xf32> to vector<1x1x1x50xf32>
    %409 = vector.shape_cast %408 : vector<1x1x1x50xf32> to vector<1x50xf32>
    %410 = arith.truncf %409 : vector<1x50xf32> to vector<1x50xbf16>
    %411 = vector.extract_strided_slice %406 {offsets = [0, 0, 0, 0], sizes = [1, 1, 50, 256], strides = [1, 1, 1, 1]} : vector<4x4x50x256xbf16> to vector<1x1x50x256xbf16>
    %412 = vector.shape_cast %411 : vector<1x1x50x256xbf16> to vector<50x256xbf16>
    %cst_77 = arith.constant dense<0.000000e+00> : vector<1x256xf32>
    %413 = tpu.matmul %410, %412, %cst_77 {dimension_numbers = #tpu.dot_dimension_numbers<[1], [0], [0], [1], [0, 0, 1, 1], [], []>} : vector<1x50xbf16>, vector<50x256xbf16>, vector<1x256xf32> -> vector<1x256xf32>
    %414 = arith.addf %407, %413 : vector<1x256xf32>
    %415 = vector.extract_strided_slice %405 {offsets = [0, 0, 1, 0], sizes = [1, 1, 1, 50], strides = [1, 1, 1, 1]} : vector<1x4x4x50xf32> to vector<1x1x1x50xf32>
    %416 = vector.shape_cast %415 : vector<1x1x1x50xf32> to vector<1x50xf32>
    %417 = arith.truncf %416 : vector<1x50xf32> to vector<1x50xbf16>
    %418 = vector.extract_strided_slice %406 {offsets = [0, 1, 0, 0], sizes = [1, 1, 50, 256], strides = [1, 1, 1, 1]} : vector<4x4x50x256xbf16> to vector<1x1x50x256xbf16>
    %419 = vector.shape_cast %418 : vector<1x1x50x256xbf16> to vector<50x256xbf16>
    %cst_78 = arith.constant dense<0.000000e+00> : vector<1x256xf32>
    %420 = tpu.matmul %417, %419, %cst_78 {dimension_numbers = #tpu.dot_dimension_numbers<[1], [0], [0], [1], [0, 0, 1, 1], [], []>} : vector<1x50xbf16>, vector<50x256xbf16>, vector<1x256xf32> -> vector<1x256xf32>
    %421 = arith.addf %414, %420 : vector<1x256xf32>
    %422 = vector.extract_strided_slice %405 {offsets = [0, 0, 2, 0], sizes = [1, 1, 1, 50], strides = [1, 1, 1, 1]} : vector<1x4x4x50xf32> to vector<1x1x1x50xf32>
    %423 = vector.shape_cast %422 : vector<1x1x1x50xf32> to vector<1x50xf32>
    %424 = arith.truncf %423 : vector<1x50xf32> to vector<1x50xbf16>
    %425 = vector.extract_strided_slice %406 {offsets = [0, 2, 0, 0], sizes = [1, 1, 50, 256], strides = [1, 1, 1, 1]} : vector<4x4x50x256xbf16> to vector<1x1x50x256xbf16>
    %426 = vector.shape_cast %425 : vector<1x1x50x256xbf16> to vector<50x256xbf16>
    %cst_79 = arith.constant dense<0.000000e+00> : vector<1x256xf32>
    %427 = tpu.matmul %424, %426, %cst_79 {dimension_numbers = #tpu.dot_dimension_numbers<[1], [0], [0], [1], [0, 0, 1, 1], [], []>} : vector<1x50xbf16>, vector<50x256xbf16>, vector<1x256xf32> -> vector<1x256xf32>
    %428 = arith.addf %421, %427 : vector<1x256xf32>
    %429 = vector.extract_strided_slice %405 {offsets = [0, 0, 3, 0], sizes = [1, 1, 1, 50], strides = [1, 1, 1, 1]} : vector<1x4x4x50xf32> to vector<1x1x1x50xf32>
    %430 = vector.shape_cast %429 : vector<1x1x1x50xf32> to vector<1x50xf32>
    %431 = arith.truncf %430 : vector<1x50xf32> to vector<1x50xbf16>
    %432 = vector.extract_strided_slice %406 {offsets = [0, 3, 0, 0], sizes = [1, 1, 50, 256], strides = [1, 1, 1, 1]} : vector<4x4x50x256xbf16> to vector<1x1x50x256xbf16>
    %433 = vector.shape_cast %432 : vector<1x1x50x256xbf16> to vector<50x256xbf16>
    %cst_80 = arith.constant dense<0.000000e+00> : vector<1x256xf32>
    %434 = tpu.matmul %431, %433, %cst_80 {dimension_numbers = #tpu.dot_dimension_numbers<[1], [0], [0], [1], [0, 0, 1, 1], [], []>} : vector<1x50xbf16>, vector<50x256xbf16>, vector<1x256xf32> -> vector<1x256xf32>
    %435 = arith.addf %428, %434 : vector<1x256xf32>
    %436 = vector.extract_strided_slice %405 {offsets = [0, 1, 0, 0], sizes = [1, 1, 1, 50], strides = [1, 1, 1, 1]} : vector<1x4x4x50xf32> to vector<1x1x1x50xf32>
    %437 = vector.shape_cast %436 : vector<1x1x1x50xf32> to vector<1x50xf32>
    %438 = arith.truncf %437 : vector<1x50xf32> to vector<1x50xbf16>
    %439 = vector.extract_strided_slice %406 {offsets = [1, 0, 0, 0], sizes = [1, 1, 50, 256], strides = [1, 1, 1, 1]} : vector<4x4x50x256xbf16> to vector<1x1x50x256xbf16>
    %440 = vector.shape_cast %439 : vector<1x1x50x256xbf16> to vector<50x256xbf16>
    %cst_81 = arith.constant dense<0.000000e+00> : vector<1x256xf32>
    %441 = tpu.matmul %438, %440, %cst_81 {dimension_numbers = #tpu.dot_dimension_numbers<[1], [0], [0], [1], [0, 0, 1, 1], [], []>} : vector<1x50xbf16>, vector<50x256xbf16>, vector<1x256xf32> -> vector<1x256xf32>
    %442 = arith.addf %435, %441 : vector<1x256xf32>
    %443 = vector.extract_strided_slice %405 {offsets = [0, 1, 1, 0], sizes = [1, 1, 1, 50], strides = [1, 1, 1, 1]} : vector<1x4x4x50xf32> to vector<1x1x1x50xf32>
    %444 = vector.shape_cast %443 : vector<1x1x1x50xf32> to vector<1x50xf32>
    %445 = arith.truncf %444 : vector<1x50xf32> to vector<1x50xbf16>
    %446 = vector.extract_strided_slice %406 {offsets = [1, 1, 0, 0], sizes = [1, 1, 50, 256], strides = [1, 1, 1, 1]} : vector<4x4x50x256xbf16> to vector<1x1x50x256xbf16>
    %447 = vector.shape_cast %446 : vector<1x1x50x256xbf16> to vector<50x256xbf16>
    %cst_82 = arith.constant dense<0.000000e+00> : vector<1x256xf32>
    %448 = tpu.matmul %445, %447, %cst_82 {dimension_numbers = #tpu.dot_dimension_numbers<[1], [0], [0], [1], [0, 0, 1, 1], [], []>} : vector<1x50xbf16>, vector<50x256xbf16>, vector<1x256xf32> -> vector<1x256xf32>
    %449 = arith.addf %442, %448 : vector<1x256xf32>
    %450 = vector.extract_strided_slice %405 {offsets = [0, 1, 2, 0], sizes = [1, 1, 1, 50], strides = [1, 1, 1, 1]} : vector<1x4x4x50xf32> to vector<1x1x1x50xf32>
    %451 = vector.shape_cast %450 : vector<1x1x1x50xf32> to vector<1x50xf32>
    %452 = arith.truncf %451 : vector<1x50xf32> to vector<1x50xbf16>
    %453 = vector.extract_strided_slice %406 {offsets = [1, 2, 0, 0], sizes = [1, 1, 50, 256], strides = [1, 1, 1, 1]} : vector<4x4x50x256xbf16> to vector<1x1x50x256xbf16>
    %454 = vector.shape_cast %453 : vector<1x1x50x256xbf16> to vector<50x256xbf16>
    %cst_83 = arith.constant dense<0.000000e+00> : vector<1x256xf32>
    %455 = tpu.matmul %452, %454, %cst_83 {dimension_numbers = #tpu.dot_dimension_numbers<[1], [0], [0], [1], [0, 0, 1, 1], [], []>} : vector<1x50xbf16>, vector<50x256xbf16>, vector<1x256xf32> -> vector<1x256xf32>
    %456 = arith.addf %449, %455 : vector<1x256xf32>
    %457 = vector.extract_strided_slice %405 {offsets = [0, 1, 3, 0], sizes = [1, 1, 1, 50], strides = [1, 1, 1, 1]} : vector<1x4x4x50xf32> to vector<1x1x1x50xf32>
    %458 = vector.shape_cast %457 : vector<1x1x1x50xf32> to vector<1x50xf32>
    %459 = arith.truncf %458 : vector<1x50xf32> to vector<1x50xbf16>
    %460 = vector.extract_strided_slice %406 {offsets = [1, 3, 0, 0], sizes = [1, 1, 50, 256], strides = [1, 1, 1, 1]} : vector<4x4x50x256xbf16> to vector<1x1x50x256xbf16>
    %461 = vector.shape_cast %460 : vector<1x1x50x256xbf16> to vector<50x256xbf16>
    %cst_84 = arith.constant dense<0.000000e+00> : vector<1x256xf32>
    %462 = tpu.matmul %459, %461, %cst_84 {dimension_numbers = #tpu.dot_dimension_numbers<[1], [0], [0], [1], [0, 0, 1, 1], [], []>} : vector<1x50xbf16>, vector<50x256xbf16>, vector<1x256xf32> -> vector<1x256xf32>
    %463 = arith.addf %456, %462 : vector<1x256xf32>
    %464 = vector.extract_strided_slice %405 {offsets = [0, 2, 0, 0], sizes = [1, 1, 1, 50], strides = [1, 1, 1, 1]} : vector<1x4x4x50xf32> to vector<1x1x1x50xf32>
    %465 = vector.shape_cast %464 : vector<1x1x1x50xf32> to vector<1x50xf32>
    %466 = arith.truncf %465 : vector<1x50xf32> to vector<1x50xbf16>
    %467 = vector.extract_strided_slice %406 {offsets = [2, 0, 0, 0], sizes = [1, 1, 50, 256], strides = [1, 1, 1, 1]} : vector<4x4x50x256xbf16> to vector<1x1x50x256xbf16>
    %468 = vector.shape_cast %467 : vector<1x1x50x256xbf16> to vector<50x256xbf16>
    %cst_85 = arith.constant dense<0.000000e+00> : vector<1x256xf32>
    %469 = tpu.matmul %466, %468, %cst_85 {dimension_numbers = #tpu.dot_dimension_numbers<[1], [0], [0], [1], [0, 0, 1, 1], [], []>} : vector<1x50xbf16>, vector<50x256xbf16>, vector<1x256xf32> -> vector<1x256xf32>
    %470 = arith.addf %463, %469 : vector<1x256xf32>
    %471 = vector.extract_strided_slice %405 {offsets = [0, 2, 1, 0], sizes = [1, 1, 1, 50], strides = [1, 1, 1, 1]} : vector<1x4x4x50xf32> to vector<1x1x1x50xf32>
    %472 = vector.shape_cast %471 : vector<1x1x1x50xf32> to vector<1x50xf32>
    %473 = arith.truncf %472 : vector<1x50xf32> to vector<1x50xbf16>
    %474 = vector.extract_strided_slice %406 {offsets = [2, 1, 0, 0], sizes = [1, 1, 50, 256], strides = [1, 1, 1, 1]} : vector<4x4x50x256xbf16> to vector<1x1x50x256xbf16>
    %475 = vector.shape_cast %474 : vector<1x1x50x256xbf16> to vector<50x256xbf16>
    %cst_86 = arith.constant dense<0.000000e+00> : vector<1x256xf32>
    %476 = tpu.matmul %473, %475, %cst_86 {dimension_numbers = #tpu.dot_dimension_numbers<[1], [0], [0], [1], [0, 0, 1, 1], [], []>} : vector<1x50xbf16>, vector<50x256xbf16>, vector<1x256xf32> -> vector<1x256xf32>
    %477 = arith.addf %470, %476 : vector<1x256xf32>
    %478 = vector.extract_strided_slice %405 {offsets = [0, 2, 2, 0], sizes = [1, 1, 1, 50], strides = [1, 1, 1, 1]} : vector<1x4x4x50xf32> to vector<1x1x1x50xf32>
    %479 = vector.shape_cast %478 : vector<1x1x1x50xf32> to vector<1x50xf32>
    %480 = arith.truncf %479 : vector<1x50xf32> to vector<1x50xbf16>
    %481 = vector.extract_strided_slice %406 {offsets = [2, 2, 0, 0], sizes = [1, 1, 50, 256], strides = [1, 1, 1, 1]} : vector<4x4x50x256xbf16> to vector<1x1x50x256xbf16>
    %482 = vector.shape_cast %481 : vector<1x1x50x256xbf16> to vector<50x256xbf16>
    %cst_87 = arith.constant dense<0.000000e+00> : vector<1x256xf32>
    %483 = tpu.matmul %480, %482, %cst_87 {dimension_numbers = #tpu.dot_dimension_numbers<[1], [0], [0], [1], [0, 0, 1, 1], [], []>} : vector<1x50xbf16>, vector<50x256xbf16>, vector<1x256xf32> -> vector<1x256xf32>
    %484 = arith.addf %477, %483 : vector<1x256xf32>
    %485 = vector.extract_strided_slice %405 {offsets = [0, 2, 3, 0], sizes = [1, 1, 1, 50], strides = [1, 1, 1, 1]} : vector<1x4x4x50xf32> to vector<1x1x1x50xf32>
    %486 = vector.shape_cast %485 : vector<1x1x1x50xf32> to vector<1x50xf32>
    %487 = arith.truncf %486 : vector<1x50xf32> to vector<1x50xbf16>
    %488 = vector.extract_strided_slice %406 {offsets = [2, 3, 0, 0], sizes = [1, 1, 50, 256], strides = [1, 1, 1, 1]} : vector<4x4x50x256xbf16> to vector<1x1x50x256xbf16>
    %489 = vector.shape_cast %488 : vector<1x1x50x256xbf16> to vector<50x256xbf16>
    %cst_88 = arith.constant dense<0.000000e+00> : vector<1x256xf32>
    %490 = tpu.matmul %487, %489, %cst_88 {dimension_numbers = #tpu.dot_dimension_numbers<[1], [0], [0], [1], [0, 0, 1, 1], [], []>} : vector<1x50xbf16>, vector<50x256xbf16>, vector<1x256xf32> -> vector<1x256xf32>
    %491 = arith.addf %484, %490 : vector<1x256xf32>
    %492 = vector.extract_strided_slice %405 {offsets = [0, 3, 0, 0], sizes = [1, 1, 1, 50], strides = [1, 1, 1, 1]} : vector<1x4x4x50xf32> to vector<1x1x1x50xf32>
    %493 = vector.shape_cast %492 : vector<1x1x1x50xf32> to vector<1x50xf32>
    %494 = arith.truncf %493 : vector<1x50xf32> to vector<1x50xbf16>
    %495 = vector.extract_strided_slice %406 {offsets = [3, 0, 0, 0], sizes = [1, 1, 50, 256], strides = [1, 1, 1, 1]} : vector<4x4x50x256xbf16> to vector<1x1x50x256xbf16>
    %496 = vector.shape_cast %495 : vector<1x1x50x256xbf16> to vector<50x256xbf16>
    %cst_89 = arith.constant dense<0.000000e+00> : vector<1x256xf32>
    %497 = tpu.matmul %494, %496, %cst_89 {dimension_numbers = #tpu.dot_dimension_numbers<[1], [0], [0], [1], [0, 0, 1, 1], [], []>} : vector<1x50xbf16>, vector<50x256xbf16>, vector<1x256xf32> -> vector<1x256xf32>
    %498 = arith.addf %491, %497 : vector<1x256xf32>
    %499 = vector.extract_strided_slice %405 {offsets = [0, 3, 1, 0], sizes = [1, 1, 1, 50], strides = [1, 1, 1, 1]} : vector<1x4x4x50xf32> to vector<1x1x1x50xf32>
    %500 = vector.shape_cast %499 : vector<1x1x1x50xf32> to vector<1x50xf32>
    %501 = arith.truncf %500 : vector<1x50xf32> to vector<1x50xbf16>
    %502 = vector.extract_strided_slice %406 {offsets = [3, 1, 0, 0], sizes = [1, 1, 50, 256], strides = [1, 1, 1, 1]} : vector<4x4x50x256xbf16> to vector<1x1x50x256xbf16>
    %503 = vector.shape_cast %502 : vector<1x1x50x256xbf16> to vector<50x256xbf16>
    %cst_90 = arith.constant dense<0.000000e+00> : vector<1x256xf32>
    %504 = tpu.matmul %501, %503, %cst_90 {dimension_numbers = #tpu.dot_dimension_numbers<[1], [0], [0], [1], [0, 0, 1, 1], [], []>} : vector<1x50xbf16>, vector<50x256xbf16>, vector<1x256xf32> -> vector<1x256xf32>
    %505 = arith.addf %498, %504 : vector<1x256xf32>
    %506 = vector.extract_strided_slice %405 {offsets = [0, 3, 2, 0], sizes = [1, 1, 1, 50], strides = [1, 1, 1, 1]} : vector<1x4x4x50xf32> to vector<1x1x1x50xf32>
    %507 = vector.shape_cast %506 : vector<1x1x1x50xf32> to vector<1x50xf32>
    %508 = arith.truncf %507 : vector<1x50xf32> to vector<1x50xbf16>
    %509 = vector.extract_strided_slice %406 {offsets = [3, 2, 0, 0], sizes = [1, 1, 50, 256], strides = [1, 1, 1, 1]} : vector<4x4x50x256xbf16> to vector<1x1x50x256xbf16>
    %510 = vector.shape_cast %509 : vector<1x1x50x256xbf16> to vector<50x256xbf16>
    %cst_91 = arith.constant dense<0.000000e+00> : vector<1x256xf32>
    %511 = tpu.matmul %508, %510, %cst_91 {dimension_numbers = #tpu.dot_dimension_numbers<[1], [0], [0], [1], [0, 0, 1, 1], [], []>} : vector<1x50xbf16>, vector<50x256xbf16>, vector<1x256xf32> -> vector<1x256xf32>
    %512 = arith.addf %505, %511 : vector<1x256xf32>
    %513 = vector.extract_strided_slice %405 {offsets = [0, 3, 3, 0], sizes = [1, 1, 1, 50], strides = [1, 1, 1, 1]} : vector<1x4x4x50xf32> to vector<1x1x1x50xf32>
    %514 = vector.shape_cast %513 : vector<1x1x1x50xf32> to vector<1x50xf32>
    %515 = arith.truncf %514 : vector<1x50xf32> to vector<1x50xbf16>
    %516 = vector.extract_strided_slice %406 {offsets = [3, 3, 0, 0], sizes = [1, 1, 50, 256], strides = [1, 1, 1, 1]} : vector<4x4x50x256xbf16> to vector<1x1x50x256xbf16>
    %517 = vector.shape_cast %516 : vector<1x1x50x256xbf16> to vector<50x256xbf16>
    %cst_92 = arith.constant dense<0.000000e+00> : vector<1x256xf32>
    %518 = tpu.matmul %515, %517, %cst_92 {dimension_numbers = #tpu.dot_dimension_numbers<[1], [0], [0], [1], [0, 0, 1, 1], [], []>} : vector<1x50xbf16>, vector<50x256xbf16>, vector<1x256xf32> -> vector<1x256xf32>
    %519 = arith.addf %512, %518 : vector<1x256xf32>
    %c0_93 = arith.constant 0 : index
    %c0_94 = arith.constant 0 : index
    %520 = vector.load %arg7[%c0_93, %c0_94] : memref<1x256xf32, #tpu.memory_space<vmem>>, vector<1x256xf32>
    %521 = arith.addf %519, %520 : vector<1x256xf32>
    %c0_95 = arith.constant 0 : index
    %c0_96 = arith.constant 0 : index
    %522 = vector.load %arg8[%c0_95, %c0_96] : memref<256x128xbf16, #tpu.memory_space<vmem>>, vector<256x128xbf16>
    %523 = arith.truncf %521 : vector<1x256xf32> to vector<1x256xbf16>
    %cst_97 = arith.constant dense<0.000000e+00> : vector<1x128xf32>
    %524 = tpu.matmul %523, %522, %cst_97 {dimension_numbers = #tpu.dot_dimension_numbers<[1], [0], [0], [1], [0, 0, 1, 1], [], []>} : vector<1x256xbf16>, vector<256x128xbf16>, vector<1x128xf32> -> vector<1x128xf32>
    %c0_98 = arith.constant 0 : index
    %c0_99 = arith.constant 0 : index
    %525 = vector.load %arg9[%c0_98, %c0_99] : memref<1x128xf32, #tpu.memory_space<vmem>>, vector<1x128xf32>
    %526 = arith.addf %524, %525 : vector<1x128xf32>
    %cst_100 = arith.constant dense<0xFF800000> : vector<1xf32>
    %527 = vector.multi_reduction <maximumf>, %526, %cst_100 [1] : vector<1x128xf32> to vector<1xf32>
    %528 = vector.shape_cast %527 : vector<1xf32> to vector<1x1xf32>
    %529 = vector.broadcast %528 : vector<1x1xf32> to vector<1x128xf32>
    %530 = arith.subf %526, %529 : vector<1x128xf32>
    %531 = math.exp %530 : vector<1x128xf32>
    %cst_101 = arith.constant dense<0.000000e+00> : vector<1xf32>
    %532 = vector.multi_reduction <add>, %531, %cst_101 [1] : vector<1x128xf32> to vector<1xf32>
    %533 = vector.shape_cast %532 : vector<1xf32> to vector<1x1xf32>
    %534 = math.log %533 : vector<1x1xf32>
    %535 = vector.broadcast %534 : vector<1x1xf32> to vector<1x128xf32>
    %536 = arith.subf %530, %535 : vector<1x128xf32>
    %c0_102 = arith.constant 0 : index
    %c0_103 = arith.constant 0 : index
    %c0_104 = arith.constant 0 : index
    %537 = vector.load %arg10[%c0_102, %c0_103, %c0_104] : memref<1x1x128xf32, #tpu.memory_space<vmem>>, vector<1x1x128xf32>
    %538 = vector.shape_cast %537 : vector<1x1x128xf32> to vector<1x128xf32>
    %539 = vector.shape_cast %536 : vector<1x128xf32> to vector<1x1x128xf32>
    tpu.vector_store %arg10[%c0_102, %c0_103, %c0_104], %539 {strides = array<i32>} : memref<1x1x128xf32, #tpu.memory_space<vmem>>, vector<1x1x128xf32>,
    return
  }
  func.func @transform_0(%arg0: i32) -> (i32, i32, i32, i32) {
    %c0_i32 = arith.constant 0 : i32
    %c0_i32_0 = arith.constant 0 : i32
    %c0_i32_1 = arith.constant 0 : i32
    %c0_i32_2 = arith.constant 0 : i32
    return %arg0, %c0_i32, %c0_i32_0, %c0_i32_1 : i32, i32, i32, i32
  }
  func.func @transform_1(%arg0: i32) -> (i32, i32, i32, i32) {
    %c0_i32 = arith.constant 0 : i32
    %c0_i32_0 = arith.constant 0 : i32
    %c0_i32_1 = arith.constant 0 : i32
    %c0_i32_2 = arith.constant 0 : i32
    %c0_i32_3 = arith.constant 0 : i32
    return %c0_i32, %c0_i32_0, %c0_i32_1, %c0_i32_2 : i32, i32, i32, i32
  }
  func.func @transform_2(%arg0: i32) -> (i32, i32) {
    %c0_i32 = arith.constant 0 : i32
    %c0_i32_0 = arith.constant 0 : i32
    %c0_i32_1 = arith.constant 0 : i32
    return %c0_i32, %c0_i32_0 : i32, i32
  }
  func.func @transform_3(%arg0: i32) -> (i32, i32, i32, i32) {
    %c0_i32 = arith.constant 0 : i32
    %c0_i32_0 = arith.constant 0 : i32
    %c0_i32_1 = arith.constant 0 : i32
    %c0_i32_2 = arith.constant 0 : i32
    %c0_i32_3 = arith.constant 0 : i32
    return %c0_i32, %c0_i32_0, %c0_i32_1, %c0_i32_2 : i32, i32, i32, i32
  }
  func.func @transform_4(%arg0: i32) -> (i32, i32) {
    %c0_i32 = arith.constant 0 : i32
    %c0_i32_0 = arith.constant 0 : i32
    %c0_i32_1 = arith.constant 0 : i32
    return %c0_i32, %c0_i32_0 : i32, i32
  }
  func.func @transform_5(%arg0: i32) -> (i32, i32, i32, i32) {
    %c0_i32 = arith.constant 0 : i32
    %c0_i32_0 = arith.constant 0 : i32
    %c0_i32_1 = arith.constant 0 : i32
    %c0_i32_2 = arith.constant 0 : i32
    %c0_i32_3 = arith.constant 0 : i32
    return %c0_i32, %c0_i32_0, %c0_i32_1, %c0_i32_2 : i32, i32, i32, i32
  }
  func.func @transform_6(%arg0: i32) -> (i32, i32) {
    %c0_i32 = arith.constant 0 : i32
    %c0_i32_0 = arith.constant 0 : i32
    %c0_i32_1 = arith.constant 0 : i32
    return %c0_i32, %c0_i32_0 : i32, i32
  }
  func.func @transform_7(%arg0: i32) -> (i32, i32) {
    %c0_i32 = arith.constant 0 : i32
    %c0_i32_0 = arith.constant 0 : i32
    %c0_i32_1 = arith.constant 0 : i32
    return %c0_i32, %c0_i32_0 : i32, i32
  }
  func.func @transform_8(%arg0: i32) -> (i32, i32) {
    %c0_i32 = arith.constant 0 : i32
    %c0_i32_0 = arith.constant 0 : i32
    %c0_i32_1 = arith.constant 0 : i32
    return %c0_i32, %c0_i32_0 : i32, i32
  }
  func.func @transform_9(%arg0: i32) -> (i32, i32, i32) {
    %c0_i32 = arith.constant 0 : i32
    %c0_i32_0 = arith.constant 0 : i32
    %c0_i32_1 = arith.constant 0 : i32
    return %arg0, %c0_i32, %c0_i32_0 : i32, i32, i32
  }
}

</mosaic_0001>

<llo_original>
// kernel: _lambda_.1
$region0: #{_lambda_.1}
  #allocation0 [shape = 'u32[]', space=smem, size = 0x4, offset = 0x4, fixed_abs, tag = 'smem constant byte address 0x4 - core index']
  #allocation1 [shape = 'u32[72,128]{1,0:T(1,128)}', space=vmem, size = 0x9000, scoped, tag = 'internal scratch']
  #allocation2 [shape = 'f32[1,20,20,1]{3,2,1,0:T(8,128)}', space=vmem, size = 0x3c000, scoped, tag = 'scratch operand']
  #allocation3 [shape = 'f32[1,12,12,20]{3,2,1,0:T(8,128)}', space=vmem, size = 0x18000, scoped, tag = 'scratch operand']
  %s0 = inlined_call_operand.vmem [shape: f32[2,16,16,1], index: 0, kind: input, shape index: {}]
  %s1 = inlined_call_operand.vmem [shape: f32[5,5,1,20], index: 1, kind: input, shape index: {}]
  %s2 = inlined_call_operand.vmem [shape: f32[1,20], index: 2, kind: input, shape index: {}]
  %s3 = inlined_call_operand.vmem [shape: bf16[5,5,20,50], index: 3, kind: input, shape index: {}]
  %s4 = inlined_call_operand.vmem [shape: f32[1,50], index: 4, kind: input, shape index: {}]
  %s5 = inlined_call_operand.vmem [shape: bf16[4,4,50,256], index: 5, kind: input, shape index: {}]
  %s6 = inlined_call_operand.vmem [shape: f32[1,256], index: 6, kind: input, shape index: {}]
  %s7 = inlined_call_operand.vmem [shape: bf16[256,128], index: 7, kind: input, shape index: {}]
  %s8 = inlined_call_operand.vmem [shape: f32[1,128], index: 8, kind: input, shape index: {}]
  %s9 = inlined_call_operand.hbm [shape: f32[2,1,128], index: 9, kind: output, shape index: {}]
  %s10 = sld [smem:[#allocation0]]
  $region69: #{_lambda_.1} parent=0
    _
  %s12 = ssub.s32 1, %s10
  %s13 = scalar_select 0, %s12, %s10
  $region1: #{_lambda_.1} parent=0
    #allocation4 [shape = 'u8[1024]{0}', space=vmem, size = 0x400, scoped, tag = 'output window, operand 0']
    #allocation5 [shape = 's32[2]{0}', space=sflag, size = 0x8, scoped, tag = 'scoped memory for _lambda_.1']
    %14 = vsyncpa [#allocation5], 0
    %s15 = scalar_lea.sflag [#allocation5], 1
    %16 = vsyncpa %s15, 0
    loop: start=0, step=1, limit=4
    $region2: #{_lambda_.1} parent=1 // loop_pre_header
      _
    $region3: #{_lambda_.1} parent=1 // loop_header
      %s18 = sphi 0, %s22
      %p19 = scmp.ge.s32.totalorder %s18, 4
      %s28 = sphi 0, %s30
      %s31 = sphi 0, %s28
      %s32 = sphi 0, %s31
      %s48 = sphi 0, %s32
      %s52 = sphi 0, %s52
      %s54 = sphi 0, %s52
      %s55 = sphi 0, %s54
      %s69 = sphi 0, %s55
      %s73 = sphi 0, %s73
      %s75 = sphi 0, %s73
      %s76 = sphi 0, %s75
      %s90 = sphi 0, %s76
      %s94 = sphi 0, %s94
      %s96 = sphi 0, %s94
      %s97 = sphi 0, %s96
      %s111 = sphi 0, %s97
      %s115 = sphi 0, %s115
      %s117 = sphi 0, %s115
      %s118 = sphi 0, %s117
      %s132 = sphi 0, %s118
      %s136 = sphi 0, %s136
      %s138 = sphi 0, %s136
      %s139 = sphi 0, %s138
      %s153 = sphi 0, %s139
      %s157 = sphi 0, %s157
      %s159 = sphi 0, %s157
      %s160 = sphi 0, %s159
      %s174 = sphi 0, %s160
      %s178 = sphi 0, %s178
      %s180 = sphi 0, %s178
      %s181 = sphi 0, %s180
      %s195 = sphi 0, %s181
      %s199 = sphi 0, %s199
      %s201 = sphi 0, %s199
      %s202 = sphi 0, %s201
      %s216 = sphi 0, %s202
      %s222 = sphi 0, %s224
      %s225 = sphi 0, %s222
      %s226 = sphi 0, %s225
      %s242 = sphi 0, %s226
    $region4: #{_lambda_.1} parent=1 // loop_header_branch
      %21 = sbr.rel (%p19) target = $region8
    $region5: #{_lambda_.1} parent=1 // loop_body
      %s23 = ssub.s32 %s18, 1
      %s24 = ssub.s32 %s18, 2
      %s25 = sadd.s32 %s18, 1
      %s26 = ssub.s32 %s18, %s25
      %p27 = scmp.eq.s32.totalorder %s26, 0
      %s29 = sadd.s32 %s28, 1
      %s30 = scalar_select %p27, %s28, %s29
      %p33 = pneg %p27
      %p34 = scmp.eq.s32.totalorder %s18, 1
      %p35 = por %p33, %p34
      %p36 = scmp.ne.s32.totalorder %s28, %s31
      %p37 = scmp.eq.s32.totalorder %s18, 0
      %p38 = por %p36, %p37
      %p39 = scmp.ne.s32.totalorder %s28, %s31
      %p40 = scmp.eq.s32.totalorder %s23, 1
      %p41 = por %p39, %p40
      %p42 = scmp.ne.s32.totalorder %s31, %s32
      %p43 = scmp.eq.s32.totalorder %s23, 0
      %p44 = por %p42, %p43
      %p45 = scmp.ne.s32.totalorder %s31, %s32
      %p46 = scmp.eq.s32.totalorder %s24, 1
      %p47 = por %p45, %p46
      %p49 = scmp.ne.s32.totalorder %s32, %s48
      %p50 = scmp.eq.s32.totalorder %s24, 0
      %p51 = por %p49, %p50
      %s53 = sadd.s32 %s52, 1
      %p56 = scmp.eq.s32.totalorder %s18, 1
      %p57 = scmp.ne.s32.totalorder %s52, %s54
      %p58 = scmp.eq.s32.totalorder %s18, 0
      %p59 = por %p57, %p58
      %p60 = scmp.ne.s32.totalorder %s52, %s54
      %p61 = scmp.eq.s32.totalorder %s23, 1
      %p62 = por %p60, %p61
      %p63 = scmp.ne.s32.totalorder %s54, %s55
      %p64 = scmp.eq.s32.totalorder %s23, 0
      %p65 = por %p63, %p64
      %p66 = scmp.ne.s32.totalorder %s54, %s55
      %p67 = scmp.eq.s32.totalorder %s24, 1
      %p68 = por %p66, %p67
      %p70 = scmp.ne.s32.totalorder %s55, %s69
      %p71 = scmp.eq.s32.totalorder %s24, 0
      %p72 = por %p70, %p71
      %s74 = sadd.s32 %s73, 1
      %p77 = scmp.eq.s32.totalorder %s18, 1
      %p78 = scmp.ne.s32.totalorder %s73, %s75
      %p79 = scmp.eq.s32.totalorder %s18, 0
      %p80 = por %p78, %p79
      %p81 = scmp.ne.s32.totalorder %s73, %s75
      %p82 = scmp.eq.s32.totalorder %s23, 1
      %p83 = por %p81, %p82
      %p84 = scmp.ne.s32.totalorder %s75, %s76
      %p85 = scmp.eq.s32.totalorder %s23, 0
      %p86 = por %p84, %p85
      %p87 = scmp.ne.s32.totalorder %s75, %s76
      %p88 = scmp.eq.s32.totalorder %s24, 1
      %p89 = por %p87, %p88
      %p91 = scmp.ne.s32.totalorder %s76, %s90
      %p92 = scmp.eq.s32.totalorder %s24, 0
      %p93 = por %p91, %p92
      %s95 = sadd.s32 %s94, 1
      %p98 = scmp.eq.s32.totalorder %s18, 1
      %p99 = scmp.ne.s32.totalorder %s94, %s96
      %p100 = scmp.eq.s32.totalorder %s18, 0
      %p101 = por %p99, %p100
      %p102 = scmp.ne.s32.totalorder %s94, %s96
      %p103 = scmp.eq.s32.totalorder %s23, 1
      %p104 = por %p102, %p103
      %p105 = scmp.ne.s32.totalorder %s96, %s97
      %p106 = scmp.eq.s32.totalorder %s23, 0
      %p107 = por %p105, %p106
      %p108 = scmp.ne.s32.totalorder %s96, %s97
      %p109 = scmp.eq.s32.totalorder %s24, 1
      %p110 = por %p108, %p109
      %p112 = scmp.ne.s32.totalorder %s97, %s111
      %p113 = scmp.eq.s32.totalorder %s24, 0
      %p114 = por %p112, %p113
      %s116 = sadd.s32 %s115, 1
      %p119 = scmp.eq.s32.totalorder %s18, 1
      %p120 = scmp.ne.s32.totalorder %s115, %s117
      %p121 = scmp.eq.s32.totalorder %s18, 0
      %p122 = por %p120, %p121
      %p123 = scmp.ne.s32.totalorder %s115, %s117
      %p124 = scmp.eq.s32.totalorder %s23, 1
      %p125 = por %p123, %p124
      %p126 = scmp.ne.s32.totalorder %s117, %s118
      %p127 = scmp.eq.s32.totalorder %s23, 0
      %p128 = por %p126, %p127
      %p129 = scmp.ne.s32.totalorder %s117, %s118
      %p130 = scmp.eq.s32.totalorder %s24, 1
      %p131 = por %p129, %p130
      %p133 = scmp.ne.s32.totalorder %s118, %s132
      %p134 = scmp.eq.s32.totalorder %s24, 0
      %p135 = por %p133, %p134
      %s137 = sadd.s32 %s136, 1
      %p140 = scmp.eq.s32.totalorder %s18, 1
      %p141 = scmp.ne.s32.totalorder %s136, %s138
      %p142 = scmp.eq.s32.totalorder %s18, 0
      %p143 = por %p141, %p142
      %p144 = scmp.ne.s32.totalorder %s136, %s138
      %p145 = scmp.eq.s32.totalorder %s23, 1
      %p146 = por %p144, %p145
      %p147 = scmp.ne.s32.totalorder %s138, %s139
      %p148 = scmp.eq.s32.totalorder %s23, 0
      %p149 = por %p147, %p148
      %p150 = scmp.ne.s32.totalorder %s138, %s139
      %p151 = scmp.eq.s32.totalorder %s24, 1
      %p152 = por %p150, %p151
      %p154 = scmp.ne.s32.totalorder %s139, %s153
      %p155 = scmp.eq.s32.totalorder %s24, 0
      %p156 = por %p154, %p155
      %s158 = sadd.s32 %s157, 1
      %p161 = scmp.eq.s32.totalorder %s18, 1
      %p162 = scmp.ne.s32.totalorder %s157, %s159
      %p163 = scmp.eq.s32.totalorder %s18, 0
      %p164 = por %p162, %p163
      %p165 = scmp.ne.s32.totalorder %s157, %s159
      %p166 = scmp.eq.s32.totalorder %s23, 1
      %p167 = por %p165, %p166
      %p168 = scmp.ne.s32.totalorder %s159, %s160
      %p169 = scmp.eq.s32.totalorder %s23, 0
      %p170 = por %p168, %p169
      %p171 = scmp.ne.s32.totalorder %s159, %s160
      %p172 = scmp.eq.s32.totalorder %s24, 1
      %p173 = por %p171, %p172
      %p175 = scmp.ne.s32.totalorder %s160, %s174
      %p176 = scmp.eq.s32.totalorder %s24, 0
      %p177 = por %p175, %p176
      %s179 = sadd.s32 %s178, 1
      %p182 = scmp.eq.s32.totalorder %s18, 1
      %p183 = scmp.ne.s32.totalorder %s178, %s180
      %p184 = scmp.eq.s32.totalorder %s18, 0
      %p185 = por %p183, %p184
      %p186 = scmp.ne.s32.totalorder %s178, %s180
      %p187 = scmp.eq.s32.totalorder %s23, 1
      %p188 = por %p186, %p187
      %p189 = scmp.ne.s32.totalorder %s180, %s181
      %p190 = scmp.eq.s32.totalorder %s23, 0
      %p191 = por %p189, %p190
      %p192 = scmp.ne.s32.totalorder %s180, %s181
      %p193 = scmp.eq.s32.totalorder %s24, 1
      %p194 = por %p192, %p193
      %p196 = scmp.ne.s32.totalorder %s181, %s195
      %p197 = scmp.eq.s32.totalorder %s24, 0
      %p198 = por %p196, %p197
      %s200 = sadd.s32 %s199, 1
      %p203 = scmp.eq.s32.totalorder %s18, 1
      %p204 = scmp.ne.s32.totalorder %s199, %s201
      %p205 = scmp.eq.s32.totalorder %s18, 0
      %p206 = por %p204, %p205
      %p207 = scmp.ne.s32.totalorder %s199, %s201
      %p208 = scmp.eq.s32.totalorder %s23, 1
      %p209 = por %p207, %p208
      %p210 = scmp.ne.s32.totalorder %s201, %s202
      %p211 = scmp.eq.s32.totalorder %s23, 0
      %p212 = por %p210, %p211
      %p213 = scmp.ne.s32.totalorder %s201, %s202
      %p214 = scmp.eq.s32.totalorder %s24, 1
      %p215 = por %p213, %p214
      %p217 = scmp.ne.s32.totalorder %s202, %s216
      %p218 = scmp.eq.s32.totalorder %s24, 0
      %p219 = por %p217, %p218
      %s220 = ssub.s32 %s18, %s25
      %p221 = scmp.eq.s32.totalorder %s220, 0
      %s223 = sadd.s32 %s222, 1
      %s224 = scalar_select %p221, %s222, %s223
      %p227 = pneg %p221
      %p228 = scmp.eq.s32.totalorder %s18, 1
      %p229 = por %p227, %p228
      %p230 = scmp.ne.s32.totalorder %s222, %s225
      %p231 = scmp.eq.s32.totalorder %s18, 0
      %p232 = por %p230, %p231
      %p233 = scmp.ne.s32.totalorder %s222, %s225
      %p234 = scmp.eq.s32.totalorder %s23, 1
      %p235 = por %p233, %p234
      %p236 = scmp.ne.s32.totalorder %s225, %s226
      %p237 = scmp.eq.s32.totalorder %s23, 0
      %p238 = por %p236, %p237
      %p239 = scmp.ne.s32.totalorder %s225, %s226
      %p240 = scmp.eq.s32.totalorder %s24, 1
      %p241 = por %p239, %p240
      %p243 = scmp.ne.s32.totalorder %s226, %s242
      %p244 = scmp.eq.s32.totalorder %s24, 0
      %p245 = por %p243, %p244
      %p246 = scmp.le.s32.totalorder 1, %s18
      %p247 = scmp.lt.s32.totalorder %s18, 3
      %p248 = pnand %p246, %p247
      %p249 = pneg %p248
      // Predicated region
      $region9: #{_lambda_.1} parent=5 // pred_check
        _
      $region10: #{_lambda_.1} parent=5 // pred_check_branch
        %251 = sbr.rel (%p248) target = $region12
      $region11: #{_lambda_.1} parent=5 // pred_region
        %s252 = ssub.s32 %s18, 1
        // Predicated region
        $region13: #{_lambda_.1} parent=11 // pred_check
          %p253 = pneg %p65
        $region14: #{_lambda_.1} parent=11 // pred_check_branch
          %255 = sbr.rel (%p253) target = $region16
        $region15: #{_lambda_.1} parent=11 // pred_region
          _
        $region16: #{_lambda_.1} parent=11 // pred_fallthru
          _
        // Predicated region
        $region17: #{_lambda_.1} parent=11 // pred_check
          %p256 = pneg %p86
        $region18: #{_lambda_.1} parent=11 // pred_check_branch
          %258 = sbr.rel (%p256) target = $region20
        $region19: #{_lambda_.1} parent=11 // pred_region
          _
        $region20: #{_lambda_.1} parent=11 // pred_fallthru
          _
        // Predicated region
        $region21: #{_lambda_.1} parent=11 // pred_check
          %p259 = pneg %p107
        $region22: #{_lambda_.1} parent=11 // pred_check_branch
          %261 = sbr.rel (%p259) target = $region24
        $region23: #{_lambda_.1} parent=11 // pred_region
          _
        $region24: #{_lambda_.1} parent=11 // pred_fallthru
          _
        // Predicated region
        $region25: #{_lambda_.1} parent=11 // pred_check
          %p262 = pneg %p128
        $region26: #{_lambda_.1} parent=11 // pred_check_branch
          %264 = sbr.rel (%p262) target = $region28
        $region27: #{_lambda_.1} parent=11 // pred_region
          _
        $region28: #{_lambda_.1} parent=11 // pred_fallthru
          _
        // Predicated region
        $region29: #{_lambda_.1} parent=11 // pred_check
          %p265 = pneg %p149
        $region30: #{_lambda_.1} parent=11 // pred_check_branch
          %267 = sbr.rel (%p265) target = $region32
        $region31: #{_lambda_.1} parent=11 // pred_region
          _
        $region32: #{_lambda_.1} parent=11 // pred_fallthru
          _
        // Predicated region
        $region33: #{_lambda_.1} parent=11 // pred_check
          %p268 = pneg %p170
        $region34: #{_lambda_.1} parent=11 // pred_check_branch
          %270 = sbr.rel (%p268) target = $region36
        $region35: #{_lambda_.1} parent=11 // pred_region
          _
        $region36: #{_lambda_.1} parent=11 // pred_fallthru
          _
        // Predicated region
        $region37: #{_lambda_.1} parent=11 // pred_check
          %p271 = pneg %p191
        $region38: #{_lambda_.1} parent=11 // pred_check_branch
          %273 = sbr.rel (%p271) target = $region40
        $region39: #{_lambda_.1} parent=11 // pred_region
          _
        $region40: #{_lambda_.1} parent=11 // pred_fallthru
          _
        // Predicated region
        $region41: #{_lambda_.1} parent=11 // pred_check
          %p274 = pneg %p212
        $region42: #{_lambda_.1} parent=11 // pred_check_branch
          %276 = sbr.rel (%p274) target = $region44
        $region43: #{_lambda_.1} parent=11 // pred_region
          _
        $region44: #{_lambda_.1} parent=11 // pred_fallthru
          _
      $region12: #{_lambda_.1} parent=5 // pred_fallthru
        _
      %p277 = scmp.lt.s32.totalorder %s18, 2
      // Predicated region
      $region45: #{_lambda_.1} parent=5 // pred_check
        %p278 = pneg %p277
      $region46: #{_lambda_.1} parent=5 // pred_check_branch
        %280 = sbr.rel (%p278) target = $region48
      $region47: #{_lambda_.1} parent=5 // pred_region
        // Predicated region
        $region49: #{_lambda_.1} parent=47 // pred_check
          %p281 = pneg %p38
        $region50: #{_lambda_.1} parent=47 // pred_check_branch
          %283 = sbr.rel (%p281) target = $region52
        $region51: #{_lambda_.1} parent=47 // pred_region
          %p284 = scmp.lt.s32.totalorder %s18, 1
          %s285 = scalar_select %p284, %s18, 1
          %s286 = smul.addr %s285, 32
          %s287 = smul.addr %s286, 8
          %s288 = scalar_lea.vmem %s0, %s287
        $region52: #{_lambda_.1} parent=47 // pred_fallthru
          _
      $region48: #{_lambda_.1} parent=5 // pred_fallthru
        _
      %p289 = scmp.le.s32.totalorder 1, %s18
      %p290 = scmp.lt.s32.totalorder %s18, 3
      %p291 = pnand %p289, %p290
      %p292 = pneg %p291
      // Predicated region
      $region53: #{_lambda_.1} parent=5 // pred_check
        _
      $region54: #{_lambda_.1} parent=5 // pred_check_branch
        %294 = sbr.rel (%p291) target = $region56
      $region55: #{_lambda_.1} parent=5 // pred_region
        %s295 = ssub.s32 %s18, 1
        %p296 = scmp.lt.s32.totalorder %s23, 1
        %s297 = scalar_select %p296, %s23, 1
        %s298 = smul.addr %s297, 32
        %s299 = smul.addr %s298, 8
        %s300 = scalar_lea.vmem %s0, %s299
        %p301 = pneg %p44
        %p302 = pneg %p41
        %p303 = pneg %p65
        %p304 = pneg %p62
        %p305 = pneg %p86
        %p306 = pneg %p83
        %p307 = pneg %p107
        %p308 = pneg %p104
        %p309 = pneg %p128
        %p310 = pneg %p125
        %p311 = pneg %p149
        %p312 = pneg %p146
        %p313 = pneg %p170
        %p314 = pneg %p167
        %p315 = pneg %p191
        %p316 = pneg %p188
        %p317 = pneg %p212
        %p318 = pneg %p209
        %p319 = pneg %p238
        %p320 = pneg %p235
        %s321 = sand.u32 %s225, 1
        %s322 = scalar_lea.sflag [#allocation5], %s321
        %s323 = sand.u32 %s225, 1
        %s324 = scalar_lea.vmem [#allocation4], %s323
        %p325 = scmp.lt.s32.totalorder %s23, 1
        %s326 = scalar_select %p325, %s23, 1
        %s327 = smul.addr %s326, 32
        %s328 = smul.addr %s327, 8
        %s329 = scalar_lea.vmem %s0, %s328
        %vm331 = vcmask 7168
        %332 = vst.msk [vmem:[#allocation2] sm:$0xff] %vm331, 0.0
        %333 = vst.msk [vmem:[#allocation2 + $0x8] sm:$0xff] %vm331, 0.0
        %vm334 = vcmask 3072
        %335 = vst.msk [vmem:[#allocation2 + $0x10] sm:$0xf] %vm334, 0.0
        %336 = vst.msk [vmem:[#allocation2 + $0x18] sm:$0xff] %vm331, 0.0
        %337 = vst.msk [vmem:[#allocation2 + $0x20] sm:$0xff] %vm331, 0.0
        %338 = vst.msk [vmem:[#allocation2 + $0x28] sm:$0xf] %vm334, 0.0
        %339 = vst.msk [vmem:[#allocation2 + $0x30] sm:$0xff] %vm331, 0.0
        %340 = vst.msk [vmem:[#allocation2 + $0x38] sm:$0xff] %vm331, 0.0
        %341 = vst.msk [vmem:[#allocation2 + $0x40] sm:$0xf] %vm334, 0.0
        %342 = vst.msk [vmem:[#allocation2 + $0x48] sm:$0xff] %vm331, 0.0
        %343 = vst.msk [vmem:[#allocation2 + $0x50] sm:$0xff] %vm331, 0.0
        %344 = vst.msk [vmem:[#allocation2 + $0x58] sm:$0xf] %vm334, 0.0
        %345 = vst.msk [vmem:[#allocation2 + $0x60] sm:$0xff] %vm331, 0.0
        %346 = vst.msk [vmem:[#allocation2 + $0x68] sm:$0xff] %vm331, 0.0
        %347 = vst.msk [vmem:[#allocation2 + $0x70] sm:$0xf] %vm334, 0.0
        %348 = vst.msk [vmem:[#allocation2 + $0x78] sm:$0xff] %vm331, 0.0
        %349 = vst.msk [vmem:[#allocation2 + $0x80] sm:$0xff] %vm331, 0.0
        %350 = vst.msk [vmem:[#allocation2 + $0x88] sm:$0xf] %vm334, 0.0
        %351 = vst.msk [vmem:[#allocation2 + $0x90] sm:$0xff] %vm331, 0.0
        %352 = vst.msk [vmem:[#allocation2 + $0x98] sm:$0xff] %vm331, 0.0
        %353 = vst.msk [vmem:[#allocation2 + $0xa0] sm:$0xf] %vm334, 0.0
        %354 = vst.msk [vmem:[#allocation2 + $0xa8] sm:$0xff] %vm331, 0.0
        %355 = vst.msk [vmem:[#allocation2 + $0xb0] sm:$0xff] %vm331, 0.0
        %356 = vst.msk [vmem:[#allocation2 + $0xb8] sm:$0xf] %vm334, 0.0
        %357 = vst.msk [vmem:[#allocation2 + $0xc0] sm:$0xff] %vm331, 0.0
        %358 = vst.msk [vmem:[#allocation2 + $0xc8] sm:$0xff] %vm331, 0.0
        %359 = vst.msk [vmem:[#allocation2 + $0xd0] sm:$0xf] %vm334, 0.0
        %360 = vst.msk [vmem:[#allocation2 + $0xd8] sm:$0xff] %vm331, 0.0
        %361 = vst.msk [vmem:[#allocation2 + $0xe0] sm:$0xff] %vm331, 0.0
        %362 = vst.msk [vmem:[#allocation2 + $0xe8] sm:$0xf] %vm334, 0.0
        %363 = vst.msk [vmem:[#allocation2 + $0xf0] sm:$0xff] %vm331, 0.0
        %364 = vst.msk [vmem:[#allocation2 + $0xf8] sm:$0xff] %vm331, 0.0
        %365 = vst.msk [vmem:[#allocation2 + $0x100] sm:$0xf] %vm334, 0.0
        %366 = vst.msk [vmem:[#allocation2 + $0x108] sm:$0xff] %vm331, 0.0
        %367 = vst.msk [vmem:[#allocation2 + $0x110] sm:$0xff] %vm331, 0.0
        %368 = vst.msk [vmem:[#allocation2 + $0x118] sm:$0xf] %vm334, 0.0
        %369 = vst.msk [vmem:[#allocation2 + $0x120] sm:$0xff] %vm331, 0.0
        %370 = vst.msk [vmem:[#allocation2 + $0x128] sm:$0xff] %vm331, 0.0
        %371 = vst.msk [vmem:[#allocation2 + $0x130] sm:$0xf] %vm334, 0.0
        %372 = vst.msk [vmem:[#allocation2 + $0x138] sm:$0xff] %vm331, 0.0
        %373 = vst.msk [vmem:[#allocation2 + $0x140] sm:$0xff] %vm331, 0.0
        %374 = vst.msk [vmem:[#allocation2 + $0x148] sm:$0xf] %vm334, 0.0
        %375 = vst.msk [vmem:[#allocation2 + $0x150] sm:$0xff] %vm331, 0.0
        %376 = vst.msk [vmem:[#allocation2 + $0x158] sm:$0xff] %vm331, 0.0
        %377 = vst.msk [vmem:[#allocation2 + $0x160] sm:$0xf] %vm334, 0.0
        %378 = vst.msk [vmem:[#allocation2 + $0x168] sm:$0xff] %vm331, 0.0
        %379 = vst.msk [vmem:[#allocation2 + $0x170] sm:$0xff] %vm331, 0.0
        %380 = vst.msk [vmem:[#allocation2 + $0x178] sm:$0xf] %vm334, 0.0
        %381 = vst.msk [vmem:[#allocation2 + $0x180] sm:$0xff] %vm331, 0.0
        %382 = vst.msk [vmem:[#allocation2 + $0x188] sm:$0xff] %vm331, 0.0
        %383 = vst.msk [vmem:[#allocation2 + $0x190] sm:$0xf] %vm334, 0.0
        %384 = vst.msk [vmem:[#allocation2 + $0x198] sm:$0xff] %vm331, 0.0
        %385 = vst.msk [vmem:[#allocation2 + $0x1a0] sm:$0xff] %vm331, 0.0
        %386 = vst.msk [vmem:[#allocation2 + $0x1a8] sm:$0xf] %vm334, 0.0
        %387 = vst.msk [vmem:[#allocation2 + $0x1b0] sm:$0xff] %vm331, 0.0
        %388 = vst.msk [vmem:[#allocation2 + $0x1b8] sm:$0xff] %vm331, 0.0
        %389 = vst.msk [vmem:[#allocation2 + $0x1c0] sm:$0xf] %vm334, 0.0
        %390 = vst.msk [vmem:[#allocation2 + $0x1c8] sm:$0xff] %vm331, 0.0
        %391 = vst.msk [vmem:[#allocation2 + $0x1d0] sm:$0xff] %vm331, 0.0
        %392 = vst.msk [vmem:[#allocation2 + $0x1d8] sm:$0xf] %vm334, 0.0
        %v393 = vld [vmem:[%s329] sm:$0xff]
        %v394 = vld [vmem:[%s329 + $0x8] sm:$0xff]
        %v395 = vld [vmem:[%s329 + $0x10] sm:$0xff]
        %v396 = vld [vmem:[%s329 + $0x18] sm:$0xff]
        %v397 = vld [vmem:[%s329 + $0x20] sm:$0xff]
        %v398 = vld [vmem:[%s329 + $0x28] sm:$0xff]
        %v399 = vld [vmem:[%s329 + $0x30] sm:$0xff]
        %v400 = vld [vmem:[%s329 + $0x38] sm:$0xff]
        %v401 = vld [vmem:[%s329 + $0x40] sm:$0xff]
        %v402 = vld [vmem:[%s329 + $0x48] sm:$0xff]
        %v403 = vld [vmem:[%s329 + $0x50] sm:$0xff]
        %v404 = vld [vmem:[%s329 + $0x58] sm:$0xff]
        %v405 = vld [vmem:[%s329 + $0x60] sm:$0xff]
        %v406 = vld [vmem:[%s329 + $0x68] sm:$0xff]
        %v407 = vld [vmem:[%s329 + $0x70] sm:$0xff]
        %v408 = vld [vmem:[%s329 + $0x78] sm:$0xff]
        %v409 = vld [vmem:[%s329 + $0x80] sm:$0xff]
        %v410 = vld [vmem:[%s329 + $0x88] sm:$0xff]
        %v411 = vld [vmem:[%s329 + $0x90] sm:$0xff]
        %v412 = vld [vmem:[%s329 + $0x98] sm:$0xff]
        %v413 = vld [vmem:[%s329 + $0xa0] sm:$0xff]
        %v414 = vld [vmem:[%s329 + $0xa8] sm:$0xff]
        %v415 = vld [vmem:[%s329 + $0xb0] sm:$0xff]
        %v416 = vld [vmem:[%s329 + $0xb8] sm:$0xff]
        %v417 = vld [vmem:[%s329 + $0xc0] sm:$0xff]
        %v418 = vld [vmem:[%s329 + $0xc8] sm:$0xff]
        %v419 = vld [vmem:[%s329 + $0xd0] sm:$0xff]
        %v420 = vld [vmem:[%s329 + $0xd8] sm:$0xff]
        %v421 = vld [vmem:[%s329 + $0xe0] sm:$0xff]
        %v422 = vld [vmem:[%s329 + $0xe8] sm:$0xff]
        %v423 = vld [vmem:[%s329 + $0xf0] sm:$0xff]
        %v424 = vld [vmem:[%s329 + $0xf8] sm:$0xff]
        %s425 = scalar_lea.vmem [#allocation2], 48
        %426 = vst.msk [vmem:[%s425 + $0x2] sm:$0xff] %vm331, %v393
        %427 = vst.msk [vmem:[%s425 + $0xa] sm:$0xff] %vm331, %v394
        %428 = vst.msk [vmem:[%s425 + $0x1a] sm:$0xff] %vm331, %v395
        %429 = vst.msk [vmem:[%s425 + $0x22] sm:$0xff] %vm331, %v396
        %430 = vst.msk [vmem:[%s425 + $0x32] sm:$0xff] %vm331, %v397
        %431 = vst.msk [vmem:[%s425 + $0x3a] sm:$0xff] %vm331, %v398
        %432 = vst.msk [vmem:[%s425 + $0x4a] sm:$0xff] %vm331, %v399
        %433 = vst.msk [vmem:[%s425 + $0x52] sm:$0xff] %vm331, %v400
        %434 = vst.msk [vmem:[%s425 + $0x62] sm:$0xff] %vm331, %v401
        %435 = vst.msk [vmem:[%s425 + $0x6a] sm:$0xff] %vm331, %v402
        %436 = vst.msk [vmem:[%s425 + $0x7a] sm:$0xff] %vm331, %v403
        %437 = vst.msk [vmem:[%s425 + $0x82] sm:$0xff] %vm331, %v404
        %438 = vst.msk [vmem:[%s425 + $0x92] sm:$0xff] %vm331, %v405
        %439 = vst.msk [vmem:[%s425 + $0x9a] sm:$0xff] %vm331, %v406
        %440 = vst.msk [vmem:[%s425 + $0xaa] sm:$0xff] %vm331, %v407
        %441 = vst.msk [vmem:[%s425 + $0xb2] sm:$0xff] %vm331, %v408
        %442 = vst.msk [vmem:[%s425 + $0xc2] sm:$0xff] %vm331, %v409
        %443 = vst.msk [vmem:[%s425 + $0xca] sm:$0xff] %vm331, %v410
        %444 = vst.msk [vmem:[%s425 + $0xda] sm:$0xff] %vm331, %v411
        %445 = vst.msk [vmem:[%s425 + $0xe2] sm:$0xff] %vm331, %v412
        %446 = vst.msk [vmem:[%s425 + $0xf2] sm:$0xff] %vm331, %v413
        %447 = vst.msk [vmem:[%s425 + $0xfa] sm:$0xff] %vm331, %v414
        %448 = vst.msk [vmem:[%s425 + $0x10a] sm:$0xff] %vm331, %v415
        %449 = vst.msk [vmem:[%s425 + $0x112] sm:$0xff] %vm331, %v416
        %450 = vst.msk [vmem:[%s425 + $0x122] sm:$0xff] %vm331, %v417
        %451 = vst.msk [vmem:[%s425 + $0x12a] sm:$0xff] %vm331, %v418
        %452 = vst.msk [vmem:[%s425 + $0x13a] sm:$0xff] %vm331, %v419
        %453 = vst.msk [vmem:[%s425 + $0x142] sm:$0xff] %vm331, %v420
        %454 = vst.msk [vmem:[%s425 + $0x152] sm:$0xff] %vm331, %v421
        %455 = vst.msk [vmem:[%s425 + $0x15a] sm:$0xff] %vm331, %v422
        %456 = vst.msk [vmem:[%s425 + $0x16a] sm:$0xff] %vm331, %v423
        %457 = vst.msk [vmem:[%s425 + $0x172] sm:$0xff] %vm331, %v424
        %v458 = vld [vmem:[#allocation2] sm:$0xff]
        %v459 = vld [vmem:[#allocation2 + $0x8] sm:$0xff]
        %v460 = vld [vmem:[#allocation2 + $0x10] sm:$0xf]
        %v461 = vld [vmem:[#allocation2 + $0x18] sm:$0xff]
        %v462 = vld [vmem:[#allocation2 + $0x20] sm:$0xff]
        %v463 = vld [vmem:[#allocation2 + $0x28] sm:$0xf]
        %v464 = vld [vmem:[#allocation2 + $0x30] sm:$0xff]
        %v465 = vld [vmem:[#allocation2 + $0x38] sm:$0xff]
        %v466 = vld [vmem:[#allocation2 + $0x40] sm:$0xf]
        %v467 = vld [vmem:[#allocation2 + $0x48] sm:$0xff]
        %v468 = vld [vmem:[#allocation2 + $0x50] sm:$0xff]
        %v469 = vld [vmem:[#allocation2 + $0x58] sm:$0xf]
        %v470 = vld [vmem:[#allocation2 + $0x60] sm:$0xff]
        %v471 = vld [vmem:[#allocation2 + $0x68] sm:$0xff]
        %v472 = vld [vmem:[#allocation2 + $0x70] sm:$0xf]
        %v473 = vld [vmem:[#allocation2 + $0x78] sm:$0xff]
        %v474 = vld [vmem:[#allocation2 + $0x80] sm:$0xff]
        %v475 = vld [vmem:[#allocation2 + $0x88] sm:$0xf]
        %v476 = vld [vmem:[#allocation2 + $0x90] sm:$0xff]
        %v477 = vld [vmem:[#allocation2 + $0x98] sm:$0xff]
        %v478 = vld [vmem:[#allocation2 + $0xa0] sm:$0xf]
        %v479 = vld [vmem:[#allocation2 + $0xa8] sm:$0xff]
        %v480 = vld [vmem:[#allocation2 + $0xb0] sm:$0xff]
        %v481 = vld [vmem:[#allocation2 + $0xb8] sm:$0xf]
        %v482 = vld [vmem:[#allocation2 + $0xc0] sm:$0xff]
        %v483 = vld [vmem:[#allocation2 + $0xc8] sm:$0xff]
        %v484 = vld [vmem:[#allocation2 + $0xd0] sm:$0xf]
        %v485 = vld [vmem:[#allocation2 + $0xd8] sm:$0xff]
        %v486 = vld [vmem:[#allocation2 + $0xe0] sm:$0xff]
        %v487 = vld [vmem:[#allocation2 + $0xe8] sm:$0xf]
        %v488 = vld [vmem:[#allocation2 + $0xf0] sm:$0xff]
        %v489 = vld [vmem:[#allocation2 + $0xf8] sm:$0xff]
        %v490 = vld [vmem:[#allocation2 + $0x100] sm:$0xf]
        %v491 = vld [vmem:[#allocation2 + $0x108] sm:$0xff]
        %v492 = vld [vmem:[#allocation2 + $0x110] sm:$0xff]
        %v493 = vld [vmem:[#allocation2 + $0x118] sm:$0xf]
        %v494 = vld [vmem:[#allocation2 + $0x120] sm:$0xff]
        %v495 = vld [vmem:[#allocation2 + $0x128] sm:$0xff]
        %v496 = vld [vmem:[#allocation2 + $0x130] sm:$0xf]
        %v497 = vld [vmem:[#allocation2 + $0x138] sm:$0xff]
        %v498 = vld [vmem:[#allocation2 + $0x140] sm:$0xff]
        %v499 = vld [vmem:[#allocation2 + $0x148] sm:$0xf]
        %v500 = vld [vmem:[#allocation2 + $0x150] sm:$0xff]
        %v501 = vld [vmem:[#allocation2 + $0x158] sm:$0xff]
        %v502 = vld [vmem:[#allocation2 + $0x160] sm:$0xf]
        %v503 = vld [vmem:[#allocation2 + $0x168] sm:$0xff]
        %v504 = vld [vmem:[#allocation2 + $0x170] sm:$0xff]
        %v505 = vld [vmem:[#allocation2 + $0x178] sm:$0xf]
        %v506 = vld [vmem:[#allocation2 + $0x180] sm:$0xff]
        %v507 = vld [vmem:[#allocation2 + $0x188] sm:$0xff]
        %v508 = vld [vmem:[#allocation2 + $0x190] sm:$0xf]
        %v509 = vld [vmem:[#allocation2 + $0x198] sm:$0xff]
        %v510 = vld [vmem:[#allocation2 + $0x1a0] sm:$0xff]
        %v511 = vld [vmem:[#allocation2 + $0x1a8] sm:$0xf]
        %v512 = vld [vmem:[#allocation2 + $0x1b0] sm:$0xff]
        %v513 = vld [vmem:[#allocation2 + $0x1b8] sm:$0xff]
        %v514 = vld [vmem:[#allocation2 + $0x1c0] sm:$0xf]
        %v515 = vld [vmem:[#allocation2 + $0x1c8] sm:$0xff]
        %v516 = vld [vmem:[#allocation2 + $0x1d0] sm:$0xff]
        %v517 = vld [vmem:[#allocation2 + $0x1d8] sm:$0xf]
        %v518 = vld [vmem:[%s1] sm:$0x1]
        %v519 = vld [vmem:[%s1 + $0x1] sm:$0x1]
        %v520 = vld [vmem:[%s1 + $0x2] sm:$0x1]
        %v521 = vld [vmem:[%s1 + $0x3] sm:$0x1]
        %v522 = vld [vmem:[%s1 + $0x4] sm:$0x1]
        %v523 = vld [vmem:[%s1 + $0x5] sm:$0x1]
        %v524 = vld [vmem:[%s1 + $0x6] sm:$0x1]
        %v525 = vld [vmem:[%s1 + $0x7] sm:$0x1]
        %v526 = vld [vmem:[%s1 + $0x8] sm:$0x1]
        %v527 = vld [vmem:[%s1 + $0x9] sm:$0x1]
        %v528 = vld [vmem:[%s1 + $0xa] sm:$0x1]
        %v529 = vld [vmem:[%s1 + $0xb] sm:$0x1]
        %v530 = vld [vmem:[%s1 + $0xc] sm:$0x1]
        %v531 = vld [vmem:[%s1 + $0xd] sm:$0x1]
        %v532 = vld [vmem:[%s1 + $0xe] sm:$0x1]
        %v533 = vld [vmem:[%s1 + $0xf] sm:$0x1]
        %v534 = vld [vmem:[%s1 + $0x10] sm:$0x1]
        %v535 = vld [vmem:[%s1 + $0x11] sm:$0x1]
        %v536 = vld [vmem:[%s1 + $0x12] sm:$0x1]
        %v537 = vld [vmem:[%s1 + $0x13] sm:$0x1]
        %v538 = vld [vmem:[%s1 + $0x14] sm:$0x1]
        %v539 = vld [vmem:[%s1 + $0x15] sm:$0x1]
        %v540 = vld [vmem:[%s1 + $0x16] sm:$0x1]
        %v541 = vld [vmem:[%s1 + $0x17] sm:$0x1]
        %v542 = vld [vmem:[%s1 + $0x18] sm:$0x1]
        %544 = vset.pattern.permute.xlu0 0
        %545 = vperm.xlu0 %544, %v458
        %v546 = vpop.permute.xlu0 %545
        %549 = vset.pattern.permute.xlu0 0
        %550 = vperm.xlu0 %549, %v459
        %v551 = vpop.permute.xlu0 %550
        %554 = vset.pattern.permute.xlu0 0
        %555 = vperm.xlu0 %554, %v461
        %v556 = vpop.permute.xlu0 %555
        %559 = vset.pattern.permute.xlu0 0
        %560 = vperm.xlu0 %559, %v462
        %v561 = vpop.permute.xlu0 %560
        %564 = vset.pattern.permute.xlu0 0
        %565 = vperm.xlu0 %564, %v464
        %v566 = vpop.permute.xlu0 %565
        %569 = vset.pattern.permute.xlu0 0
        %570 = vperm.xlu0 %569, %v465
        %v571 = vpop.permute.xlu0 %570
        %574 = vset.pattern.permute.xlu0 0
        %575 = vperm.xlu0 %574, %v467
        %v576 = vpop.permute.xlu0 %575
        %579 = vset.pattern.permute.xlu0 0
        %580 = vperm.xlu0 %579, %v468
        %v581 = vpop.permute.xlu0 %580
        %584 = vset.pattern.permute.xlu0 0
        %585 = vperm.xlu0 %584, %v470
        %v586 = vpop.permute.xlu0 %585
        %589 = vset.pattern.permute.xlu0 0
        %590 = vperm.xlu0 %589, %v471
        %v591 = vpop.permute.xlu0 %590
        %594 = vset.pattern.permute.xlu0 0
        %595 = vperm.xlu0 %594, %v473
        %v596 = vpop.permute.xlu0 %595
        %599 = vset.pattern.permute.xlu0 0
        %600 = vperm.xlu0 %599, %v474
        %v601 = vpop.permute.xlu0 %600
        %604 = vset.pattern.permute.xlu0 0
        %605 = vperm.xlu0 %604, %v476
        %v606 = vpop.permute.xlu0 %605
        %609 = vset.pattern.permute.xlu0 0
        %610 = vperm.xlu0 %609, %v477
        %v611 = vpop.permute.xlu0 %610
        %614 = vset.pattern.permute.xlu0 0
        %615 = vperm.xlu0 %614, %v479
        %v616 = vpop.permute.xlu0 %615
        %619 = vset.pattern.permute.xlu0 0
        %620 = vperm.xlu0 %619, %v480
        %v621 = vpop.permute.xlu0 %620
        %624 = vset.pattern.permute.xlu0 0
        %625 = vperm.xlu0 %624, %v482
        %v626 = vpop.permute.xlu0 %625
        %629 = vset.pattern.permute.xlu0 0
        %630 = vperm.xlu0 %629, %v483
        %v631 = vpop.permute.xlu0 %630
        %634 = vset.pattern.permute.xlu0 0
        %635 = vperm.xlu0 %634, %v485
        %v636 = vpop.permute.xlu0 %635
        %639 = vset.pattern.permute.xlu0 0
        %640 = vperm.xlu0 %639, %v486
        %v641 = vpop.permute.xlu0 %640
        %644 = vset.pattern.permute.xlu0 0
        %645 = vperm.xlu0 %644, %v488
        %v646 = vpop.permute.xlu0 %645
        %649 = vset.pattern.permute.xlu0 0
        %650 = vperm.xlu0 %649, %v489
        %v651 = vpop.permute.xlu0 %650
        %654 = vset.pattern.permute.xlu0 0
        %655 = vperm.xlu0 %654, %v491
        %v656 = vpop.permute.xlu0 %655
        %659 = vset.pattern.permute.xlu0 0
        %660 = vperm.xlu0 %659, %v492
        %v661 = vpop.permute.xlu0 %660
        %664 = vset.pattern.permute.xlu0 0
        %665 = vperm.xlu0 %664, %v494
        %v666 = vpop.permute.xlu0 %665
        %669 = vset.pattern.permute.xlu0 0
        %670 = vperm.xlu0 %669, %v495
        %v671 = vpop.permute.xlu0 %670
        %674 = vset.pattern.permute.xlu0 0
        %675 = vperm.xlu0 %674, %v497
        %v676 = vpop.permute.xlu0 %675
        %679 = vset.pattern.permute.xlu0 0
        %680 = vperm.xlu0 %679, %v498
        %v681 = vpop.permute.xlu0 %680
        %684 = vset.pattern.permute.xlu0 0
        %685 = vperm.xlu0 %684, %v500
        %v686 = vpop.permute.xlu0 %685
        %689 = vset.pattern.permute.xlu0 0
        %690 = vperm.xlu0 %689, %v501
        %v691 = vpop.permute.xlu0 %690
        %694 = vset.pattern.permute.xlu0 0
        %695 = vperm.xlu0 %694, %v503
        %v696 = vpop.permute.xlu0 %695
        %699 = vset.pattern.permute.xlu0 0
        %700 = vperm.xlu0 %699, %v504
        %v701 = vpop.permute.xlu0 %700
        %v704 = vperm.slane %v518, 0
        %v706 = vmul.f32 %v546, %v704
        %v707 = vmul.f32 %v551, %v704
        %v708 = vmul.f32 %v556, %v704
        %v709 = vmul.f32 %v561, %v704
        %v710 = vmul.f32 %v566, %v704
        %v711 = vmul.f32 %v571, %v704
        %v712 = vmul.f32 %v576, %v704
        %v713 = vmul.f32 %v581, %v704
        %v714 = vmul.f32 %v586, %v704
        %v715 = vmul.f32 %v591, %v704
        %v716 = vmul.f32 %v596, %v704
        %v717 = vmul.f32 %v601, %v704
        %v718 = vmul.f32 %v606, %v704
        %v719 = vmul.f32 %v611, %v704
        %v720 = vmul.f32 %v616, %v704
        %v721 = vmul.f32 %v621, %v704
        %v722 = vmul.f32 %v626, %v704
        %v723 = vmul.f32 %v631, %v704
        %v724 = vmul.f32 %v636, %v704
        %v725 = vmul.f32 %v641, %v704
        %v726 = vmul.f32 %v646, %v704
        %v727 = vmul.f32 %v651, %v704
        %v728 = vmul.f32 %v656, %v704
        %v729 = vmul.f32 %v661, %v704
        %v730 = vmul.f32 %v666, %v704
        %v731 = vmul.f32 %v671, %v704
        %v732 = vmul.f32 %v676, %v704
        %v733 = vmul.f32 %v681, %v704
        %v734 = vmul.f32 %v686, %v704
        %v735 = vmul.f32 %v691, %v704
        %v736 = vmul.f32 %v696, %v704
        %v737 = vmul.f32 %v701, %v704
        %v738 = vadd.f32 %v706, 0.0
        %v739 = vadd.f32 %v707, 0.0
        %v740 = vadd.f32 %v708, 0.0
        %v741 = vadd.f32 %v709, 0.0
        %v742 = vadd.f32 %v710, 0.0
        %v743 = vadd.f32 %v711, 0.0
        %v744 = vadd.f32 %v712, 0.0
        %v745 = vadd.f32 %v713, 0.0
        %v746 = vadd.f32 %v714, 0.0
        %v747 = vadd.f32 %v715, 0.0
        %v748 = vadd.f32 %v716, 0.0
        %v749 = vadd.f32 %v717, 0.0
        %v750 = vadd.f32 %v718, 0.0
        %v751 = vadd.f32 %v719, 0.0
        %v752 = vadd.f32 %v720, 0.0
        %v753 = vadd.f32 %v721, 0.0
        %v754 = vadd.f32 %v722, 0.0
        %v755 = vadd.f32 %v723, 0.0
        %v756 = vadd.f32 %v724, 0.0
        %v757 = vadd.f32 %v725, 0.0
        %v758 = vadd.f32 %v726, 0.0
        %v759 = vadd.f32 %v727, 0.0
        %v760 = vadd.f32 %v728, 0.0
        %v761 = vadd.f32 %v729, 0.0
        %v762 = vadd.f32 %v730, 0.0
        %v763 = vadd.f32 %v731, 0.0
        %v764 = vadd.f32 %v732, 0.0
        %v765 = vadd.f32 %v733, 0.0
        %v766 = vadd.f32 %v734, 0.0
        %v767 = vadd.f32 %v735, 0.0
        %v768 = vadd.f32 %v736, 0.0
        %v769 = vadd.f32 %v737, 0.0
        %vm786 = vcmask 1046528
        %v787 = vrot.slane %v458, 1
        %v788 = vrot.slane %v459, 1
        %v789 = vsel %vm786, %v787, %v788
        %v790 = vrot.slane %v460, 1
        %v791 = vsel %vm786, %v788, %v790
        %v792 = vrot.slane %v461, 1
        %v793 = vrot.slane %v462, 1
        %v794 = vsel %vm786, %v792, %v793
        %v795 = vrot.slane %v463, 1
        %v796 = vsel %vm786, %v793, %v795
        %v797 = vrot.slane %v464, 1
        %v798 = vrot.slane %v465, 1
        %v799 = vsel %vm786, %v797, %v798
        %v800 = vrot.slane %v466, 1
        %v801 = vsel %vm786, %v798, %v800
        %v802 = vrot.slane %v467, 1
        %v803 = vrot.slane %v468, 1
        %v804 = vsel %vm786, %v802, %v803
        %v805 = vrot.slane %v469, 1
        %v806 = vsel %vm786, %v803, %v805
        %v807 = vrot.slane %v470, 1
        %v808 = vrot.slane %v471, 1
        %v809 = vsel %vm786, %v807, %v808
        %v810 = vrot.slane %v472, 1
        %v811 = vsel %vm786, %v808, %v810
        %v812 = vrot.slane %v473, 1
        %v813 = vrot.slane %v474, 1
        %v814 = vsel %vm786, %v812, %v813
        %v815 = vrot.slane %v475, 1
        %v816 = vsel %vm786, %v813, %v815
        %v817 = vrot.slane %v476, 1
        %v818 = vrot.slane %v477, 1
        %v819 = vsel %vm786, %v817, %v818
        %v820 = vrot.slane %v478, 1
        %v821 = vsel %vm786, %v818, %v820
        %v822 = vrot.slane %v479, 1
        %v823 = vrot.slane %v480, 1
        %v824 = vsel %vm786, %v822, %v823
        %v825 = vrot.slane %v481, 1
        %v826 = vsel %vm786, %v823, %v825
        %v827 = vrot.slane %v482, 1
        %v828 = vrot.slane %v483, 1
        %v829 = vsel %vm786, %v827, %v828
        %v830 = vrot.slane %v484, 1
        %v831 = vsel %vm786, %v828, %v830
        %v832 = vrot.slane %v485, 1
        %v833 = vrot.slane %v486, 1
        %v834 = vsel %vm786, %v832, %v833
        %v835 = vrot.slane %v487, 1
        %v836 = vsel %vm786, %v833, %v835
        %v837 = vrot.slane %v488, 1
        %v838 = vrot.slane %v489, 1
        %v839 = vsel %vm786, %v837, %v838
        %v840 = vrot.slane %v490, 1
        %v841 = vsel %vm786, %v838, %v840
        %v842 = vrot.slane %v491, 1
        %v843 = vrot.slane %v492, 1
        %v844 = vsel %vm786, %v842, %v843
        %v845 = vrot.slane %v493, 1
        %v846 = vsel %vm786, %v843, %v845
        %v847 = vrot.slane %v494, 1
        %v848 = vrot.slane %v495, 1
        %v849 = vsel %vm786, %v847, %v848
        %v850 = vrot.slane %v496, 1
        %v851 = vsel %vm786, %v848, %v850
        %v852 = vrot.slane %v497, 1
        %v853 = vrot.slane %v498, 1
        %v854 = vsel %vm786, %v852, %v853
        %v855 = vrot.slane %v499, 1
        %v856 = vsel %vm786, %v853, %v855
        %v857 = vrot.slane %v500, 1
        %v858 = vrot.slane %v501, 1
        %v859 = vsel %vm786, %v857, %v858
        %v860 = vrot.slane %v502, 1
        %v861 = vsel %vm786, %v858, %v860
        %v862 = vrot.slane %v503, 1
        %v863 = vrot.slane %v504, 1
        %v864 = vsel %vm786, %v862, %v863
        %v865 = vrot.slane %v505, 1
        %v866 = vsel %vm786, %v863, %v865
        %867 = vset.pattern.permute.xlu0 0
        %868 = vperm.xlu0 %867, %v789
        %v869 = vpop.permute.xlu0 %868
        %871 = vset.pattern.permute.xlu0 0
        %872 = vperm.xlu0 %871, %v791
        %v873 = vpop.permute.xlu0 %872
        %875 = vset.pattern.permute.xlu0 0
        %876 = vperm.xlu0 %875, %v794
        %v877 = vpop.permute.xlu0 %876
        %879 = vset.pattern.permute.xlu0 0
        %880 = vperm.xlu0 %879, %v796
        %v881 = vpop.permute.xlu0 %880
        %883 = vset.pattern.permute.xlu0 0
        %884 = vperm.xlu0 %883, %v799
        %v885 = vpop.permute.xlu0 %884
        %887 = vset.pattern.permute.xlu0 0
        %888 = vperm.xlu0 %887, %v801
        %v889 = vpop.permute.xlu0 %888
        %891 = vset.pattern.permute.xlu0 0
        %892 = vperm.xlu0 %891, %v804
        %v893 = vpop.permute.xlu0 %892
        %895 = vset.pattern.permute.xlu0 0
        %896 = vperm.xlu0 %895, %v806
        %v897 = vpop.permute.xlu0 %896
        %899 = vset.pattern.permute.xlu0 0
        %900 = vperm.xlu0 %899, %v809
        %v901 = vpop.permute.xlu0 %900
        %903 = vset.pattern.permute.xlu0 0
        %904 = vperm.xlu0 %903, %v811
        %v905 = vpop.permute.xlu0 %904
        %907 = vset.pattern.permute.xlu0 0
        %908 = vperm.xlu0 %907, %v814
        %v909 = vpop.permute.xlu0 %908
        %911 = vset.pattern.permute.xlu0 0
        %912 = vperm.xlu0 %911, %v816
        %v913 = vpop.permute.xlu0 %912
        %915 = vset.pattern.permute.xlu0 0
        %916 = vperm.xlu0 %915, %v819
        %v917 = vpop.permute.xlu0 %916
        %919 = vset.pattern.permute.xlu0 0
        %920 = vperm.xlu0 %919, %v821
        %v921 = vpop.permute.xlu0 %920
        %923 = vset.pattern.permute.xlu0 0
        %924 = vperm.xlu0 %923, %v824
        %v925 = vpop.permute.xlu0 %924
        %927 = vset.pattern.permute.xlu0 0
        %928 = vperm.xlu0 %927, %v826
        %v929 = vpop.permute.xlu0 %928
        %931 = vset.pattern.permute.xlu0 0
        %932 = vperm.xlu0 %931, %v829
        %v933 = vpop.permute.xlu0 %932
        %935 = vset.pattern.permute.xlu0 0
        %936 = vperm.xlu0 %935, %v831
        %v937 = vpop.permute.xlu0 %936
        %939 = vset.pattern.permute.xlu0 0
        %940 = vperm.xlu0 %939, %v834
        %v941 = vpop.permute.xlu0 %940
        %943 = vset.pattern.permute.xlu0 0
        %944 = vperm.xlu0 %943, %v836
        %v945 = vpop.permute.xlu0 %944
        %947 = vset.pattern.permute.xlu0 0
        %948 = vperm.xlu0 %947, %v839
        %v949 = vpop.permute.xlu0 %948
        %951 = vset.pattern.permute.xlu0 0
        %952 = vperm.xlu0 %951, %v841
        %v953 = vpop.permute.xlu0 %952
        %955 = vset.pattern.permute.xlu0 0
        %956 = vperm.xlu0 %955, %v844
        %v957 = vpop.permute.xlu0 %956
        %959 = vset.pattern.permute.xlu0 0
        %960 = vperm.xlu0 %959, %v846
        %v961 = vpop.permute.xlu0 %960
        %963 = vset.pattern.permute.xlu0 0
        %964 = vperm.xlu0 %963, %v849
        %v965 = vpop.permute.xlu0 %964
        %967 = vset.pattern.permute.xlu0 0
        %968 = vperm.xlu0 %967, %v851
        %v969 = vpop.permute.xlu0 %968
        %971 = vset.pattern.permute.xlu0 0
        %972 = vperm.xlu0 %971, %v854
        %v973 = vpop.permute.xlu0 %972
        %975 = vset.pattern.permute.xlu0 0
        %976 = vperm.xlu0 %975, %v856
        %v977 = vpop.permute.xlu0 %976
        %979 = vset.pattern.permute.xlu0 0
        %980 = vperm.xlu0 %979, %v859
        %v981 = vpop.permute.xlu0 %980
        %983 = vset.pattern.permute.xlu0 0
        %984 = vperm.xlu0 %983, %v861
        %v985 = vpop.permute.xlu0 %984
        %987 = vset.pattern.permute.xlu0 0
        %988 = vperm.xlu0 %987, %v864
        %v989 = vpop.permute.xlu0 %988
        %991 = vset.pattern.permute.xlu0 0
        %992 = vperm.xlu0 %991, %v866
        %v993 = vpop.permute.xlu0 %992
        %v996 = vperm.slane %v519, 0
        %v998 = vmul.f32 %v869, %v996
        %v999 = vmul.f32 %v873, %v996
        %v1000 = vmul.f32 %v877, %v996
        %v1001 = vmul.f32 %v881, %v996
        %v1002 = vmul.f32 %v885, %v996
        %v1003 = vmul.f32 %v889, %v996
        %v1004 = vmul.f32 %v893, %v996
        %v1005 = vmul.f32 %v897, %v996
        %v1006 = vmul.f32 %v901, %v996
        %v1007 = vmul.f32 %v905, %v996
        %v1008 = vmul.f32 %v909, %v996
        %v1009 = vmul.f32 %v913, %v996
        %v1010 = vmul.f32 %v917, %v996
        %v1011 = vmul.f32 %v921, %v996
        %v1012 = vmul.f32 %v925, %v996
        %v1013 = vmul.f32 %v929, %v996
        %v1014 = vmul.f32 %v933, %v996
        %v1015 = vmul.f32 %v937, %v996
        %v1016 = vmul.f32 %v941, %v996
        %v1017 = vmul.f32 %v945, %v996
        %v1018 = vmul.f32 %v949, %v996
        %v1019 = vmul.f32 %v953, %v996
        %v1020 = vmul.f32 %v957, %v996
        %v1021 = vmul.f32 %v961, %v996
        %v1022 = vmul.f32 %v965, %v996
        %v1023 = vmul.f32 %v969, %v996
        %v1024 = vmul.f32 %v973, %v996
        %v1025 = vmul.f32 %v977, %v996
        %v1026 = vmul.f32 %v981, %v996
        %v1027 = vmul.f32 %v985, %v996
        %v1028 = vmul.f32 %v989, %v996
        %v1029 = vmul.f32 %v993, %v996
        %v1030 = vadd.f32 %v738, %v998
        %v1031 = vadd.f32 %v739, %v999
        %v1032 = vadd.f32 %v740, %v1000
        %v1033 = vadd.f32 %v741, %v1001
        %v1034 = vadd.f32 %v742, %v1002
        %v1035 = vadd.f32 %v743, %v1003
        %v1036 = vadd.f32 %v744, %v1004
        %v1037 = vadd.f32 %v745, %v1005
        %v1038 = vadd.f32 %v746, %v1006
        %v1039 = vadd.f32 %v747, %v1007
        %v1040 = vadd.f32 %v748, %v1008
        %v1041 = vadd.f32 %v749, %v1009
        %v1042 = vadd.f32 %v750, %v1010
        %v1043 = vadd.f32 %v751, %v1011
        %v1044 = vadd.f32 %v752, %v1012
        %v1045 = vadd.f32 %v753, %v1013
        %v1046 = vadd.f32 %v754, %v1014
        %v1047 = vadd.f32 %v755, %v1015
        %v1048 = vadd.f32 %v756, %v1016
        %v1049 = vadd.f32 %v757, %v1017
        %v1050 = vadd.f32 %v758, %v1018
        %v1051 = vadd.f32 %v759, %v1019
        %v1052 = vadd.f32 %v760, %v1020
        %v1053 = vadd.f32 %v761, %v1021
        %v1054 = vadd.f32 %v762, %v1022
        %v1055 = vadd.f32 %v763, %v1023
        %v1056 = vadd.f32 %v764, %v1024
        %v1057 = vadd.f32 %v765, %v1025
        %v1058 = vadd.f32 %v766, %v1026
        %v1059 = vadd.f32 %v767, %v1027
        %v1060 = vadd.f32 %v768, %v1028
        %v1061 = vadd.f32 %v769, %v1029
        %vm1062 = vcmask 1045504
        %v1063 = vrot.slane %v458, 2
        %v1064 = vrot.slane %v459, 2
        %v1065 = vsel %vm1062, %v1063, %v1064
        %v1066 = vrot.slane %v460, 2
        %v1067 = vsel %vm1062, %v1064, %v1066
        %v1068 = vrot.slane %v461, 2
        %v1069 = vrot.slane %v462, 2
        %v1070 = vsel %vm1062, %v1068, %v1069
        %v1071 = vrot.slane %v463, 2
        %v1072 = vsel %vm1062, %v1069, %v1071
        %v1073 = vrot.slane %v464, 2
        %v1074 = vrot.slane %v465, 2
        %v1075 = vsel %vm1062, %v1073, %v1074
        %v1076 = vrot.slane %v466, 2
        %v1077 = vsel %vm1062, %v1074, %v1076
        %v1078 = vrot.slane %v467, 2
        %v1079 = vrot.slane %v468, 2
        %v1080 = vsel %vm1062, %v1078, %v1079
        %v1081 = vrot.slane %v469, 2
        %v1082 = vsel %vm1062, %v1079, %v1081
        %v1083 = vrot.slane %v470, 2
        %v1084 = vrot.slane %v471, 2
        %v1085 = vsel %vm1062, %v1083, %v1084
        %v1086 = vrot.slane %v472, 2
        %v1087 = vsel %vm1062, %v1084, %v1086
        %v1088 = vrot.slane %v473, 2
        %v1089 = vrot.slane %v474, 2
        %v1090 = vsel %vm1062, %v1088, %v1089
        %v1091 = vrot.slane %v475, 2
        %v1092 = vsel %vm1062, %v1089, %v1091
        %v1093 = vrot.slane %v476, 2
        %v1094 = vrot.slane %v477, 2
        %v1095 = vsel %vm1062, %v1093, %v1094
        %v1096 = vrot.slane %v478, 2
        %v1097 = vsel %vm1062, %v1094, %v1096
        %v1098 = vrot.slane %v479, 2
        %v1099 = vrot.slane %v480, 2
        %v1100 = vsel %vm1062, %v1098, %v1099
        %v1101 = vrot.slane %v481, 2
        %v1102 = vsel %vm1062, %v1099, %v1101
        %v1103 = vrot.slane %v482, 2
        %v1104 = vrot.slane %v483, 2
        %v1105 = vsel %vm1062, %v1103, %v1104
        %v1106 = vrot.slane %v484, 2
        %v1107 = vsel %vm1062, %v1104, %v1106
        %v1108 = vrot.slane %v485, 2
        %v1109 = vrot.slane %v486, 2
        %v1110 = vsel %vm1062, %v1108, %v1109
        %v1111 = vrot.slane %v487, 2
        %v1112 = vsel %vm1062, %v1109, %v1111
        %v1113 = vrot.slane %v488, 2
        %v1114 = vrot.slane %v489, 2
        %v1115 = vsel %vm1062, %v1113, %v1114
        %v1116 = vrot.slane %v490, 2
        %v1117 = vsel %vm1062, %v1114, %v1116
        %v1118 = vrot.slane %v491, 2
        %v1119 = vrot.slane %v492, 2
        %v1120 = vsel %vm1062, %v1118, %v1119
        %v1121 = vrot.slane %v493, 2
        %v1122 = vsel %vm1062, %v1119, %v1121
        %v1123 = vrot.slane %v494, 2
        %v1124 = vrot.slane %v495, 2
        %v1125 = vsel %vm1062, %v1123, %v1124
        %v1126 = vrot.slane %v496, 2
        %v1127 = vsel %vm1062, %v1124, %v1126
        %v1128 = vrot.slane %v497, 2
        %v1129 = vrot.slane %v498, 2
        %v1130 = vsel %vm1062, %v1128, %v1129
        %v1131 = vrot.slane %v499, 2
        %v1132 = vsel %vm1062, %v1129, %v1131
        %v1133 = vrot.slane %v500, 2
        %v1134 = vrot.slane %v501, 2
        %v1135 = vsel %vm1062, %v1133, %v1134
        %v1136 = vrot.slane %v502, 2
        %v1137 = vsel %vm1062, %v1134, %v1136
        %v1138 = vrot.slane %v503, 2
        %v1139 = vrot.slane %v504, 2
        %v1140 = vsel %vm1062, %v1138, %v1139
        %v1141 = vrot.slane %v505, 2
        %v1142 = vsel %vm1062, %v1139, %v1141
        %1143 = vset.pattern.permute.xlu0 0
        %1144 = vperm.xlu0 %1143, %v1065
        %v1145 = vpop.permute.xlu0 %1144
        %1147 = vset.pattern.permute.xlu0 0
        %1148 = vperm.xlu0 %1147, %v1067
        %v1149 = vpop.permute.xlu0 %1148
        %1151 = vset.pattern.permute.xlu0 0
        %1152 = vperm.xlu0 %1151, %v1070
        %v1153 = vpop.permute.xlu0 %1152
        %1155 = vset.pattern.permute.xlu0 0
        %1156 = vperm.xlu0 %1155, %v1072
        %v1157 = vpop.permute.xlu0 %1156
        %1159 = vset.pattern.permute.xlu0 0
        %1160 = vperm.xlu0 %1159, %v1075
        %v1161 = vpop.permute.xlu0 %1160
        %1163 = vset.pattern.permute.xlu0 0
        %1164 = vperm.xlu0 %1163, %v1077
        %v1165 = vpop.permute.xlu0 %1164
        %1167 = vset.pattern.permute.xlu0 0
        %1168 = vperm.xlu0 %1167, %v1080
        %v1169 = vpop.permute.xlu0 %1168
        %1171 = vset.pattern.permute.xlu0 0
        %1172 = vperm.xlu0 %1171, %v1082
        %v1173 = vpop.permute.xlu0 %1172
        %1175 = vset.pattern.permute.xlu0 0
        %1176 = vperm.xlu0 %1175, %v1085
        %v1177 = vpop.permute.xlu0 %1176
        %1179 = vset.pattern.permute.xlu0 0
        %1180 = vperm.xlu0 %1179, %v1087
        %v1181 = vpop.permute.xlu0 %1180
        %1183 = vset.pattern.permute.xlu0 0
        %1184 = vperm.xlu0 %1183, %v1090
        %v1185 = vpop.permute.xlu0 %1184
        %1187 = vset.pattern.permute.xlu0 0
        %1188 = vperm.xlu0 %1187, %v1092
        %v1189 = vpop.permute.xlu0 %1188
        %1191 = vset.pattern.permute.xlu0 0
        %1192 = vperm.xlu0 %1191, %v1095
        %v1193 = vpop.permute.xlu0 %1192
        %1195 = vset.pattern.permute.xlu0 0
        %1196 = vperm.xlu0 %1195, %v1097
        %v1197 = vpop.permute.xlu0 %1196
        %1199 = vset.pattern.permute.xlu0 0
        %1200 = vperm.xlu0 %1199, %v1100
        %v1201 = vpop.permute.xlu0 %1200
        %1203 = vset.pattern.permute.xlu0 0
        %1204 = vperm.xlu0 %1203, %v1102
        %v1205 = vpop.permute.xlu0 %1204
        %1207 = vset.pattern.permute.xlu0 0
        %1208 = vperm.xlu0 %1207, %v1105
        %v1209 = vpop.permute.xlu0 %1208
        %1211 = vset.pattern.permute.xlu0 0
        %1212 = vperm.xlu0 %1211, %v1107
        %v1213 = vpop.permute.xlu0 %1212
        %1215 = vset.pattern.permute.xlu0 0
        %1216 = vperm.xlu0 %1215, %v1110
        %v1217 = vpop.permute.xlu0 %1216
        %1219 = vset.pattern.permute.xlu0 0
        %1220 = vperm.xlu0 %1219, %v1112
        %v1221 = vpop.permute.xlu0 %1220
        %1223 = vset.pattern.permute.xlu0 0
        %1224 = vperm.xlu0 %1223, %v1115
        %v1225 = vpop.permute.xlu0 %1224
        %1227 = vset.pattern.permute.xlu0 0
        %1228 = vperm.xlu0 %1227, %v1117
        %v1229 = vpop.permute.xlu0 %1228
        %1231 = vset.pattern.permute.xlu0 0
        %1232 = vperm.xlu0 %1231, %v1120
        %v1233 = vpop.permute.xlu0 %1232
        %1235 = vset.pattern.permute.xlu0 0
        %1236 = vperm.xlu0 %1235, %v1122
        %v1237 = vpop.permute.xlu0 %1236
        %1239 = vset.pattern.permute.xlu0 0
        %1240 = vperm.xlu0 %1239, %v1125
        %v1241 = vpop.permute.xlu0 %1240
        %1243 = vset.pattern.permute.xlu0 0
        %1244 = vperm.xlu0 %1243, %v1127
        %v1245 = vpop.permute.xlu0 %1244
        %1247 = vset.pattern.permute.xlu0 0
        %1248 = vperm.xlu0 %1247, %v1130
        %v1249 = vpop.permute.xlu0 %1248
        %1251 = vset.pattern.permute.xlu0 0
        %1252 = vperm.xlu0 %1251, %v1132
        %v1253 = vpop.permute.xlu0 %1252
        %1255 = vset.pattern.permute.xlu0 0
        %1256 = vperm.xlu0 %1255, %v1135
        %v1257 = vpop.permute.xlu0 %1256
        %1259 = vset.pattern.permute.xlu0 0
        %1260 = vperm.xlu0 %1259, %v1137
        %v1261 = vpop.permute.xlu0 %1260
        %1263 = vset.pattern.permute.xlu0 0
        %1264 = vperm.xlu0 %1263, %v1140
        %v1265 = vpop.permute.xlu0 %1264
        %1267 = vset.pattern.permute.xlu0 0
        %1268 = vperm.xlu0 %1267, %v1142
        %v1269 = vpop.permute.xlu0 %1268
        %v1272 = vperm.slane %v520, 0
        %v1274 = vmul.f32 %v1145, %v1272
        %v1275 = vmul.f32 %v1149, %v1272
        %v1276 = vmul.f32 %v1153, %v1272
        %v1277 = vmul.f32 %v1157, %v1272
        %v1278 = vmul.f32 %v1161, %v1272
        %v1279 = vmul.f32 %v1165, %v1272
        %v1280 = vmul.f32 %v1169, %v1272
        %v1281 = vmul.f32 %v1173, %v1272
        %v1282 = vmul.f32 %v1177, %v1272
        %v1283 = vmul.f32 %v1181, %v1272
        %v1284 = vmul.f32 %v1185, %v1272
        %v1285 = vmul.f32 %v1189, %v1272
        %v1286 = vmul.f32 %v1193, %v1272
        %v1287 = vmul.f32 %v1197, %v1272
        %v1288 = vmul.f32 %v1201, %v1272
        %v1289 = vmul.f32 %v1205, %v1272
        %v1290 = vmul.f32 %v1209, %v1272
        %v1291 = vmul.f32 %v1213, %v1272
        %v1292 = vmul.f32 %v1217, %v1272
        %v1293 = vmul.f32 %v1221, %v1272
        %v1294 = vmul.f32 %v1225, %v1272
        %v1295 = vmul.f32 %v1229, %v1272
        %v1296 = vmul.f32 %v1233, %v1272
        %v1297 = vmul.f32 %v1237, %v1272
        %v1298 = vmul.f32 %v1241, %v1272
        %v1299 = vmul.f32 %v1245, %v1272
        %v1300 = vmul.f32 %v1249, %v1272
        %v1301 = vmul.f32 %v1253, %v1272
        %v1302 = vmul.f32 %v1257, %v1272
        %v1303 = vmul.f32 %v1261, %v1272
        %v1304 = vmul.f32 %v1265, %v1272
        %v1305 = vmul.f32 %v1269, %v1272
        %v1306 = vadd.f32 %v1030, %v1274
        %v1307 = vadd.f32 %v1031, %v1275
        %v1308 = vadd.f32 %v1032, %v1276
        %v1309 = vadd.f32 %v1033, %v1277
        %v1310 = vadd.f32 %v1034, %v1278
        %v1311 = vadd.f32 %v1035, %v1279
        %v1312 = vadd.f32 %v1036, %v1280
        %v1313 = vadd.f32 %v1037, %v1281
        %v1314 = vadd.f32 %v1038, %v1282
        %v1315 = vadd.f32 %v1039, %v1283
        %v1316 = vadd.f32 %v1040, %v1284
        %v1317 = vadd.f32 %v1041, %v1285
        %v1318 = vadd.f32 %v1042, %v1286
        %v1319 = vadd.f32 %v1043, %v1287
        %v1320 = vadd.f32 %v1044, %v1288
        %v1321 = vadd.f32 %v1045, %v1289
        %v1322 = vadd.f32 %v1046, %v1290
        %v1323 = vadd.f32 %v1047, %v1291
        %v1324 = vadd.f32 %v1048, %v1292
        %v1325 = vadd.f32 %v1049, %v1293
        %v1326 = vadd.f32 %v1050, %v1294
        %v1327 = vadd.f32 %v1051, %v1295
        %v1328 = vadd.f32 %v1052, %v1296
        %v1329 = vadd.f32 %v1053, %v1297
        %v1330 = vadd.f32 %v1054, %v1298
        %v1331 = vadd.f32 %v1055, %v1299
        %v1332 = vadd.f32 %v1056, %v1300
        %v1333 = vadd.f32 %v1057, %v1301
        %v1334 = vadd.f32 %v1058, %v1302
        %v1335 = vadd.f32 %v1059, %v1303
        %v1336 = vadd.f32 %v1060, %v1304
        %v1337 = vadd.f32 %v1061, %v1305
        %vm1338 = vcmask 1044480
        %v1339 = vrot.slane %v458, 3
        %v1340 = vrot.slane %v459, 3
        %v1341 = vsel %vm1338, %v1339, %v1340
        %v1342 = vrot.slane %v460, 3
        %v1343 = vsel %vm1338, %v1340, %v1342
        %v1344 = vrot.slane %v461, 3
        %v1345 = vrot.slane %v462, 3
        %v1346 = vsel %vm1338, %v1344, %v1345
        %v1347 = vrot.slane %v463, 3
        %v1348 = vsel %vm1338, %v1345, %v1347
        %v1349 = vrot.slane %v464, 3
        %v1350 = vrot.slane %v465, 3
        %v1351 = vsel %vm1338, %v1349, %v1350
        %v1352 = vrot.slane %v466, 3
        %v1353 = vsel %vm1338, %v1350, %v1352
        %v1354 = vrot.slane %v467, 3
        %v1355 = vrot.slane %v468, 3
        %v1356 = vsel %vm1338, %v1354, %v1355
        %v1357 = vrot.slane %v469, 3
        %v1358 = vsel %vm1338, %v1355, %v1357
        %v1359 = vrot.slane %v470, 3
        %v1360 = vrot.slane %v471, 3
        %v1361 = vsel %vm1338, %v1359, %v1360
        %v1362 = vrot.slane %v472, 3
        %v1363 = vsel %vm1338, %v1360, %v1362
        %v1364 = vrot.slane %v473, 3
        %v1365 = vrot.slane %v474, 3
        %v1366 = vsel %vm1338, %v1364, %v1365
        %v1367 = vrot.slane %v475, 3
        %v1368 = vsel %vm1338, %v1365, %v1367
        %v1369 = vrot.slane %v476, 3
        %v1370 = vrot.slane %v477, 3
        %v1371 = vsel %vm1338, %v1369, %v1370
        %v1372 = vrot.slane %v478, 3
        %v1373 = vsel %vm1338, %v1370, %v1372
        %v1374 = vrot.slane %v479, 3
        %v1375 = vrot.slane %v480, 3
        %v1376 = vsel %vm1338, %v1374, %v1375
        %v1377 = vrot.slane %v481, 3
        %v1378 = vsel %vm1338, %v1375, %v1377
        %v1379 = vrot.slane %v482, 3
        %v1380 = vrot.slane %v483, 3
        %v1381 = vsel %vm1338, %v1379, %v1380
        %v1382 = vrot.slane %v484, 3
        %v1383 = vsel %vm1338, %v1380, %v1382
        %v1384 = vrot.slane %v485, 3
        %v1385 = vrot.slane %v486, 3
        %v1386 = vsel %vm1338, %v1384, %v1385
        %v1387 = vrot.slane %v487, 3
        %v1388 = vsel %vm1338, %v1385, %v1387
        %v1389 = vrot.slane %v488, 3
        %v1390 = vrot.slane %v489, 3
        %v1391 = vsel %vm1338, %v1389, %v1390
        %v1392 = vrot.slane %v490, 3
        %v1393 = vsel %vm1338, %v1390, %v1392
        %v1394 = vrot.slane %v491, 3
        %v1395 = vrot.slane %v492, 3
        %v1396 = vsel %vm1338, %v1394, %v1395
        %v1397 = vrot.slane %v493, 3
        %v1398 = vsel %vm1338, %v1395, %v1397
        %v1399 = vrot.slane %v494, 3
        %v1400 = vrot.slane %v495, 3
        %v1401 = vsel %vm1338, %v1399, %v1400
        %v1402 = vrot.slane %v496, 3
        %v1403 = vsel %vm1338, %v1400, %v1402
        %v1404 = vrot.slane %v497, 3
        %v1405 = vrot.slane %v498, 3
        %v1406 = vsel %vm1338, %v1404, %v1405
        %v1407 = vrot.slane %v499, 3
        %v1408 = vsel %vm1338, %v1405, %v1407
        %v1409 = vrot.slane %v500, 3
        %v1410 = vrot.slane %v501, 3
        %v1411 = vsel %vm1338, %v1409, %v1410
        %v1412 = vrot.slane %v502, 3
        %v1413 = vsel %vm1338, %v1410, %v1412
        %v1414 = vrot.slane %v503, 3
        %v1415 = vrot.slane %v504, 3
        %v1416 = vsel %vm1338, %v1414, %v1415
        %v1417 = vrot.slane %v505, 3
        %v1418 = vsel %vm1338, %v1415, %v1417
        %1419 = vset.pattern.permute.xlu0 0
        %1420 = vperm.xlu0 %1419, %v1341
        %v1421 = vpop.permute.xlu0 %1420
        %1423 = vset.pattern.permute.xlu0 0
        %1424 = vperm.xlu0 %1423, %v1343
        %v1425 = vpop.permute.xlu0 %1424
        %1427 = vset.pattern.permute.xlu0 0
        %1428 = vperm.xlu0 %1427, %v1346
        %v1429 = vpop.permute.xlu0 %1428
        %1431 = vset.pattern.permute.xlu0 0
        %1432 = vperm.xlu0 %1431, %v1348
        %v1433 = vpop.permute.xlu0 %1432
        %1435 = vset.pattern.permute.xlu0 0
        %1436 = vperm.xlu0 %1435, %v1351
        %v1437 = vpop.permute.xlu0 %1436
        %1439 = vset.pattern.permute.xlu0 0
        %1440 = vperm.xlu0 %1439, %v1353
        %v1441 = vpop.permute.xlu0 %1440
        %1443 = vset.pattern.permute.xlu0 0
        %1444 = vperm.xlu0 %1443, %v1356
        %v1445 = vpop.permute.xlu0 %1444
        %1447 = vset.pattern.permute.xlu0 0
        %1448 = vperm.xlu0 %1447, %v1358
        %v1449 = vpop.permute.xlu0 %1448
        %1451 = vset.pattern.permute.xlu0 0
        %1452 = vperm.xlu0 %1451, %v1361
        %v1453 = vpop.permute.xlu0 %1452
        %1455 = vset.pattern.permute.xlu0 0
        %1456 = vperm.xlu0 %1455, %v1363
        %v1457 = vpop.permute.xlu0 %1456
        %1459 = vset.pattern.permute.xlu0 0
        %1460 = vperm.xlu0 %1459, %v1366
        %v1461 = vpop.permute.xlu0 %1460
        %1463 = vset.pattern.permute.xlu0 0
        %1464 = vperm.xlu0 %1463, %v1368
        %v1465 = vpop.permute.xlu0 %1464
        %1467 = vset.pattern.permute.xlu0 0
        %1468 = vperm.xlu0 %1467, %v1371
        %v1469 = vpop.permute.xlu0 %1468
        %1471 = vset.pattern.permute.xlu0 0
        %1472 = vperm.xlu0 %1471, %v1373
        %v1473 = vpop.permute.xlu0 %1472
        %1475 = vset.pattern.permute.xlu0 0
        %1476 = vperm.xlu0 %1475, %v1376
        %v1477 = vpop.permute.xlu0 %1476
        %1479 = vset.pattern.permute.xlu0 0
        %1480 = vperm.xlu0 %1479, %v1378
        %v1481 = vpop.permute.xlu0 %1480
        %1483 = vset.pattern.permute.xlu0 0
        %1484 = vperm.xlu0 %1483, %v1381
        %v1485 = vpop.permute.xlu0 %1484
        %1487 = vset.pattern.permute.xlu0 0
        %1488 = vperm.xlu0 %1487, %v1383
        %v1489 = vpop.permute.xlu0 %1488
        %1491 = vset.pattern.permute.xlu0 0
        %1492 = vperm.xlu0 %1491, %v1386
        %v1493 = vpop.permute.xlu0 %1492
        %1495 = vset.pattern.permute.xlu0 0
        %1496 = vperm.xlu0 %1495, %v1388
        %v1497 = vpop.permute.xlu0 %1496
        %1499 = vset.pattern.permute.xlu0 0
        %1500 = vperm.xlu0 %1499, %v1391
        %v1501 = vpop.permute.xlu0 %1500
        %1503 = vset.pattern.permute.xlu0 0
        %1504 = vperm.xlu0 %1503, %v1393
        %v1505 = vpop.permute.xlu0 %1504
        %1507 = vset.pattern.permute.xlu0 0
        %1508 = vperm.xlu0 %1507, %v1396
        %v1509 = vpop.permute.xlu0 %1508
        %1511 = vset.pattern.permute.xlu0 0
        %1512 = vperm.xlu0 %1511, %v1398
        %v1513 = vpop.permute.xlu0 %1512
        %1515 = vset.pattern.permute.xlu0 0
        %1516 = vperm.xlu0 %1515, %v1401
        %v1517 = vpop.permute.xlu0 %1516
        %1519 = vset.pattern.permute.xlu0 0
        %1520 = vperm.xlu0 %1519, %v1403
        %v1521 = vpop.permute.xlu0 %1520
        %1523 = vset.pattern.permute.xlu0 0
        %1524 = vperm.xlu0 %1523, %v1406
        %v1525 = vpop.permute.xlu0 %1524
        %1527 = vset.pattern.permute.xlu0 0
        %1528 = vperm.xlu0 %1527, %v1408
        %v1529 = vpop.permute.xlu0 %1528
        %1531 = vset.pattern.permute.xlu0 0
        %1532 = vperm.xlu0 %1531, %v1411
        %v1533 = vpop.permute.xlu0 %1532
        %1535 = vset.pattern.permute.xlu0 0
        %1536 = vperm.xlu0 %1535, %v1413
        %v1537 = vpop.permute.xlu0 %1536
        %1539 = vset.pattern.permute.xlu0 0
        %1540 = vperm.xlu0 %1539, %v1416
        %v1541 = vpop.permute.xlu0 %1540
        %1543 = vset.pattern.permute.xlu0 0
        %1544 = vperm.xlu0 %1543, %v1418
        %v1545 = vpop.permute.xlu0 %1544
        %v1548 = vperm.slane %v521, 0
        %v1550 = vmul.f32 %v1421, %v1548
        %v1551 = vmul.f32 %v1425, %v1548
        %v1552 = vmul.f32 %v1429, %v1548
        %v1553 = vmul.f32 %v1433, %v1548
        %v1554 = vmul.f32 %v1437, %v1548
        %v1555 = vmul.f32 %v1441, %v1548
        %v1556 = vmul.f32 %v1445, %v1548
        %v1557 = vmul.f32 %v1449, %v1548
        %v1558 = vmul.f32 %v1453, %v1548
        %v1559 = vmul.f32 %v1457, %v1548
        %v1560 = vmul.f32 %v1461, %v1548
        %v1561 = vmul.f32 %v1465, %v1548
        %v1562 = vmul.f32 %v1469, %v1548
        %v1563 = vmul.f32 %v1473, %v1548
        %v1564 = vmul.f32 %v1477, %v1548
        %v1565 = vmul.f32 %v1481, %v1548
        %v1566 = vmul.f32 %v1485, %v1548
        %v1567 = vmul.f32 %v1489, %v1548
        %v1568 = vmul.f32 %v1493, %v1548
        %v1569 = vmul.f32 %v1497, %v1548
        %v1570 = vmul.f32 %v1501, %v1548
        %v1571 = vmul.f32 %v1505, %v1548
        %v1572 = vmul.f32 %v1509, %v1548
        %v1573 = vmul.f32 %v1513, %v1548
        %v1574 = vmul.f32 %v1517, %v1548
        %v1575 = vmul.f32 %v1521, %v1548
        %v1576 = vmul.f32 %v1525, %v1548
        %v1577 = vmul.f32 %v1529, %v1548
        %v1578 = vmul.f32 %v1533, %v1548
        %v1579 = vmul.f32 %v1537, %v1548
        %v1580 = vmul.f32 %v1541, %v1548
        %v1581 = vmul.f32 %v1545, %v1548
        %v1582 = vadd.f32 %v1306, %v1550
        %v1583 = vadd.f32 %v1307, %v1551
        %v1584 = vadd.f32 %v1308, %v1552
        %v1585 = vadd.f32 %v1309, %v1553
        %v1586 = vadd.f32 %v1310, %v1554
        %v1587 = vadd.f32 %v1311, %v1555
        %v1588 = vadd.f32 %v1312, %v1556
        %v1589 = vadd.f32 %v1313, %v1557
        %v1590 = vadd.f32 %v1314, %v1558
        %v1591 = vadd.f32 %v1315, %v1559
        %v1592 = vadd.f32 %v1316, %v1560
        %v1593 = vadd.f32 %v1317, %v1561
        %v1594 = vadd.f32 %v1318, %v1562
        %v1595 = vadd.f32 %v1319, %v1563
        %v1596 = vadd.f32 %v1320, %v1564
        %v1597 = vadd.f32 %v1321, %v1565
        %v1598 = vadd.f32 %v1322, %v1566
        %v1599 = vadd.f32 %v1323, %v1567
        %v1600 = vadd.f32 %v1324, %v1568
        %v1601 = vadd.f32 %v1325, %v1569
        %v1602 = vadd.f32 %v1326, %v1570
        %v1603 = vadd.f32 %v1327, %v1571
        %v1604 = vadd.f32 %v1328, %v1572
        %v1605 = vadd.f32 %v1329, %v1573
        %v1606 = vadd.f32 %v1330, %v1574
        %v1607 = vadd.f32 %v1331, %v1575
        %v1608 = vadd.f32 %v1332, %v1576
        %v1609 = vadd.f32 %v1333, %v1577
        %v1610 = vadd.f32 %v1334, %v1578
        %v1611 = vadd.f32 %v1335, %v1579
        %v1612 = vadd.f32 %v1336, %v1580
        %v1613 = vadd.f32 %v1337, %v1581
        %vm1614 = vcmask 1043456
        %v1615 = vrot.slane %v458, 4
        %v1616 = vrot.slane %v459, 4
        %v1617 = vsel %vm1614, %v1615, %v1616
        %v1618 = vrot.slane %v460, 4
        %v1619 = vsel %vm1614, %v1616, %v1618
        %v1620 = vrot.slane %v461, 4
        %v1621 = vrot.slane %v462, 4
        %v1622 = vsel %vm1614, %v1620, %v1621
        %v1623 = vrot.slane %v463, 4
        %v1624 = vsel %vm1614, %v1621, %v1623
        %v1625 = vrot.slane %v464, 4
        %v1626 = vrot.slane %v465, 4
        %v1627 = vsel %vm1614, %v1625, %v1626
        %v1628 = vrot.slane %v466, 4
        %v1629 = vsel %vm1614, %v1626, %v1628
        %v1630 = vrot.slane %v467, 4
        %v1631 = vrot.slane %v468, 4
        %v1632 = vsel %vm1614, %v1630, %v1631
        %v1633 = vrot.slane %v469, 4
        %v1634 = vsel %vm1614, %v1631, %v1633
        %v1635 = vrot.slane %v470, 4
        %v1636 = vrot.slane %v471, 4
        %v1637 = vsel %vm1614, %v1635, %v1636
        %v1638 = vrot.slane %v472, 4
        %v1639 = vsel %vm1614, %v1636, %v1638
        %v1640 = vrot.slane %v473, 4
        %v1641 = vrot.slane %v474, 4
        %v1642 = vsel %vm1614, %v1640, %v1641
        %v1643 = vrot.slane %v475, 4
        %v1644 = vsel %vm1614, %v1641, %v1643
        %v1645 = vrot.slane %v476, 4
        %v1646 = vrot.slane %v477, 4
        %v1647 = vsel %vm1614, %v1645, %v1646
        %v1648 = vrot.slane %v478, 4
        %v1649 = vsel %vm1614, %v1646, %v1648
        %v1650 = vrot.slane %v479, 4
        %v1651 = vrot.slane %v480, 4
        %v1652 = vsel %vm1614, %v1650, %v1651
        %v1653 = vrot.slane %v481, 4
        %v1654 = vsel %vm1614, %v1651, %v1653
        %v1655 = vrot.slane %v482, 4
        %v1656 = vrot.slane %v483, 4
        %v1657 = vsel %vm1614, %v1655, %v1656
        %v1658 = vrot.slane %v484, 4
        %v1659 = vsel %vm1614, %v1656, %v1658
        %v1660 = vrot.slane %v485, 4
        %v1661 = vrot.slane %v486, 4
        %v1662 = vsel %vm1614, %v1660, %v1661
        %v1663 = vrot.slane %v487, 4
        %v1664 = vsel %vm1614, %v1661, %v1663
        %v1665 = vrot.slane %v488, 4
        %v1666 = vrot.slane %v489, 4
        %v1667 = vsel %vm1614, %v1665, %v1666
        %v1668 = vrot.slane %v490, 4
        %v1669 = vsel %vm1614, %v1666, %v1668
        %v1670 = vrot.slane %v491, 4
        %v1671 = vrot.slane %v492, 4
        %v1672 = vsel %vm1614, %v1670, %v1671
        %v1673 = vrot.slane %v493, 4
        %v1674 = vsel %vm1614, %v1671, %v1673
        %v1675 = vrot.slane %v494, 4
        %v1676 = vrot.slane %v495, 4
        %v1677 = vsel %vm1614, %v1675, %v1676
        %v1678 = vrot.slane %v496, 4
        %v1679 = vsel %vm1614, %v1676, %v1678
        %v1680 = vrot.slane %v497, 4
        %v1681 = vrot.slane %v498, 4
        %v1682 = vsel %vm1614, %v1680, %v1681
        %v1683 = vrot.slane %v499, 4
        %v1684 = vsel %vm1614, %v1681, %v1683
        %v1685 = vrot.slane %v500, 4
        %v1686 = vrot.slane %v501, 4
        %v1687 = vsel %vm1614, %v1685, %v1686
        %v1688 = vrot.slane %v502, 4
        %v1689 = vsel %vm1614, %v1686, %v1688
        %v1690 = vrot.slane %v503, 4
        %v1691 = vrot.slane %v504, 4
        %v1692 = vsel %vm1614, %v1690, %v1691
        %v1693 = vrot.slane %v505, 4
        %v1694 = vsel %vm1614, %v1691, %v1693
        %1695 = vset.pattern.permute.xlu0 0
        %1696 = vperm.xlu0 %1695, %v1617
        %v1697 = vpop.permute.xlu0 %1696
        %1699 = vset.pattern.permute.xlu0 0
        %1700 = vperm.xlu0 %1699, %v1619
        %v1701 = vpop.permute.xlu0 %1700
        %1703 = vset.pattern.permute.xlu0 0
        %1704 = vperm.xlu0 %1703, %v1622
        %v1705 = vpop.permute.xlu0 %1704
        %1707 = vset.pattern.permute.xlu0 0
        %1708 = vperm.xlu0 %1707, %v1624
        %v1709 = vpop.permute.xlu0 %1708
        %1711 = vset.pattern.permute.xlu0 0
        %1712 = vperm.xlu0 %1711, %v1627
        %v1713 = vpop.permute.xlu0 %1712
        %1715 = vset.pattern.permute.xlu0 0
        %1716 = vperm.xlu0 %1715, %v1629
        %v1717 = vpop.permute.xlu0 %1716
        %1719 = vset.pattern.permute.xlu0 0
        %1720 = vperm.xlu0 %1719, %v1632
        %v1721 = vpop.permute.xlu0 %1720
        %1723 = vset.pattern.permute.xlu0 0
        %1724 = vperm.xlu0 %1723, %v1634
        %v1725 = vpop.permute.xlu0 %1724
        %1727 = vset.pattern.permute.xlu0 0
        %1728 = vperm.xlu0 %1727, %v1637
        %v1729 = vpop.permute.xlu0 %1728
        %1731 = vset.pattern.permute.xlu0 0
        %1732 = vperm.xlu0 %1731, %v1639
        %v1733 = vpop.permute.xlu0 %1732
        %1735 = vset.pattern.permute.xlu0 0
        %1736 = vperm.xlu0 %1735, %v1642
        %v1737 = vpop.permute.xlu0 %1736
        %1739 = vset.pattern.permute.xlu0 0
        %1740 = vperm.xlu0 %1739, %v1644
        %v1741 = vpop.permute.xlu0 %1740
        %1743 = vset.pattern.permute.xlu0 0
        %1744 = vperm.xlu0 %1743, %v1647
        %v1745 = vpop.permute.xlu0 %1744
        %1747 = vset.pattern.permute.xlu0 0
        %1748 = vperm.xlu0 %1747, %v1649
        %v1749 = vpop.permute.xlu0 %1748
        %1751 = vset.pattern.permute.xlu0 0
        %1752 = vperm.xlu0 %1751, %v1652
        %v1753 = vpop.permute.xlu0 %1752
        %1755 = vset.pattern.permute.xlu0 0
        %1756 = vperm.xlu0 %1755, %v1654
        %v1757 = vpop.permute.xlu0 %1756
        %1759 = vset.pattern.permute.xlu0 0
        %1760 = vperm.xlu0 %1759, %v1657
        %v1761 = vpop.permute.xlu0 %1760
        %1763 = vset.pattern.permute.xlu0 0
        %1764 = vperm.xlu0 %1763, %v1659
        %v1765 = vpop.permute.xlu0 %1764
        %1767 = vset.pattern.permute.xlu0 0
        %1768 = vperm.xlu0 %1767, %v1662
        %v1769 = vpop.permute.xlu0 %1768
        %1771 = vset.pattern.permute.xlu0 0
        %1772 = vperm.xlu0 %1771, %v1664
        %v1773 = vpop.permute.xlu0 %1772
        %1775 = vset.pattern.permute.xlu0 0
        %1776 = vperm.xlu0 %1775, %v1667
        %v1777 = vpop.permute.xlu0 %1776
        %1779 = vset.pattern.permute.xlu0 0
        %1780 = vperm.xlu0 %1779, %v1669
        %v1781 = vpop.permute.xlu0 %1780
        %1783 = vset.pattern.permute.xlu0 0
        %1784 = vperm.xlu0 %1783, %v1672
        %v1785 = vpop.permute.xlu0 %1784
        %1787 = vset.pattern.permute.xlu0 0
        %1788 = vperm.xlu0 %1787, %v1674
        %v1789 = vpop.permute.xlu0 %1788
        %1791 = vset.pattern.permute.xlu0 0
        %1792 = vperm.xlu0 %1791, %v1677
        %v1793 = vpop.permute.xlu0 %1792
        %1795 = vset.pattern.permute.xlu0 0
        %1796 = vperm.xlu0 %1795, %v1679
        %v1797 = vpop.permute.xlu0 %1796
        %1799 = vset.pattern.permute.xlu0 0
        %1800 = vperm.xlu0 %1799, %v1682
        %v1801 = vpop.permute.xlu0 %1800
        %1803 = vset.pattern.permute.xlu0 0
        %1804 = vperm.xlu0 %1803, %v1684
        %v1805 = vpop.permute.xlu0 %1804
        %1807 = vset.pattern.permute.xlu0 0
        %1808 = vperm.xlu0 %1807, %v1687
        %v1809 = vpop.permute.xlu0 %1808
        %1811 = vset.pattern.permute.xlu0 0
        %1812 = vperm.xlu0 %1811, %v1689
        %v1813 = vpop.permute.xlu0 %1812
        %1815 = vset.pattern.permute.xlu0 0
        %1816 = vperm.xlu0 %1815, %v1692
        %v1817 = vpop.permute.xlu0 %1816
        %1819 = vset.pattern.permute.xlu0 0
        %1820 = vperm.xlu0 %1819, %v1694
        %v1821 = vpop.permute.xlu0 %1820
        %v1824 = vperm.slane %v522, 0
        %v1826 = vmul.f32 %v1697, %v1824
        %v1827 = vmul.f32 %v1701, %v1824
        %v1828 = vmul.f32 %v1705, %v1824
        %v1829 = vmul.f32 %v1709, %v1824
        %v1830 = vmul.f32 %v1713, %v1824
        %v1831 = vmul.f32 %v1717, %v1824
        %v1832 = vmul.f32 %v1721, %v1824
        %v1833 = vmul.f32 %v1725, %v1824
        %v1834 = vmul.f32 %v1729, %v1824
        %v1835 = vmul.f32 %v1733, %v1824
        %v1836 = vmul.f32 %v1737, %v1824
        %v1837 = vmul.f32 %v1741, %v1824
        %v1838 = vmul.f32 %v1745, %v1824
        %v1839 = vmul.f32 %v1749, %v1824
        %v1840 = vmul.f32 %v1753, %v1824
        %v1841 = vmul.f32 %v1757, %v1824
        %v1842 = vmul.f32 %v1761, %v1824
        %v1843 = vmul.f32 %v1765, %v1824
        %v1844 = vmul.f32 %v1769, %v1824
        %v1845 = vmul.f32 %v1773, %v1824
        %v1846 = vmul.f32 %v1777, %v1824
        %v1847 = vmul.f32 %v1781, %v1824
        %v1848 = vmul.f32 %v1785, %v1824
        %v1849 = vmul.f32 %v1789, %v1824
        %v1850 = vmul.f32 %v1793, %v1824
        %v1851 = vmul.f32 %v1797, %v1824
        %v1852 = vmul.f32 %v1801, %v1824
        %v1853 = vmul.f32 %v1805, %v1824
        %v1854 = vmul.f32 %v1809, %v1824
        %v1855 = vmul.f32 %v1813, %v1824
        %v1856 = vmul.f32 %v1817, %v1824
        %v1857 = vmul.f32 %v1821, %v1824
        %v1858 = vadd.f32 %v1582, %v1826
        %v1859 = vadd.f32 %v1583, %v1827
        %v1860 = vadd.f32 %v1584, %v1828
        %v1861 = vadd.f32 %v1585, %v1829
        %v1862 = vadd.f32 %v1586, %v1830
        %v1863 = vadd.f32 %v1587, %v1831
        %v1864 = vadd.f32 %v1588, %v1832
        %v1865 = vadd.f32 %v1589, %v1833
        %v1866 = vadd.f32 %v1590, %v1834
        %v1867 = vadd.f32 %v1591, %v1835
        %v1868 = vadd.f32 %v1592, %v1836
        %v1869 = vadd.f32 %v1593, %v1837
        %v1870 = vadd.f32 %v1594, %v1838
        %v1871 = vadd.f32 %v1595, %v1839
        %v1872 = vadd.f32 %v1596, %v1840
        %v1873 = vadd.f32 %v1597, %v1841
        %v1874 = vadd.f32 %v1598, %v1842
        %v1875 = vadd.f32 %v1599, %v1843
        %v1876 = vadd.f32 %v1600, %v1844
        %v1877 = vadd.f32 %v1601, %v1845
        %v1878 = vadd.f32 %v1602, %v1846
        %v1879 = vadd.f32 %v1603, %v1847
        %v1880 = vadd.f32 %v1604, %v1848
        %v1881 = vadd.f32 %v1605, %v1849
        %v1882 = vadd.f32 %v1606, %v1850
        %v1883 = vadd.f32 %v1607, %v1851
        %v1884 = vadd.f32 %v1608, %v1852
        %v1885 = vadd.f32 %v1609, %v1853
        %v1886 = vadd.f32 %v1610, %v1854
        %v1887 = vadd.f32 %v1611, %v1855
        %v1888 = vadd.f32 %v1612, %v1856
        %v1889 = vadd.f32 %v1613, %v1857
        %1891 = vset.pattern.permute.xlu0 0
        %1892 = vperm.xlu0 %1891, %v506
        %v1893 = vpop.permute.xlu0 %1892
        %1896 = vset.pattern.permute.xlu0 0
        %1897 = vperm.xlu0 %1896, %v507
        %v1898 = vpop.permute.xlu0 %1897
        %v1901 = vperm.slane %v523, 0
        %v1903 = vmul.f32 %v556, %v1901
        %v1904 = vmul.f32 %v561, %v1901
        %v1905 = vmul.f32 %v566, %v1901
        %v1906 = vmul.f32 %v571, %v1901
        %v1907 = vmul.f32 %v576, %v1901
        %v1908 = vmul.f32 %v581, %v1901
        %v1909 = vmul.f32 %v586, %v1901
        %v1910 = vmul.f32 %v591, %v1901
        %v1911 = vmul.f32 %v596, %v1901
        %v1912 = vmul.f32 %v601, %v1901
        %v1913 = vmul.f32 %v606, %v1901
        %v1914 = vmul.f32 %v611, %v1901
        %v1915 = vmul.f32 %v616, %v1901
        %v1916 = vmul.f32 %v621, %v1901
        %v1917 = vmul.f32 %v626, %v1901
        %v1918 = vmul.f32 %v631, %v1901
        %v1919 = vmul.f32 %v636, %v1901
        %v1920 = vmul.f32 %v641, %v1901
        %v1921 = vmul.f32 %v646, %v1901
        %v1922 = vmul.f32 %v651, %v1901
        %v1923 = vmul.f32 %v656, %v1901
        %v1924 = vmul.f32 %v661, %v1901
        %v1925 = vmul.f32 %v666, %v1901
        %v1926 = vmul.f32 %v671, %v1901
        %v1927 = vmul.f32 %v676, %v1901
        %v1928 = vmul.f32 %v681, %v1901
        %v1929 = vmul.f32 %v686, %v1901
        %v1930 = vmul.f32 %v691, %v1901
        %v1931 = vmul.f32 %v696, %v1901
        %v1932 = vmul.f32 %v701, %v1901
        %v1933 = vmul.f32 %v1893, %v1901
        %v1934 = vmul.f32 %v1898, %v1901
        %v1935 = vadd.f32 %v1858, %v1903
        %v1936 = vadd.f32 %v1859, %v1904
        %v1937 = vadd.f32 %v1860, %v1905
        %v1938 = vadd.f32 %v1861, %v1906
        %v1939 = vadd.f32 %v1862, %v1907
        %v1940 = vadd.f32 %v1863, %v1908
        %v1941 = vadd.f32 %v1864, %v1909
        %v1942 = vadd.f32 %v1865, %v1910
        %v1943 = vadd.f32 %v1866, %v1911
        %v1944 = vadd.f32 %v1867, %v1912
        %v1945 = vadd.f32 %v1868, %v1913
        %v1946 = vadd.f32 %v1869, %v1914
        %v1947 = vadd.f32 %v1870, %v1915
        %v1948 = vadd.f32 %v1871, %v1916
        %v1949 = vadd.f32 %v1872, %v1917
        %v1950 = vadd.f32 %v1873, %v1918
        %v1951 = vadd.f32 %v1874, %v1919
        %v1952 = vadd.f32 %v1875, %v1920
        %v1953 = vadd.f32 %v1876, %v1921
        %v1954 = vadd.f32 %v1877, %v1922
        %v1955 = vadd.f32 %v1878, %v1923
        %v1956 = vadd.f32 %v1879, %v1924
        %v1957 = vadd.f32 %v1880, %v1925
        %v1958 = vadd.f32 %v1881, %v1926
        %v1959 = vadd.f32 %v1882, %v1927
        %v1960 = vadd.f32 %v1883, %v1928
        %v1961 = vadd.f32 %v1884, %v1929
        %v1962 = vadd.f32 %v1885, %v1930
        %v1963 = vadd.f32 %v1886, %v1931
        %v1964 = vadd.f32 %v1887, %v1932
        %v1965 = vadd.f32 %v1888, %v1933
        %v1966 = vadd.f32 %v1889, %v1934
        %v1968 = vrot.slane %v506, 1
        %v1969 = vrot.slane %v507, 1
        %v1970 = vsel %vm786, %v1968, %v1969
        %v1971 = vrot.slane %v508, 1
        %v1972 = vsel %vm786, %v1969, %v1971
        %1973 = vset.pattern.permute.xlu0 0
        %1974 = vperm.xlu0 %1973, %v1970
        %v1975 = vpop.permute.xlu0 %1974
        %1977 = vset.pattern.permute.xlu0 0
        %1978 = vperm.xlu0 %1977, %v1972
        %v1979 = vpop.permute.xlu0 %1978
        %v1982 = vperm.slane %v524, 0
        %v1984 = vmul.f32 %v877, %v1982
        %v1985 = vmul.f32 %v881, %v1982
        %v1986 = vmul.f32 %v885, %v1982
        %v1987 = vmul.f32 %v889, %v1982
        %v1988 = vmul.f32 %v893, %v1982
        %v1989 = vmul.f32 %v897, %v1982
        %v1990 = vmul.f32 %v901, %v1982
        %v1991 = vmul.f32 %v905, %v1982
        %v1992 = vmul.f32 %v909, %v1982
        %v1993 = vmul.f32 %v913, %v1982
        %v1994 = vmul.f32 %v917, %v1982
        %v1995 = vmul.f32 %v921, %v1982
        %v1996 = vmul.f32 %v925, %v1982
        %v1997 = vmul.f32 %v929, %v1982
        %v1998 = vmul.f32 %v933, %v1982
        %v1999 = vmul.f32 %v937, %v1982
        %v2000 = vmul.f32 %v941, %v1982
        %v2001 = vmul.f32 %v945, %v1982
        %v2002 = vmul.f32 %v949, %v1982
        %v2003 = vmul.f32 %v953, %v1982
        %v2004 = vmul.f32 %v957, %v1982
        %v2005 = vmul.f32 %v961, %v1982
        %v2006 = vmul.f32 %v965, %v1982
        %v2007 = vmul.f32 %v969, %v1982
        %v2008 = vmul.f32 %v973, %v1982
        %v2009 = vmul.f32 %v977, %v1982
        %v2010 = vmul.f32 %v981, %v1982
        %v2011 = vmul.f32 %v985, %v1982
        %v2012 = vmul.f32 %v989, %v1982
        %v2013 = vmul.f32 %v993, %v1982
        %v2014 = vmul.f32 %v1975, %v1982
        %v2015 = vmul.f32 %v1979, %v1982
        %v2016 = vadd.f32 %v1935, %v1984
        %v2017 = vadd.f32 %v1936, %v1985
        %v2018 = vadd.f32 %v1937, %v1986
        %v2019 = vadd.f32 %v1938, %v1987
        %v2020 = vadd.f32 %v1939, %v1988
        %v2021 = vadd.f32 %v1940, %v1989
        %v2022 = vadd.f32 %v1941, %v1990
        %v2023 = vadd.f32 %v1942, %v1991
        %v2024 = vadd.f32 %v1943, %v1992
        %v2025 = vadd.f32 %v1944, %v1993
        %v2026 = vadd.f32 %v1945, %v1994
        %v2027 = vadd.f32 %v1946, %v1995
        %v2028 = vadd.f32 %v1947, %v1996
        %v2029 = vadd.f32 %v1948, %v1997
        %v2030 = vadd.f32 %v1949, %v1998
        %v2031 = vadd.f32 %v1950, %v1999
        %v2032 = vadd.f32 %v1951, %v2000
        %v2033 = vadd.f32 %v1952, %v2001
        %v2034 = vadd.f32 %v1953, %v2002
        %v2035 = vadd.f32 %v1954, %v2003
        %v2036 = vadd.f32 %v1955, %v2004
        %v2037 = vadd.f32 %v1956, %v2005
        %v2038 = vadd.f32 %v1957, %v2006
        %v2039 = vadd.f32 %v1958, %v2007
        %v2040 = vadd.f32 %v1959, %v2008
        %v2041 = vadd.f32 %v1960, %v2009
        %v2042 = vadd.f32 %v1961, %v2010
        %v2043 = vadd.f32 %v1962, %v2011
        %v2044 = vadd.f32 %v1963, %v2012
        %v2045 = vadd.f32 %v1964, %v2013
        %v2046 = vadd.f32 %v1965, %v2014
        %v2047 = vadd.f32 %v1966, %v2015
        %v2048 = vrot.slane %v506, 2
        %v2049 = vrot.slane %v507, 2
        %v2050 = vsel %vm1062, %v2048, %v2049
        %v2051 = vrot.slane %v508, 2
        %v2052 = vsel %vm1062, %v2049, %v2051
        %2053 = vset.pattern.permute.xlu0 0
        %2054 = vperm.xlu0 %2053, %v2050
        %v2055 = vpop.permute.xlu0 %2054
        %2057 = vset.pattern.permute.xlu0 0
        %2058 = vperm.xlu0 %2057, %v2052
        %v2059 = vpop.permute.xlu0 %2058
        %v2062 = vperm.slane %v525, 0
        %v2064 = vmul.f32 %v1153, %v2062
        %v2065 = vmul.f32 %v1157, %v2062
        %v2066 = vmul.f32 %v1161, %v2062
        %v2067 = vmul.f32 %v1165, %v2062
        %v2068 = vmul.f32 %v1169, %v2062
        %v2069 = vmul.f32 %v1173, %v2062
        %v2070 = vmul.f32 %v1177, %v2062
        %v2071 = vmul.f32 %v1181, %v2062
        %v2072 = vmul.f32 %v1185, %v2062
        %v2073 = vmul.f32 %v1189, %v2062
        %v2074 = vmul.f32 %v1193, %v2062
        %v2075 = vmul.f32 %v1197, %v2062
        %v2076 = vmul.f32 %v1201, %v2062
        %v2077 = vmul.f32 %v1205, %v2062
        %v2078 = vmul.f32 %v1209, %v2062
        %v2079 = vmul.f32 %v1213, %v2062
        %v2080 = vmul.f32 %v1217, %v2062
        %v2081 = vmul.f32 %v1221, %v2062
        %v2082 = vmul.f32 %v1225, %v2062
        %v2083 = vmul.f32 %v1229, %v2062
        %v2084 = vmul.f32 %v1233, %v2062
        %v2085 = vmul.f32 %v1237, %v2062
        %v2086 = vmul.f32 %v1241, %v2062
        %v2087 = vmul.f32 %v1245, %v2062
        %v2088 = vmul.f32 %v1249, %v2062
        %v2089 = vmul.f32 %v1253, %v2062
        %v2090 = vmul.f32 %v1257, %v2062
        %v2091 = vmul.f32 %v1261, %v2062
        %v2092 = vmul.f32 %v1265, %v2062
        %v2093 = vmul.f32 %v1269, %v2062
        %v2094 = vmul.f32 %v2055, %v2062
        %v2095 = vmul.f32 %v2059, %v2062
        %v2096 = vadd.f32 %v2016, %v2064
        %v2097 = vadd.f32 %v2017, %v2065
        %v2098 = vadd.f32 %v2018, %v2066
        %v2099 = vadd.f32 %v2019, %v2067
        %v2100 = vadd.f32 %v2020, %v2068
        %v2101 = vadd.f32 %v2021, %v2069
        %v2102 = vadd.f32 %v2022, %v2070
        %v2103 = vadd.f32 %v2023, %v2071
        %v2104 = vadd.f32 %v2024, %v2072
        %v2105 = vadd.f32 %v2025, %v2073
        %v2106 = vadd.f32 %v2026, %v2074
        %v2107 = vadd.f32 %v2027, %v2075
        %v2108 = vadd.f32 %v2028, %v2076
        %v2109 = vadd.f32 %v2029, %v2077
        %v2110 = vadd.f32 %v2030, %v2078
        %v2111 = vadd.f32 %v2031, %v2079
        %v2112 = vadd.f32 %v2032, %v2080
        %v2113 = vadd.f32 %v2033, %v2081
        %v2114 = vadd.f32 %v2034, %v2082
        %v2115 = vadd.f32 %v2035, %v2083
        %v2116 = vadd.f32 %v2036, %v2084
        %v2117 = vadd.f32 %v2037, %v2085
        %v2118 = vadd.f32 %v2038, %v2086
        %v2119 = vadd.f32 %v2039, %v2087
        %v2120 = vadd.f32 %v2040, %v2088
        %v2121 = vadd.f32 %v2041, %v2089
        %v2122 = vadd.f32 %v2042, %v2090
        %v2123 = vadd.f32 %v2043, %v2091
        %v2124 = vadd.f32 %v2044, %v2092
        %v2125 = vadd.f32 %v2045, %v2093
        %v2126 = vadd.f32 %v2046, %v2094
        %v2127 = vadd.f32 %v2047, %v2095
        %v2128 = vrot.slane %v506, 3
        %v2129 = vrot.slane %v507, 3
        %v2130 = vsel %vm1338, %v2128, %v2129
        %v2131 = vrot.slane %v508, 3
        %v2132 = vsel %vm1338, %v2129, %v2131
        %2133 = vset.pattern.permute.xlu0 0
        %2134 = vperm.xlu0 %2133, %v2130
        %v2135 = vpop.permute.xlu0 %2134
        %2137 = vset.pattern.permute.xlu0 0
        %2138 = vperm.xlu0 %2137, %v2132
        %v2139 = vpop.permute.xlu0 %2138
        %v2142 = vperm.slane %v526, 0
        %v2144 = vmul.f32 %v1429, %v2142
        %v2145 = vmul.f32 %v1433, %v2142
        %v2146 = vmul.f32 %v1437, %v2142
        %v2147 = vmul.f32 %v1441, %v2142
        %v2148 = vmul.f32 %v1445, %v2142
        %v2149 = vmul.f32 %v1449, %v2142
        %v2150 = vmul.f32 %v1453, %v2142
        %v2151 = vmul.f32 %v1457, %v2142
        %v2152 = vmul.f32 %v1461, %v2142
        %v2153 = vmul.f32 %v1465, %v2142
        %v2154 = vmul.f32 %v1469, %v2142
        %v2155 = vmul.f32 %v1473, %v2142
        %v2156 = vmul.f32 %v1477, %v2142
        %v2157 = vmul.f32 %v1481, %v2142
        %v2158 = vmul.f32 %v1485, %v2142
        %v2159 = vmul.f32 %v1489, %v2142
        %v2160 = vmul.f32 %v1493, %v2142
        %v2161 = vmul.f32 %v1497, %v2142
        %v2162 = vmul.f32 %v1501, %v2142
        %v2163 = vmul.f32 %v1505, %v2142
        %v2164 = vmul.f32 %v1509, %v2142
        %v2165 = vmul.f32 %v1513, %v2142
        %v2166 = vmul.f32 %v1517, %v2142
        %v2167 = vmul.f32 %v1521, %v2142
        %v2168 = vmul.f32 %v1525, %v2142
        %v2169 = vmul.f32 %v1529, %v2142
        %v2170 = vmul.f32 %v1533, %v2142
        %v2171 = vmul.f32 %v1537, %v2142
        %v2172 = vmul.f32 %v1541, %v2142
        %v2173 = vmul.f32 %v1545, %v2142
        %v2174 = vmul.f32 %v2135, %v2142
        %v2175 = vmul.f32 %v2139, %v2142
        %v2176 = vadd.f32 %v2096, %v2144
        %v2177 = vadd.f32 %v2097, %v2145
        %v2178 = vadd.f32 %v2098, %v2146
        %v2179 = vadd.f32 %v2099, %v2147
        %v2180 = vadd.f32 %v2100, %v2148
        %v2181 = vadd.f32 %v2101, %v2149
        %v2182 = vadd.f32 %v2102, %v2150
        %v2183 = vadd.f32 %v2103, %v2151
        %v2184 = vadd.f32 %v2104, %v2152
        %v2185 = vadd.f32 %v2105, %v2153
        %v2186 = vadd.f32 %v2106, %v2154
        %v2187 = vadd.f32 %v2107, %v2155
        %v2188 = vadd.f32 %v2108, %v2156
        %v2189 = vadd.f32 %v2109, %v2157
        %v2190 = vadd.f32 %v2110, %v2158
        %v2191 = vadd.f32 %v2111, %v2159
        %v2192 = vadd.f32 %v2112, %v2160
        %v2193 = vadd.f32 %v2113, %v2161
        %v2194 = vadd.f32 %v2114, %v2162
        %v2195 = vadd.f32 %v2115, %v2163
        %v2196 = vadd.f32 %v2116, %v2164
        %v2197 = vadd.f32 %v2117, %v2165
        %v2198 = vadd.f32 %v2118, %v2166
        %v2199 = vadd.f32 %v2119, %v2167
        %v2200 = vadd.f32 %v2120, %v2168
        %v2201 = vadd.f32 %v2121, %v2169
        %v2202 = vadd.f32 %v2122, %v2170
        %v2203 = vadd.f32 %v2123, %v2171
        %v2204 = vadd.f32 %v2124, %v2172
        %v2205 = vadd.f32 %v2125, %v2173
        %v2206 = vadd.f32 %v2126, %v2174
        %v2207 = vadd.f32 %v2127, %v2175
        %v2208 = vrot.slane %v506, 4
        %v2209 = vrot.slane %v507, 4
        %v2210 = vsel %vm1614, %v2208, %v2209
        %v2211 = vrot.slane %v508, 4
        %v2212 = vsel %vm1614, %v2209, %v2211
        %2213 = vset.pattern.permute.xlu0 0
        %2214 = vperm.xlu0 %2213, %v2210
        %v2215 = vpop.permute.xlu0 %2214
        %2217 = vset.pattern.permute.xlu0 0
        %2218 = vperm.xlu0 %2217, %v2212
        %v2219 = vpop.permute.xlu0 %2218
        %v2222 = vperm.slane %v527, 0
        %v2224 = vmul.f32 %v1705, %v2222
        %v2225 = vmul.f32 %v1709, %v2222
        %v2226 = vmul.f32 %v1713, %v2222
        %v2227 = vmul.f32 %v1717, %v2222
        %v2228 = vmul.f32 %v1721, %v2222
        %v2229 = vmul.f32 %v1725, %v2222
        %v2230 = vmul.f32 %v1729, %v2222
        %v2231 = vmul.f32 %v1733, %v2222
        %v2232 = vmul.f32 %v1737, %v2222
        %v2233 = vmul.f32 %v1741, %v2222
        %v2234 = vmul.f32 %v1745, %v2222
        %v2235 = vmul.f32 %v1749, %v2222
        %v2236 = vmul.f32 %v1753, %v2222
        %v2237 = vmul.f32 %v1757, %v2222
        %v2238 = vmul.f32 %v1761, %v2222
        %v2239 = vmul.f32 %v1765, %v2222
        %v2240 = vmul.f32 %v1769, %v2222
        %v2241 = vmul.f32 %v1773, %v2222
        %v2242 = vmul.f32 %v1777, %v2222
        %v2243 = vmul.f32 %v1781, %v2222
        %v2244 = vmul.f32 %v1785, %v2222
        %v2245 = vmul.f32 %v1789, %v2222
        %v2246 = vmul.f32 %v1793, %v2222
        %v2247 = vmul.f32 %v1797, %v2222
        %v2248 = vmul.f32 %v1801, %v2222
        %v2249 = vmul.f32 %v1805, %v2222
        %v2250 = vmul.f32 %v1809, %v2222
        %v2251 = vmul.f32 %v1813, %v2222
        %v2252 = vmul.f32 %v1817, %v2222
        %v2253 = vmul.f32 %v1821, %v2222
        %v2254 = vmul.f32 %v2215, %v2222
        %v2255 = vmul.f32 %v2219, %v2222
        %v2256 = vadd.f32 %v2176, %v2224
        %v2257 = vadd.f32 %v2177, %v2225
        %v2258 = vadd.f32 %v2178, %v2226
        %v2259 = vadd.f32 %v2179, %v2227
        %v2260 = vadd.f32 %v2180, %v2228
        %v2261 = vadd.f32 %v2181, %v2229
        %v2262 = vadd.f32 %v2182, %v2230
        %v2263 = vadd.f32 %v2183, %v2231
        %v2264 = vadd.f32 %v2184, %v2232
        %v2265 = vadd.f32 %v2185, %v2233
        %v2266 = vadd.f32 %v2186, %v2234
        %v2267 = vadd.f32 %v2187, %v2235
        %v2268 = vadd.f32 %v2188, %v2236
        %v2269 = vadd.f32 %v2189, %v2237
        %v2270 = vadd.f32 %v2190, %v2238
        %v2271 = vadd.f32 %v2191, %v2239
        %v2272 = vadd.f32 %v2192, %v2240
        %v2273 = vadd.f32 %v2193, %v2241
        %v2274 = vadd.f32 %v2194, %v2242
        %v2275 = vadd.f32 %v2195, %v2243
        %v2276 = vadd.f32 %v2196, %v2244
        %v2277 = vadd.f32 %v2197, %v2245
        %v2278 = vadd.f32 %v2198, %v2246
        %v2279 = vadd.f32 %v2199, %v2247
        %v2280 = vadd.f32 %v2200, %v2248
        %v2281 = vadd.f32 %v2201, %v2249
        %v2282 = vadd.f32 %v2202, %v2250
        %v2283 = vadd.f32 %v2203, %v2251
        %v2284 = vadd.f32 %v2204, %v2252
        %v2285 = vadd.f32 %v2205, %v2253
        %v2286 = vadd.f32 %v2206, %v2254
        %v2287 = vadd.f32 %v2207, %v2255
        %2289 = vset.pattern.permute.xlu0 0
        %2290 = vperm.xlu0 %2289, %v509
        %v2291 = vpop.permute.xlu0 %2290
        %2294 = vset.pattern.permute.xlu0 0
        %2295 = vperm.xlu0 %2294, %v510
        %v2296 = vpop.permute.xlu0 %2295
        %v2299 = vperm.slane %v528, 0
        %v2301 = vmul.f32 %v566, %v2299
        %v2302 = vmul.f32 %v571, %v2299
        %v2303 = vmul.f32 %v576, %v2299
        %v2304 = vmul.f32 %v581, %v2299
        %v2305 = vmul.f32 %v586, %v2299
        %v2306 = vmul.f32 %v591, %v2299
        %v2307 = vmul.f32 %v596, %v2299
        %v2308 = vmul.f32 %v601, %v2299
        %v2309 = vmul.f32 %v606, %v2299
        %v2310 = vmul.f32 %v611, %v2299
        %v2311 = vmul.f32 %v616, %v2299
        %v2312 = vmul.f32 %v621, %v2299
        %v2313 = vmul.f32 %v626, %v2299
        %v2314 = vmul.f32 %v631, %v2299
        %v2315 = vmul.f32 %v636, %v2299
        %v2316 = vmul.f32 %v641, %v2299
        %v2317 = vmul.f32 %v646, %v2299
        %v2318 = vmul.f32 %v651, %v2299
        %v2319 = vmul.f32 %v656, %v2299
        %v2320 = vmul.f32 %v661, %v2299
        %v2321 = vmul.f32 %v666, %v2299
        %v2322 = vmul.f32 %v671, %v2299
        %v2323 = vmul.f32 %v676, %v2299
        %v2324 = vmul.f32 %v681, %v2299
        %v2325 = vmul.f32 %v686, %v2299
        %v2326 = vmul.f32 %v691, %v2299
        %v2327 = vmul.f32 %v696, %v2299
        %v2328 = vmul.f32 %v701, %v2299
        %v2329 = vmul.f32 %v1893, %v2299
        %v2330 = vmul.f32 %v1898, %v2299
        %v2331 = vmul.f32 %v2291, %v2299
        %v2332 = vmul.f32 %v2296, %v2299
        %v2333 = vadd.f32 %v2256, %v2301
        %v2334 = vadd.f32 %v2257, %v2302
        %v2335 = vadd.f32 %v2258, %v2303
        %v2336 = vadd.f32 %v2259, %v2304
        %v2337 = vadd.f32 %v2260, %v2305
        %v2338 = vadd.f32 %v2261, %v2306
        %v2339 = vadd.f32 %v2262, %v2307
        %v2340 = vadd.f32 %v2263, %v2308
        %v2341 = vadd.f32 %v2264, %v2309
        %v2342 = vadd.f32 %v2265, %v2310
        %v2343 = vadd.f32 %v2266, %v2311
        %v2344 = vadd.f32 %v2267, %v2312
        %v2345 = vadd.f32 %v2268, %v2313
        %v2346 = vadd.f32 %v2269, %v2314
        %v2347 = vadd.f32 %v2270, %v2315
        %v2348 = vadd.f32 %v2271, %v2316
        %v2349 = vadd.f32 %v2272, %v2317
        %v2350 = vadd.f32 %v2273, %v2318
        %v2351 = vadd.f32 %v2274, %v2319
        %v2352 = vadd.f32 %v2275, %v2320
        %v2353 = vadd.f32 %v2276, %v2321
        %v2354 = vadd.f32 %v2277, %v2322
        %v2355 = vadd.f32 %v2278, %v2323
        %v2356 = vadd.f32 %v2279, %v2324
        %v2357 = vadd.f32 %v2280, %v2325
        %v2358 = vadd.f32 %v2281, %v2326
        %v2359 = vadd.f32 %v2282, %v2327
        %v2360 = vadd.f32 %v2283, %v2328
        %v2361 = vadd.f32 %v2284, %v2329
        %v2362 = vadd.f32 %v2285, %v2330
        %v2363 = vadd.f32 %v2286, %v2331
        %v2364 = vadd.f32 %v2287, %v2332
        %v2366 = vrot.slane %v509, 1
        %v2367 = vrot.slane %v510, 1
        %v2368 = vsel %vm786, %v2366, %v2367
        %v2369 = vrot.slane %v511, 1
        %v2370 = vsel %vm786, %v2367, %v2369
        %2371 = vset.pattern.permute.xlu0 0
        %2372 = vperm.xlu0 %2371, %v2368
        %v2373 = vpop.permute.xlu0 %2372
        %2375 = vset.pattern.permute.xlu0 0
        %2376 = vperm.xlu0 %2375, %v2370
        %v2377 = vpop.permute.xlu0 %2376
        %v2380 = vperm.slane %v529, 0
        %v2382 = vmul.f32 %v885, %v2380
        %v2383 = vmul.f32 %v889, %v2380
        %v2384 = vmul.f32 %v893, %v2380
        %v2385 = vmul.f32 %v897, %v2380
        %v2386 = vmul.f32 %v901, %v2380
        %v2387 = vmul.f32 %v905, %v2380
        %v2388 = vmul.f32 %v909, %v2380
        %v2389 = vmul.f32 %v913, %v2380
        %v2390 = vmul.f32 %v917, %v2380
        %v2391 = vmul.f32 %v921, %v2380
        %v2392 = vmul.f32 %v925, %v2380
        %v2393 = vmul.f32 %v929, %v2380
        %v2394 = vmul.f32 %v933, %v2380
        %v2395 = vmul.f32 %v937, %v2380
        %v2396 = vmul.f32 %v941, %v2380
        %v2397 = vmul.f32 %v945, %v2380
        %v2398 = vmul.f32 %v949, %v2380
        %v2399 = vmul.f32 %v953, %v2380
        %v2400 = vmul.f32 %v957, %v2380
        %v2401 = vmul.f32 %v961, %v2380
        %v2402 = vmul.f32 %v965, %v2380
        %v2403 = vmul.f32 %v969, %v2380
        %v2404 = vmul.f32 %v973, %v2380
        %v2405 = vmul.f32 %v977, %v2380
        %v2406 = vmul.f32 %v981, %v2380
        %v2407 = vmul.f32 %v985, %v2380
        %v2408 = vmul.f32 %v989, %v2380
        %v2409 = vmul.f32 %v993, %v2380
        %v2410 = vmul.f32 %v1975, %v2380
        %v2411 = vmul.f32 %v1979, %v2380
        %v2412 = vmul.f32 %v2373, %v2380
        %v2413 = vmul.f32 %v2377, %v2380
        %v2414 = vadd.f32 %v2333, %v2382
        %v2415 = vadd.f32 %v2334, %v2383
        %v2416 = vadd.f32 %v2335, %v2384
        %v2417 = vadd.f32 %v2336, %v2385
        %v2418 = vadd.f32 %v2337, %v2386
        %v2419 = vadd.f32 %v2338, %v2387
        %v2420 = vadd.f32 %v2339, %v2388
        %v2421 = vadd.f32 %v2340, %v2389
        %v2422 = vadd.f32 %v2341, %v2390
        %v2423 = vadd.f32 %v2342, %v2391
        %v2424 = vadd.f32 %v2343, %v2392
        %v2425 = vadd.f32 %v2344, %v2393
        %v2426 = vadd.f32 %v2345, %v2394
        %v2427 = vadd.f32 %v2346, %v2395
        %v2428 = vadd.f32 %v2347, %v2396
        %v2429 = vadd.f32 %v2348, %v2397
        %v2430 = vadd.f32 %v2349, %v2398
        %v2431 = vadd.f32 %v2350, %v2399
        %v2432 = vadd.f32 %v2351, %v2400
        %v2433 = vadd.f32 %v2352, %v2401
        %v2434 = vadd.f32 %v2353, %v2402
        %v2435 = vadd.f32 %v2354, %v2403
        %v2436 = vadd.f32 %v2355, %v2404
        %v2437 = vadd.f32 %v2356, %v2405
        %v2438 = vadd.f32 %v2357, %v2406
        %v2439 = vadd.f32 %v2358, %v2407
        %v2440 = vadd.f32 %v2359, %v2408
        %v2441 = vadd.f32 %v2360, %v2409
        %v2442 = vadd.f32 %v2361, %v2410
        %v2443 = vadd.f32 %v2362, %v2411
        %v2444 = vadd.f32 %v2363, %v2412
        %v2445 = vadd.f32 %v2364, %v2413
        %v2446 = vrot.slane %v509, 2
        %v2447 = vrot.slane %v510, 2
        %v2448 = vsel %vm1062, %v2446, %v2447
        %v2449 = vrot.slane %v511, 2
        %v2450 = vsel %vm1062, %v2447, %v2449
        %2451 = vset.pattern.permute.xlu0 0
        %2452 = vperm.xlu0 %2451, %v2448
        %v2453 = vpop.permute.xlu0 %2452
        %2455 = vset.pattern.permute.xlu0 0
        %2456 = vperm.xlu0 %2455, %v2450
        %v2457 = vpop.permute.xlu0 %2456
        %v2460 = vperm.slane %v530, 0
        %v2462 = vmul.f32 %v1161, %v2460
        %v2463 = vmul.f32 %v1165, %v2460
        %v2464 = vmul.f32 %v1169, %v2460
        %v2465 = vmul.f32 %v1173, %v2460
        %v2466 = vmul.f32 %v1177, %v2460
        %v2467 = vmul.f32 %v1181, %v2460
        %v2468 = vmul.f32 %v1185, %v2460
        %v2469 = vmul.f32 %v1189, %v2460
        %v2470 = vmul.f32 %v1193, %v2460
        %v2471 = vmul.f32 %v1197, %v2460
        %v2472 = vmul.f32 %v1201, %v2460
        %v2473 = vmul.f32 %v1205, %v2460
        %v2474 = vmul.f32 %v1209, %v2460
        %v2475 = vmul.f32 %v1213, %v2460
        %v2476 = vmul.f32 %v1217, %v2460
        %v2477 = vmul.f32 %v1221, %v2460
        %v2478 = vmul.f32 %v1225, %v2460
        %v2479 = vmul.f32 %v1229, %v2460
        %v2480 = vmul.f32 %v1233, %v2460
        %v2481 = vmul.f32 %v1237, %v2460
        %v2482 = vmul.f32 %v1241, %v2460
        %v2483 = vmul.f32 %v1245, %v2460
        %v2484 = vmul.f32 %v1249, %v2460
        %v2485 = vmul.f32 %v1253, %v2460
        %v2486 = vmul.f32 %v1257, %v2460
        %v2487 = vmul.f32 %v1261, %v2460
        %v2488 = vmul.f32 %v1265, %v2460
        %v2489 = vmul.f32 %v1269, %v2460
        %v2490 = vmul.f32 %v2055, %v2460
        %v2491 = vmul.f32 %v2059, %v2460
        %v2492 = vmul.f32 %v2453, %v2460
        %v2493 = vmul.f32 %v2457, %v2460
        %v2494 = vadd.f32 %v2414, %v2462
        %v2495 = vadd.f32 %v2415, %v2463
        %v2496 = vadd.f32 %v2416, %v2464
        %v2497 = vadd.f32 %v2417, %v2465
        %v2498 = vadd.f32 %v2418, %v2466
        %v2499 = vadd.f32 %v2419, %v2467
        %v2500 = vadd.f32 %v2420, %v2468
        %v2501 = vadd.f32 %v2421, %v2469
        %v2502 = vadd.f32 %v2422, %v2470
        %v2503 = vadd.f32 %v2423, %v2471
        %v2504 = vadd.f32 %v2424, %v2472
        %v2505 = vadd.f32 %v2425, %v2473
        %v2506 = vadd.f32 %v2426, %v2474
        %v2507 = vadd.f32 %v2427, %v2475
        %v2508 = vadd.f32 %v2428, %v2476
        %v2509 = vadd.f32 %v2429, %v2477
        %v2510 = vadd.f32 %v2430, %v2478
        %v2511 = vadd.f32 %v2431, %v2479
        %v2512 = vadd.f32 %v2432, %v2480
        %v2513 = vadd.f32 %v2433, %v2481
        %v2514 = vadd.f32 %v2434, %v2482
        %v2515 = vadd.f32 %v2435, %v2483
        %v2516 = vadd.f32 %v2436, %v2484
        %v2517 = vadd.f32 %v2437, %v2485
        %v2518 = vadd.f32 %v2438, %v2486
        %v2519 = vadd.f32 %v2439, %v2487
        %v2520 = vadd.f32 %v2440, %v2488
        %v2521 = vadd.f32 %v2441, %v2489
        %v2522 = vadd.f32 %v2442, %v2490
        %v2523 = vadd.f32 %v2443, %v2491
        %v2524 = vadd.f32 %v2444, %v2492
        %v2525 = vadd.f32 %v2445, %v2493
        %v2526 = vrot.slane %v509, 3
        %v2527 = vrot.slane %v510, 3
        %v2528 = vsel %vm1338, %v2526, %v2527
        %v2529 = vrot.slane %v511, 3
        %v2530 = vsel %vm1338, %v2527, %v2529
        %2531 = vset.pattern.permute.xlu0 0
        %2532 = vperm.xlu0 %2531, %v2528
        %v2533 = vpop.permute.xlu0 %2532
        %2535 = vset.pattern.permute.xlu0 0
        %2536 = vperm.xlu0 %2535, %v2530
        %v2537 = vpop.permute.xlu0 %2536
        %v2540 = vperm.slane %v531, 0
        %v2542 = vmul.f32 %v1437, %v2540
        %v2543 = vmul.f32 %v1441, %v2540
        %v2544 = vmul.f32 %v1445, %v2540
        %v2545 = vmul.f32 %v1449, %v2540
        %v2546 = vmul.f32 %v1453, %v2540
        %v2547 = vmul.f32 %v1457, %v2540
        %v2548 = vmul.f32 %v1461, %v2540
        %v2549 = vmul.f32 %v1465, %v2540
        %v2550 = vmul.f32 %v1469, %v2540
        %v2551 = vmul.f32 %v1473, %v2540
        %v2552 = vmul.f32 %v1477, %v2540
        %v2553 = vmul.f32 %v1481, %v2540
        %v2554 = vmul.f32 %v1485, %v2540
        %v2555 = vmul.f32 %v1489, %v2540
        %v2556 = vmul.f32 %v1493, %v2540
        %v2557 = vmul.f32 %v1497, %v2540
        %v2558 = vmul.f32 %v1501, %v2540
        %v2559 = vmul.f32 %v1505, %v2540
        %v2560 = vmul.f32 %v1509, %v2540
        %v2561 = vmul.f32 %v1513, %v2540
        %v2562 = vmul.f32 %v1517, %v2540
        %v2563 = vmul.f32 %v1521, %v2540
        %v2564 = vmul.f32 %v1525, %v2540
        %v2565 = vmul.f32 %v1529, %v2540
        %v2566 = vmul.f32 %v1533, %v2540
        %v2567 = vmul.f32 %v1537, %v2540
        %v2568 = vmul.f32 %v1541, %v2540
        %v2569 = vmul.f32 %v1545, %v2540
        %v2570 = vmul.f32 %v2135, %v2540
        %v2571 = vmul.f32 %v2139, %v2540
        %v2572 = vmul.f32 %v2533, %v2540
        %v2573 = vmul.f32 %v2537, %v2540
        %v2574 = vadd.f32 %v2494, %v2542
        %v2575 = vadd.f32 %v2495, %v2543
        %v2576 = vadd.f32 %v2496, %v2544
        %v2577 = vadd.f32 %v2497, %v2545
        %v2578 = vadd.f32 %v2498, %v2546
        %v2579 = vadd.f32 %v2499, %v2547
        %v2580 = vadd.f32 %v2500, %v2548
        %v2581 = vadd.f32 %v2501, %v2549
        %v2582 = vadd.f32 %v2502, %v2550
        %v2583 = vadd.f32 %v2503, %v2551
        %v2584 = vadd.f32 %v2504, %v2552
        %v2585 = vadd.f32 %v2505, %v2553
        %v2586 = vadd.f32 %v2506, %v2554
        %v2587 = vadd.f32 %v2507, %v2555
        %v2588 = vadd.f32 %v2508, %v2556
        %v2589 = vadd.f32 %v2509, %v2557
        %v2590 = vadd.f32 %v2510, %v2558
        %v2591 = vadd.f32 %v2511, %v2559
        %v2592 = vadd.f32 %v2512, %v2560
        %v2593 = vadd.f32 %v2513, %v2561
        %v2594 = vadd.f32 %v2514, %v2562
        %v2595 = vadd.f32 %v2515, %v2563
        %v2596 = vadd.f32 %v2516, %v2564
        %v2597 = vadd.f32 %v2517, %v2565
        %v2598 = vadd.f32 %v2518, %v2566
        %v2599 = vadd.f32 %v2519, %v2567
        %v2600 = vadd.f32 %v2520, %v2568
        %v2601 = vadd.f32 %v2521, %v2569
        %v2602 = vadd.f32 %v2522, %v2570
        %v2603 = vadd.f32 %v2523, %v2571
        %v2604 = vadd.f32 %v2524, %v2572
        %v2605 = vadd.f32 %v2525, %v2573
        %v2606 = vrot.slane %v509, 4
        %v2607 = vrot.slane %v510, 4
        %v2608 = vsel %vm1614, %v2606, %v2607
        %v2609 = vrot.slane %v511, 4
        %v2610 = vsel %vm1614, %v2607, %v2609
        %2611 = vset.pattern.permute.xlu0 0
        %2612 = vperm.xlu0 %2611, %v2608
        %v2613 = vpop.permute.xlu0 %2612
        %2615 = vset.pattern.permute.xlu0 0
        %2616 = vperm.xlu0 %2615, %v2610
        %v2617 = vpop.permute.xlu0 %2616
        %v2620 = vperm.slane %v532, 0
        %v2622 = vmul.f32 %v1713, %v2620
        %v2623 = vmul.f32 %v1717, %v2620
        %v2624 = vmul.f32 %v1721, %v2620
        %v2625 = vmul.f32 %v1725, %v2620
        %v2626 = vmul.f32 %v1729, %v2620
        %v2627 = vmul.f32 %v1733, %v2620
        %v2628 = vmul.f32 %v1737, %v2620
        %v2629 = vmul.f32 %v1741, %v2620
        %v2630 = vmul.f32 %v1745, %v2620
        %v2631 = vmul.f32 %v1749, %v2620
        %v2632 = vmul.f32 %v1753, %v2620
        %v2633 = vmul.f32 %v1757, %v2620
        %v2634 = vmul.f32 %v1761, %v2620
        %v2635 = vmul.f32 %v1765, %v2620
        %v2636 = vmul.f32 %v1769, %v2620
        %v2637 = vmul.f32 %v1773, %v2620
        %v2638 = vmul.f32 %v1777, %v2620
        %v2639 = vmul.f32 %v1781, %v2620
        %v2640 = vmul.f32 %v1785, %v2620
        %v2641 = vmul.f32 %v1789, %v2620
        %v2642 = vmul.f32 %v1793, %v2620
        %v2643 = vmul.f32 %v1797, %v2620
        %v2644 = vmul.f32 %v1801, %v2620
        %v2645 = vmul.f32 %v1805, %v2620
        %v2646 = vmul.f32 %v1809, %v2620
        %v2647 = vmul.f32 %v1813, %v2620
        %v2648 = vmul.f32 %v1817, %v2620
        %v2649 = vmul.f32 %v1821, %v2620
        %v2650 = vmul.f32 %v2215, %v2620
        %v2651 = vmul.f32 %v2219, %v2620
        %v2652 = vmul.f32 %v2613, %v2620
        %v2653 = vmul.f32 %v2617, %v2620
        %v2654 = vadd.f32 %v2574, %v2622
        %v2655 = vadd.f32 %v2575, %v2623
        %v2656 = vadd.f32 %v2576, %v2624
        %v2657 = vadd.f32 %v2577, %v2625
        %v2658 = vadd.f32 %v2578, %v2626
        %v2659 = vadd.f32 %v2579, %v2627
        %v2660 = vadd.f32 %v2580, %v2628
        %v2661 = vadd.f32 %v2581, %v2629
        %v2662 = vadd.f32 %v2582, %v2630
        %v2663 = vadd.f32 %v2583, %v2631
        %v2664 = vadd.f32 %v2584, %v2632
        %v2665 = vadd.f32 %v2585, %v2633
        %v2666 = vadd.f32 %v2586, %v2634
        %v2667 = vadd.f32 %v2587, %v2635
        %v2668 = vadd.f32 %v2588, %v2636
        %v2669 = vadd.f32 %v2589, %v2637
        %v2670 = vadd.f32 %v2590, %v2638
        %v2671 = vadd.f32 %v2591, %v2639
        %v2672 = vadd.f32 %v2592, %v2640
        %v2673 = vadd.f32 %v2593, %v2641
        %v2674 = vadd.f32 %v2594, %v2642
        %v2675 = vadd.f32 %v2595, %v2643
        %v2676 = vadd.f32 %v2596, %v2644
        %v2677 = vadd.f32 %v2597, %v2645
        %v2678 = vadd.f32 %v2598, %v2646
        %v2679 = vadd.f32 %v2599, %v2647
        %v2680 = vadd.f32 %v2600, %v2648
        %v2681 = vadd.f32 %v2601, %v2649
        %v2682 = vadd.f32 %v2602, %v2650
        %v2683 = vadd.f32 %v2603, %v2651
        %v2684 = vadd.f32 %v2604, %v2652
        %v2685 = vadd.f32 %v2605, %v2653
        %2687 = vset.pattern.permute.xlu0 0
        %2688 = vperm.xlu0 %2687, %v512
        %v2689 = vpop.permute.xlu0 %2688
        %2692 = vset.pattern.permute.xlu0 0
        %2693 = vperm.xlu0 %2692, %v513
        %v2694 = vpop.permute.xlu0 %2693
        %v2697 = vperm.slane %v533, 0
        %v2699 = vmul.f32 %v576, %v2697
        %v2700 = vmul.f32 %v581, %v2697
        %v2701 = vmul.f32 %v586, %v2697
        %v2702 = vmul.f32 %v591, %v2697
        %v2703 = vmul.f32 %v596, %v2697
        %v2704 = vmul.f32 %v601, %v2697
        %v2705 = vmul.f32 %v606, %v2697
        %v2706 = vmul.f32 %v611, %v2697
        %v2707 = vmul.f32 %v616, %v2697
        %v2708 = vmul.f32 %v621, %v2697
        %v2709 = vmul.f32 %v626, %v2697
        %v2710 = vmul.f32 %v631, %v2697
        %v2711 = vmul.f32 %v636, %v2697
        %v2712 = vmul.f32 %v641, %v2697
        %v2713 = vmul.f32 %v646, %v2697
        %v2714 = vmul.f32 %v651, %v2697
        %v2715 = vmul.f32 %v656, %v2697
        %v2716 = vmul.f32 %v661, %v2697
        %v2717 = vmul.f32 %v666, %v2697
        %v2718 = vmul.f32 %v671, %v2697
        %v2719 = vmul.f32 %v676, %v2697
        %v2720 = vmul.f32 %v681, %v2697
        %v2721 = vmul.f32 %v686, %v2697
        %v2722 = vmul.f32 %v691, %v2697
        %v2723 = vmul.f32 %v696, %v2697
        %v2724 = vmul.f32 %v701, %v2697
        %v2725 = vmul.f32 %v1893, %v2697
        %v2726 = vmul.f32 %v1898, %v2697
        %v2727 = vmul.f32 %v2291, %v2697
        %v2728 = vmul.f32 %v2296, %v2697
        %v2729 = vmul.f32 %v2689, %v2697
        %v2730 = vmul.f32 %v2694, %v2697
        %v2731 = vadd.f32 %v2654, %v2699
        %v2732 = vadd.f32 %v2655, %v2700
        %v2733 = vadd.f32 %v2656, %v2701
        %v2734 = vadd.f32 %v2657, %v2702
        %v2735 = vadd.f32 %v2658, %v2703
        %v2736 = vadd.f32 %v2659, %v2704
        %v2737 = vadd.f32 %v2660, %v2705
        %v2738 = vadd.f32 %v2661, %v2706
        %v2739 = vadd.f32 %v2662, %v2707
        %v2740 = vadd.f32 %v2663, %v2708
        %v2741 = vadd.f32 %v2664, %v2709
        %v2742 = vadd.f32 %v2665, %v2710
        %v2743 = vadd.f32 %v2666, %v2711
        %v2744 = vadd.f32 %v2667, %v2712
        %v2745 = vadd.f32 %v2668, %v2713
        %v2746 = vadd.f32 %v2669, %v2714
        %v2747 = vadd.f32 %v2670, %v2715
        %v2748 = vadd.f32 %v2671, %v2716
        %v2749 = vadd.f32 %v2672, %v2717
        %v2750 = vadd.f32 %v2673, %v2718
        %v2751 = vadd.f32 %v2674, %v2719
        %v2752 = vadd.f32 %v2675, %v2720
        %v2753 = vadd.f32 %v2676, %v2721
        %v2754 = vadd.f32 %v2677, %v2722
        %v2755 = vadd.f32 %v2678, %v2723
        %v2756 = vadd.f32 %v2679, %v2724
        %v2757 = vadd.f32 %v2680, %v2725
        %v2758 = vadd.f32 %v2681, %v2726
        %v2759 = vadd.f32 %v2682, %v2727
        %v2760 = vadd.f32 %v2683, %v2728
        %v2761 = vadd.f32 %v2684, %v2729
        %v2762 = vadd.f32 %v2685, %v2730
        %v2764 = vrot.slane %v512, 1
        %v2765 = vrot.slane %v513, 1
        %v2766 = vsel %vm786, %v2764, %v2765
        %v2767 = vrot.slane %v514, 1
        %v2768 = vsel %vm786, %v2765, %v2767
        %2769 = vset.pattern.permute.xlu0 0
        %2770 = vperm.xlu0 %2769, %v2766
        %v2771 = vpop.permute.xlu0 %2770
        %2773 = vset.pattern.permute.xlu0 0
        %2774 = vperm.xlu0 %2773, %v2768
        %v2775 = vpop.permute.xlu0 %2774
        %v2778 = vperm.slane %v534, 0
        %v2780 = vmul.f32 %v893, %v2778
        %v2781 = vmul.f32 %v897, %v2778
        %v2782 = vmul.f32 %v901, %v2778
        %v2783 = vmul.f32 %v905, %v2778
        %v2784 = vmul.f32 %v909, %v2778
        %v2785 = vmul.f32 %v913, %v2778
        %v2786 = vmul.f32 %v917, %v2778
        %v2787 = vmul.f32 %v921, %v2778
        %v2788 = vmul.f32 %v925, %v2778
        %v2789 = vmul.f32 %v929, %v2778
        %v2790 = vmul.f32 %v933, %v2778
        %v2791 = vmul.f32 %v937, %v2778
        %v2792 = vmul.f32 %v941, %v2778
        %v2793 = vmul.f32 %v945, %v2778
        %v2794 = vmul.f32 %v949, %v2778
        %v2795 = vmul.f32 %v953, %v2778
        %v2796 = vmul.f32 %v957, %v2778
        %v2797 = vmul.f32 %v961, %v2778
        %v2798 = vmul.f32 %v965, %v2778
        %v2799 = vmul.f32 %v969, %v2778
        %v2800 = vmul.f32 %v973, %v2778
        %v2801 = vmul.f32 %v977, %v2778
        %v2802 = vmul.f32 %v981, %v2778
        %v2803 = vmul.f32 %v985, %v2778
        %v2804 = vmul.f32 %v989, %v2778
        %v2805 = vmul.f32 %v993, %v2778
        %v2806 = vmul.f32 %v1975, %v2778
        %v2807 = vmul.f32 %v1979, %v2778
        %v2808 = vmul.f32 %v2373, %v2778
        %v2809 = vmul.f32 %v2377, %v2778
        %v2810 = vmul.f32 %v2771, %v2778
        %v2811 = vmul.f32 %v2775, %v2778
        %v2812 = vadd.f32 %v2731, %v2780
        %v2813 = vadd.f32 %v2732, %v2781
        %v2814 = vadd.f32 %v2733, %v2782
        %v2815 = vadd.f32 %v2734, %v2783
        %v2816 = vadd.f32 %v2735, %v2784
        %v2817 = vadd.f32 %v2736, %v2785
        %v2818 = vadd.f32 %v2737, %v2786
        %v2819 = vadd.f32 %v2738, %v2787
        %v2820 = vadd.f32 %v2739, %v2788
        %v2821 = vadd.f32 %v2740, %v2789
        %v2822 = vadd.f32 %v2741, %v2790
        %v2823 = vadd.f32 %v2742, %v2791
        %v2824 = vadd.f32 %v2743, %v2792
        %v2825 = vadd.f32 %v2744, %v2793
        %v2826 = vadd.f32 %v2745, %v2794
        %v2827 = vadd.f32 %v2746, %v2795
        %v2828 = vadd.f32 %v2747, %v2796
        %v2829 = vadd.f32 %v2748, %v2797
        %v2830 = vadd.f32 %v2749, %v2798
        %v2831 = vadd.f32 %v2750, %v2799
        %v2832 = vadd.f32 %v2751, %v2800
        %v2833 = vadd.f32 %v2752, %v2801
        %v2834 = vadd.f32 %v2753, %v2802
        %v2835 = vadd.f32 %v2754, %v2803
        %v2836 = vadd.f32 %v2755, %v2804
        %v2837 = vadd.f32 %v2756, %v2805
        %v2838 = vadd.f32 %v2757, %v2806
        %v2839 = vadd.f32 %v2758, %v2807
        %v2840 = vadd.f32 %v2759, %v2808
        %v2841 = vadd.f32 %v2760, %v2809
        %v2842 = vadd.f32 %v2761, %v2810
        %v2843 = vadd.f32 %v2762, %v2811
        %v2844 = vrot.slane %v512, 2
        %v2845 = vrot.slane %v513, 2
        %v2846 = vsel %vm1062, %v2844, %v2845
        %v2847 = vrot.slane %v514, 2
        %v2848 = vsel %vm1062, %v2845, %v2847
        %2849 = vset.pattern.permute.xlu0 0
        %2850 = vperm.xlu0 %2849, %v2846
        %v2851 = vpop.permute.xlu0 %2850
        %2853 = vset.pattern.permute.xlu0 0
        %2854 = vperm.xlu0 %2853, %v2848
        %v2855 = vpop.permute.xlu0 %2854
        %v2858 = vperm.slane %v535, 0
        %v2860 = vmul.f32 %v1169, %v2858
        %v2861 = vmul.f32 %v1173, %v2858
        %v2862 = vmul.f32 %v1177, %v2858
        %v2863 = vmul.f32 %v1181, %v2858
        %v2864 = vmul.f32 %v1185, %v2858
        %v2865 = vmul.f32 %v1189, %v2858
        %v2866 = vmul.f32 %v1193, %v2858
        %v2867 = vmul.f32 %v1197, %v2858
        %v2868 = vmul.f32 %v1201, %v2858
        %v2869 = vmul.f32 %v1205, %v2858
        %v2870 = vmul.f32 %v1209, %v2858
        %v2871 = vmul.f32 %v1213, %v2858
        %v2872 = vmul.f32 %v1217, %v2858
        %v2873 = vmul.f32 %v1221, %v2858
        %v2874 = vmul.f32 %v1225, %v2858
        %v2875 = vmul.f32 %v1229, %v2858
        %v2876 = vmul.f32 %v1233, %v2858
        %v2877 = vmul.f32 %v1237, %v2858
        %v2878 = vmul.f32 %v1241, %v2858
        %v2879 = vmul.f32 %v1245, %v2858
        %v2880 = vmul.f32 %v1249, %v2858
        %v2881 = vmul.f32 %v1253, %v2858
        %v2882 = vmul.f32 %v1257, %v2858
        %v2883 = vmul.f32 %v1261, %v2858
        %v2884 = vmul.f32 %v1265, %v2858
        %v2885 = vmul.f32 %v1269, %v2858
        %v2886 = vmul.f32 %v2055, %v2858
        %v2887 = vmul.f32 %v2059, %v2858
        %v2888 = vmul.f32 %v2453, %v2858
        %v2889 = vmul.f32 %v2457, %v2858
        %v2890 = vmul.f32 %v2851, %v2858
        %v2891 = vmul.f32 %v2855, %v2858
        %v2892 = vadd.f32 %v2812, %v2860
        %v2893 = vadd.f32 %v2813, %v2861
        %v2894 = vadd.f32 %v2814, %v2862
        %v2895 = vadd.f32 %v2815, %v2863
        %v2896 = vadd.f32 %v2816, %v2864
        %v2897 = vadd.f32 %v2817, %v2865
        %v2898 = vadd.f32 %v2818, %v2866
        %v2899 = vadd.f32 %v2819, %v2867
        %v2900 = vadd.f32 %v2820, %v2868
        %v2901 = vadd.f32 %v2821, %v2869
        %v2902 = vadd.f32 %v2822, %v2870
        %v2903 = vadd.f32 %v2823, %v2871
        %v2904 = vadd.f32 %v2824, %v2872
        %v2905 = vadd.f32 %v2825, %v2873
        %v2906 = vadd.f32 %v2826, %v2874
        %v2907 = vadd.f32 %v2827, %v2875
        %v2908 = vadd.f32 %v2828, %v2876
        %v2909 = vadd.f32 %v2829, %v2877
        %v2910 = vadd.f32 %v2830, %v2878
        %v2911 = vadd.f32 %v2831, %v2879
        %v2912 = vadd.f32 %v2832, %v2880
        %v2913 = vadd.f32 %v2833, %v2881
        %v2914 = vadd.f32 %v2834, %v2882
        %v2915 = vadd.f32 %v2835, %v2883
        %v2916 = vadd.f32 %v2836, %v2884
        %v2917 = vadd.f32 %v2837, %v2885
        %v2918 = vadd.f32 %v2838, %v2886
        %v2919 = vadd.f32 %v2839, %v2887
        %v2920 = vadd.f32 %v2840, %v2888
        %v2921 = vadd.f32 %v2841, %v2889
        %v2922 = vadd.f32 %v2842, %v2890
        %v2923 = vadd.f32 %v2843, %v2891
        %v2924 = vrot.slane %v512, 3
        %v2925 = vrot.slane %v513, 3
        %v2926 = vsel %vm1338, %v2924, %v2925
        %v2927 = vrot.slane %v514, 3
        %v2928 = vsel %vm1338, %v2925, %v2927
        %2929 = vset.pattern.permute.xlu0 0
        %2930 = vperm.xlu0 %2929, %v2926
        %v2931 = vpop.permute.xlu0 %2930
        %2933 = vset.pattern.permute.xlu0 0
        %2934 = vperm.xlu0 %2933, %v2928
        %v2935 = vpop.permute.xlu0 %2934
        %v2938 = vperm.slane %v536, 0
        %v2940 = vmul.f32 %v1445, %v2938
        %v2941 = vmul.f32 %v1449, %v2938
        %v2942 = vmul.f32 %v1453, %v2938
        %v2943 = vmul.f32 %v1457, %v2938
        %v2944 = vmul.f32 %v1461, %v2938
        %v2945 = vmul.f32 %v1465, %v2938
        %v2946 = vmul.f32 %v1469, %v2938
        %v2947 = vmul.f32 %v1473, %v2938
        %v2948 = vmul.f32 %v1477, %v2938
        %v2949 = vmul.f32 %v1481, %v2938
        %v2950 = vmul.f32 %v1485, %v2938
        %v2951 = vmul.f32 %v1489, %v2938
        %v2952 = vmul.f32 %v1493, %v2938
        %v2953 = vmul.f32 %v1497, %v2938
        %v2954 = vmul.f32 %v1501, %v2938
        %v2955 = vmul.f32 %v1505, %v2938
        %v2956 = vmul.f32 %v1509, %v2938
        %v2957 = vmul.f32 %v1513, %v2938
        %v2958 = vmul.f32 %v1517, %v2938
        %v2959 = vmul.f32 %v1521, %v2938
        %v2960 = vmul.f32 %v1525, %v2938
        %v2961 = vmul.f32 %v1529, %v2938
        %v2962 = vmul.f32 %v1533, %v2938
        %v2963 = vmul.f32 %v1537, %v2938
        %v2964 = vmul.f32 %v1541, %v2938
        %v2965 = vmul.f32 %v1545, %v2938
        %v2966 = vmul.f32 %v2135, %v2938
        %v2967 = vmul.f32 %v2139, %v2938
        %v2968 = vmul.f32 %v2533, %v2938
        %v2969 = vmul.f32 %v2537, %v2938
        %v2970 = vmul.f32 %v2931, %v2938
        %v2971 = vmul.f32 %v2935, %v2938
        %v2972 = vadd.f32 %v2892, %v2940
        %v2973 = vadd.f32 %v2893, %v2941
        %v2974 = vadd.f32 %v2894, %v2942
        %v2975 = vadd.f32 %v2895, %v2943
        %v2976 = vadd.f32 %v2896, %v2944
        %v2977 = vadd.f32 %v2897, %v2945
        %v2978 = vadd.f32 %v2898, %v2946
        %v2979 = vadd.f32 %v2899, %v2947
        %v2980 = vadd.f32 %v2900, %v2948
        %v2981 = vadd.f32 %v2901, %v2949
        %v2982 = vadd.f32 %v2902, %v2950
        %v2983 = vadd.f32 %v2903, %v2951
        %v2984 = vadd.f32 %v2904, %v2952
        %v2985 = vadd.f32 %v2905, %v2953
        %v2986 = vadd.f32 %v2906, %v2954
        %v2987 = vadd.f32 %v2907, %v2955
        %v2988 = vadd.f32 %v2908, %v2956
        %v2989 = vadd.f32 %v2909, %v2957
        %v2990 = vadd.f32 %v2910, %v2958
        %v2991 = vadd.f32 %v2911, %v2959
        %v2992 = vadd.f32 %v2912, %v2960
        %v2993 = vadd.f32 %v2913, %v2961
        %v2994 = vadd.f32 %v2914, %v2962
        %v2995 = vadd.f32 %v2915, %v2963
        %v2996 = vadd.f32 %v2916, %v2964
        %v2997 = vadd.f32 %v2917, %v2965
        %v2998 = vadd.f32 %v2918, %v2966
        %v2999 = vadd.f32 %v2919, %v2967
        %v3000 = vadd.f32 %v2920, %v2968
        %v3001 = vadd.f32 %v2921, %v2969
        %v3002 = vadd.f32 %v2922, %v2970
        %v3003 = vadd.f32 %v2923, %v2971
        %v3004 = vrot.slane %v512, 4
        %v3005 = vrot.slane %v513, 4
        %v3006 = vsel %vm1614, %v3004, %v3005
        %v3007 = vrot.slane %v514, 4
        %v3008 = vsel %vm1614, %v3005, %v3007
        %3009 = vset.pattern.permute.xlu0 0
        %3010 = vperm.xlu0 %3009, %v3006
        %v3011 = vpop.permute.xlu0 %3010
        %3013 = vset.pattern.permute.xlu0 0
        %3014 = vperm.xlu0 %3013, %v3008
        %v3015 = vpop.permute.xlu0 %3014
        %v3018 = vperm.slane %v537, 0
        %v3020 = vmul.f32 %v1721, %v3018
        %v3021 = vmul.f32 %v1725, %v3018
        %v3022 = vmul.f32 %v1729, %v3018
        %v3023 = vmul.f32 %v1733, %v3018
        %v3024 = vmul.f32 %v1737, %v3018
        %v3025 = vmul.f32 %v1741, %v3018
        %v3026 = vmul.f32 %v1745, %v3018
        %v3027 = vmul.f32 %v1749, %v3018
        %v3028 = vmul.f32 %v1753, %v3018
        %v3029 = vmul.f32 %v1757, %v3018
        %v3030 = vmul.f32 %v1761, %v3018
        %v3031 = vmul.f32 %v1765, %v3018
        %v3032 = vmul.f32 %v1769, %v3018
        %v3033 = vmul.f32 %v1773, %v3018
        %v3034 = vmul.f32 %v1777, %v3018
        %v3035 = vmul.f32 %v1781, %v3018
        %v3036 = vmul.f32 %v1785, %v3018
        %v3037 = vmul.f32 %v1789, %v3018
        %v3038 = vmul.f32 %v1793, %v3018
        %v3039 = vmul.f32 %v1797, %v3018
        %v3040 = vmul.f32 %v1801, %v3018
        %v3041 = vmul.f32 %v1805, %v3018
        %v3042 = vmul.f32 %v1809, %v3018
        %v3043 = vmul.f32 %v1813, %v3018
        %v3044 = vmul.f32 %v1817, %v3018
        %v3045 = vmul.f32 %v1821, %v3018
        %v3046 = vmul.f32 %v2215, %v3018
        %v3047 = vmul.f32 %v2219, %v3018
        %v3048 = vmul.f32 %v2613, %v3018
        %v3049 = vmul.f32 %v2617, %v3018
        %v3050 = vmul.f32 %v3011, %v3018
        %v3051 = vmul.f32 %v3015, %v3018
        %v3052 = vadd.f32 %v2972, %v3020
        %v3053 = vadd.f32 %v2973, %v3021
        %v3054 = vadd.f32 %v2974, %v3022
        %v3055 = vadd.f32 %v2975, %v3023
        %v3056 = vadd.f32 %v2976, %v3024
        %v3057 = vadd.f32 %v2977, %v3025
        %v3058 = vadd.f32 %v2978, %v3026
        %v3059 = vadd.f32 %v2979, %v3027
        %v3060 = vadd.f32 %v2980, %v3028
        %v3061 = vadd.f32 %v2981, %v3029
        %v3062 = vadd.f32 %v2982, %v3030
        %v3063 = vadd.f32 %v2983, %v3031
        %v3064 = vadd.f32 %v2984, %v3032
        %v3065 = vadd.f32 %v2985, %v3033
        %v3066 = vadd.f32 %v2986, %v3034
        %v3067 = vadd.f32 %v2987, %v3035
        %v3068 = vadd.f32 %v2988, %v3036
        %v3069 = vadd.f32 %v2989, %v3037
        %v3070 = vadd.f32 %v2990, %v3038
        %v3071 = vadd.f32 %v2991, %v3039
        %v3072 = vadd.f32 %v2992, %v3040
        %v3073 = vadd.f32 %v2993, %v3041
        %v3074 = vadd.f32 %v2994, %v3042
        %v3075 = vadd.f32 %v2995, %v3043
        %v3076 = vadd.f32 %v2996, %v3044
        %v3077 = vadd.f32 %v2997, %v3045
        %v3078 = vadd.f32 %v2998, %v3046
        %v3079 = vadd.f32 %v2999, %v3047
        %v3080 = vadd.f32 %v3000, %v3048
        %v3081 = vadd.f32 %v3001, %v3049
        %v3082 = vadd.f32 %v3002, %v3050
        %v3083 = vadd.f32 %v3003, %v3051
        %3085 = vset.pattern.permute.xlu0 0
        %3086 = vperm.xlu0 %3085, %v515
        %v3087 = vpop.permute.xlu0 %3086
        %3090 = vset.pattern.permute.xlu0 0
        %3091 = vperm.xlu0 %3090, %v516
        %v3092 = vpop.permute.xlu0 %3091
        %v3095 = vperm.slane %v538, 0
        %v3097 = vmul.f32 %v586, %v3095
        %v3098 = vmul.f32 %v591, %v3095
        %v3099 = vmul.f32 %v596, %v3095
        %v3100 = vmul.f32 %v601, %v3095
        %v3101 = vmul.f32 %v606, %v3095
        %v3102 = vmul.f32 %v611, %v3095
        %v3103 = vmul.f32 %v616, %v3095
        %v3104 = vmul.f32 %v621, %v3095
        %v3105 = vmul.f32 %v626, %v3095
        %v3106 = vmul.f32 %v631, %v3095
        %v3107 = vmul.f32 %v636, %v3095
        %v3108 = vmul.f32 %v641, %v3095
        %v3109 = vmul.f32 %v646, %v3095
        %v3110 = vmul.f32 %v651, %v3095
        %v3111 = vmul.f32 %v656, %v3095
        %v3112 = vmul.f32 %v661, %v3095
        %v3113 = vmul.f32 %v666, %v3095
        %v3114 = vmul.f32 %v671, %v3095
        %v3115 = vmul.f32 %v676, %v3095
        %v3116 = vmul.f32 %v681, %v3095
        %v3117 = vmul.f32 %v686, %v3095
        %v3118 = vmul.f32 %v691, %v3095
        %v3119 = vmul.f32 %v696, %v3095
        %v3120 = vmul.f32 %v701, %v3095
        %v3121 = vmul.f32 %v1893, %v3095
        %v3122 = vmul.f32 %v1898, %v3095
        %v3123 = vmul.f32 %v2291, %v3095
        %v3124 = vmul.f32 %v2296, %v3095
        %v3125 = vmul.f32 %v2689, %v3095
        %v3126 = vmul.f32 %v2694, %v3095
        %v3127 = vmul.f32 %v3087, %v3095
        %v3128 = vmul.f32 %v3092, %v3095
        %v3129 = vadd.f32 %v3052, %v3097
        %v3130 = vadd.f32 %v3053, %v3098
        %v3131 = vadd.f32 %v3054, %v3099
        %v3132 = vadd.f32 %v3055, %v3100
        %v3133 = vadd.f32 %v3056, %v3101
        %v3134 = vadd.f32 %v3057, %v3102
        %v3135 = vadd.f32 %v3058, %v3103
        %v3136 = vadd.f32 %v3059, %v3104
        %v3137 = vadd.f32 %v3060, %v3105
        %v3138 = vadd.f32 %v3061, %v3106
        %v3139 = vadd.f32 %v3062, %v3107
        %v3140 = vadd.f32 %v3063, %v3108
        %v3141 = vadd.f32 %v3064, %v3109
        %v3142 = vadd.f32 %v3065, %v3110
        %v3143 = vadd.f32 %v3066, %v3111
        %v3144 = vadd.f32 %v3067, %v3112
        %v3145 = vadd.f32 %v3068, %v3113
        %v3146 = vadd.f32 %v3069, %v3114
        %v3147 = vadd.f32 %v3070, %v3115
        %v3148 = vadd.f32 %v3071, %v3116
        %v3149 = vadd.f32 %v3072, %v3117
        %v3150 = vadd.f32 %v3073, %v3118
        %v3151 = vadd.f32 %v3074, %v3119
        %v3152 = vadd.f32 %v3075, %v3120
        %v3153 = vadd.f32 %v3076, %v3121
        %v3154 = vadd.f32 %v3077, %v3122
        %v3155 = vadd.f32 %v3078, %v3123
        %v3156 = vadd.f32 %v3079, %v3124
        %v3157 = vadd.f32 %v3080, %v3125
        %v3158 = vadd.f32 %v3081, %v3126
        %v3159 = vadd.f32 %v3082, %v3127
        %v3160 = vadd.f32 %v3083, %v3128
        %v3162 = vrot.slane %v515, 1
        %v3163 = vrot.slane %v516, 1
        %v3164 = vsel %vm786, %v3162, %v3163
        %v3165 = vrot.slane %v517, 1
        %v3166 = vsel %vm786, %v3163, %v3165
        %3167 = vset.pattern.permute.xlu0 0
        %3168 = vperm.xlu0 %3167, %v3164
        %v3169 = vpop.permute.xlu0 %3168
        %3171 = vset.pattern.permute.xlu0 0
        %3172 = vperm.xlu0 %3171, %v3166
        %v3173 = vpop.permute.xlu0 %3172
        %v3176 = vperm.slane %v539, 0
        %v3178 = vmul.f32 %v901, %v3176
        %v3179 = vmul.f32 %v905, %v3176
        %v3180 = vmul.f32 %v909, %v3176
        %v3181 = vmul.f32 %v913, %v3176
        %v3182 = vmul.f32 %v917, %v3176
        %v3183 = vmul.f32 %v921, %v3176
        %v3184 = vmul.f32 %v925, %v3176
        %v3185 = vmul.f32 %v929, %v3176
        %v3186 = vmul.f32 %v933, %v3176
        %v3187 = vmul.f32 %v937, %v3176
        %v3188 = vmul.f32 %v941, %v3176
        %v3189 = vmul.f32 %v945, %v3176
        %v3190 = vmul.f32 %v949, %v3176
        %v3191 = vmul.f32 %v953, %v3176
        %v3192 = vmul.f32 %v957, %v3176
        %v3193 = vmul.f32 %v961, %v3176
        %v3194 = vmul.f32 %v965, %v3176
        %v3195 = vmul.f32 %v969, %v3176
        %v3196 = vmul.f32 %v973, %v3176
        %v3197 = vmul.f32 %v977, %v3176
        %v3198 = vmul.f32 %v981, %v3176
        %v3199 = vmul.f32 %v985, %v3176
        %v3200 = vmul.f32 %v989, %v3176
        %v3201 = vmul.f32 %v993, %v3176
        %v3202 = vmul.f32 %v1975, %v3176
        %v3203 = vmul.f32 %v1979, %v3176
        %v3204 = vmul.f32 %v2373, %v3176
        %v3205 = vmul.f32 %v2377, %v3176
        %v3206 = vmul.f32 %v2771, %v3176
        %v3207 = vmul.f32 %v2775, %v3176
        %v3208 = vmul.f32 %v3169, %v3176
        %v3209 = vmul.f32 %v3173, %v3176
        %v3210 = vadd.f32 %v3129, %v3178
        %v3211 = vadd.f32 %v3130, %v3179
        %v3212 = vadd.f32 %v3131, %v3180
        %v3213 = vadd.f32 %v3132, %v3181
        %v3214 = vadd.f32 %v3133, %v3182
        %v3215 = vadd.f32 %v3134, %v3183
        %v3216 = vadd.f32 %v3135, %v3184
        %v3217 = vadd.f32 %v3136, %v3185
        %v3218 = vadd.f32 %v3137, %v3186
        %v3219 = vadd.f32 %v3138, %v3187
        %v3220 = vadd.f32 %v3139, %v3188
        %v3221 = vadd.f32 %v3140, %v3189
        %v3222 = vadd.f32 %v3141, %v3190
        %v3223 = vadd.f32 %v3142, %v3191
        %v3224 = vadd.f32 %v3143, %v3192
        %v3225 = vadd.f32 %v3144, %v3193
        %v3226 = vadd.f32 %v3145, %v3194
        %v3227 = vadd.f32 %v3146, %v3195
        %v3228 = vadd.f32 %v3147, %v3196
        %v3229 = vadd.f32 %v3148, %v3197
        %v3230 = vadd.f32 %v3149, %v3198
        %v3231 = vadd.f32 %v3150, %v3199
        %v3232 = vadd.f32 %v3151, %v3200
        %v3233 = vadd.f32 %v3152, %v3201
        %v3234 = vadd.f32 %v3153, %v3202
        %v3235 = vadd.f32 %v3154, %v3203
        %v3236 = vadd.f32 %v3155, %v3204
        %v3237 = vadd.f32 %v3156, %v3205
        %v3238 = vadd.f32 %v3157, %v3206
        %v3239 = vadd.f32 %v3158, %v3207
        %v3240 = vadd.f32 %v3159, %v3208
        %v3241 = vadd.f32 %v3160, %v3209
        %v3242 = vrot.slane %v515, 2
        %v3243 = vrot.slane %v516, 2
        %v3244 = vsel %vm1062, %v3242, %v3243
        %v3245 = vrot.slane %v517, 2
        %v3246 = vsel %vm1062, %v3243, %v3245
        %3247 = vset.pattern.permute.xlu0 0
        %3248 = vperm.xlu0 %3247, %v3244
        %v3249 = vpop.permute.xlu0 %3248
        %3251 = vset.pattern.permute.xlu0 0
        %3252 = vperm.xlu0 %3251, %v3246
        %v3253 = vpop.permute.xlu0 %3252
        %v3256 = vperm.slane %v540, 0
        %v3258 = vmul.f32 %v1177, %v3256
        %v3259 = vmul.f32 %v1181, %v3256
        %v3260 = vmul.f32 %v1185, %v3256
        %v3261 = vmul.f32 %v1189, %v3256
        %v3262 = vmul.f32 %v1193, %v3256
        %v3263 = vmul.f32 %v1197, %v3256
        %v3264 = vmul.f32 %v1201, %v3256
        %v3265 = vmul.f32 %v1205, %v3256
        %v3266 = vmul.f32 %v1209, %v3256
        %v3267 = vmul.f32 %v1213, %v3256
        %v3268 = vmul.f32 %v1217, %v3256
        %v3269 = vmul.f32 %v1221, %v3256
        %v3270 = vmul.f32 %v1225, %v3256
        %v3271 = vmul.f32 %v1229, %v3256
        %v3272 = vmul.f32 %v1233, %v3256
        %v3273 = vmul.f32 %v1237, %v3256
        %v3274 = vmul.f32 %v1241, %v3256
        %v3275 = vmul.f32 %v1245, %v3256
        %v3276 = vmul.f32 %v1249, %v3256
        %v3277 = vmul.f32 %v1253, %v3256
        %v3278 = vmul.f32 %v1257, %v3256
        %v3279 = vmul.f32 %v1261, %v3256
        %v3280 = vmul.f32 %v1265, %v3256
        %v3281 = vmul.f32 %v1269, %v3256
        %v3282 = vmul.f32 %v2055, %v3256
        %v3283 = vmul.f32 %v2059, %v3256
        %v3284 = vmul.f32 %v2453, %v3256
        %v3285 = vmul.f32 %v2457, %v3256
        %v3286 = vmul.f32 %v2851, %v3256
        %v3287 = vmul.f32 %v2855, %v3256
        %v3288 = vmul.f32 %v3249, %v3256
        %v3289 = vmul.f32 %v3253, %v3256
        %v3290 = vadd.f32 %v3210, %v3258
        %v3291 = vadd.f32 %v3211, %v3259
        %v3292 = vadd.f32 %v3212, %v3260
        %v3293 = vadd.f32 %v3213, %v3261
        %v3294 = vadd.f32 %v3214, %v3262
        %v3295 = vadd.f32 %v3215, %v3263
        %v3296 = vadd.f32 %v3216, %v3264
        %v3297 = vadd.f32 %v3217, %v3265
        %v3298 = vadd.f32 %v3218, %v3266
        %v3299 = vadd.f32 %v3219, %v3267
        %v3300 = vadd.f32 %v3220, %v3268
        %v3301 = vadd.f32 %v3221, %v3269
        %v3302 = vadd.f32 %v3222, %v3270
        %v3303 = vadd.f32 %v3223, %v3271
        %v3304 = vadd.f32 %v3224, %v3272
        %v3305 = vadd.f32 %v3225, %v3273
        %v3306 = vadd.f32 %v3226, %v3274
        %v3307 = vadd.f32 %v3227, %v3275
        %v3308 = vadd.f32 %v3228, %v3276
        %v3309 = vadd.f32 %v3229, %v3277
        %v3310 = vadd.f32 %v3230, %v3278
        %v3311 = vadd.f32 %v3231, %v3279
        %v3312 = vadd.f32 %v3232, %v3280
        %v3313 = vadd.f32 %v3233, %v3281
        %v3314 = vadd.f32 %v3234, %v3282
        %v3315 = vadd.f32 %v3235, %v3283
        %v3316 = vadd.f32 %v3236, %v3284
        %v3317 = vadd.f32 %v3237, %v3285
        %v3318 = vadd.f32 %v3238, %v3286
        %v3319 = vadd.f32 %v3239, %v3287
        %v3320 = vadd.f32 %v3240, %v3288
        %v3321 = vadd.f32 %v3241, %v3289
        %v3322 = vrot.slane %v515, 3
        %v3323 = vrot.slane %v516, 3
        %v3324 = vsel %vm1338, %v3322, %v3323
        %v3325 = vrot.slane %v517, 3
        %v3326 = vsel %vm1338, %v3323, %v3325
        %3327 = vset.pattern.permute.xlu0 0
        %3328 = vperm.xlu0 %3327, %v3324
        %v3329 = vpop.permute.xlu0 %3328
        %3331 = vset.pattern.permute.xlu0 0
        %3332 = vperm.xlu0 %3331, %v3326
        %v3333 = vpop.permute.xlu0 %3332
        %v3336 = vperm.slane %v541, 0
        %v3338 = vmul.f32 %v1453, %v3336
        %v3339 = vmul.f32 %v1457, %v3336
        %v3340 = vmul.f32 %v1461, %v3336
        %v3341 = vmul.f32 %v1465, %v3336
        %v3342 = vmul.f32 %v1469, %v3336
        %v3343 = vmul.f32 %v1473, %v3336
        %v3344 = vmul.f32 %v1477, %v3336
        %v3345 = vmul.f32 %v1481, %v3336
        %v3346 = vmul.f32 %v1485, %v3336
        %v3347 = vmul.f32 %v1489, %v3336
        %v3348 = vmul.f32 %v1493, %v3336
        %v3349 = vmul.f32 %v1497, %v3336
        %v3350 = vmul.f32 %v1501, %v3336
        %v3351 = vmul.f32 %v1505, %v3336
        %v3352 = vmul.f32 %v1509, %v3336
        %v3353 = vmul.f32 %v1513, %v3336
        %v3354 = vmul.f32 %v1517, %v3336
        %v3355 = vmul.f32 %v1521, %v3336
        %v3356 = vmul.f32 %v1525, %v3336
        %v3357 = vmul.f32 %v1529, %v3336
        %v3358 = vmul.f32 %v1533, %v3336
        %v3359 = vmul.f32 %v1537, %v3336
        %v3360 = vmul.f32 %v1541, %v3336
        %v3361 = vmul.f32 %v1545, %v3336
        %v3362 = vmul.f32 %v2135, %v3336
        %v3363 = vmul.f32 %v2139, %v3336
        %v3364 = vmul.f32 %v2533, %v3336
        %v3365 = vmul.f32 %v2537, %v3336
        %v3366 = vmul.f32 %v2931, %v3336
        %v3367 = vmul.f32 %v2935, %v3336
        %v3368 = vmul.f32 %v3329, %v3336
        %v3369 = vmul.f32 %v3333, %v3336
        %v3370 = vadd.f32 %v3290, %v3338
        %v3371 = vadd.f32 %v3291, %v3339
        %v3372 = vadd.f32 %v3292, %v3340
        %v3373 = vadd.f32 %v3293, %v3341
        %v3374 = vadd.f32 %v3294, %v3342
        %v3375 = vadd.f32 %v3295, %v3343
        %v3376 = vadd.f32 %v3296, %v3344
        %v3377 = vadd.f32 %v3297, %v3345
        %v3378 = vadd.f32 %v3298, %v3346
        %v3379 = vadd.f32 %v3299, %v3347
        %v3380 = vadd.f32 %v3300, %v3348
        %v3381 = vadd.f32 %v3301, %v3349
        %v3382 = vadd.f32 %v3302, %v3350
        %v3383 = vadd.f32 %v3303, %v3351
        %v3384 = vadd.f32 %v3304, %v3352
        %v3385 = vadd.f32 %v3305, %v3353
        %v3386 = vadd.f32 %v3306, %v3354
        %v3387 = vadd.f32 %v3307, %v3355
        %v3388 = vadd.f32 %v3308, %v3356
        %v3389 = vadd.f32 %v3309, %v3357
        %v3390 = vadd.f32 %v3310, %v3358
        %v3391 = vadd.f32 %v3311, %v3359
        %v3392 = vadd.f32 %v3312, %v3360
        %v3393 = vadd.f32 %v3313, %v3361
        %v3394 = vadd.f32 %v3314, %v3362
        %v3395 = vadd.f32 %v3315, %v3363
        %v3396 = vadd.f32 %v3316, %v3364
        %v3397 = vadd.f32 %v3317, %v3365
        %v3398 = vadd.f32 %v3318, %v3366
        %v3399 = vadd.f32 %v3319, %v3367
        %v3400 = vadd.f32 %v3320, %v3368
        %v3401 = vadd.f32 %v3321, %v3369
        %v3402 = vrot.slane %v515, 4
        %v3403 = vrot.slane %v516, 4
        %v3404 = vsel %vm1614, %v3402, %v3403
        %v3405 = vrot.slane %v517, 4
        %v3406 = vsel %vm1614, %v3403, %v3405
        %3407 = vset.pattern.permute.xlu0 0
        %3408 = vperm.xlu0 %3407, %v3404
        %v3409 = vpop.permute.xlu0 %3408
        %3411 = vset.pattern.permute.xlu0 0
        %3412 = vperm.xlu0 %3411, %v3406
        %v3413 = vpop.permute.xlu0 %3412
        %v3416 = vperm.slane %v542, 0
        %v3418 = vmul.f32 %v1729, %v3416
        %v3419 = vmul.f32 %v1733, %v3416
        %v3420 = vmul.f32 %v1737, %v3416
        %v3421 = vmul.f32 %v1741, %v3416
        %v3422 = vmul.f32 %v1745, %v3416
        %v3423 = vmul.f32 %v1749, %v3416
        %v3424 = vmul.f32 %v1753, %v3416
        %v3425 = vmul.f32 %v1757, %v3416
        %v3426 = vmul.f32 %v1761, %v3416
        %v3427 = vmul.f32 %v1765, %v3416
        %v3428 = vmul.f32 %v1769, %v3416
        %v3429 = vmul.f32 %v1773, %v3416
        %v3430 = vmul.f32 %v1777, %v3416
        %v3431 = vmul.f32 %v1781, %v3416
        %v3432 = vmul.f32 %v1785, %v3416
        %v3433 = vmul.f32 %v1789, %v3416
        %v3434 = vmul.f32 %v1793, %v3416
        %v3435 = vmul.f32 %v1797, %v3416
        %v3436 = vmul.f32 %v1801, %v3416
        %v3437 = vmul.f32 %v1805, %v3416
        %v3438 = vmul.f32 %v1809, %v3416
        %v3439 = vmul.f32 %v1813, %v3416
        %v3440 = vmul.f32 %v1817, %v3416
        %v3441 = vmul.f32 %v1821, %v3416
        %v3442 = vmul.f32 %v2215, %v3416
        %v3443 = vmul.f32 %v2219, %v3416
        %v3444 = vmul.f32 %v2613, %v3416
        %v3445 = vmul.f32 %v2617, %v3416
        %v3446 = vmul.f32 %v3011, %v3416
        %v3447 = vmul.f32 %v3015, %v3416
        %v3448 = vmul.f32 %v3409, %v3416
        %v3449 = vmul.f32 %v3413, %v3416
        %v3450 = vadd.f32 %v3370, %v3418
        %v3451 = vadd.f32 %v3371, %v3419
        %v3452 = vadd.f32 %v3372, %v3420
        %v3453 = vadd.f32 %v3373, %v3421
        %v3454 = vadd.f32 %v3374, %v3422
        %v3455 = vadd.f32 %v3375, %v3423
        %v3456 = vadd.f32 %v3376, %v3424
        %v3457 = vadd.f32 %v3377, %v3425
        %v3458 = vadd.f32 %v3378, %v3426
        %v3459 = vadd.f32 %v3379, %v3427
        %v3460 = vadd.f32 %v3380, %v3428
        %v3461 = vadd.f32 %v3381, %v3429
        %v3462 = vadd.f32 %v3382, %v3430
        %v3463 = vadd.f32 %v3383, %v3431
        %v3464 = vadd.f32 %v3384, %v3432
        %v3465 = vadd.f32 %v3385, %v3433
        %v3466 = vadd.f32 %v3386, %v3434
        %v3467 = vadd.f32 %v3387, %v3435
        %v3468 = vadd.f32 %v3388, %v3436
        %v3469 = vadd.f32 %v3389, %v3437
        %v3470 = vadd.f32 %v3390, %v3438
        %v3471 = vadd.f32 %v3391, %v3439
        %v3472 = vadd.f32 %v3392, %v3440
        %v3473 = vadd.f32 %v3393, %v3441
        %v3474 = vadd.f32 %v3394, %v3442
        %v3475 = vadd.f32 %v3395, %v3443
        %v3476 = vadd.f32 %v3396, %v3444
        %v3477 = vadd.f32 %v3397, %v3445
        %v3478 = vadd.f32 %v3398, %v3446
        %v3479 = vadd.f32 %v3399, %v3447
        %v3480 = vadd.f32 %v3400, %v3448
        %v3481 = vadd.f32 %v3401, %v3449
        %v3482 = vld [vmem:[%s2] sm:$0x1]
        %v3484 = vperm.slane %v3482, 0
        %v3486 = vadd.f32 %v3450, %v3484
        %v3487 = vadd.f32 %v3451, %v3484
        %v3488 = vadd.f32 %v3452, %v3484
        %v3489 = vadd.f32 %v3453, %v3484
        %v3490 = vadd.f32 %v3454, %v3484
        %v3491 = vadd.f32 %v3455, %v3484
        %v3492 = vadd.f32 %v3456, %v3484
        %v3493 = vadd.f32 %v3457, %v3484
        %v3494 = vadd.f32 %v3458, %v3484
        %v3495 = vadd.f32 %v3459, %v3484
        %v3496 = vadd.f32 %v3460, %v3484
        %v3497 = vadd.f32 %v3461, %v3484
        %v3498 = vadd.f32 %v3462, %v3484
        %v3499 = vadd.f32 %v3463, %v3484
        %v3500 = vadd.f32 %v3464, %v3484
        %v3501 = vadd.f32 %v3465, %v3484
        %v3502 = vadd.f32 %v3466, %v3484
        %v3503 = vadd.f32 %v3467, %v3484
        %v3504 = vadd.f32 %v3468, %v3484
        %v3505 = vadd.f32 %v3469, %v3484
        %v3506 = vadd.f32 %v3470, %v3484
        %v3507 = vadd.f32 %v3471, %v3484
        %v3508 = vadd.f32 %v3472, %v3484
        %v3509 = vadd.f32 %v3473, %v3484
        %v3510 = vadd.f32 %v3474, %v3484
        %v3511 = vadd.f32 %v3475, %v3484
        %v3512 = vadd.f32 %v3476, %v3484
        %v3513 = vadd.f32 %v3477, %v3484
        %v3514 = vadd.f32 %v3478, %v3484
        %v3515 = vadd.f32 %v3479, %v3484
        %v3516 = vadd.f32 %v3480, %v3484
        %v3517 = vadd.f32 %v3481, %v3484
        %v3518 = vmax.f32 %v3486, 0.0
        %v3519 = vmax.f32 %v3487, 0.0
        %v3520 = vmax.f32 %v3488, 0.0
        %v3521 = vmax.f32 %v3489, 0.0
        %v3522 = vmax.f32 %v3490, 0.0
        %v3523 = vmax.f32 %v3491, 0.0
        %v3524 = vmax.f32 %v3492, 0.0
        %v3525 = vmax.f32 %v3493, 0.0
        %v3526 = vmax.f32 %v3494, 0.0
        %v3527 = vmax.f32 %v3495, 0.0
        %v3528 = vmax.f32 %v3496, 0.0
        %v3529 = vmax.f32 %v3497, 0.0
        %v3530 = vmax.f32 %v3498, 0.0
        %v3531 = vmax.f32 %v3499, 0.0
        %v3532 = vmax.f32 %v3500, 0.0
        %v3533 = vmax.f32 %v3501, 0.0
        %v3534 = vmax.f32 %v3502, 0.0
        %v3535 = vmax.f32 %v3503, 0.0
        %v3536 = vmax.f32 %v3504, 0.0
        %v3537 = vmax.f32 %v3505, 0.0
        %v3538 = vmax.f32 %v3506, 0.0
        %v3539 = vmax.f32 %v3507, 0.0
        %v3540 = vmax.f32 %v3508, 0.0
        %v3541 = vmax.f32 %v3509, 0.0
        %v3542 = vmax.f32 %v3510, 0.0
        %v3543 = vmax.f32 %v3511, 0.0
        %v3544 = vmax.f32 %v3512, 0.0
        %v3545 = vmax.f32 %v3513, 0.0
        %v3546 = vmax.f32 %v3514, 0.0
        %v3547 = vmax.f32 %v3515, 0.0
        %v3548 = vmax.f32 %v3516, 0.0
        %v3549 = vmax.f32 %v3517, 0.0
        %v3582 = vrot.slane %v3518, 2
        %v3583 = vrot.slane %v3518, 4
        %v3584 = vrot.slane %v3518, 6
        %v3585 = vrot.slane %v3519, 2
        %v3586 = vrot.slane %v3519, 4
        %v3587 = vrot.slane %v3519, 6
        %v3588 = vrot.slane %v3520, 2
        %v3589 = vrot.slane %v3520, 4
        %v3590 = vrot.slane %v3520, 6
        %v3591 = vrot.slane %v3521, 2
        %v3592 = vrot.slane %v3521, 4
        %v3593 = vrot.slane %v3521, 6
        %v3594 = vrot.slane %v3522, 2
        %v3595 = vrot.slane %v3522, 4
        %v3596 = vrot.slane %v3522, 6
        %v3597 = vrot.slane %v3523, 2
        %v3598 = vrot.slane %v3523, 4
        %v3599 = vrot.slane %v3523, 6
        %v3600 = vrot.slane %v3524, 2
        %v3601 = vrot.slane %v3524, 4
        %v3602 = vrot.slane %v3524, 6
        %v3603 = vrot.slane %v3525, 2
        %v3604 = vrot.slane %v3525, 4
        %v3605 = vrot.slane %v3525, 6
        %v3606 = vrot.slane %v3526, 2
        %v3607 = vrot.slane %v3526, 4
        %v3608 = vrot.slane %v3526, 6
        %v3609 = vrot.slane %v3527, 2
        %v3610 = vrot.slane %v3527, 4
        %v3611 = vrot.slane %v3527, 6
        %v3612 = vrot.slane %v3528, 2
        %v3613 = vrot.slane %v3528, 4
        %v3614 = vrot.slane %v3528, 6
        %v3615 = vrot.slane %v3529, 2
        %v3616 = vrot.slane %v3529, 4
        %v3617 = vrot.slane %v3529, 6
        %v3618 = vrot.slane %v3530, 2
        %v3619 = vrot.slane %v3530, 4
        %v3620 = vrot.slane %v3530, 6
        %v3621 = vrot.slane %v3531, 2
        %v3622 = vrot.slane %v3531, 4
        %v3623 = vrot.slane %v3531, 6
        %v3624 = vrot.slane %v3532, 2
        %v3625 = vrot.slane %v3532, 4
        %v3626 = vrot.slane %v3532, 6
        %v3627 = vrot.slane %v3533, 2
        %v3628 = vrot.slane %v3533, 4
        %v3629 = vrot.slane %v3533, 6
        %v3630 = vrot.slane %v3534, 2
        %v3631 = vrot.slane %v3534, 4
        %v3632 = vrot.slane %v3534, 6
        %v3633 = vrot.slane %v3535, 2
        %v3634 = vrot.slane %v3535, 4
        %v3635 = vrot.slane %v3535, 6
        %v3636 = vrot.slane %v3536, 2
        %v3637 = vrot.slane %v3536, 4
        %v3638 = vrot.slane %v3536, 6
        %v3639 = vrot.slane %v3537, 2
        %v3640 = vrot.slane %v3537, 4
        %v3641 = vrot.slane %v3537, 6
        %v3642 = vrot.slane %v3538, 2
        %v3643 = vrot.slane %v3538, 4
        %v3644 = vrot.slane %v3538, 6
        %v3645 = vrot.slane %v3539, 2
        %v3646 = vrot.slane %v3539, 4
        %v3647 = vrot.slane %v3539, 6
        %v3648 = vrot.slane %v3540, 2
        %v3649 = vrot.slane %v3540, 4
        %v3650 = vrot.slane %v3540, 6
        %v3651 = vrot.slane %v3541, 2
        %v3652 = vrot.slane %v3541, 4
        %v3653 = vrot.slane %v3541, 6
        %v3654 = vrot.slane %v3542, 2
        %v3655 = vrot.slane %v3542, 4
        %v3656 = vrot.slane %v3542, 6
        %v3657 = vrot.slane %v3543, 2
        %v3658 = vrot.slane %v3543, 4
        %v3659 = vrot.slane %v3543, 6
        %v3660 = vrot.slane %v3544, 2
        %v3661 = vrot.slane %v3544, 4
        %v3662 = vrot.slane %v3544, 6
        %v3663 = vrot.slane %v3545, 2
        %v3664 = vrot.slane %v3545, 4
        %v3665 = vrot.slane %v3545, 6
        %v3666 = vrot.slane %v3546, 2
        %v3667 = vrot.slane %v3546, 4
        %v3668 = vrot.slane %v3546, 6
        %v3669 = vrot.slane %v3547, 2
        %v3670 = vrot.slane %v3547, 4
        %v3671 = vrot.slane %v3547, 6
        %v3672 = vrot.slane %v3548, 2
        %v3673 = vrot.slane %v3548, 4
        %v3674 = vrot.slane %v3548, 6
        %v3675 = vrot.slane %v3549, 2
        %v3676 = vrot.slane %v3549, 4
        %v3677 = vrot.slane %v3549, 6
        %vm3774 = vcmask 156672
        %v3775 = vsel %vm3774, %v3518, -inf
        %v3776 = vrot.slane %v3775, 4
        %v3777 = vmax.f32 %v3775, %v3776
        %v3778 = vrot.slane %v3777, 2
        %v3779 = vmax.f32 %v3777, %v3778
        %v3780 = vrot.slane %v3779, 1
        %v3781 = vmax.f32 %v3779, %v3780
        %v3782 = vsel %vm3774, %v3582, -inf
        %v3783 = vrot.slane %v3782, 4
        %v3784 = vmax.f32 %v3782, %v3783
        %v3785 = vrot.slane %v3784, 2
        %v3786 = vmax.f32 %v3784, %v3785
        %v3787 = vrot.slane %v3786, 1
        %v3788 = vmax.f32 %v3786, %v3787
        %v3789 = vsel %vm3774, %v3583, -inf
        %v3790 = vrot.slane %v3789, 4
        %v3791 = vmax.f32 %v3789, %v3790
        %v3792 = vrot.slane %v3791, 2
        %v3793 = vmax.f32 %v3791, %v3792
        %v3794 = vrot.slane %v3793, 1
        %v3795 = vmax.f32 %v3793, %v3794
        %v3796 = vsel %vm3774, %v3584, -inf
        %v3797 = vrot.slane %v3796, 4
        %v3798 = vmax.f32 %v3796, %v3797
        %v3799 = vrot.slane %v3798, 2
        %v3800 = vmax.f32 %v3798, %v3799
        %v3801 = vrot.slane %v3800, 1
        %v3802 = vmax.f32 %v3800, %v3801
        %v3803 = vsel %vm3774, %v3519, -inf
        %v3804 = vrot.slane %v3803, 4
        %v3805 = vmax.f32 %v3803, %v3804
        %v3806 = vrot.slane %v3805, 2
        %v3807 = vmax.f32 %v3805, %v3806
        %v3808 = vrot.slane %v3807, 1
        %v3809 = vmax.f32 %v3807, %v3808
        %v3810 = vsel %vm3774, %v3585, -inf
        %v3811 = vrot.slane %v3810, 4
        %v3812 = vmax.f32 %v3810, %v3811
        %v3813 = vrot.slane %v3812, 2
        %v3814 = vmax.f32 %v3812, %v3813
        %v3815 = vrot.slane %v3814, 1
        %v3816 = vmax.f32 %v3814, %v3815
        %v3817 = vsel %vm3774, %v3586, -inf
        %v3818 = vrot.slane %v3817, 4
        %v3819 = vmax.f32 %v3817, %v3818
        %v3820 = vrot.slane %v3819, 2
        %v3821 = vmax.f32 %v3819, %v3820
        %v3822 = vrot.slane %v3821, 1
        %v3823 = vmax.f32 %v3821, %v3822
        %v3824 = vsel %vm3774, %v3587, -inf
        %v3825 = vrot.slane %v3824, 4
        %v3826 = vmax.f32 %v3824, %v3825
        %v3827 = vrot.slane %v3826, 2
        %v3828 = vmax.f32 %v3826, %v3827
        %v3829 = vrot.slane %v3828, 1
        %v3830 = vmax.f32 %v3828, %v3829
        %v3831 = vsel %vm3774, %v3520, -inf
        %v3832 = vrot.slane %v3831, 4
        %v3833 = vmax.f32 %v3831, %v3832
        %v3834 = vrot.slane %v3833, 2
        %v3835 = vmax.f32 %v3833, %v3834
        %v3836 = vrot.slane %v3835, 1
        %v3837 = vmax.f32 %v3835, %v3836
        %v3838 = vsel %vm3774, %v3588, -inf
        %v3839 = vrot.slane %v3838, 4
        %v3840 = vmax.f32 %v3838, %v3839
        %v3841 = vrot.slane %v3840, 2
        %v3842 = vmax.f32 %v3840, %v3841
        %v3843 = vrot.slane %v3842, 1
        %v3844 = vmax.f32 %v3842, %v3843
        %v3845 = vsel %vm3774, %v3589, -inf
        %v3846 = vrot.slane %v3845, 4
        %v3847 = vmax.f32 %v3845, %v3846
        %v3848 = vrot.slane %v3847, 2
        %v3849 = vmax.f32 %v3847, %v3848
        %v3850 = vrot.slane %v3849, 1
        %v3851 = vmax.f32 %v3849, %v3850
        %v3852 = vsel %vm3774, %v3590, -inf
        %v3853 = vrot.slane %v3852, 4
        %v3854 = vmax.f32 %v3852, %v3853
        %v3855 = vrot.slane %v3854, 2
        %v3856 = vmax.f32 %v3854, %v3855
        %v3857 = vrot.slane %v3856, 1
        %v3858 = vmax.f32 %v3856, %v3857
        %v3859 = vsel %vm3774, %v3521, -inf
        %v3860 = vrot.slane %v3859, 4
        %v3861 = vmax.f32 %v3859, %v3860
        %v3862 = vrot.slane %v3861, 2
        %v3863 = vmax.f32 %v3861, %v3862
        %v3864 = vrot.slane %v3863, 1
        %v3865 = vmax.f32 %v3863, %v3864
        %v3866 = vsel %vm3774, %v3591, -inf
        %v3867 = vrot.slane %v3866, 4
        %v3868 = vmax.f32 %v3866, %v3867
        %v3869 = vrot.slane %v3868, 2
        %v3870 = vmax.f32 %v3868, %v3869
        %v3871 = vrot.slane %v3870, 1
        %v3872 = vmax.f32 %v3870, %v3871
        %v3873 = vsel %vm3774, %v3592, -inf
        %v3874 = vrot.slane %v3873, 4
        %v3875 = vmax.f32 %v3873, %v3874
        %v3876 = vrot.slane %v3875, 2
        %v3877 = vmax.f32 %v3875, %v3876
        %v3878 = vrot.slane %v3877, 1
        %v3879 = vmax.f32 %v3877, %v3878
        %v3880 = vsel %vm3774, %v3593, -inf
        %v3881 = vrot.slane %v3880, 4
        %v3882 = vmax.f32 %v3880, %v3881
        %v3883 = vrot.slane %v3882, 2
        %v3884 = vmax.f32 %v3882, %v3883
        %v3885 = vrot.slane %v3884, 1
        %v3886 = vmax.f32 %v3884, %v3885
        %v3887 = vsel %vm3774, %v3522, -inf
        %v3888 = vrot.slane %v3887, 4
        %v3889 = vmax.f32 %v3887, %v3888
        %v3890 = vrot.slane %v3889, 2
        %v3891 = vmax.f32 %v3889, %v3890
        %v3892 = vrot.slane %v3891, 1
        %v3893 = vmax.f32 %v3891, %v3892
        %v3894 = vsel %vm3774, %v3594, -inf
        %v3895 = vrot.slane %v3894, 4
        %v3896 = vmax.f32 %v3894, %v3895
        %v3897 = vrot.slane %v3896, 2
        %v3898 = vmax.f32 %v3896, %v3897
        %v3899 = vrot.slane %v3898, 1
        %v3900 = vmax.f32 %v3898, %v3899
        %v3901 = vsel %vm3774, %v3595, -inf
        %v3902 = vrot.slane %v3901, 4
        %v3903 = vmax.f32 %v3901, %v3902
        %v3904 = vrot.slane %v3903, 2
        %v3905 = vmax.f32 %v3903, %v3904
        %v3906 = vrot.slane %v3905, 1
        %v3907 = vmax.f32 %v3905, %v3906
        %v3908 = vsel %vm3774, %v3596, -inf
        %v3909 = vrot.slane %v3908, 4
        %v3910 = vmax.f32 %v3908, %v3909
        %v3911 = vrot.slane %v3910, 2
        %v3912 = vmax.f32 %v3910, %v3911
        %v3913 = vrot.slane %v3912, 1
        %v3914 = vmax.f32 %v3912, %v3913
        %v3915 = vsel %vm3774, %v3523, -inf
        %v3916 = vrot.slane %v3915, 4
        %v3917 = vmax.f32 %v3915, %v3916
        %v3918 = vrot.slane %v3917, 2
        %v3919 = vmax.f32 %v3917, %v3918
        %v3920 = vrot.slane %v3919, 1
        %v3921 = vmax.f32 %v3919, %v3920
        %v3922 = vsel %vm3774, %v3597, -inf
        %v3923 = vrot.slane %v3922, 4
        %v3924 = vmax.f32 %v3922, %v3923
        %v3925 = vrot.slane %v3924, 2
        %v3926 = vmax.f32 %v3924, %v3925
        %v3927 = vrot.slane %v3926, 1
        %v3928 = vmax.f32 %v3926, %v3927
        %v3929 = vsel %vm3774, %v3598, -inf
        %v3930 = vrot.slane %v3929, 4
        %v3931 = vmax.f32 %v3929, %v3930
        %v3932 = vrot.slane %v3931, 2
        %v3933 = vmax.f32 %v3931, %v3932
        %v3934 = vrot.slane %v3933, 1
        %v3935 = vmax.f32 %v3933, %v3934
        %v3936 = vsel %vm3774, %v3599, -inf
        %v3937 = vrot.slane %v3936, 4
        %v3938 = vmax.f32 %v3936, %v3937
        %v3939 = vrot.slane %v3938, 2
        %v3940 = vmax.f32 %v3938, %v3939
        %v3941 = vrot.slane %v3940, 1
        %v3942 = vmax.f32 %v3940, %v3941
        %v3943 = vsel %vm3774, %v3524, -inf
        %v3944 = vrot.slane %v3943, 4
        %v3945 = vmax.f32 %v3943, %v3944
        %v3946 = vrot.slane %v3945, 2
        %v3947 = vmax.f32 %v3945, %v3946
        %v3948 = vrot.slane %v3947, 1
        %v3949 = vmax.f32 %v3947, %v3948
        %v3950 = vsel %vm3774, %v3600, -inf
        %v3951 = vrot.slane %v3950, 4
        %v3952 = vmax.f32 %v3950, %v3951
        %v3953 = vrot.slane %v3952, 2
        %v3954 = vmax.f32 %v3952, %v3953
        %v3955 = vrot.slane %v3954, 1
        %v3956 = vmax.f32 %v3954, %v3955
        %v3957 = vsel %vm3774, %v3601, -inf
        %v3958 = vrot.slane %v3957, 4
        %v3959 = vmax.f32 %v3957, %v3958
        %v3960 = vrot.slane %v3959, 2
        %v3961 = vmax.f32 %v3959, %v3960
        %v3962 = vrot.slane %v3961, 1
        %v3963 = vmax.f32 %v3961, %v3962
        %v3964 = vsel %vm3774, %v3602, -inf
        %v3965 = vrot.slane %v3964, 4
        %v3966 = vmax.f32 %v3964, %v3965
        %v3967 = vrot.slane %v3966, 2
        %v3968 = vmax.f32 %v3966, %v3967
        %v3969 = vrot.slane %v3968, 1
        %v3970 = vmax.f32 %v3968, %v3969
        %v3971 = vsel %vm3774, %v3525, -inf
        %v3972 = vrot.slane %v3971, 4
        %v3973 = vmax.f32 %v3971, %v3972
        %v3974 = vrot.slane %v3973, 2
        %v3975 = vmax.f32 %v3973, %v3974
        %v3976 = vrot.slane %v3975, 1
        %v3977 = vmax.f32 %v3975, %v3976
        %v3978 = vsel %vm3774, %v3603, -inf
        %v3979 = vrot.slane %v3978, 4
        %v3980 = vmax.f32 %v3978, %v3979
        %v3981 = vrot.slane %v3980, 2
        %v3982 = vmax.f32 %v3980, %v3981
        %v3983 = vrot.slane %v3982, 1
        %v3984 = vmax.f32 %v3982, %v3983
        %v3985 = vsel %vm3774, %v3604, -inf
        %v3986 = vrot.slane %v3985, 4
        %v3987 = vmax.f32 %v3985, %v3986
        %v3988 = vrot.slane %v3987, 2
        %v3989 = vmax.f32 %v3987, %v3988
        %v3990 = vrot.slane %v3989, 1
        %v3991 = vmax.f32 %v3989, %v3990
        %v3992 = vsel %vm3774, %v3605, -inf
        %v3993 = vrot.slane %v3992, 4
        %v3994 = vmax.f32 %v3992, %v3993
        %v3995 = vrot.slane %v3994, 2
        %v3996 = vmax.f32 %v3994, %v3995
        %v3997 = vrot.slane %v3996, 1
        %v3998 = vmax.f32 %v3996, %v3997
        %v3999 = vsel %vm3774, %v3526, -inf
        %v4000 = vrot.slane %v3999, 4
        %v4001 = vmax.f32 %v3999, %v4000
        %v4002 = vrot.slane %v4001, 2
        %v4003 = vmax.f32 %v4001, %v4002
        %v4004 = vrot.slane %v4003, 1
        %v4005 = vmax.f32 %v4003, %v4004
        %v4006 = vsel %vm3774, %v3606, -inf
        %v4007 = vrot.slane %v4006, 4
        %v4008 = vmax.f32 %v4006, %v4007
        %v4009 = vrot.slane %v4008, 2
        %v4010 = vmax.f32 %v4008, %v4009
        %v4011 = vrot.slane %v4010, 1
        %v4012 = vmax.f32 %v4010, %v4011
        %v4013 = vsel %vm3774, %v3607, -inf
        %v4014 = vrot.slane %v4013, 4
        %v4015 = vmax.f32 %v4013, %v4014
        %v4016 = vrot.slane %v4015, 2
        %v4017 = vmax.f32 %v4015, %v4016
        %v4018 = vrot.slane %v4017, 1
        %v4019 = vmax.f32 %v4017, %v4018
        %v4020 = vsel %vm3774, %v3608, -inf
        %v4021 = vrot.slane %v4020, 4
        %v4022 = vmax.f32 %v4020, %v4021
        %v4023 = vrot.slane %v4022, 2
        %v4024 = vmax.f32 %v4022, %v4023
        %v4025 = vrot.slane %v4024, 1
        %v4026 = vmax.f32 %v4024, %v4025
        %v4027 = vsel %vm3774, %v3527, -inf
        %v4028 = vrot.slane %v4027, 4
        %v4029 = vmax.f32 %v4027, %v4028
        %v4030 = vrot.slane %v4029, 2
        %v4031 = vmax.f32 %v4029, %v4030
        %v4032 = vrot.slane %v4031, 1
        %v4033 = vmax.f32 %v4031, %v4032
        %v4034 = vsel %vm3774, %v3609, -inf
        %v4035 = vrot.slane %v4034, 4
        %v4036 = vmax.f32 %v4034, %v4035
        %v4037 = vrot.slane %v4036, 2
        %v4038 = vmax.f32 %v4036, %v4037
        %v4039 = vrot.slane %v4038, 1
        %v4040 = vmax.f32 %v4038, %v4039
        %v4041 = vsel %vm3774, %v3610, -inf
        %v4042 = vrot.slane %v4041, 4
        %v4043 = vmax.f32 %v4041, %v4042
        %v4044 = vrot.slane %v4043, 2
        %v4045 = vmax.f32 %v4043, %v4044
        %v4046 = vrot.slane %v4045, 1
        %v4047 = vmax.f32 %v4045, %v4046
        %v4048 = vsel %vm3774, %v3611, -inf
        %v4049 = vrot.slane %v4048, 4
        %v4050 = vmax.f32 %v4048, %v4049
        %v4051 = vrot.slane %v4050, 2
        %v4052 = vmax.f32 %v4050, %v4051
        %v4053 = vrot.slane %v4052, 1
        %v4054 = vmax.f32 %v4052, %v4053
        %v4055 = vsel %vm3774, %v3528, -inf
        %v4056 = vrot.slane %v4055, 4
        %v4057 = vmax.f32 %v4055, %v4056
        %v4058 = vrot.slane %v4057, 2
        %v4059 = vmax.f32 %v4057, %v4058
        %v4060 = vrot.slane %v4059, 1
        %v4061 = vmax.f32 %v4059, %v4060
        %v4062 = vsel %vm3774, %v3612, -inf
        %v4063 = vrot.slane %v4062, 4
        %v4064 = vmax.f32 %v4062, %v4063
        %v4065 = vrot.slane %v4064, 2
        %v4066 = vmax.f32 %v4064, %v4065
        %v4067 = vrot.slane %v4066, 1
        %v4068 = vmax.f32 %v4066, %v4067
        %v4069 = vsel %vm3774, %v3613, -inf
        %v4070 = vrot.slane %v4069, 4
        %v4071 = vmax.f32 %v4069, %v4070
        %v4072 = vrot.slane %v4071, 2
        %v4073 = vmax.f32 %v4071, %v4072
        %v4074 = vrot.slane %v4073, 1
        %v4075 = vmax.f32 %v4073, %v4074
        %v4076 = vsel %vm3774, %v3614, -inf
        %v4077 = vrot.slane %v4076, 4
        %v4078 = vmax.f32 %v4076, %v4077
        %v4079 = vrot.slane %v4078, 2
        %v4080 = vmax.f32 %v4078, %v4079
        %v4081 = vrot.slane %v4080, 1
        %v4082 = vmax.f32 %v4080, %v4081
        %v4083 = vsel %vm3774, %v3529, -inf
        %v4084 = vrot.slane %v4083, 4
        %v4085 = vmax.f32 %v4083, %v4084
        %v4086 = vrot.slane %v4085, 2
        %v4087 = vmax.f32 %v4085, %v4086
        %v4088 = vrot.slane %v4087, 1
        %v4089 = vmax.f32 %v4087, %v4088
        %v4090 = vsel %vm3774, %v3615, -inf
        %v4091 = vrot.slane %v4090, 4
        %v4092 = vmax.f32 %v4090, %v4091
        %v4093 = vrot.slane %v4092, 2
        %v4094 = vmax.f32 %v4092, %v4093
        %v4095 = vrot.slane %v4094, 1
        %v4096 = vmax.f32 %v4094, %v4095
        %v4097 = vsel %vm3774, %v3616, -inf
        %v4098 = vrot.slane %v4097, 4
        %v4099 = vmax.f32 %v4097, %v4098
        %v4100 = vrot.slane %v4099, 2
        %v4101 = vmax.f32 %v4099, %v4100
        %v4102 = vrot.slane %v4101, 1
        %v4103 = vmax.f32 %v4101, %v4102
        %v4104 = vsel %vm3774, %v3617, -inf
        %v4105 = vrot.slane %v4104, 4
        %v4106 = vmax.f32 %v4104, %v4105
        %v4107 = vrot.slane %v4106, 2
        %v4108 = vmax.f32 %v4106, %v4107
        %v4109 = vrot.slane %v4108, 1
        %v4110 = vmax.f32 %v4108, %v4109
        %v4111 = vsel %vm3774, %v3530, -inf
        %v4112 = vrot.slane %v4111, 4
        %v4113 = vmax.f32 %v4111, %v4112
        %v4114 = vrot.slane %v4113, 2
        %v4115 = vmax.f32 %v4113, %v4114
        %v4116 = vrot.slane %v4115, 1
        %v4117 = vmax.f32 %v4115, %v4116
        %v4118 = vsel %vm3774, %v3618, -inf
        %v4119 = vrot.slane %v4118, 4
        %v4120 = vmax.f32 %v4118, %v4119
        %v4121 = vrot.slane %v4120, 2
        %v4122 = vmax.f32 %v4120, %v4121
        %v4123 = vrot.slane %v4122, 1
        %v4124 = vmax.f32 %v4122, %v4123
        %v4125 = vsel %vm3774, %v3619, -inf
        %v4126 = vrot.slane %v4125, 4
        %v4127 = vmax.f32 %v4125, %v4126
        %v4128 = vrot.slane %v4127, 2
        %v4129 = vmax.f32 %v4127, %v4128
        %v4130 = vrot.slane %v4129, 1
        %v4131 = vmax.f32 %v4129, %v4130
        %v4132 = vsel %vm3774, %v3620, -inf
        %v4133 = vrot.slane %v4132, 4
        %v4134 = vmax.f32 %v4132, %v4133
        %v4135 = vrot.slane %v4134, 2
        %v4136 = vmax.f32 %v4134, %v4135
        %v4137 = vrot.slane %v4136, 1
        %v4138 = vmax.f32 %v4136, %v4137
        %v4139 = vsel %vm3774, %v3531, -inf
        %v4140 = vrot.slane %v4139, 4
        %v4141 = vmax.f32 %v4139, %v4140
        %v4142 = vrot.slane %v4141, 2
        %v4143 = vmax.f32 %v4141, %v4142
        %v4144 = vrot.slane %v4143, 1
        %v4145 = vmax.f32 %v4143, %v4144
        %v4146 = vsel %vm3774, %v3621, -inf
        %v4147 = vrot.slane %v4146, 4
        %v4148 = vmax.f32 %v4146, %v4147
        %v4149 = vrot.slane %v4148, 2
        %v4150 = vmax.f32 %v4148, %v4149
        %v4151 = vrot.slane %v4150, 1
        %v4152 = vmax.f32 %v4150, %v4151
        %v4153 = vsel %vm3774, %v3622, -inf
        %v4154 = vrot.slane %v4153, 4
        %v4155 = vmax.f32 %v4153, %v4154
        %v4156 = vrot.slane %v4155, 2
        %v4157 = vmax.f32 %v4155, %v4156
        %v4158 = vrot.slane %v4157, 1
        %v4159 = vmax.f32 %v4157, %v4158
        %v4160 = vsel %vm3774, %v3623, -inf
        %v4161 = vrot.slane %v4160, 4
        %v4162 = vmax.f32 %v4160, %v4161
        %v4163 = vrot.slane %v4162, 2
        %v4164 = vmax.f32 %v4162, %v4163
        %v4165 = vrot.slane %v4164, 1
        %v4166 = vmax.f32 %v4164, %v4165
        %v4167 = vsel %vm3774, %v3532, -inf
        %v4168 = vrot.slane %v4167, 4
        %v4169 = vmax.f32 %v4167, %v4168
        %v4170 = vrot.slane %v4169, 2
        %v4171 = vmax.f32 %v4169, %v4170
        %v4172 = vrot.slane %v4171, 1
        %v4173 = vmax.f32 %v4171, %v4172
        %v4174 = vsel %vm3774, %v3624, -inf
        %v4175 = vrot.slane %v4174, 4
        %v4176 = vmax.f32 %v4174, %v4175
        %v4177 = vrot.slane %v4176, 2
        %v4178 = vmax.f32 %v4176, %v4177
        %v4179 = vrot.slane %v4178, 1
        %v4180 = vmax.f32 %v4178, %v4179
        %v4181 = vsel %vm3774, %v3625, -inf
        %v4182 = vrot.slane %v4181, 4
        %v4183 = vmax.f32 %v4181, %v4182
        %v4184 = vrot.slane %v4183, 2
        %v4185 = vmax.f32 %v4183, %v4184
        %v4186 = vrot.slane %v4185, 1
        %v4187 = vmax.f32 %v4185, %v4186
        %v4188 = vsel %vm3774, %v3626, -inf
        %v4189 = vrot.slane %v4188, 4
        %v4190 = vmax.f32 %v4188, %v4189
        %v4191 = vrot.slane %v4190, 2
        %v4192 = vmax.f32 %v4190, %v4191
        %v4193 = vrot.slane %v4192, 1
        %v4194 = vmax.f32 %v4192, %v4193
        %v4195 = vsel %vm3774, %v3533, -inf
        %v4196 = vrot.slane %v4195, 4
        %v4197 = vmax.f32 %v4195, %v4196
        %v4198 = vrot.slane %v4197, 2
        %v4199 = vmax.f32 %v4197, %v4198
        %v4200 = vrot.slane %v4199, 1
        %v4201 = vmax.f32 %v4199, %v4200
        %v4202 = vsel %vm3774, %v3627, -inf
        %v4203 = vrot.slane %v4202, 4
        %v4204 = vmax.f32 %v4202, %v4203
        %v4205 = vrot.slane %v4204, 2
        %v4206 = vmax.f32 %v4204, %v4205
        %v4207 = vrot.slane %v4206, 1
        %v4208 = vmax.f32 %v4206, %v4207
        %v4209 = vsel %vm3774, %v3628, -inf
        %v4210 = vrot.slane %v4209, 4
        %v4211 = vmax.f32 %v4209, %v4210
        %v4212 = vrot.slane %v4211, 2
        %v4213 = vmax.f32 %v4211, %v4212
        %v4214 = vrot.slane %v4213, 1
        %v4215 = vmax.f32 %v4213, %v4214
        %v4216 = vsel %vm3774, %v3629, -inf
        %v4217 = vrot.slane %v4216, 4
        %v4218 = vmax.f32 %v4216, %v4217
        %v4219 = vrot.slane %v4218, 2
        %v4220 = vmax.f32 %v4218, %v4219
        %v4221 = vrot.slane %v4220, 1
        %v4222 = vmax.f32 %v4220, %v4221
        %v4223 = vsel %vm3774, %v3534, -inf
        %v4224 = vrot.slane %v4223, 4
        %v4225 = vmax.f32 %v4223, %v4224
        %v4226 = vrot.slane %v4225, 2
        %v4227 = vmax.f32 %v4225, %v4226
        %v4228 = vrot.slane %v4227, 1
        %v4229 = vmax.f32 %v4227, %v4228
        %v4230 = vsel %vm3774, %v3630, -inf
        %v4231 = vrot.slane %v4230, 4
        %v4232 = vmax.f32 %v4230, %v4231
        %v4233 = vrot.slane %v4232, 2
        %v4234 = vmax.f32 %v4232, %v4233
        %v4235 = vrot.slane %v4234, 1
        %v4236 = vmax.f32 %v4234, %v4235
        %v4237 = vsel %vm3774, %v3631, -inf
        %v4238 = vrot.slane %v4237, 4
        %v4239 = vmax.f32 %v4237, %v4238
        %v4240 = vrot.slane %v4239, 2
        %v4241 = vmax.f32 %v4239, %v4240
        %v4242 = vrot.slane %v4241, 1
        %v4243 = vmax.f32 %v4241, %v4242
        %v4244 = vsel %vm3774, %v3632, -inf
        %v4245 = vrot.slane %v4244, 4
        %v4246 = vmax.f32 %v4244, %v4245
        %v4247 = vrot.slane %v4246, 2
        %v4248 = vmax.f32 %v4246, %v4247
        %v4249 = vrot.slane %v4248, 1
        %v4250 = vmax.f32 %v4248, %v4249
        %v4251 = vsel %vm3774, %v3535, -inf
        %v4252 = vrot.slane %v4251, 4
        %v4253 = vmax.f32 %v4251, %v4252
        %v4254 = vrot.slane %v4253, 2
        %v4255 = vmax.f32 %v4253, %v4254
        %v4256 = vrot.slane %v4255, 1
        %v4257 = vmax.f32 %v4255, %v4256
        %v4258 = vsel %vm3774, %v3633, -inf
        %v4259 = vrot.slane %v4258, 4
        %v4260 = vmax.f32 %v4258, %v4259
        %v4261 = vrot.slane %v4260, 2
        %v4262 = vmax.f32 %v4260, %v4261
        %v4263 = vrot.slane %v4262, 1
        %v4264 = vmax.f32 %v4262, %v4263
        %v4265 = vsel %vm3774, %v3634, -inf
        %v4266 = vrot.slane %v4265, 4
        %v4267 = vmax.f32 %v4265, %v4266
        %v4268 = vrot.slane %v4267, 2
        %v4269 = vmax.f32 %v4267, %v4268
        %v4270 = vrot.slane %v4269, 1
        %v4271 = vmax.f32 %v4269, %v4270
        %v4272 = vsel %vm3774, %v3635, -inf
        %v4273 = vrot.slane %v4272, 4
        %v4274 = vmax.f32 %v4272, %v4273
        %v4275 = vrot.slane %v4274, 2
        %v4276 = vmax.f32 %v4274, %v4275
        %v4277 = vrot.slane %v4276, 1
        %v4278 = vmax.f32 %v4276, %v4277
        %v4279 = vsel %vm3774, %v3536, -inf
        %v4280 = vrot.slane %v4279, 4
        %v4281 = vmax.f32 %v4279, %v4280
        %v4282 = vrot.slane %v4281, 2
        %v4283 = vmax.f32 %v4281, %v4282
        %v4284 = vrot.slane %v4283, 1
        %v4285 = vmax.f32 %v4283, %v4284
        %v4286 = vsel %vm3774, %v3636, -inf
        %v4287 = vrot.slane %v4286, 4
        %v4288 = vmax.f32 %v4286, %v4287
        %v4289 = vrot.slane %v4288, 2
        %v4290 = vmax.f32 %v4288, %v4289
        %v4291 = vrot.slane %v4290, 1
        %v4292 = vmax.f32 %v4290, %v4291
        %v4293 = vsel %vm3774, %v3637, -inf
        %v4294 = vrot.slane %v4293, 4
        %v4295 = vmax.f32 %v4293, %v4294
        %v4296 = vrot.slane %v4295, 2
        %v4297 = vmax.f32 %v4295, %v4296
        %v4298 = vrot.slane %v4297, 1
        %v4299 = vmax.f32 %v4297, %v4298
        %v4300 = vsel %vm3774, %v3638, -inf
        %v4301 = vrot.slane %v4300, 4
        %v4302 = vmax.f32 %v4300, %v4301
        %v4303 = vrot.slane %v4302, 2
        %v4304 = vmax.f32 %v4302, %v4303
        %v4305 = vrot.slane %v4304, 1
        %v4306 = vmax.f32 %v4304, %v4305
        %v4307 = vsel %vm3774, %v3537, -inf
        %v4308 = vrot.slane %v4307, 4
        %v4309 = vmax.f32 %v4307, %v4308
        %v4310 = vrot.slane %v4309, 2
        %v4311 = vmax.f32 %v4309, %v4310
        %v4312 = vrot.slane %v4311, 1
        %v4313 = vmax.f32 %v4311, %v4312
        %v4314 = vsel %vm3774, %v3639, -inf
        %v4315 = vrot.slane %v4314, 4
        %v4316 = vmax.f32 %v4314, %v4315
        %v4317 = vrot.slane %v4316, 2
        %v4318 = vmax.f32 %v4316, %v4317
        %v4319 = vrot.slane %v4318, 1
        %v4320 = vmax.f32 %v4318, %v4319
        %v4321 = vsel %vm3774, %v3640, -inf
        %v4322 = vrot.slane %v4321, 4
        %v4323 = vmax.f32 %v4321, %v4322
        %v4324 = vrot.slane %v4323, 2
        %v4325 = vmax.f32 %v4323, %v4324
        %v4326 = vrot.slane %v4325, 1
        %v4327 = vmax.f32 %v4325, %v4326
        %v4328 = vsel %vm3774, %v3641, -inf
        %v4329 = vrot.slane %v4328, 4
        %v4330 = vmax.f32 %v4328, %v4329
        %v4331 = vrot.slane %v4330, 2
        %v4332 = vmax.f32 %v4330, %v4331
        %v4333 = vrot.slane %v4332, 1
        %v4334 = vmax.f32 %v4332, %v4333
        %v4335 = vsel %vm3774, %v3538, -inf
        %v4336 = vrot.slane %v4335, 4
        %v4337 = vmax.f32 %v4335, %v4336
        %v4338 = vrot.slane %v4337, 2
        %v4339 = vmax.f32 %v4337, %v4338
        %v4340 = vrot.slane %v4339, 1
        %v4341 = vmax.f32 %v4339, %v4340
        %v4342 = vsel %vm3774, %v3642, -inf
        %v4343 = vrot.slane %v4342, 4
        %v4344 = vmax.f32 %v4342, %v4343
        %v4345 = vrot.slane %v4344, 2
        %v4346 = vmax.f32 %v4344, %v4345
        %v4347 = vrot.slane %v4346, 1
        %v4348 = vmax.f32 %v4346, %v4347
        %v4349 = vsel %vm3774, %v3643, -inf
        %v4350 = vrot.slane %v4349, 4
        %v4351 = vmax.f32 %v4349, %v4350
        %v4352 = vrot.slane %v4351, 2
        %v4353 = vmax.f32 %v4351, %v4352
        %v4354 = vrot.slane %v4353, 1
        %v4355 = vmax.f32 %v4353, %v4354
        %v4356 = vsel %vm3774, %v3644, -inf
        %v4357 = vrot.slane %v4356, 4
        %v4358 = vmax.f32 %v4356, %v4357
        %v4359 = vrot.slane %v4358, 2
        %v4360 = vmax.f32 %v4358, %v4359
        %v4361 = vrot.slane %v4360, 1
        %v4362 = vmax.f32 %v4360, %v4361
        %v4363 = vsel %vm3774, %v3539, -inf
        %v4364 = vrot.slane %v4363, 4
        %v4365 = vmax.f32 %v4363, %v4364
        %v4366 = vrot.slane %v4365, 2
        %v4367 = vmax.f32 %v4365, %v4366
        %v4368 = vrot.slane %v4367, 1
        %v4369 = vmax.f32 %v4367, %v4368
        %v4370 = vsel %vm3774, %v3645, -inf
        %v4371 = vrot.slane %v4370, 4
        %v4372 = vmax.f32 %v4370, %v4371
        %v4373 = vrot.slane %v4372, 2
        %v4374 = vmax.f32 %v4372, %v4373
        %v4375 = vrot.slane %v4374, 1
        %v4376 = vmax.f32 %v4374, %v4375
        %v4377 = vsel %vm3774, %v3646, -inf
        %v4378 = vrot.slane %v4377, 4
        %v4379 = vmax.f32 %v4377, %v4378
        %v4380 = vrot.slane %v4379, 2
        %v4381 = vmax.f32 %v4379, %v4380
        %v4382 = vrot.slane %v4381, 1
        %v4383 = vmax.f32 %v4381, %v4382
        %v4384 = vsel %vm3774, %v3647, -inf
        %v4385 = vrot.slane %v4384, 4
        %v4386 = vmax.f32 %v4384, %v4385
        %v4387 = vrot.slane %v4386, 2
        %v4388 = vmax.f32 %v4386, %v4387
        %v4389 = vrot.slane %v4388, 1
        %v4390 = vmax.f32 %v4388, %v4389
        %v4391 = vsel %vm3774, %v3540, -inf
        %v4392 = vrot.slane %v4391, 4
        %v4393 = vmax.f32 %v4391, %v4392
        %v4394 = vrot.slane %v4393, 2
        %v4395 = vmax.f32 %v4393, %v4394
        %v4396 = vrot.slane %v4395, 1
        %v4397 = vmax.f32 %v4395, %v4396
        %v4398 = vsel %vm3774, %v3648, -inf
        %v4399 = vrot.slane %v4398, 4
        %v4400 = vmax.f32 %v4398, %v4399
        %v4401 = vrot.slane %v4400, 2
        %v4402 = vmax.f32 %v4400, %v4401
        %v4403 = vrot.slane %v4402, 1
        %v4404 = vmax.f32 %v4402, %v4403
        %v4405 = vsel %vm3774, %v3649, -inf
        %v4406 = vrot.slane %v4405, 4
        %v4407 = vmax.f32 %v4405, %v4406
        %v4408 = vrot.slane %v4407, 2
        %v4409 = vmax.f32 %v4407, %v4408
        %v4410 = vrot.slane %v4409, 1
        %v4411 = vmax.f32 %v4409, %v4410
        %v4412 = vsel %vm3774, %v3650, -inf
        %v4413 = vrot.slane %v4412, 4
        %v4414 = vmax.f32 %v4412, %v4413
        %v4415 = vrot.slane %v4414, 2
        %v4416 = vmax.f32 %v4414, %v4415
        %v4417 = vrot.slane %v4416, 1
        %v4418 = vmax.f32 %v4416, %v4417
        %v4419 = vsel %vm3774, %v3541, -inf
        %v4420 = vrot.slane %v4419, 4
        %v4421 = vmax.f32 %v4419, %v4420
        %v4422 = vrot.slane %v4421, 2
        %v4423 = vmax.f32 %v4421, %v4422
        %v4424 = vrot.slane %v4423, 1
        %v4425 = vmax.f32 %v4423, %v4424
        %v4426 = vsel %vm3774, %v3651, -inf
        %v4427 = vrot.slane %v4426, 4
        %v4428 = vmax.f32 %v4426, %v4427
        %v4429 = vrot.slane %v4428, 2
        %v4430 = vmax.f32 %v4428, %v4429
        %v4431 = vrot.slane %v4430, 1
        %v4432 = vmax.f32 %v4430, %v4431
        %v4433 = vsel %vm3774, %v3652, -inf
        %v4434 = vrot.slane %v4433, 4
        %v4435 = vmax.f32 %v4433, %v4434
        %v4436 = vrot.slane %v4435, 2
        %v4437 = vmax.f32 %v4435, %v4436
        %v4438 = vrot.slane %v4437, 1
        %v4439 = vmax.f32 %v4437, %v4438
        %v4440 = vsel %vm3774, %v3653, -inf
        %v4441 = vrot.slane %v4440, 4
        %v4442 = vmax.f32 %v4440, %v4441
        %v4443 = vrot.slane %v4442, 2
        %v4444 = vmax.f32 %v4442, %v4443
        %v4445 = vrot.slane %v4444, 1
        %v4446 = vmax.f32 %v4444, %v4445
        %v4447 = vsel %vm3774, %v3542, -inf
        %v4448 = vrot.slane %v4447, 4
        %v4449 = vmax.f32 %v4447, %v4448
        %v4450 = vrot.slane %v4449, 2
        %v4451 = vmax.f32 %v4449, %v4450
        %v4452 = vrot.slane %v4451, 1
        %v4453 = vmax.f32 %v4451, %v4452
        %v4454 = vsel %vm3774, %v3654, -inf
        %v4455 = vrot.slane %v4454, 4
        %v4456 = vmax.f32 %v4454, %v4455
        %v4457 = vrot.slane %v4456, 2
        %v4458 = vmax.f32 %v4456, %v4457
        %v4459 = vrot.slane %v4458, 1
        %v4460 = vmax.f32 %v4458, %v4459
        %v4461 = vsel %vm3774, %v3655, -inf
        %v4462 = vrot.slane %v4461, 4
        %v4463 = vmax.f32 %v4461, %v4462
        %v4464 = vrot.slane %v4463, 2
        %v4465 = vmax.f32 %v4463, %v4464
        %v4466 = vrot.slane %v4465, 1
        %v4467 = vmax.f32 %v4465, %v4466
        %v4468 = vsel %vm3774, %v3656, -inf
        %v4469 = vrot.slane %v4468, 4
        %v4470 = vmax.f32 %v4468, %v4469
        %v4471 = vrot.slane %v4470, 2
        %v4472 = vmax.f32 %v4470, %v4471
        %v4473 = vrot.slane %v4472, 1
        %v4474 = vmax.f32 %v4472, %v4473
        %v4475 = vsel %vm3774, %v3543, -inf
        %v4476 = vrot.slane %v4475, 4
        %v4477 = vmax.f32 %v4475, %v4476
        %v4478 = vrot.slane %v4477, 2
        %v4479 = vmax.f32 %v4477, %v4478
        %v4480 = vrot.slane %v4479, 1
        %v4481 = vmax.f32 %v4479, %v4480
        %v4482 = vsel %vm3774, %v3657, -inf
        %v4483 = vrot.slane %v4482, 4
        %v4484 = vmax.f32 %v4482, %v4483
        %v4485 = vrot.slane %v4484, 2
        %v4486 = vmax.f32 %v4484, %v4485
        %v4487 = vrot.slane %v4486, 1
        %v4488 = vmax.f32 %v4486, %v4487
        %v4489 = vsel %vm3774, %v3658, -inf
        %v4490 = vrot.slane %v4489, 4
        %v4491 = vmax.f32 %v4489, %v4490
        %v4492 = vrot.slane %v4491, 2
        %v4493 = vmax.f32 %v4491, %v4492
        %v4494 = vrot.slane %v4493, 1
        %v4495 = vmax.f32 %v4493, %v4494
        %v4496 = vsel %vm3774, %v3659, -inf
        %v4497 = vrot.slane %v4496, 4
        %v4498 = vmax.f32 %v4496, %v4497
        %v4499 = vrot.slane %v4498, 2
        %v4500 = vmax.f32 %v4498, %v4499
        %v4501 = vrot.slane %v4500, 1
        %v4502 = vmax.f32 %v4500, %v4501
        %v4503 = vsel %vm3774, %v3544, -inf
        %v4504 = vrot.slane %v4503, 4
        %v4505 = vmax.f32 %v4503, %v4504
        %v4506 = vrot.slane %v4505, 2
        %v4507 = vmax.f32 %v4505, %v4506
        %v4508 = vrot.slane %v4507, 1
        %v4509 = vmax.f32 %v4507, %v4508
        %v4510 = vsel %vm3774, %v3660, -inf
        %v4511 = vrot.slane %v4510, 4
        %v4512 = vmax.f32 %v4510, %v4511
        %v4513 = vrot.slane %v4512, 2
        %v4514 = vmax.f32 %v4512, %v4513
        %v4515 = vrot.slane %v4514, 1
        %v4516 = vmax.f32 %v4514, %v4515
        %v4517 = vsel %vm3774, %v3661, -inf
        %v4518 = vrot.slane %v4517, 4
        %v4519 = vmax.f32 %v4517, %v4518
        %v4520 = vrot.slane %v4519, 2
        %v4521 = vmax.f32 %v4519, %v4520
        %v4522 = vrot.slane %v4521, 1
        %v4523 = vmax.f32 %v4521, %v4522
        %v4524 = vsel %vm3774, %v3662, -inf
        %v4525 = vrot.slane %v4524, 4
        %v4526 = vmax.f32 %v4524, %v4525
        %v4527 = vrot.slane %v4526, 2
        %v4528 = vmax.f32 %v4526, %v4527
        %v4529 = vrot.slane %v4528, 1
        %v4530 = vmax.f32 %v4528, %v4529
        %v4531 = vsel %vm3774, %v3545, -inf
        %v4532 = vrot.slane %v4531, 4
        %v4533 = vmax.f32 %v4531, %v4532
        %v4534 = vrot.slane %v4533, 2
        %v4535 = vmax.f32 %v4533, %v4534
        %v4536 = vrot.slane %v4535, 1
        %v4537 = vmax.f32 %v4535, %v4536
        %v4538 = vsel %vm3774, %v3663, -inf
        %v4539 = vrot.slane %v4538, 4
        %v4540 = vmax.f32 %v4538, %v4539
        %v4541 = vrot.slane %v4540, 2
        %v4542 = vmax.f32 %v4540, %v4541
        %v4543 = vrot.slane %v4542, 1
        %v4544 = vmax.f32 %v4542, %v4543
        %v4545 = vsel %vm3774, %v3664, -inf
        %v4546 = vrot.slane %v4545, 4
        %v4547 = vmax.f32 %v4545, %v4546
        %v4548 = vrot.slane %v4547, 2
        %v4549 = vmax.f32 %v4547, %v4548
        %v4550 = vrot.slane %v4549, 1
        %v4551 = vmax.f32 %v4549, %v4550
        %v4552 = vsel %vm3774, %v3665, -inf
        %v4553 = vrot.slane %v4552, 4
        %v4554 = vmax.f32 %v4552, %v4553
        %v4555 = vrot.slane %v4554, 2
        %v4556 = vmax.f32 %v4554, %v4555
        %v4557 = vrot.slane %v4556, 1
        %v4558 = vmax.f32 %v4556, %v4557
        %v4559 = vsel %vm3774, %v3546, -inf
        %v4560 = vrot.slane %v4559, 4
        %v4561 = vmax.f32 %v4559, %v4560
        %v4562 = vrot.slane %v4561, 2
        %v4563 = vmax.f32 %v4561, %v4562
        %v4564 = vrot.slane %v4563, 1
        %v4565 = vmax.f32 %v4563, %v4564
        %v4566 = vsel %vm3774, %v3666, -inf
        %v4567 = vrot.slane %v4566, 4
        %v4568 = vmax.f32 %v4566, %v4567
        %v4569 = vrot.slane %v4568, 2
        %v4570 = vmax.f32 %v4568, %v4569
        %v4571 = vrot.slane %v4570, 1
        %v4572 = vmax.f32 %v4570, %v4571
        %v4573 = vsel %vm3774, %v3667, -inf
        %v4574 = vrot.slane %v4573, 4
        %v4575 = vmax.f32 %v4573, %v4574
        %v4576 = vrot.slane %v4575, 2
        %v4577 = vmax.f32 %v4575, %v4576
        %v4578 = vrot.slane %v4577, 1
        %v4579 = vmax.f32 %v4577, %v4578
        %v4580 = vsel %vm3774, %v3668, -inf
        %v4581 = vrot.slane %v4580, 4
        %v4582 = vmax.f32 %v4580, %v4581
        %v4583 = vrot.slane %v4582, 2
        %v4584 = vmax.f32 %v4582, %v4583
        %v4585 = vrot.slane %v4584, 1
        %v4586 = vmax.f32 %v4584, %v4585
        %v4587 = vsel %vm3774, %v3547, -inf
        %v4588 = vrot.slane %v4587, 4
        %v4589 = vmax.f32 %v4587, %v4588
        %v4590 = vrot.slane %v4589, 2
        %v4591 = vmax.f32 %v4589, %v4590
        %v4592 = vrot.slane %v4591, 1
        %v4593 = vmax.f32 %v4591, %v4592
        %v4594 = vsel %vm3774, %v3669, -inf
        %v4595 = vrot.slane %v4594, 4
        %v4596 = vmax.f32 %v4594, %v4595
        %v4597 = vrot.slane %v4596, 2
        %v4598 = vmax.f32 %v4596, %v4597
        %v4599 = vrot.slane %v4598, 1
        %v4600 = vmax.f32 %v4598, %v4599
        %v4601 = vsel %vm3774, %v3670, -inf
        %v4602 = vrot.slane %v4601, 4
        %v4603 = vmax.f32 %v4601, %v4602
        %v4604 = vrot.slane %v4603, 2
        %v4605 = vmax.f32 %v4603, %v4604
        %v4606 = vrot.slane %v4605, 1
        %v4607 = vmax.f32 %v4605, %v4606
        %v4608 = vsel %vm3774, %v3671, -inf
        %v4609 = vrot.slane %v4608, 4
        %v4610 = vmax.f32 %v4608, %v4609
        %v4611 = vrot.slane %v4610, 2
        %v4612 = vmax.f32 %v4610, %v4611
        %v4613 = vrot.slane %v4612, 1
        %v4614 = vmax.f32 %v4612, %v4613
        %v4615 = vsel %vm3774, %v3548, -inf
        %v4616 = vrot.slane %v4615, 4
        %v4617 = vmax.f32 %v4615, %v4616
        %v4618 = vrot.slane %v4617, 2
        %v4619 = vmax.f32 %v4617, %v4618
        %v4620 = vrot.slane %v4619, 1
        %v4621 = vmax.f32 %v4619, %v4620
        %v4622 = vsel %vm3774, %v3672, -inf
        %v4623 = vrot.slane %v4622, 4
        %v4624 = vmax.f32 %v4622, %v4623
        %v4625 = vrot.slane %v4624, 2
        %v4626 = vmax.f32 %v4624, %v4625
        %v4627 = vrot.slane %v4626, 1
        %v4628 = vmax.f32 %v4626, %v4627
        %v4629 = vsel %vm3774, %v3673, -inf
        %v4630 = vrot.slane %v4629, 4
        %v4631 = vmax.f32 %v4629, %v4630
        %v4632 = vrot.slane %v4631, 2
        %v4633 = vmax.f32 %v4631, %v4632
        %v4634 = vrot.slane %v4633, 1
        %v4635 = vmax.f32 %v4633, %v4634
        %v4636 = vsel %vm3774, %v3674, -inf
        %v4637 = vrot.slane %v4636, 4
        %v4638 = vmax.f32 %v4636, %v4637
        %v4639 = vrot.slane %v4638, 2
        %v4640 = vmax.f32 %v4638, %v4639
        %v4641 = vrot.slane %v4640, 1
        %v4642 = vmax.f32 %v4640, %v4641
        %v4643 = vsel %vm3774, %v3549, -inf
        %v4644 = vrot.slane %v4643, 4
        %v4645 = vmax.f32 %v4643, %v4644
        %v4646 = vrot.slane %v4645, 2
        %v4647 = vmax.f32 %v4645, %v4646
        %v4648 = vrot.slane %v4647, 1
        %v4649 = vmax.f32 %v4647, %v4648
        %v4650 = vsel %vm3774, %v3675, -inf
        %v4651 = vrot.slane %v4650, 4
        %v4652 = vmax.f32 %v4650, %v4651
        %v4653 = vrot.slane %v4652, 2
        %v4654 = vmax.f32 %v4652, %v4653
        %v4655 = vrot.slane %v4654, 1
        %v4656 = vmax.f32 %v4654, %v4655
        %v4657 = vsel %vm3774, %v3676, -inf
        %v4658 = vrot.slane %v4657, 4
        %v4659 = vmax.f32 %v4657, %v4658
        %v4660 = vrot.slane %v4659, 2
        %v4661 = vmax.f32 %v4659, %v4660
        %v4662 = vrot.slane %v4661, 1
        %v4663 = vmax.f32 %v4661, %v4662
        %v4664 = vsel %vm3774, %v3677, -inf
        %v4665 = vrot.slane %v4664, 4
        %v4666 = vmax.f32 %v4664, %v4665
        %v4667 = vrot.slane %v4666, 2
        %v4668 = vmax.f32 %v4666, %v4667
        %v4669 = vrot.slane %v4668, 1
        %v4670 = vmax.f32 %v4668, %v4669
        %vm4671 = vcmask 162816
        %v4672 = vsel %vm4671, %v3781, -inf
        %v4673 = vsel %vm4671, %v3837, -inf
        %v4674 = vmax.f32 %v4672, %v4673
        %v4675 = vsel %vm4671, %v3788, -inf
        %v4676 = vsel %vm4671, %v3844, -inf
        %v4677 = vmax.f32 %v4675, %v4676
        %v4678 = vsel %vm4671, %v3795, -inf
        %v4679 = vsel %vm4671, %v3851, -inf
        %v4680 = vmax.f32 %v4678, %v4679
        %v4681 = vsel %vm4671, %v3802, -inf
        %v4682 = vsel %vm4671, %v3858, -inf
        %v4683 = vmax.f32 %v4681, %v4682
        %v4684 = vsel %vm4671, %v3809, -inf
        %v4685 = vsel %vm4671, %v3865, -inf
        %v4686 = vmax.f32 %v4684, %v4685
        %v4687 = vsel %vm4671, %v3816, -inf
        %v4688 = vsel %vm4671, %v3872, -inf
        %v4689 = vmax.f32 %v4687, %v4688
        %v4690 = vsel %vm4671, %v3823, -inf
        %v4691 = vsel %vm4671, %v3879, -inf
        %v4692 = vmax.f32 %v4690, %v4691
        %v4693 = vsel %vm4671, %v3830, -inf
        %v4694 = vsel %vm4671, %v3886, -inf
        %v4695 = vmax.f32 %v4693, %v4694
        %v4696 = vsel %vm4671, %v3893, -inf
        %v4697 = vsel %vm4671, %v3949, -inf
        %v4698 = vmax.f32 %v4696, %v4697
        %v4699 = vsel %vm4671, %v3900, -inf
        %v4700 = vsel %vm4671, %v3956, -inf
        %v4701 = vmax.f32 %v4699, %v4700
        %v4702 = vsel %vm4671, %v3907, -inf
        %v4703 = vsel %vm4671, %v3963, -inf
        %v4704 = vmax.f32 %v4702, %v4703
        %v4705 = vsel %vm4671, %v3914, -inf
        %v4706 = vsel %vm4671, %v3970, -inf
        %v4707 = vmax.f32 %v4705, %v4706
        %v4708 = vsel %vm4671, %v3921, -inf
        %v4709 = vsel %vm4671, %v3977, -inf
        %v4710 = vmax.f32 %v4708, %v4709
        %v4711 = vsel %vm4671, %v3928, -inf
        %v4712 = vsel %vm4671, %v3984, -inf
        %v4713 = vmax.f32 %v4711, %v4712
        %v4714 = vsel %vm4671, %v3935, -inf
        %v4715 = vsel %vm4671, %v3991, -inf
        %v4716 = vmax.f32 %v4714, %v4715
        %v4717 = vsel %vm4671, %v3942, -inf
        %v4718 = vsel %vm4671, %v3998, -inf
        %v4719 = vmax.f32 %v4717, %v4718
        %v4720 = vsel %vm4671, %v4005, -inf
        %v4721 = vsel %vm4671, %v4061, -inf
        %v4722 = vmax.f32 %v4720, %v4721
        %v4723 = vsel %vm4671, %v4012, -inf
        %v4724 = vsel %vm4671, %v4068, -inf
        %v4725 = vmax.f32 %v4723, %v4724
        %v4726 = vsel %vm4671, %v4019, -inf
        %v4727 = vsel %vm4671, %v4075, -inf
        %v4728 = vmax.f32 %v4726, %v4727
        %v4729 = vsel %vm4671, %v4026, -inf
        %v4730 = vsel %vm4671, %v4082, -inf
        %v4731 = vmax.f32 %v4729, %v4730
        %v4732 = vsel %vm4671, %v4033, -inf
        %v4733 = vsel %vm4671, %v4089, -inf
        %v4734 = vmax.f32 %v4732, %v4733
        %v4735 = vsel %vm4671, %v4040, -inf
        %v4736 = vsel %vm4671, %v4096, -inf
        %v4737 = vmax.f32 %v4735, %v4736
        %v4738 = vsel %vm4671, %v4047, -inf
        %v4739 = vsel %vm4671, %v4103, -inf
        %v4740 = vmax.f32 %v4738, %v4739
        %v4741 = vsel %vm4671, %v4054, -inf
        %v4742 = vsel %vm4671, %v4110, -inf
        %v4743 = vmax.f32 %v4741, %v4742
        %v4744 = vsel %vm4671, %v4117, -inf
        %v4745 = vsel %vm4671, %v4173, -inf
        %v4746 = vmax.f32 %v4744, %v4745
        %v4747 = vsel %vm4671, %v4124, -inf
        %v4748 = vsel %vm4671, %v4180, -inf
        %v4749 = vmax.f32 %v4747, %v4748
        %v4750 = vsel %vm4671, %v4131, -inf
        %v4751 = vsel %vm4671, %v4187, -inf
        %v4752 = vmax.f32 %v4750, %v4751
        %v4753 = vsel %vm4671, %v4138, -inf
        %v4754 = vsel %vm4671, %v4194, -inf
        %v4755 = vmax.f32 %v4753, %v4754
        %v4756 = vsel %vm4671, %v4145, -inf
        %v4757 = vsel %vm4671, %v4201, -inf
        %v4758 = vmax.f32 %v4756, %v4757
        %v4759 = vsel %vm4671, %v4152, -inf
        %v4760 = vsel %vm4671, %v4208, -inf
        %v4761 = vmax.f32 %v4759, %v4760
        %v4762 = vsel %vm4671, %v4159, -inf
        %v4763 = vsel %vm4671, %v4215, -inf
        %v4764 = vmax.f32 %v4762, %v4763
        %v4765 = vsel %vm4671, %v4166, -inf
        %v4766 = vsel %vm4671, %v4222, -inf
        %v4767 = vmax.f32 %v4765, %v4766
        %v4768 = vsel %vm4671, %v4229, -inf
        %v4769 = vsel %vm4671, %v4285, -inf
        %v4770 = vmax.f32 %v4768, %v4769
        %v4771 = vsel %vm4671, %v4236, -inf
        %v4772 = vsel %vm4671, %v4292, -inf
        %v4773 = vmax.f32 %v4771, %v4772
        %v4774 = vsel %vm4671, %v4243, -inf
        %v4775 = vsel %vm4671, %v4299, -inf
        %v4776 = vmax.f32 %v4774, %v4775
        %v4777 = vsel %vm4671, %v4250, -inf
        %v4778 = vsel %vm4671, %v4306, -inf
        %v4779 = vmax.f32 %v4777, %v4778
        %v4780 = vsel %vm4671, %v4257, -inf
        %v4781 = vsel %vm4671, %v4313, -inf
        %v4782 = vmax.f32 %v4780, %v4781
        %v4783 = vsel %vm4671, %v4264, -inf
        %v4784 = vsel %vm4671, %v4320, -inf
        %v4785 = vmax.f32 %v4783, %v4784
        %v4786 = vsel %vm4671, %v4271, -inf
        %v4787 = vsel %vm4671, %v4327, -inf
        %v4788 = vmax.f32 %v4786, %v4787
        %v4789 = vsel %vm4671, %v4278, -inf
        %v4790 = vsel %vm4671, %v4334, -inf
        %v4791 = vmax.f32 %v4789, %v4790
        %v4792 = vsel %vm4671, %v4341, -inf
        %v4793 = vsel %vm4671, %v4397, -inf
        %v4794 = vmax.f32 %v4792, %v4793
        %v4795 = vsel %vm4671, %v4348, -inf
        %v4796 = vsel %vm4671, %v4404, -inf
        %v4797 = vmax.f32 %v4795, %v4796
        %v4798 = vsel %vm4671, %v4355, -inf
        %v4799 = vsel %vm4671, %v4411, -inf
        %v4800 = vmax.f32 %v4798, %v4799
        %v4801 = vsel %vm4671, %v4362, -inf
        %v4802 = vsel %vm4671, %v4418, -inf
        %v4803 = vmax.f32 %v4801, %v4802
        %v4804 = vsel %vm4671, %v4369, -inf
        %v4805 = vsel %vm4671, %v4425, -inf
        %v4806 = vmax.f32 %v4804, %v4805
        %v4807 = vsel %vm4671, %v4376, -inf
        %v4808 = vsel %vm4671, %v4432, -inf
        %v4809 = vmax.f32 %v4807, %v4808
        %v4810 = vsel %vm4671, %v4383, -inf
        %v4811 = vsel %vm4671, %v4439, -inf
        %v4812 = vmax.f32 %v4810, %v4811
        %v4813 = vsel %vm4671, %v4390, -inf
        %v4814 = vsel %vm4671, %v4446, -inf
        %v4815 = vmax.f32 %v4813, %v4814
        %v4816 = vsel %vm4671, %v4453, -inf
        %v4817 = vsel %vm4671, %v4509, -inf
        %v4818 = vmax.f32 %v4816, %v4817
        %v4819 = vsel %vm4671, %v4460, -inf
        %v4820 = vsel %vm4671, %v4516, -inf
        %v4821 = vmax.f32 %v4819, %v4820
        %v4822 = vsel %vm4671, %v4467, -inf
        %v4823 = vsel %vm4671, %v4523, -inf
        %v4824 = vmax.f32 %v4822, %v4823
        %v4825 = vsel %vm4671, %v4474, -inf
        %v4826 = vsel %vm4671, %v4530, -inf
        %v4827 = vmax.f32 %v4825, %v4826
        %v4828 = vsel %vm4671, %v4481, -inf
        %v4829 = vsel %vm4671, %v4537, -inf
        %v4830 = vmax.f32 %v4828, %v4829
        %v4831 = vsel %vm4671, %v4488, -inf
        %v4832 = vsel %vm4671, %v4544, -inf
        %v4833 = vmax.f32 %v4831, %v4832
        %v4834 = vsel %vm4671, %v4495, -inf
        %v4835 = vsel %vm4671, %v4551, -inf
        %v4836 = vmax.f32 %v4834, %v4835
        %v4837 = vsel %vm4671, %v4502, -inf
        %v4838 = vsel %vm4671, %v4558, -inf
        %v4839 = vmax.f32 %v4837, %v4838
        %v4840 = vsel %vm4671, %v4565, -inf
        %v4841 = vsel %vm4671, %v4621, -inf
        %v4842 = vmax.f32 %v4840, %v4841
        %v4843 = vsel %vm4671, %v4572, -inf
        %v4844 = vsel %vm4671, %v4628, -inf
        %v4845 = vmax.f32 %v4843, %v4844
        %v4846 = vsel %vm4671, %v4579, -inf
        %v4847 = vsel %vm4671, %v4635, -inf
        %v4848 = vmax.f32 %v4846, %v4847
        %v4849 = vsel %vm4671, %v4586, -inf
        %v4850 = vsel %vm4671, %v4642, -inf
        %v4851 = vmax.f32 %v4849, %v4850
        %v4852 = vsel %vm4671, %v4593, -inf
        %v4853 = vsel %vm4671, %v4649, -inf
        %v4854 = vmax.f32 %v4852, %v4853
        %v4855 = vsel %vm4671, %v4600, -inf
        %v4856 = vsel %vm4671, %v4656, -inf
        %v4857 = vmax.f32 %v4855, %v4856
        %v4858 = vsel %vm4671, %v4607, -inf
        %v4859 = vsel %vm4671, %v4663, -inf
        %v4860 = vmax.f32 %v4858, %v4859
        %v4861 = vsel %vm4671, %v4614, -inf
        %v4862 = vsel %vm4671, %v4670, -inf
        %v4863 = vmax.f32 %v4861, %v4862
        %4864 = vst.msk [vmem:[#allocation3] sm:$0xff] %vm4671, 0.0
        %vm4865 = vcmask 158720
        %4866 = vst.msk [vmem:[#allocation3 + $0x8] sm:$0xf] %vm4865, 0.0
        %4867 = vst.msk [vmem:[#allocation3 + $0x10] sm:$0xff] %vm4671, 0.0
        %4868 = vst.msk [vmem:[#allocation3 + $0x18] sm:$0xf] %vm4865, 0.0
        %4869 = vst.msk [vmem:[#allocation3 + $0x20] sm:$0xff] %vm4671, 0.0
        %4870 = vst.msk [vmem:[#allocation3 + $0x28] sm:$0xf] %vm4865, 0.0
        %4871 = vst.msk [vmem:[#allocation3 + $0x30] sm:$0xff] %vm4671, 0.0
        %4872 = vst.msk [vmem:[#allocation3 + $0x38] sm:$0xf] %vm4865, 0.0
        %4873 = vst.msk [vmem:[#allocation3 + $0x40] sm:$0xff] %vm4671, 0.0
        %4874 = vst.msk [vmem:[#allocation3 + $0x48] sm:$0xf] %vm4865, 0.0
        %4875 = vst.msk [vmem:[#allocation3 + $0x50] sm:$0xff] %vm4671, 0.0
        %4876 = vst.msk [vmem:[#allocation3 + $0x58] sm:$0xf] %vm4865, 0.0
        %4877 = vst.msk [vmem:[#allocation3 + $0x60] sm:$0xff] %vm4671, 0.0
        %4878 = vst.msk [vmem:[#allocation3 + $0x68] sm:$0xf] %vm4865, 0.0
        %4879 = vst.msk [vmem:[#allocation3 + $0x70] sm:$0xff] %vm4671, 0.0
        %4880 = vst.msk [vmem:[#allocation3 + $0x78] sm:$0xf] %vm4865, 0.0
        %4881 = vst.msk [vmem:[#allocation3 + $0x80] sm:$0xff] %vm4671, 0.0
        %4882 = vst.msk [vmem:[#allocation3 + $0x88] sm:$0xf] %vm4865, 0.0
        %4883 = vst.msk [vmem:[#allocation3 + $0x90] sm:$0xff] %vm4671, 0.0
        %4884 = vst.msk [vmem:[#allocation3 + $0x98] sm:$0xf] %vm4865, 0.0
        %4885 = vst.msk [vmem:[#allocation3 + $0xa0] sm:$0xff] %vm4671, 0.0
        %4886 = vst.msk [vmem:[#allocation3 + $0xa8] sm:$0xf] %vm4865, 0.0
        %4887 = vst.msk [vmem:[#allocation3 + $0xb0] sm:$0xff] %vm4671, 0.0
        %4888 = vst.msk [vmem:[#allocation3 + $0xb8] sm:$0xf] %vm4865, 0.0
        %vm4953 = vcmask 1041409
        %v4954 = vsel %vm4953, %v4677, %v4674
        %vm4955 = vcmask 1042434
        %v4956 = vsel %vm4955, %v4680, %v4954
        %vm4957 = vcmask 1043459
        %v4958 = vsel %vm4957, %v4683, %v4956
        %vm4959 = vcmask 1044484
        %v4960 = vsel %vm4959, %v4686, %v4958
        %vm4961 = vcmask 1045509
        %v4962 = vsel %vm4961, %v4689, %v4960
        %vm4963 = vcmask 1046534
        %v4964 = vsel %vm4963, %v4692, %v4962
        %vm4965 = vcmask 1047559
        %v4966 = vsel %vm4965, %v4695, %v4964
        %v4967 = vsel %vm4953, %v4701, %v4698
        %v4968 = vsel %vm4955, %v4704, %v4967
        %v4969 = vsel %vm4957, %v4707, %v4968
        %v4970 = vsel %vm4959, %v4710, %v4969
        %v4971 = vsel %vm4961, %v4713, %v4970
        %v4972 = vsel %vm4963, %v4716, %v4971
        %v4973 = vsel %vm4965, %v4719, %v4972
        %v4974 = vsel %vm4953, %v4725, %v4722
        %v4975 = vsel %vm4955, %v4728, %v4974
        %v4976 = vsel %vm4957, %v4731, %v4975
        %v4977 = vsel %vm4959, %v4734, %v4976
        %v4978 = vsel %vm4961, %v4737, %v4977
        %v4979 = vsel %vm4963, %v4740, %v4978
        %v4980 = vsel %vm4965, %v4743, %v4979
        %v4981 = vsel %vm4953, %v4749, %v4746
        %v4982 = vsel %vm4955, %v4752, %v4981
        %v4983 = vsel %vm4957, %v4755, %v4982
        %v4984 = vsel %vm4959, %v4758, %v4983
        %v4985 = vsel %vm4961, %v4761, %v4984
        %v4986 = vsel %vm4963, %v4764, %v4985
        %v4987 = vsel %vm4965, %v4767, %v4986
        %v4988 = vsel %vm4953, %v4773, %v4770
        %v4989 = vsel %vm4955, %v4776, %v4988
        %v4990 = vsel %vm4957, %v4779, %v4989
        %v4991 = vsel %vm4959, %v4782, %v4990
        %v4992 = vsel %vm4961, %v4785, %v4991
        %v4993 = vsel %vm4963, %v4788, %v4992
        %v4994 = vsel %vm4965, %v4791, %v4993
        %v4995 = vsel %vm4953, %v4797, %v4794
        %v4996 = vsel %vm4955, %v4800, %v4995
        %v4997 = vsel %vm4957, %v4803, %v4996
        %v4998 = vsel %vm4959, %v4806, %v4997
        %v4999 = vsel %vm4961, %v4809, %v4998
        %v5000 = vsel %vm4963, %v4812, %v4999
        %v5001 = vsel %vm4965, %v4815, %v5000
        %v5002 = vsel %vm4953, %v4821, %v4818
        %v5003 = vsel %vm4955, %v4824, %v5002
        %v5004 = vsel %vm4957, %v4827, %v5003
        %v5005 = vsel %vm4959, %v4830, %v5004
        %v5006 = vsel %vm4961, %v4833, %v5005
        %v5007 = vsel %vm4963, %v4836, %v5006
        %v5008 = vsel %vm4965, %v4839, %v5007
        %v5009 = vsel %vm4953, %v4845, %v4842
        %v5010 = vsel %vm4955, %v4848, %v5009
        %v5011 = vsel %vm4957, %v4851, %v5010
        %v5012 = vsel %vm4959, %v4854, %v5011
        %v5013 = vsel %vm4961, %v4857, %v5012
        %v5014 = vsel %vm4963, %v4860, %v5013
        %v5015 = vsel %vm4965, %v4863, %v5014
        %s5024 = scalar_lea.vmem [#allocation3], 32
        %5025 = vst.msk [vmem:[%s5024 + $0x2] sm:$0xff] %vm4671, %v4966
        %5026 = vst.msk [vmem:[%s5024 + $0x12] sm:$0xff] %vm4671, %v4973
        %5027 = vst.msk [vmem:[%s5024 + $0x22] sm:$0xff] %vm4671, %v4980
        %5028 = vst.msk [vmem:[%s5024 + $0x32] sm:$0xff] %vm4671, %v4987
        %5029 = vst.msk [vmem:[%s5024 + $0x42] sm:$0xff] %vm4671, %v4994
        %5030 = vst.msk [vmem:[%s5024 + $0x52] sm:$0xff] %vm4671, %v5001
        %5031 = vst.msk [vmem:[%s5024 + $0x62] sm:$0xff] %vm4671, %v5008
        %5032 = vst.msk [vmem:[%s5024 + $0x72] sm:$0xff] %vm4671, %v5015
        %v5033 = vld [vmem:[#allocation3] sm:$0xff]
        %v5034 = vld [vmem:[#allocation3 + $0x8] sm:$0xf]
        %v5035 = vld [vmem:[#allocation3 + $0x10] sm:$0xff]
        %v5036 = vld [vmem:[#allocation3 + $0x18] sm:$0xf]
        %v5037 = vld [vmem:[#allocation3 + $0x20] sm:$0xff]
        %v5038 = vld [vmem:[#allocation3 + $0x28] sm:$0xf]
        %v5039 = vld [vmem:[#allocation3 + $0x30] sm:$0xff]
        %v5040 = vld [vmem:[#allocation3 + $0x38] sm:$0xf]
        %v5041 = vld [vmem:[#allocation3 + $0x40] sm:$0xff]
        %v5042 = vld [vmem:[#allocation3 + $0x48] sm:$0xf]
        %v5043 = vld [vmem:[#allocation3 + $0x50] sm:$0xff]
        %v5044 = vld [vmem:[#allocation3 + $0x58] sm:$0xf]
        %v5045 = vld [vmem:[#allocation3 + $0x60] sm:$0xff]
        %v5046 = vld [vmem:[#allocation3 + $0x68] sm:$0xf]
        %v5047 = vld [vmem:[#allocation3 + $0x70] sm:$0xff]
        %v5048 = vld [vmem:[#allocation3 + $0x78] sm:$0xf]
        %v5049 = vld [vmem:[#allocation3 + $0x80] sm:$0xff]
        %v5050 = vld [vmem:[#allocation3 + $0x88] sm:$0xf]
        %v5051 = vld [vmem:[#allocation3 + $0x90] sm:$0xff]
        %v5052 = vld [vmem:[#allocation3 + $0x98] sm:$0xf]
        %v5053 = vld [vmem:[#allocation3 + $0xa0] sm:$0xff]
        %v5054 = vld [vmem:[#allocation3 + $0xa8] sm:$0xf]
        %v5055 = vld [vmem:[#allocation3 + $0xb0] sm:$0xff]
        %v5056 = vld [vmem:[#allocation3 + $0xb8] sm:$0xf]
        %v5057 = vld [vmem:[%s3] sm:$0xf]
        %v5058 = vld [vmem:[%s3 + $0x4] sm:$0xf]
        %v5059 = vld [vmem:[%s3 + $0x8] sm:$0x3]
        %v5060 = vld [vmem:[%s3 + $0xc] sm:$0xf]
        %v5061 = vld [vmem:[%s3 + $0x10] sm:$0xf]
        %v5062 = vld [vmem:[%s3 + $0x14] sm:$0x3]
        %v5063 = vld [vmem:[%s3 + $0x18] sm:$0xf]
        %v5064 = vld [vmem:[%s3 + $0x1c] sm:$0xf]
        %v5065 = vld [vmem:[%s3 + $0x20] sm:$0x3]
        %v5066 = vld [vmem:[%s3 + $0x24] sm:$0xf]
        %v5067 = vld [vmem:[%s3 + $0x28] sm:$0xf]
        %v5068 = vld [vmem:[%s3 + $0x2c] sm:$0x3]
        %v5069 = vld [vmem:[%s3 + $0x30] sm:$0xf]
        %v5070 = vld [vmem:[%s3 + $0x34] sm:$0xf]
        %v5071 = vld [vmem:[%s3 + $0x38] sm:$0x3]
        %v5072 = vld [vmem:[%s3 + $0x3c] sm:$0xf]
        %v5073 = vld [vmem:[%s3 + $0x40] sm:$0xf]
        %v5074 = vld [vmem:[%s3 + $0x44] sm:$0x3]
        %v5075 = vld [vmem:[%s3 + $0x48] sm:$0xf]
        %v5076 = vld [vmem:[%s3 + $0x4c] sm:$0xf]
        %v5077 = vld [vmem:[%s3 + $0x50] sm:$0x3]
        %v5078 = vld [vmem:[%s3 + $0x54] sm:$0xf]
        %v5079 = vld [vmem:[%s3 + $0x58] sm:$0xf]
        %v5080 = vld [vmem:[%s3 + $0x5c] sm:$0x3]
        %v5081 = vld [vmem:[%s3 + $0x60] sm:$0xf]
        %v5082 = vld [vmem:[%s3 + $0x64] sm:$0xf]
        %v5083 = vld [vmem:[%s3 + $0x68] sm:$0x3]
        %v5084 = vld [vmem:[%s3 + $0x6c] sm:$0xf]
        %v5085 = vld [vmem:[%s3 + $0x70] sm:$0xf]
        %v5086 = vld [vmem:[%s3 + $0x74] sm:$0x3]
        %v5087 = vld [vmem:[%s3 + $0x78] sm:$0xf]
        %v5088 = vld [vmem:[%s3 + $0x7c] sm:$0xf]
        %v5089 = vld [vmem:[%s3 + $0x80] sm:$0x3]
        %v5090 = vld [vmem:[%s3 + $0x84] sm:$0xf]
        %v5091 = vld [vmem:[%s3 + $0x88] sm:$0xf]
        %v5092 = vld [vmem:[%s3 + $0x8c] sm:$0x3]
        %v5093 = vld [vmem:[%s3 + $0x90] sm:$0xf]
        %v5094 = vld [vmem:[%s3 + $0x94] sm:$0xf]
        %v5095 = vld [vmem:[%s3 + $0x98] sm:$0x3]
        %v5096 = vld [vmem:[%s3 + $0x9c] sm:$0xf]
        %v5097 = vld [vmem:[%s3 + $0xa0] sm:$0xf]
        %v5098 = vld [vmem:[%s3 + $0xa4] sm:$0x3]
        %v5099 = vld [vmem:[%s3 + $0xa8] sm:$0xf]
        %v5100 = vld [vmem:[%s3 + $0xac] sm:$0xf]
        %v5101 = vld [vmem:[%s3 + $0xb0] sm:$0x3]
        %v5102 = vld [vmem:[%s3 + $0xb4] sm:$0xf]
        %v5103 = vld [vmem:[%s3 + $0xb8] sm:$0xf]
        %v5104 = vld [vmem:[%s3 + $0xbc] sm:$0x3]
        %v5105 = vld [vmem:[%s3 + $0xc0] sm:$0xf]
        %v5106 = vld [vmem:[%s3 + $0xc4] sm:$0xf]
        %v5107 = vld [vmem:[%s3 + $0xc8] sm:$0x3]
        %v5108 = vld [vmem:[%s3 + $0xcc] sm:$0xf]
        %v5109 = vld [vmem:[%s3 + $0xd0] sm:$0xf]
        %v5110 = vld [vmem:[%s3 + $0xd4] sm:$0x3]
        %v5111 = vld [vmem:[%s3 + $0xd8] sm:$0xf]
        %v5112 = vld [vmem:[%s3 + $0xdc] sm:$0xf]
        %v5113 = vld [vmem:[%s3 + $0xe0] sm:$0x3]
        %v5114 = vld [vmem:[%s3 + $0xe4] sm:$0xf]
        %v5115 = vld [vmem:[%s3 + $0xe8] sm:$0xf]
        %v5116 = vld [vmem:[%s3 + $0xec] sm:$0x3]
        %v5117 = vld [vmem:[%s3 + $0xf0] sm:$0xf]
        %v5118 = vld [vmem:[%s3 + $0xf4] sm:$0xf]
        %v5119 = vld [vmem:[%s3 + $0xf8] sm:$0x3]
        %v5120 = vld [vmem:[%s3 + $0xfc] sm:$0xf]
        %v5121 = vld [vmem:[%s3 + $0x100] sm:$0xf]
        %v5122 = vld [vmem:[%s3 + $0x104] sm:$0x3]
        %v5123 = vld [vmem:[%s3 + $0x108] sm:$0xf]
        %v5124 = vld [vmem:[%s3 + $0x10c] sm:$0xf]
        %v5125 = vld [vmem:[%s3 + $0x110] sm:$0x3]
        %v5126 = vld [vmem:[%s3 + $0x114] sm:$0xf]
        %v5127 = vld [vmem:[%s3 + $0x118] sm:$0xf]
        %v5128 = vld [vmem:[%s3 + $0x11c] sm:$0x3]
        %v5129 = vld [vmem:[%s3 + $0x120] sm:$0xf]
        %v5130 = vld [vmem:[%s3 + $0x124] sm:$0xf]
        %v5131 = vld [vmem:[%s3 + $0x128] sm:$0x3]
        %v5132 = vpack.c.bf16 %v5035, %v5033
        %v5133 = vpack.c.bf16 %v5039, %v5037
        %v5134 = vpack.c.bf16 %v5043, %v5041
        %v5135 = vpack.c.bf16 %v5047, %v5045
        %v5152 = vrot.slane %v5033, 1
        %v5153 = vrot.slane %v5034, 1
        %v5154 = vsel %vm786, %v5152, %v5153
        %v5155 = vrot.slane %v5035, 1
        %v5156 = vrot.slane %v5036, 1
        %v5157 = vsel %vm786, %v5155, %v5156
        %v5158 = vrot.slane %v5037, 1
        %v5159 = vrot.slane %v5038, 1
        %v5160 = vsel %vm786, %v5158, %v5159
        %v5161 = vrot.slane %v5039, 1
        %v5162 = vrot.slane %v5040, 1
        %v5163 = vsel %vm786, %v5161, %v5162
        %v5164 = vrot.slane %v5041, 1
        %v5165 = vrot.slane %v5042, 1
        %v5166 = vsel %vm786, %v5164, %v5165
        %v5167 = vrot.slane %v5043, 1
        %v5168 = vrot.slane %v5044, 1
        %v5169 = vsel %vm786, %v5167, %v5168
        %v5170 = vrot.slane %v5045, 1
        %v5171 = vrot.slane %v5046, 1
        %v5172 = vsel %vm786, %v5170, %v5171
        %v5173 = vrot.slane %v5047, 1
        %v5174 = vrot.slane %v5048, 1
        %v5175 = vsel %vm786, %v5173, %v5174
        %v5184 = vpack.c.bf16 %v5157, %v5154
        %v5185 = vpack.c.bf16 %v5163, %v5160
        %v5186 = vpack.c.bf16 %v5169, %v5166
        %v5187 = vpack.c.bf16 %v5175, %v5172
        %v5191 = vunpack.c.l.b16 %v5060
        %v5192 = vunpack.c.l.b16 %v5061
        %v5193 = vunpack.c.l.b16 %v5062
        %v5194 = vpack.c.b16 %v5192, %v5191
        %v5195 = vpack.c.b16 %v5193, %v5193
        %v5198 = vsel %vm4671, %v5184, 0
        %v5201 = vsel %vm4671, %v5185, 0
        %v5204 = vsel %vm4671, %v5186, 0
        %v5207 = vsel %vm4671, %v5187, 0
        %vm5209 = vcmask 1041408
        %v5211 = vsel %vm5209, %v5195, 0
        %5213 = vmatpush.bf16.msra.mxu0 0
        %5214 = vmatpush.bf16.msra.mxu0 0
        %5215 = vmatpush.bf16.msra.mxu0 0
        %5216 = vmatpush.bf16.msra.mxu0 0
        %5217 = vmatpush.bf16.msra.mxu0 0
        %5218 = vmatpush.bf16.msra.mxu0 0
        %5219 = vmatpush.bf16.msra.mxu0 %v5211
        %5220 = vmatpush.bf16.msra.mxu0 %v5194
        %5221 = vmatmul.bf16.gmra.mxu0 %v5198
        %v5222 = vpop.f32.mrf.mxu0
        %v5223 = vadd.f32 0.0, %v5222
        %v5224 = vpop.f32.mrf.mxu0
        %v5225 = vadd.f32 0.0, %v5224
        %5226 = vmatmul.bf16.gmra.mxu0 %v5201
        %v5227 = vpop.f32.mrf.mxu0
        %v5228 = vadd.f32 0.0, %v5227
        %v5229 = vpop.f32.mrf.mxu0
        %v5230 = vadd.f32 0.0, %v5229
        %5231 = vmatmul.bf16.gmra.mxu0 %v5204
        %v5232 = vpop.f32.mrf.mxu0
        %v5233 = vadd.f32 0.0, %v5232
        %v5234 = vpop.f32.mrf.mxu0
        %v5235 = vadd.f32 0.0, %v5234
        %5236 = vmatmul.bf16.gmra.mxu0 %v5207
        %v5237 = vpop.f32.mrf.mxu0
        %v5238 = vadd.f32 0.0, %v5237
        %v5239 = vpop.f32.mrf.mxu0
        %v5240 = vadd.f32 0.0, %v5239
        %5241 = vdwg.mxu0
        %v5245 = vunpack.c.l.b16 %v5057
        %v5246 = vunpack.c.l.b16 %v5058
        %v5247 = vunpack.c.l.b16 %v5059
        %v5248 = vpack.c.b16 %v5246, %v5245
        %v5249 = vpack.c.b16 %v5247, %v5247
        %v5252 = vsel %vm4671, %v5132, 0
        %v5255 = vsel %vm4671, %v5133, 0
        %v5258 = vsel %vm4671, %v5134, 0
        %v5261 = vsel %vm4671, %v5135, 0
        %v5264 = vsel %vm5209, %v5249, 0
        %5266 = vmatpush.bf16.msra.mxu0 0
        %5267 = vmatpush.bf16.msra.mxu0 0
        %5268 = vmatpush.bf16.msra.mxu0 0
        %5269 = vmatpush.bf16.msra.mxu0 0
        %5270 = vmatpush.bf16.msra.mxu0 0
        %5271 = vmatpush.bf16.msra.mxu0 0
        %5272 = vmatpush.bf16.msra.mxu0 %v5264
        %5273 = vmatpush.bf16.msra.mxu0 %v5248
        %5274 = vmatmul.bf16.gmra.mxu0 %v5252
        %v5275 = vpop.f32.mrf.mxu0
        %v5276 = vadd.f32 %v5223, %v5275
        %v5277 = vpop.f32.mrf.mxu0
        %v5278 = vadd.f32 %v5225, %v5277
        %5279 = vmatmul.bf16.gmra.mxu0 %v5255
        %v5280 = vpop.f32.mrf.mxu0
        %v5281 = vadd.f32 %v5228, %v5280
        %v5282 = vpop.f32.mrf.mxu0
        %v5283 = vadd.f32 %v5230, %v5282
        %5284 = vmatmul.bf16.gmra.mxu0 %v5258
        %v5285 = vpop.f32.mrf.mxu0
        %v5286 = vadd.f32 %v5233, %v5285
        %v5287 = vpop.f32.mrf.mxu0
        %v5288 = vadd.f32 %v5235, %v5287
        %5289 = vmatmul.bf16.gmra.mxu0 %v5261
        %v5290 = vpop.f32.mrf.mxu0
        %v5291 = vadd.f32 %v5238, %v5290
        %v5292 = vpop.f32.mrf.mxu0
        %v5293 = vadd.f32 %v5240, %v5292
        %5294 = vdwg.mxu0
        %v5295 = vrot.slane %v5033, 2
        %v5296 = vrot.slane %v5034, 2
        %v5297 = vsel %vm1062, %v5295, %v5296
        %v5298 = vrot.slane %v5035, 2
        %v5299 = vrot.slane %v5036, 2
        %v5300 = vsel %vm1062, %v5298, %v5299
        %v5301 = vrot.slane %v5037, 2
        %v5302 = vrot.slane %v5038, 2
        %v5303 = vsel %vm1062, %v5301, %v5302
        %v5304 = vrot.slane %v5039, 2
        %v5305 = vrot.slane %v5040, 2
        %v5306 = vsel %vm1062, %v5304, %v5305
        %v5307 = vrot.slane %v5041, 2
        %v5308 = vrot.slane %v5042, 2
        %v5309 = vsel %vm1062, %v5307, %v5308
        %v5310 = vrot.slane %v5043, 2
        %v5311 = vrot.slane %v5044, 2
        %v5312 = vsel %vm1062, %v5310, %v5311
        %v5313 = vrot.slane %v5045, 2
        %v5314 = vrot.slane %v5046, 2
        %v5315 = vsel %vm1062, %v5313, %v5314
        %v5316 = vrot.slane %v5047, 2
        %v5317 = vrot.slane %v5048, 2
        %v5318 = vsel %vm1062, %v5316, %v5317
        %v5327 = vpack.c.bf16 %v5300, %v5297
        %v5328 = vpack.c.bf16 %v5306, %v5303
        %v5329 = vpack.c.bf16 %v5312, %v5309
        %v5330 = vpack.c.bf16 %v5318, %v5315
        %v5334 = vunpack.c.l.b16 %v5063
        %v5335 = vunpack.c.l.b16 %v5064
        %v5336 = vunpack.c.l.b16 %v5065
        %v5337 = vpack.c.b16 %v5335, %v5334
        %v5338 = vpack.c.b16 %v5336, %v5336
        %v5341 = vsel %vm4671, %v5327, 0
        %v5344 = vsel %vm4671, %v5328, 0
        %v5347 = vsel %vm4671, %v5329, 0
        %v5350 = vsel %vm4671, %v5330, 0
        %v5353 = vsel %vm5209, %v5338, 0
        %5355 = vmatpush.bf16.msra.mxu0 0
        %5356 = vmatpush.bf16.msra.mxu0 0
        %5357 = vmatpush.bf16.msra.mxu0 0
        %5358 = vmatpush.bf16.msra.mxu0 0
        %5359 = vmatpush.bf16.msra.mxu0 0
        %5360 = vmatpush.bf16.msra.mxu0 0
        %5361 = vmatpush.bf16.msra.mxu0 %v5353
        %5362 = vmatpush.bf16.msra.mxu0 %v5337
        %5363 = vmatmul.bf16.gmra.mxu0 %v5341
        %v5364 = vpop.f32.mrf.mxu0
        %v5365 = vadd.f32 0.0, %v5364
        %v5366 = vpop.f32.mrf.mxu0
        %v5367 = vadd.f32 0.0, %v5366
        %5368 = vmatmul.bf16.gmra.mxu0 %v5344
        %v5369 = vpop.f32.mrf.mxu0
        %v5370 = vadd.f32 0.0, %v5369
        %v5371 = vpop.f32.mrf.mxu0
        %v5372 = vadd.f32 0.0, %v5371
        %5373 = vmatmul.bf16.gmra.mxu0 %v5347
        %v5374 = vpop.f32.mrf.mxu0
        %v5375 = vadd.f32 0.0, %v5374
        %v5376 = vpop.f32.mrf.mxu0
        %v5377 = vadd.f32 0.0, %v5376
        %5378 = vmatmul.bf16.gmra.mxu0 %v5350
        %v5379 = vpop.f32.mrf.mxu0
        %v5380 = vadd.f32 0.0, %v5379
        %v5381 = vpop.f32.mrf.mxu0
        %v5382 = vadd.f32 0.0, %v5381
        %5383 = vdwg.mxu0
        %v5384 = vadd.f32 %v5276, %v5365
        %v5385 = vadd.f32 %v5278, %v5367
        %v5386 = vadd.f32 %v5281, %v5370
        %v5387 = vadd.f32 %v5283, %v5372
        %v5388 = vadd.f32 %v5286, %v5375
        %v5389 = vadd.f32 %v5288, %v5377
        %v5390 = vadd.f32 %v5291, %v5380
        %v5391 = vadd.f32 %v5293, %v5382
        %v5392 = vrot.slane %v5033, 3
        %v5393 = vrot.slane %v5034, 3
        %v5394 = vsel %vm1338, %v5392, %v5393
        %v5395 = vrot.slane %v5035, 3
        %v5396 = vrot.slane %v5036, 3
        %v5397 = vsel %vm1338, %v5395, %v5396
        %v5398 = vrot.slane %v5037, 3
        %v5399 = vrot.slane %v5038, 3
        %v5400 = vsel %vm1338, %v5398, %v5399
        %v5401 = vrot.slane %v5039, 3
        %v5402 = vrot.slane %v5040, 3
        %v5403 = vsel %vm1338, %v5401, %v5402
        %v5404 = vrot.slane %v5041, 3
        %v5405 = vrot.slane %v5042, 3
        %v5406 = vsel %vm1338, %v5404, %v5405
        %v5407 = vrot.slane %v5043, 3
        %v5408 = vrot.slane %v5044, 3
        %v5409 = vsel %vm1338, %v5407, %v5408
        %v5410 = vrot.slane %v5045, 3
        %v5411 = vrot.slane %v5046, 3
        %v5412 = vsel %vm1338, %v5410, %v5411
        %v5413 = vrot.slane %v5047, 3
        %v5414 = vrot.slane %v5048, 3
        %v5415 = vsel %vm1338, %v5413, %v5414
        %v5424 = vpack.c.bf16 %v5397, %v5394
        %v5425 = vpack.c.bf16 %v5403, %v5400
        %v5426 = vpack.c.bf16 %v5409, %v5406
        %v5427 = vpack.c.bf16 %v5415, %v5412
        %v5431 = vunpack.c.l.b16 %v5066
        %v5432 = vunpack.c.l.b16 %v5067
        %v5433 = vunpack.c.l.b16 %v5068
        %v5434 = vpack.c.b16 %v5432, %v5431
        %v5435 = vpack.c.b16 %v5433, %v5433
        %v5438 = vsel %vm4671, %v5424, 0
        %v5441 = vsel %vm4671, %v5425, 0
        %v5444 = vsel %vm4671, %v5426, 0
        %v5447 = vsel %vm4671, %v5427, 0
        %v5450 = vsel %vm5209, %v5435, 0
        %5452 = vmatpush.bf16.msra.mxu0 0
        %5453 = vmatpush.bf16.msra.mxu0 0
        %5454 = vmatpush.bf16.msra.mxu0 0
        %5455 = vmatpush.bf16.msra.mxu0 0
        %5456 = vmatpush.bf16.msra.mxu0 0
        %5457 = vmatpush.bf16.msra.mxu0 0
        %5458 = vmatpush.bf16.msra.mxu0 %v5450
        %5459 = vmatpush.bf16.msra.mxu0 %v5434
        %5460 = vmatmul.bf16.gmra.mxu0 %v5438
        %v5461 = vpop.f32.mrf.mxu0
        %v5462 = vadd.f32 0.0, %v5461
        %v5463 = vpop.f32.mrf.mxu0
        %v5464 = vadd.f32 0.0, %v5463
        %5465 = vmatmul.bf16.gmra.mxu0 %v5441
        %v5466 = vpop.f32.mrf.mxu0
        %v5467 = vadd.f32 0.0, %v5466
        %v5468 = vpop.f32.mrf.mxu0
        %v5469 = vadd.f32 0.0, %v5468
        %5470 = vmatmul.bf16.gmra.mxu0 %v5444
        %v5471 = vpop.f32.mrf.mxu0
        %v5472 = vadd.f32 0.0, %v5471
        %v5473 = vpop.f32.mrf.mxu0
        %v5474 = vadd.f32 0.0, %v5473
        %5475 = vmatmul.bf16.gmra.mxu0 %v5447
        %v5476 = vpop.f32.mrf.mxu0
        %v5477 = vadd.f32 0.0, %v5476
        %v5478 = vpop.f32.mrf.mxu0
        %v5479 = vadd.f32 0.0, %v5478
        %5480 = vdwg.mxu0
        %v5481 = vadd.f32 %v5384, %v5462
        %v5482 = vadd.f32 %v5385, %v5464
        %v5483 = vadd.f32 %v5386, %v5467
        %v5484 = vadd.f32 %v5387, %v5469
        %v5485 = vadd.f32 %v5388, %v5472
        %v5486 = vadd.f32 %v5389, %v5474
        %v5487 = vadd.f32 %v5390, %v5477
        %v5488 = vadd.f32 %v5391, %v5479
        %v5489 = vrot.slane %v5033, 4
        %v5490 = vrot.slane %v5034, 4
        %v5491 = vsel %vm1614, %v5489, %v5490
        %v5492 = vrot.slane %v5035, 4
        %v5493 = vrot.slane %v5036, 4
        %v5494 = vsel %vm1614, %v5492, %v5493
        %v5495 = vrot.slane %v5037, 4
        %v5496 = vrot.slane %v5038, 4
        %v5497 = vsel %vm1614, %v5495, %v5496
        %v5498 = vrot.slane %v5039, 4
        %v5499 = vrot.slane %v5040, 4
        %v5500 = vsel %vm1614, %v5498, %v5499
        %v5501 = vrot.slane %v5041, 4
        %v5502 = vrot.slane %v5042, 4
        %v5503 = vsel %vm1614, %v5501, %v5502
        %v5504 = vrot.slane %v5043, 4
        %v5505 = vrot.slane %v5044, 4
        %v5506 = vsel %vm1614, %v5504, %v5505
        %v5507 = vrot.slane %v5045, 4
        %v5508 = vrot.slane %v5046, 4
        %v5509 = vsel %vm1614, %v5507, %v5508
        %v5510 = vrot.slane %v5047, 4
        %v5511 = vrot.slane %v5048, 4
        %v5512 = vsel %vm1614, %v5510, %v5511
        %v5521 = vpack.c.bf16 %v5494, %v5491
        %v5522 = vpack.c.bf16 %v5500, %v5497
        %v5523 = vpack.c.bf16 %v5506, %v5503
        %v5524 = vpack.c.bf16 %v5512, %v5509
        %v5528 = vunpack.c.l.b16 %v5069
        %v5529 = vunpack.c.l.b16 %v5070
        %v5530 = vunpack.c.l.b16 %v5071
        %v5531 = vpack.c.b16 %v5529, %v5528
        %v5532 = vpack.c.b16 %v5530, %v5530
        %v5535 = vsel %vm4671, %v5521, 0
        %v5538 = vsel %vm4671, %v5522, 0
        %v5541 = vsel %vm4671, %v5523, 0
        %v5544 = vsel %vm4671, %v5524, 0
        %v5547 = vsel %vm5209, %v5532, 0
        %5549 = vmatpush.bf16.msra.mxu0 0
        %5550 = vmatpush.bf16.msra.mxu0 0
        %5551 = vmatpush.bf16.msra.mxu0 0
        %5552 = vmatpush.bf16.msra.mxu0 0
        %5553 = vmatpush.bf16.msra.mxu0 0
        %5554 = vmatpush.bf16.msra.mxu0 0
        %5555 = vmatpush.bf16.msra.mxu0 %v5547
        %5556 = vmatpush.bf16.msra.mxu0 %v5531
        %5557 = vmatmul.bf16.gmra.mxu0 %v5535
        %v5558 = vpop.f32.mrf.mxu0
        %v5559 = vadd.f32 0.0, %v5558
        %v5560 = vpop.f32.mrf.mxu0
        %v5561 = vadd.f32 0.0, %v5560
        %5562 = vmatmul.bf16.gmra.mxu0 %v5538
        %v5563 = vpop.f32.mrf.mxu0
        %v5564 = vadd.f32 0.0, %v5563
        %v5565 = vpop.f32.mrf.mxu0
        %v5566 = vadd.f32 0.0, %v5565
        %5567 = vmatmul.bf16.gmra.mxu0 %v5541
        %v5568 = vpop.f32.mrf.mxu0
        %v5569 = vadd.f32 0.0, %v5568
        %v5570 = vpop.f32.mrf.mxu0
        %v5571 = vadd.f32 0.0, %v5570
        %5572 = vmatmul.bf16.gmra.mxu0 %v5544
        %v5573 = vpop.f32.mrf.mxu0
        %v5574 = vadd.f32 0.0, %v5573
        %v5575 = vpop.f32.mrf.mxu0
        %v5576 = vadd.f32 0.0, %v5575
        %5577 = vdwg.mxu0
        %v5578 = vadd.f32 %v5481, %v5559
        %v5579 = vadd.f32 %v5482, %v5561
        %v5580 = vadd.f32 %v5483, %v5564
        %v5581 = vadd.f32 %v5484, %v5566
        %v5582 = vadd.f32 %v5485, %v5569
        %v5583 = vadd.f32 %v5486, %v5571
        %v5584 = vadd.f32 %v5487, %v5574
        %v5585 = vadd.f32 %v5488, %v5576
        %v5586 = vpack.c.bf16 %v5037, %v5035
        %v5587 = vpack.c.bf16 %v5041, %v5039
        %v5588 = vpack.c.bf16 %v5045, %v5043
        %v5589 = vpack.c.bf16 %v5049, %v5047
        %v5593 = vunpack.c.l.b16 %v5072
        %v5594 = vunpack.c.l.b16 %v5073
        %v5595 = vunpack.c.l.b16 %v5074
        %v5596 = vpack.c.b16 %v5594, %v5593
        %v5597 = vpack.c.b16 %v5595, %v5595
        %v5600 = vsel %vm4671, %v5586, 0
        %v5603 = vsel %vm4671, %v5587, 0
        %v5606 = vsel %vm4671, %v5588, 0
        %v5609 = vsel %vm4671, %v5589, 0
        %v5612 = vsel %vm5209, %v5597, 0
        %5614 = vmatpush.bf16.msra.mxu0 0
        %5615 = vmatpush.bf16.msra.mxu0 0
        %5616 = vmatpush.bf16.msra.mxu0 0
        %5617 = vmatpush.bf16.msra.mxu0 0
        %5618 = vmatpush.bf16.msra.mxu0 0
        %5619 = vmatpush.bf16.msra.mxu0 0
        %5620 = vmatpush.bf16.msra.mxu0 %v5612
        %5621 = vmatpush.bf16.msra.mxu0 %v5596
        %5622 = vmatmul.bf16.gmra.mxu0 %v5600
        %v5623 = vpop.f32.mrf.mxu0
        %v5624 = vadd.f32 0.0, %v5623
        %v5625 = vpop.f32.mrf.mxu0
        %v5626 = vadd.f32 0.0, %v5625
        %5627 = vmatmul.bf16.gmra.mxu0 %v5603
        %v5628 = vpop.f32.mrf.mxu0
        %v5629 = vadd.f32 0.0, %v5628
        %v5630 = vpop.f32.mrf.mxu0
        %v5631 = vadd.f32 0.0, %v5630
        %5632 = vmatmul.bf16.gmra.mxu0 %v5606
        %v5633 = vpop.f32.mrf.mxu0
        %v5634 = vadd.f32 0.0, %v5633
        %v5635 = vpop.f32.mrf.mxu0
        %v5636 = vadd.f32 0.0, %v5635
        %5637 = vmatmul.bf16.gmra.mxu0 %v5609
        %v5638 = vpop.f32.mrf.mxu0
        %v5639 = vadd.f32 0.0, %v5638
        %v5640 = vpop.f32.mrf.mxu0
        %v5641 = vadd.f32 0.0, %v5640
        %5642 = vdwg.mxu0
        %v5643 = vadd.f32 %v5578, %v5624
        %v5644 = vadd.f32 %v5579, %v5626
        %v5645 = vadd.f32 %v5580, %v5629
        %v5646 = vadd.f32 %v5581, %v5631
        %v5647 = vadd.f32 %v5582, %v5634
        %v5648 = vadd.f32 %v5583, %v5636
        %v5649 = vadd.f32 %v5584, %v5639
        %v5650 = vadd.f32 %v5585, %v5641
        %v5653 = vrot.slane %v5049, 1
        %v5654 = vrot.slane %v5050, 1
        %v5655 = vsel %vm786, %v5653, %v5654
        %v5657 = vpack.c.bf16 %v5160, %v5157
        %v5658 = vpack.c.bf16 %v5166, %v5163
        %v5659 = vpack.c.bf16 %v5172, %v5169
        %v5660 = vpack.c.bf16 %v5655, %v5175
        %v5664 = vunpack.c.l.b16 %v5075
        %v5665 = vunpack.c.l.b16 %v5076
        %v5666 = vunpack.c.l.b16 %v5077
        %v5667 = vpack.c.b16 %v5665, %v5664
        %v5668 = vpack.c.b16 %v5666, %v5666
        %v5671 = vsel %vm4671, %v5657, 0
        %v5674 = vsel %vm4671, %v5658, 0
        %v5677 = vsel %vm4671, %v5659, 0
        %v5680 = vsel %vm4671, %v5660, 0
        %v5683 = vsel %vm5209, %v5668, 0
        %5685 = vmatpush.bf16.msra.mxu0 0
        %5686 = vmatpush.bf16.msra.mxu0 0
        %5687 = vmatpush.bf16.msra.mxu0 0
        %5688 = vmatpush.bf16.msra.mxu0 0
        %5689 = vmatpush.bf16.msra.mxu0 0
        %5690 = vmatpush.bf16.msra.mxu0 0
        %5691 = vmatpush.bf16.msra.mxu0 %v5683
        %5692 = vmatpush.bf16.msra.mxu0 %v5667
        %5693 = vmatmul.bf16.gmra.mxu0 %v5671
        %v5694 = vpop.f32.mrf.mxu0
        %v5695 = vadd.f32 0.0, %v5694
        %v5696 = vpop.f32.mrf.mxu0
        %v5697 = vadd.f32 0.0, %v5696
        %5698 = vmatmul.bf16.gmra.mxu0 %v5674
        %v5699 = vpop.f32.mrf.mxu0
        %v5700 = vadd.f32 0.0, %v5699
        %v5701 = vpop.f32.mrf.mxu0
        %v5702 = vadd.f32 0.0, %v5701
        %5703 = vmatmul.bf16.gmra.mxu0 %v5677
        %v5704 = vpop.f32.mrf.mxu0
        %v5705 = vadd.f32 0.0, %v5704
        %v5706 = vpop.f32.mrf.mxu0
        %v5707 = vadd.f32 0.0, %v5706
        %5708 = vmatmul.bf16.gmra.mxu0 %v5680
        %v5709 = vpop.f32.mrf.mxu0
        %v5710 = vadd.f32 0.0, %v5709
        %v5711 = vpop.f32.mrf.mxu0
        %v5712 = vadd.f32 0.0, %v5711
        %5713 = vdwg.mxu0
        %v5714 = vadd.f32 %v5643, %v5695
        %v5715 = vadd.f32 %v5644, %v5697
        %v5716 = vadd.f32 %v5645, %v5700
        %v5717 = vadd.f32 %v5646, %v5702
        %v5718 = vadd.f32 %v5647, %v5705
        %v5719 = vadd.f32 %v5648, %v5707
        %v5720 = vadd.f32 %v5649, %v5710
        %v5721 = vadd.f32 %v5650, %v5712
        %v5722 = vrot.slane %v5049, 2
        %v5723 = vrot.slane %v5050, 2
        %v5724 = vsel %vm1062, %v5722, %v5723
        %v5726 = vpack.c.bf16 %v5303, %v5300
        %v5727 = vpack.c.bf16 %v5309, %v5306
        %v5728 = vpack.c.bf16 %v5315, %v5312
        %v5729 = vpack.c.bf16 %v5724, %v5318
        %v5733 = vunpack.c.l.b16 %v5078
        %v5734 = vunpack.c.l.b16 %v5079
        %v5735 = vunpack.c.l.b16 %v5080
        %v5736 = vpack.c.b16 %v5734, %v5733
        %v5737 = vpack.c.b16 %v5735, %v5735
        %v5740 = vsel %vm4671, %v5726, 0
        %v5743 = vsel %vm4671, %v5727, 0
        %v5746 = vsel %vm4671, %v5728, 0
        %v5749 = vsel %vm4671, %v5729, 0
        %v5752 = vsel %vm5209, %v5737, 0
        %5754 = vmatpush.bf16.msra.mxu0 0
        %5755 = vmatpush.bf16.msra.mxu0 0
        %5756 = vmatpush.bf16.msra.mxu0 0
        %5757 = vmatpush.bf16.msra.mxu0 0
        %5758 = vmatpush.bf16.msra.mxu0 0
        %5759 = vmatpush.bf16.msra.mxu0 0
        %5760 = vmatpush.bf16.msra.mxu0 %v5752
        %5761 = vmatpush.bf16.msra.mxu0 %v5736
        %5762 = vmatmul.bf16.gmra.mxu0 %v5740
        %v5763 = vpop.f32.mrf.mxu0
        %v5764 = vadd.f32 0.0, %v5763
        %v5765 = vpop.f32.mrf.mxu0
        %v5766 = vadd.f32 0.0, %v5765
        %5767 = vmatmul.bf16.gmra.mxu0 %v5743
        %v5768 = vpop.f32.mrf.mxu0
        %v5769 = vadd.f32 0.0, %v5768
        %v5770 = vpop.f32.mrf.mxu0
        %v5771 = vadd.f32 0.0, %v5770
        %5772 = vmatmul.bf16.gmra.mxu0 %v5746
        %v5773 = vpop.f32.mrf.mxu0
        %v5774 = vadd.f32 0.0, %v5773
        %v5775 = vpop.f32.mrf.mxu0
        %v5776 = vadd.f32 0.0, %v5775
        %5777 = vmatmul.bf16.gmra.mxu0 %v5749
        %v5778 = vpop.f32.mrf.mxu0
        %v5779 = vadd.f32 0.0, %v5778
        %v5780 = vpop.f32.mrf.mxu0
        %v5781 = vadd.f32 0.0, %v5780
        %5782 = vdwg.mxu0
        %v5783 = vadd.f32 %v5714, %v5764
        %v5784 = vadd.f32 %v5715, %v5766
        %v5785 = vadd.f32 %v5716, %v5769
        %v5786 = vadd.f32 %v5717, %v5771
        %v5787 = vadd.f32 %v5718, %v5774
        %v5788 = vadd.f32 %v5719, %v5776
        %v5789 = vadd.f32 %v5720, %v5779
        %v5790 = vadd.f32 %v5721, %v5781
        %v5791 = vrot.slane %v5049, 3
        %v5792 = vrot.slane %v5050, 3
        %v5793 = vsel %vm1338, %v5791, %v5792
        %v5795 = vpack.c.bf16 %v5400, %v5397
        %v5796 = vpack.c.bf16 %v5406, %v5403
        %v5797 = vpack.c.bf16 %v5412, %v5409
        %v5798 = vpack.c.bf16 %v5793, %v5415
        %v5802 = vunpack.c.l.b16 %v5081
        %v5803 = vunpack.c.l.b16 %v5082
        %v5804 = vunpack.c.l.b16 %v5083
        %v5805 = vpack.c.b16 %v5803, %v5802
        %v5806 = vpack.c.b16 %v5804, %v5804
        %v5809 = vsel %vm4671, %v5795, 0
        %v5812 = vsel %vm4671, %v5796, 0
        %v5815 = vsel %vm4671, %v5797, 0
        %v5818 = vsel %vm4671, %v5798, 0
        %v5821 = vsel %vm5209, %v5806, 0
        %5823 = vmatpush.bf16.msra.mxu0 0
        %5824 = vmatpush.bf16.msra.mxu0 0
        %5825 = vmatpush.bf16.msra.mxu0 0
        %5826 = vmatpush.bf16.msra.mxu0 0
        %5827 = vmatpush.bf16.msra.mxu0 0
        %5828 = vmatpush.bf16.msra.mxu0 0
        %5829 = vmatpush.bf16.msra.mxu0 %v5821
        %5830 = vmatpush.bf16.msra.mxu0 %v5805
        %5831 = vmatmul.bf16.gmra.mxu0 %v5809
        %v5832 = vpop.f32.mrf.mxu0
        %v5833 = vadd.f32 0.0, %v5832
        %v5834 = vpop.f32.mrf.mxu0
        %v5835 = vadd.f32 0.0, %v5834
        %5836 = vmatmul.bf16.gmra.mxu0 %v5812
        %v5837 = vpop.f32.mrf.mxu0
        %v5838 = vadd.f32 0.0, %v5837
        %v5839 = vpop.f32.mrf.mxu0
        %v5840 = vadd.f32 0.0, %v5839
        %5841 = vmatmul.bf16.gmra.mxu0 %v5815
        %v5842 = vpop.f32.mrf.mxu0
        %v5843 = vadd.f32 0.0, %v5842
        %v5844 = vpop.f32.mrf.mxu0
        %v5845 = vadd.f32 0.0, %v5844
        %5846 = vmatmul.bf16.gmra.mxu0 %v5818
        %v5847 = vpop.f32.mrf.mxu0
        %v5848 = vadd.f32 0.0, %v5847
        %v5849 = vpop.f32.mrf.mxu0
        %v5850 = vadd.f32 0.0, %v5849
        %5851 = vdwg.mxu0
        %v5852 = vadd.f32 %v5783, %v5833
        %v5853 = vadd.f32 %v5784, %v5835
        %v5854 = vadd.f32 %v5785, %v5838
        %v5855 = vadd.f32 %v5786, %v5840
        %v5856 = vadd.f32 %v5787, %v5843
        %v5857 = vadd.f32 %v5788, %v5845
        %v5858 = vadd.f32 %v5789, %v5848
        %v5859 = vadd.f32 %v5790, %v5850
        %v5860 = vrot.slane %v5049, 4
        %v5861 = vrot.slane %v5050, 4
        %v5862 = vsel %vm1614, %v5860, %v5861
        %v5864 = vpack.c.bf16 %v5497, %v5494
        %v5865 = vpack.c.bf16 %v5503, %v5500
        %v5866 = vpack.c.bf16 %v5509, %v5506
        %v5867 = vpack.c.bf16 %v5862, %v5512
        %v5871 = vunpack.c.l.b16 %v5084
        %v5872 = vunpack.c.l.b16 %v5085
        %v5873 = vunpack.c.l.b16 %v5086
        %v5874 = vpack.c.b16 %v5872, %v5871
        %v5875 = vpack.c.b16 %v5873, %v5873
        %v5878 = vsel %vm4671, %v5864, 0
        %v5881 = vsel %vm4671, %v5865, 0
        %v5884 = vsel %vm4671, %v5866, 0
        %v5887 = vsel %vm4671, %v5867, 0
        %v5890 = vsel %vm5209, %v5875, 0
        %5892 = vmatpush.bf16.msra.mxu0 0
        %5893 = vmatpush.bf16.msra.mxu0 0
        %5894 = vmatpush.bf16.msra.mxu0 0
        %5895 = vmatpush.bf16.msra.mxu0 0
        %5896 = vmatpush.bf16.msra.mxu0 0
        %5897 = vmatpush.bf16.msra.mxu0 0
        %5898 = vmatpush.bf16.msra.mxu0 %v5890
        %5899 = vmatpush.bf16.msra.mxu0 %v5874
        %5900 = vmatmul.bf16.gmra.mxu0 %v5878
        %v5901 = vpop.f32.mrf.mxu0
        %v5902 = vadd.f32 0.0, %v5901
        %v5903 = vpop.f32.mrf.mxu0
        %v5904 = vadd.f32 0.0, %v5903
        %5905 = vmatmul.bf16.gmra.mxu0 %v5881
        %v5906 = vpop.f32.mrf.mxu0
        %v5907 = vadd.f32 0.0, %v5906
        %v5908 = vpop.f32.mrf.mxu0
        %v5909 = vadd.f32 0.0, %v5908
        %5910 = vmatmul.bf16.gmra.mxu0 %v5884
        %v5911 = vpop.f32.mrf.mxu0
        %v5912 = vadd.f32 0.0, %v5911
        %v5913 = vpop.f32.mrf.mxu0
        %v5914 = vadd.f32 0.0, %v5913
        %5915 = vmatmul.bf16.gmra.mxu0 %v5887
        %v5916 = vpop.f32.mrf.mxu0
        %v5917 = vadd.f32 0.0, %v5916
        %v5918 = vpop.f32.mrf.mxu0
        %v5919 = vadd.f32 0.0, %v5918
        %5920 = vdwg.mxu0
        %v5921 = vadd.f32 %v5852, %v5902
        %v5922 = vadd.f32 %v5853, %v5904
        %v5923 = vadd.f32 %v5854, %v5907
        %v5924 = vadd.f32 %v5855, %v5909
        %v5925 = vadd.f32 %v5856, %v5912
        %v5926 = vadd.f32 %v5857, %v5914
        %v5927 = vadd.f32 %v5858, %v5917
        %v5928 = vadd.f32 %v5859, %v5919
        %v5929 = vpack.c.bf16 %v5051, %v5049
        %v5933 = vunpack.c.l.b16 %v5087
        %v5934 = vunpack.c.l.b16 %v5088
        %v5935 = vunpack.c.l.b16 %v5089
        %v5936 = vpack.c.b16 %v5934, %v5933
        %v5937 = vpack.c.b16 %v5935, %v5935
        %v5940 = vsel %vm4671, %v5929, 0
        %v5943 = vsel %vm5209, %v5937, 0
        %5945 = vmatpush.bf16.msra.mxu0 0
        %5946 = vmatpush.bf16.msra.mxu0 0
        %5947 = vmatpush.bf16.msra.mxu0 0
        %5948 = vmatpush.bf16.msra.mxu0 0
        %5949 = vmatpush.bf16.msra.mxu0 0
        %5950 = vmatpush.bf16.msra.mxu0 0
        %5951 = vmatpush.bf16.msra.mxu0 %v5943
        %5952 = vmatpush.bf16.msra.mxu0 %v5936
        %5953 = vmatmul.bf16.gmra.mxu0 %v5255
        %v5954 = vpop.f32.mrf.mxu0
        %v5955 = vadd.f32 0.0, %v5954
        %v5956 = vpop.f32.mrf.mxu0
        %v5957 = vadd.f32 0.0, %v5956
        %5958 = vmatmul.bf16.gmra.mxu0 %v5258
        %v5959 = vpop.f32.mrf.mxu0
        %v5960 = vadd.f32 0.0, %v5959
        %v5961 = vpop.f32.mrf.mxu0
        %v5962 = vadd.f32 0.0, %v5961
        %5963 = vmatmul.bf16.gmra.mxu0 %v5261
        %v5964 = vpop.f32.mrf.mxu0
        %v5965 = vadd.f32 0.0, %v5964
        %v5966 = vpop.f32.mrf.mxu0
        %v5967 = vadd.f32 0.0, %v5966
        %5968 = vmatmul.bf16.gmra.mxu0 %v5940
        %v5969 = vpop.f32.mrf.mxu0
        %v5970 = vadd.f32 0.0, %v5969
        %v5971 = vpop.f32.mrf.mxu0
        %v5972 = vadd.f32 0.0, %v5971
        %5973 = vdwg.mxu0
        %v5974 = vadd.f32 %v5921, %v5955
        %v5975 = vadd.f32 %v5922, %v5957
        %v5976 = vadd.f32 %v5923, %v5960
        %v5977 = vadd.f32 %v5924, %v5962
        %v5978 = vadd.f32 %v5925, %v5965
        %v5979 = vadd.f32 %v5926, %v5967
        %v5980 = vadd.f32 %v5927, %v5970
        %v5981 = vadd.f32 %v5928, %v5972
        %v5984 = vrot.slane %v5051, 1
        %v5985 = vrot.slane %v5052, 1
        %v5986 = vsel %vm786, %v5984, %v5985
        %v5988 = vpack.c.bf16 %v5986, %v5655
        %v5992 = vunpack.c.l.b16 %v5090
        %v5993 = vunpack.c.l.b16 %v5091
        %v5994 = vunpack.c.l.b16 %v5092
        %v5995 = vpack.c.b16 %v5993, %v5992
        %v5996 = vpack.c.b16 %v5994, %v5994
        %v5999 = vsel %vm4671, %v5988, 0
        %v6002 = vsel %vm5209, %v5996, 0
        %6004 = vmatpush.bf16.msra.mxu0 0
        %6005 = vmatpush.bf16.msra.mxu0 0
        %6006 = vmatpush.bf16.msra.mxu0 0
        %6007 = vmatpush.bf16.msra.mxu0 0
        %6008 = vmatpush.bf16.msra.mxu0 0
        %6009 = vmatpush.bf16.msra.mxu0 0
        %6010 = vmatpush.bf16.msra.mxu0 %v6002
        %6011 = vmatpush.bf16.msra.mxu0 %v5995
        %6012 = vmatmul.bf16.gmra.mxu0 %v5201
        %v6013 = vpop.f32.mrf.mxu0
        %v6014 = vadd.f32 0.0, %v6013
        %v6015 = vpop.f32.mrf.mxu0
        %v6016 = vadd.f32 0.0, %v6015
        %6017 = vmatmul.bf16.gmra.mxu0 %v5204
        %v6018 = vpop.f32.mrf.mxu0
        %v6019 = vadd.f32 0.0, %v6018
        %v6020 = vpop.f32.mrf.mxu0
        %v6021 = vadd.f32 0.0, %v6020
        %6022 = vmatmul.bf16.gmra.mxu0 %v5207
        %v6023 = vpop.f32.mrf.mxu0
        %v6024 = vadd.f32 0.0, %v6023
        %v6025 = vpop.f32.mrf.mxu0
        %v6026 = vadd.f32 0.0, %v6025
        %6027 = vmatmul.bf16.gmra.mxu0 %v5999
        %v6028 = vpop.f32.mrf.mxu0
        %v6029 = vadd.f32 0.0, %v6028
        %v6030 = vpop.f32.mrf.mxu0
        %v6031 = vadd.f32 0.0, %v6030
        %6032 = vdwg.mxu0
        %v6033 = vadd.f32 %v5974, %v6014
        %v6034 = vadd.f32 %v5975, %v6016
        %v6035 = vadd.f32 %v5976, %v6019
        %v6036 = vadd.f32 %v5977, %v6021
        %v6037 = vadd.f32 %v5978, %v6024
        %v6038 = vadd.f32 %v5979, %v6026
        %v6039 = vadd.f32 %v5980, %v6029
        %v6040 = vadd.f32 %v5981, %v6031
        %v6041 = vrot.slane %v5051, 2
        %v6042 = vrot.slane %v5052, 2
        %v6043 = vsel %vm1062, %v6041, %v6042
        %v6045 = vpack.c.bf16 %v6043, %v5724
        %v6049 = vunpack.c.l.b16 %v5093
        %v6050 = vunpack.c.l.b16 %v5094
        %v6051 = vunpack.c.l.b16 %v5095
        %v6052 = vpack.c.b16 %v6050, %v6049
        %v6053 = vpack.c.b16 %v6051, %v6051
        %v6056 = vsel %vm4671, %v6045, 0
        %v6059 = vsel %vm5209, %v6053, 0
        %6061 = vmatpush.bf16.msra.mxu0 0
        %6062 = vmatpush.bf16.msra.mxu0 0
        %6063 = vmatpush.bf16.msra.mxu0 0
        %6064 = vmatpush.bf16.msra.mxu0 0
        %6065 = vmatpush.bf16.msra.mxu0 0
        %6066 = vmatpush.bf16.msra.mxu0 0
        %6067 = vmatpush.bf16.msra.mxu0 %v6059
        %6068 = vmatpush.bf16.msra.mxu0 %v6052
        %6069 = vmatmul.bf16.gmra.mxu0 %v5344
        %v6070 = vpop.f32.mrf.mxu0
        %v6071 = vadd.f32 0.0, %v6070
        %v6072 = vpop.f32.mrf.mxu0
        %v6073 = vadd.f32 0.0, %v6072
        %6074 = vmatmul.bf16.gmra.mxu0 %v5347
        %v6075 = vpop.f32.mrf.mxu0
        %v6076 = vadd.f32 0.0, %v6075
        %v6077 = vpop.f32.mrf.mxu0
        %v6078 = vadd.f32 0.0, %v6077
        %6079 = vmatmul.bf16.gmra.mxu0 %v5350
        %v6080 = vpop.f32.mrf.mxu0
        %v6081 = vadd.f32 0.0, %v6080
        %v6082 = vpop.f32.mrf.mxu0
        %v6083 = vadd.f32 0.0, %v6082
        %6084 = vmatmul.bf16.gmra.mxu0 %v6056
        %v6085 = vpop.f32.mrf.mxu0
        %v6086 = vadd.f32 0.0, %v6085
        %v6087 = vpop.f32.mrf.mxu0
        %v6088 = vadd.f32 0.0, %v6087
        %6089 = vdwg.mxu0
        %v6090 = vadd.f32 %v6033, %v6071
        %v6091 = vadd.f32 %v6034, %v6073
        %v6092 = vadd.f32 %v6035, %v6076
        %v6093 = vadd.f32 %v6036, %v6078
        %v6094 = vadd.f32 %v6037, %v6081
        %v6095 = vadd.f32 %v6038, %v6083
        %v6096 = vadd.f32 %v6039, %v6086
        %v6097 = vadd.f32 %v6040, %v6088
        %v6098 = vrot.slane %v5051, 3
        %v6099 = vrot.slane %v5052, 3
        %v6100 = vsel %vm1338, %v6098, %v6099
        %v6102 = vpack.c.bf16 %v6100, %v5793
        %v6106 = vunpack.c.l.b16 %v5096
        %v6107 = vunpack.c.l.b16 %v5097
        %v6108 = vunpack.c.l.b16 %v5098
        %v6109 = vpack.c.b16 %v6107, %v6106
        %v6110 = vpack.c.b16 %v6108, %v6108
        %v6113 = vsel %vm4671, %v6102, 0
        %v6116 = vsel %vm5209, %v6110, 0
        %6118 = vmatpush.bf16.msra.mxu0 0
        %6119 = vmatpush.bf16.msra.mxu0 0
        %6120 = vmatpush.bf16.msra.mxu0 0
        %6121 = vmatpush.bf16.msra.mxu0 0
        %6122 = vmatpush.bf16.msra.mxu0 0
        %6123 = vmatpush.bf16.msra.mxu0 0
        %6124 = vmatpush.bf16.msra.mxu0 %v6116
        %6125 = vmatpush.bf16.msra.mxu0 %v6109
        %6126 = vmatmul.bf16.gmra.mxu0 %v5441
        %v6127 = vpop.f32.mrf.mxu0
        %v6128 = vadd.f32 0.0, %v6127
        %v6129 = vpop.f32.mrf.mxu0
        %v6130 = vadd.f32 0.0, %v6129
        %6131 = vmatmul.bf16.gmra.mxu0 %v5444
        %v6132 = vpop.f32.mrf.mxu0
        %v6133 = vadd.f32 0.0, %v6132
        %v6134 = vpop.f32.mrf.mxu0
        %v6135 = vadd.f32 0.0, %v6134
        %6136 = vmatmul.bf16.gmra.mxu0 %v5447
        %v6137 = vpop.f32.mrf.mxu0
        %v6138 = vadd.f32 0.0, %v6137
        %v6139 = vpop.f32.mrf.mxu0
        %v6140 = vadd.f32 0.0, %v6139
        %6141 = vmatmul.bf16.gmra.mxu0 %v6113
        %v6142 = vpop.f32.mrf.mxu0
        %v6143 = vadd.f32 0.0, %v6142
        %v6144 = vpop.f32.mrf.mxu0
        %v6145 = vadd.f32 0.0, %v6144
        %6146 = vdwg.mxu0
        %v6147 = vadd.f32 %v6090, %v6128
        %v6148 = vadd.f32 %v6091, %v6130
        %v6149 = vadd.f32 %v6092, %v6133
        %v6150 = vadd.f32 %v6093, %v6135
        %v6151 = vadd.f32 %v6094, %v6138
        %v6152 = vadd.f32 %v6095, %v6140
        %v6153 = vadd.f32 %v6096, %v6143
        %v6154 = vadd.f32 %v6097, %v6145
        %v6155 = vrot.slane %v5051, 4
        %v6156 = vrot.slane %v5052, 4
        %v6157 = vsel %vm1614, %v6155, %v6156
        %v6159 = vpack.c.bf16 %v6157, %v5862
        %v6163 = vunpack.c.l.b16 %v5099
        %v6164 = vunpack.c.l.b16 %v5100
        %v6165 = vunpack.c.l.b16 %v5101
        %v6166 = vpack.c.b16 %v6164, %v6163
        %v6167 = vpack.c.b16 %v6165, %v6165
        %v6170 = vsel %vm4671, %v6159, 0
        %v6173 = vsel %vm5209, %v6167, 0
        %6175 = vmatpush.bf16.msra.mxu0 0
        %6176 = vmatpush.bf16.msra.mxu0 0
        %6177 = vmatpush.bf16.msra.mxu0 0
        %6178 = vmatpush.bf16.msra.mxu0 0
        %6179 = vmatpush.bf16.msra.mxu0 0
        %6180 = vmatpush.bf16.msra.mxu0 0
        %6181 = vmatpush.bf16.msra.mxu0 %v6173
        %6182 = vmatpush.bf16.msra.mxu0 %v6166
        %6183 = vmatmul.bf16.gmra.mxu0 %v5538
        %v6184 = vpop.f32.mrf.mxu0
        %v6185 = vadd.f32 0.0, %v6184
        %v6186 = vpop.f32.mrf.mxu0
        %v6187 = vadd.f32 0.0, %v6186
        %6188 = vmatmul.bf16.gmra.mxu0 %v5541
        %v6189 = vpop.f32.mrf.mxu0
        %v6190 = vadd.f32 0.0, %v6189
        %v6191 = vpop.f32.mrf.mxu0
        %v6192 = vadd.f32 0.0, %v6191
        %6193 = vmatmul.bf16.gmra.mxu0 %v5544
        %v6194 = vpop.f32.mrf.mxu0
        %v6195 = vadd.f32 0.0, %v6194
        %v6196 = vpop.f32.mrf.mxu0
        %v6197 = vadd.f32 0.0, %v6196
        %6198 = vmatmul.bf16.gmra.mxu0 %v6170
        %v6199 = vpop.f32.mrf.mxu0
        %v6200 = vadd.f32 0.0, %v6199
        %v6201 = vpop.f32.mrf.mxu0
        %v6202 = vadd.f32 0.0, %v6201
        %6203 = vdwg.mxu0
        %v6204 = vadd.f32 %v6147, %v6185
        %v6205 = vadd.f32 %v6148, %v6187
        %v6206 = vadd.f32 %v6149, %v6190
        %v6207 = vadd.f32 %v6150, %v6192
        %v6208 = vadd.f32 %v6151, %v6195
        %v6209 = vadd.f32 %v6152, %v6197
        %v6210 = vadd.f32 %v6153, %v6200
        %v6211 = vadd.f32 %v6154, %v6202
        %v6212 = vpack.c.bf16 %v5053, %v5051
        %v6216 = vunpack.c.l.b16 %v5102
        %v6217 = vunpack.c.l.b16 %v5103
        %v6218 = vunpack.c.l.b16 %v5104
        %v6219 = vpack.c.b16 %v6217, %v6216
        %v6220 = vpack.c.b16 %v6218, %v6218
        %v6223 = vsel %vm4671, %v6212, 0
        %v6226 = vsel %vm5209, %v6220, 0
        %6228 = vmatpush.bf16.msra.mxu0 0
        %6229 = vmatpush.bf16.msra.mxu0 0
        %6230 = vmatpush.bf16.msra.mxu0 0
        %6231 = vmatpush.bf16.msra.mxu0 0
        %6232 = vmatpush.bf16.msra.mxu0 0
        %6233 = vmatpush.bf16.msra.mxu0 0
        %6234 = vmatpush.bf16.msra.mxu0 %v6226
        %6235 = vmatpush.bf16.msra.mxu0 %v6219
        %6236 = vmatmul.bf16.gmra.mxu0 %v5603
        %v6237 = vpop.f32.mrf.mxu0
        %v6238 = vadd.f32 0.0, %v6237
        %v6239 = vpop.f32.mrf.mxu0
        %v6240 = vadd.f32 0.0, %v6239
        %6241 = vmatmul.bf16.gmra.mxu0 %v5606
        %v6242 = vpop.f32.mrf.mxu0
        %v6243 = vadd.f32 0.0, %v6242
        %v6244 = vpop.f32.mrf.mxu0
        %v6245 = vadd.f32 0.0, %v6244
        %6246 = vmatmul.bf16.gmra.mxu0 %v5609
        %v6247 = vpop.f32.mrf.mxu0
        %v6248 = vadd.f32 0.0, %v6247
        %v6249 = vpop.f32.mrf.mxu0
        %v6250 = vadd.f32 0.0, %v6249
        %6251 = vmatmul.bf16.gmra.mxu0 %v6223
        %v6252 = vpop.f32.mrf.mxu0
        %v6253 = vadd.f32 0.0, %v6252
        %v6254 = vpop.f32.mrf.mxu0
        %v6255 = vadd.f32 0.0, %v6254
        %6256 = vdwg.mxu0
        %v6257 = vadd.f32 %v6204, %v6238
        %v6258 = vadd.f32 %v6205, %v6240
        %v6259 = vadd.f32 %v6206, %v6243
        %v6260 = vadd.f32 %v6207, %v6245
        %v6261 = vadd.f32 %v6208, %v6248
        %v6262 = vadd.f32 %v6209, %v6250
        %v6263 = vadd.f32 %v6210, %v6253
        %v6264 = vadd.f32 %v6211, %v6255
        %v6267 = vrot.slane %v5053, 1
        %v6268 = vrot.slane %v5054, 1
        %v6269 = vsel %vm786, %v6267, %v6268
        %v6271 = vpack.c.bf16 %v6269, %v5986
        %v6275 = vunpack.c.l.b16 %v5105
        %v6276 = vunpack.c.l.b16 %v5106
        %v6277 = vunpack.c.l.b16 %v5107
        %v6278 = vpack.c.b16 %v6276, %v6275
        %v6279 = vpack.c.b16 %v6277, %v6277
        %v6282 = vsel %vm4671, %v6271, 0
        %v6285 = vsel %vm5209, %v6279, 0
        %6287 = vmatpush.bf16.msra.mxu0 0
        %6288 = vmatpush.bf16.msra.mxu0 0
        %6289 = vmatpush.bf16.msra.mxu0 0
        %6290 = vmatpush.bf16.msra.mxu0 0
        %6291 = vmatpush.bf16.msra.mxu0 0
        %6292 = vmatpush.bf16.msra.mxu0 0
        %6293 = vmatpush.bf16.msra.mxu0 %v6285
        %6294 = vmatpush.bf16.msra.mxu0 %v6278
        %6295 = vmatmul.bf16.gmra.mxu0 %v5674
        %v6296 = vpop.f32.mrf.mxu0
        %v6297 = vadd.f32 0.0, %v6296
        %v6298 = vpop.f32.mrf.mxu0
        %v6299 = vadd.f32 0.0, %v6298
        %6300 = vmatmul.bf16.gmra.mxu0 %v5677
        %v6301 = vpop.f32.mrf.mxu0
        %v6302 = vadd.f32 0.0, %v6301
        %v6303 = vpop.f32.mrf.mxu0
        %v6304 = vadd.f32 0.0, %v6303
        %6305 = vmatmul.bf16.gmra.mxu0 %v5680
        %v6306 = vpop.f32.mrf.mxu0
        %v6307 = vadd.f32 0.0, %v6306
        %v6308 = vpop.f32.mrf.mxu0
        %v6309 = vadd.f32 0.0, %v6308
        %6310 = vmatmul.bf16.gmra.mxu0 %v6282
        %v6311 = vpop.f32.mrf.mxu0
        %v6312 = vadd.f32 0.0, %v6311
        %v6313 = vpop.f32.mrf.mxu0
        %v6314 = vadd.f32 0.0, %v6313
        %6315 = vdwg.mxu0
        %v6316 = vadd.f32 %v6257, %v6297
        %v6317 = vadd.f32 %v6258, %v6299
        %v6318 = vadd.f32 %v6259, %v6302
        %v6319 = vadd.f32 %v6260, %v6304
        %v6320 = vadd.f32 %v6261, %v6307
        %v6321 = vadd.f32 %v6262, %v6309
        %v6322 = vadd.f32 %v6263, %v6312
        %v6323 = vadd.f32 %v6264, %v6314
        %v6324 = vrot.slane %v5053, 2
        %v6325 = vrot.slane %v5054, 2
        %v6326 = vsel %vm1062, %v6324, %v6325
        %v6328 = vpack.c.bf16 %v6326, %v6043
        %v6332 = vunpack.c.l.b16 %v5108
        %v6333 = vunpack.c.l.b16 %v5109
        %v6334 = vunpack.c.l.b16 %v5110
        %v6335 = vpack.c.b16 %v6333, %v6332
        %v6336 = vpack.c.b16 %v6334, %v6334
        %v6339 = vsel %vm4671, %v6328, 0
        %v6342 = vsel %vm5209, %v6336, 0
        %6344 = vmatpush.bf16.msra.mxu0 0
        %6345 = vmatpush.bf16.msra.mxu0 0
        %6346 = vmatpush.bf16.msra.mxu0 0
        %6347 = vmatpush.bf16.msra.mxu0 0
        %6348 = vmatpush.bf16.msra.mxu0 0
        %6349 = vmatpush.bf16.msra.mxu0 0
        %6350 = vmatpush.bf16.msra.mxu0 %v6342
        %6351 = vmatpush.bf16.msra.mxu0 %v6335
        %6352 = vmatmul.bf16.gmra.mxu0 %v5743
        %v6353 = vpop.f32.mrf.mxu0
        %v6354 = vadd.f32 0.0, %v6353
        %v6355 = vpop.f32.mrf.mxu0
        %v6356 = vadd.f32 0.0, %v6355
        %6357 = vmatmul.bf16.gmra.mxu0 %v5746
        %v6358 = vpop.f32.mrf.mxu0
        %v6359 = vadd.f32 0.0, %v6358
        %v6360 = vpop.f32.mrf.mxu0
        %v6361 = vadd.f32 0.0, %v6360
        %6362 = vmatmul.bf16.gmra.mxu0 %v5749
        %v6363 = vpop.f32.mrf.mxu0
        %v6364 = vadd.f32 0.0, %v6363
        %v6365 = vpop.f32.mrf.mxu0
        %v6366 = vadd.f32 0.0, %v6365
        %6367 = vmatmul.bf16.gmra.mxu0 %v6339
        %v6368 = vpop.f32.mrf.mxu0
        %v6369 = vadd.f32 0.0, %v6368
        %v6370 = vpop.f32.mrf.mxu0
        %v6371 = vadd.f32 0.0, %v6370
        %6372 = vdwg.mxu0
        %v6373 = vadd.f32 %v6316, %v6354
        %v6374 = vadd.f32 %v6317, %v6356
        %v6375 = vadd.f32 %v6318, %v6359
        %v6376 = vadd.f32 %v6319, %v6361
        %v6377 = vadd.f32 %v6320, %v6364
        %v6378 = vadd.f32 %v6321, %v6366
        %v6379 = vadd.f32 %v6322, %v6369
        %v6380 = vadd.f32 %v6323, %v6371
        %v6381 = vrot.slane %v5053, 3
        %v6382 = vrot.slane %v5054, 3
        %v6383 = vsel %vm1338, %v6381, %v6382
        %v6385 = vpack.c.bf16 %v6383, %v6100
        %v6389 = vunpack.c.l.b16 %v5111
        %v6390 = vunpack.c.l.b16 %v5112
        %v6391 = vunpack.c.l.b16 %v5113
        %v6392 = vpack.c.b16 %v6390, %v6389
        %v6393 = vpack.c.b16 %v6391, %v6391
        %v6396 = vsel %vm4671, %v6385, 0
        %v6399 = vsel %vm5209, %v6393, 0
        %6401 = vmatpush.bf16.msra.mxu0 0
        %6402 = vmatpush.bf16.msra.mxu0 0
        %6403 = vmatpush.bf16.msra.mxu0 0
        %6404 = vmatpush.bf16.msra.mxu0 0
        %6405 = vmatpush.bf16.msra.mxu0 0
        %6406 = vmatpush.bf16.msra.mxu0 0
        %6407 = vmatpush.bf16.msra.mxu0 %v6399
        %6408 = vmatpush.bf16.msra.mxu0 %v6392
        %6409 = vmatmul.bf16.gmra.mxu0 %v5812
        %v6410 = vpop.f32.mrf.mxu0
        %v6411 = vadd.f32 0.0, %v6410
        %v6412 = vpop.f32.mrf.mxu0
        %v6413 = vadd.f32 0.0, %v6412
        %6414 = vmatmul.bf16.gmra.mxu0 %v5815
        %v6415 = vpop.f32.mrf.mxu0
        %v6416 = vadd.f32 0.0, %v6415
        %v6417 = vpop.f32.mrf.mxu0
        %v6418 = vadd.f32 0.0, %v6417
        %6419 = vmatmul.bf16.gmra.mxu0 %v5818
        %v6420 = vpop.f32.mrf.mxu0
        %v6421 = vadd.f32 0.0, %v6420
        %v6422 = vpop.f32.mrf.mxu0
        %v6423 = vadd.f32 0.0, %v6422
        %6424 = vmatmul.bf16.gmra.mxu0 %v6396
        %v6425 = vpop.f32.mrf.mxu0
        %v6426 = vadd.f32 0.0, %v6425
        %v6427 = vpop.f32.mrf.mxu0
        %v6428 = vadd.f32 0.0, %v6427
        %6429 = vdwg.mxu0
        %v6430 = vadd.f32 %v6373, %v6411
        %v6431 = vadd.f32 %v6374, %v6413
        %v6432 = vadd.f32 %v6375, %v6416
        %v6433 = vadd.f32 %v6376, %v6418
        %v6434 = vadd.f32 %v6377, %v6421
        %v6435 = vadd.f32 %v6378, %v6423
        %v6436 = vadd.f32 %v6379, %v6426
        %v6437 = vadd.f32 %v6380, %v6428
        %v6438 = vrot.slane %v5053, 4
        %v6439 = vrot.slane %v5054, 4
        %v6440 = vsel %vm1614, %v6438, %v6439
        %v6442 = vpack.c.bf16 %v6440, %v6157
        %v6446 = vunpack.c.l.b16 %v5114
        %v6447 = vunpack.c.l.b16 %v5115
        %v6448 = vunpack.c.l.b16 %v5116
        %v6449 = vpack.c.b16 %v6447, %v6446
        %v6450 = vpack.c.b16 %v6448, %v6448
        %v6453 = vsel %vm4671, %v6442, 0
        %v6456 = vsel %vm5209, %v6450, 0
        %6458 = vmatpush.bf16.msra.mxu0 0
        %6459 = vmatpush.bf16.msra.mxu0 0
        %6460 = vmatpush.bf16.msra.mxu0 0
        %6461 = vmatpush.bf16.msra.mxu0 0
        %6462 = vmatpush.bf16.msra.mxu0 0
        %6463 = vmatpush.bf16.msra.mxu0 0
        %6464 = vmatpush.bf16.msra.mxu0 %v6456
        %6465 = vmatpush.bf16.msra.mxu0 %v6449
        %6466 = vmatmul.bf16.gmra.mxu0 %v5881
        %v6467 = vpop.f32.mrf.mxu0
        %v6468 = vadd.f32 0.0, %v6467
        %v6469 = vpop.f32.mrf.mxu0
        %v6470 = vadd.f32 0.0, %v6469
        %6471 = vmatmul.bf16.gmra.mxu0 %v5884
        %v6472 = vpop.f32.mrf.mxu0
        %v6473 = vadd.f32 0.0, %v6472
        %v6474 = vpop.f32.mrf.mxu0
        %v6475 = vadd.f32 0.0, %v6474
        %6476 = vmatmul.bf16.gmra.mxu0 %v5887
        %v6477 = vpop.f32.mrf.mxu0
        %v6478 = vadd.f32 0.0, %v6477
        %v6479 = vpop.f32.mrf.mxu0
        %v6480 = vadd.f32 0.0, %v6479
        %6481 = vmatmul.bf16.gmra.mxu0 %v6453
        %v6482 = vpop.f32.mrf.mxu0
        %v6483 = vadd.f32 0.0, %v6482
        %v6484 = vpop.f32.mrf.mxu0
        %v6485 = vadd.f32 0.0, %v6484
        %6486 = vdwg.mxu0
        %v6487 = vadd.f32 %v6430, %v6468
        %v6488 = vadd.f32 %v6431, %v6470
        %v6489 = vadd.f32 %v6432, %v6473
        %v6490 = vadd.f32 %v6433, %v6475
        %v6491 = vadd.f32 %v6434, %v6478
        %v6492 = vadd.f32 %v6435, %v6480
        %v6493 = vadd.f32 %v6436, %v6483
        %v6494 = vadd.f32 %v6437, %v6485
        %v6495 = vpack.c.bf16 %v5055, %v5053
        %v6499 = vunpack.c.l.b16 %v5117
        %v6500 = vunpack.c.l.b16 %v5118
        %v6501 = vunpack.c.l.b16 %v5119
        %v6502 = vpack.c.b16 %v6500, %v6499
        %v6503 = vpack.c.b16 %v6501, %v6501
        %v6506 = vsel %vm4671, %v6495, 0
        %v6509 = vsel %vm5209, %v6503, 0
        %6511 = vmatpush.bf16.msra.mxu0 0
        %6512 = vmatpush.bf16.msra.mxu0 0
        %6513 = vmatpush.bf16.msra.mxu0 0
        %6514 = vmatpush.bf16.msra.mxu0 0
        %6515 = vmatpush.bf16.msra.mxu0 0
        %6516 = vmatpush.bf16.msra.mxu0 0
        %6517 = vmatpush.bf16.msra.mxu0 %v6509
        %6518 = vmatpush.bf16.msra.mxu0 %v6502
        %6519 = vmatmul.bf16.gmra.mxu0 %v5258
        %v6520 = vpop.f32.mrf.mxu0
        %v6521 = vadd.f32 0.0, %v6520
        %v6522 = vpop.f32.mrf.mxu0
        %v6523 = vadd.f32 0.0, %v6522
        %6524 = vmatmul.bf16.gmra.mxu0 %v5261
        %v6525 = vpop.f32.mrf.mxu0
        %v6526 = vadd.f32 0.0, %v6525
        %v6527 = vpop.f32.mrf.mxu0
        %v6528 = vadd.f32 0.0, %v6527
        %6529 = vmatmul.bf16.gmra.mxu0 %v5940
        %v6530 = vpop.f32.mrf.mxu0
        %v6531 = vadd.f32 0.0, %v6530
        %v6532 = vpop.f32.mrf.mxu0
        %v6533 = vadd.f32 0.0, %v6532
        %6534 = vmatmul.bf16.gmra.mxu0 %v6506
        %v6535 = vpop.f32.mrf.mxu0
        %v6536 = vadd.f32 0.0, %v6535
        %v6537 = vpop.f32.mrf.mxu0
        %v6538 = vadd.f32 0.0, %v6537
        %6539 = vdwg.mxu0
        %v6540 = vadd.f32 %v6487, %v6521
        %v6541 = vadd.f32 %v6488, %v6523
        %v6542 = vadd.f32 %v6489, %v6526
        %v6543 = vadd.f32 %v6490, %v6528
        %v6544 = vadd.f32 %v6491, %v6531
        %v6545 = vadd.f32 %v6492, %v6533
        %v6546 = vadd.f32 %v6493, %v6536
        %v6547 = vadd.f32 %v6494, %v6538
        %v6550 = vrot.slane %v5055, 1
        %v6551 = vrot.slane %v5056, 1
        %v6552 = vsel %vm786, %v6550, %v6551
        %v6554 = vpack.c.bf16 %v6552, %v6269
        %v6558 = vunpack.c.l.b16 %v5120
        %v6559 = vunpack.c.l.b16 %v5121
        %v6560 = vunpack.c.l.b16 %v5122
        %v6561 = vpack.c.b16 %v6559, %v6558
        %v6562 = vpack.c.b16 %v6560, %v6560
        %v6565 = vsel %vm4671, %v6554, 0
        %v6568 = vsel %vm5209, %v6562, 0
        %6570 = vmatpush.bf16.msra.mxu0 0
        %6571 = vmatpush.bf16.msra.mxu0 0
        %6572 = vmatpush.bf16.msra.mxu0 0
        %6573 = vmatpush.bf16.msra.mxu0 0
        %6574 = vmatpush.bf16.msra.mxu0 0
        %6575 = vmatpush.bf16.msra.mxu0 0
        %6576 = vmatpush.bf16.msra.mxu0 %v6568
        %6577 = vmatpush.bf16.msra.mxu0 %v6561
        %6578 = vmatmul.bf16.gmra.mxu0 %v5204
        %v6579 = vpop.f32.mrf.mxu0
        %v6580 = vadd.f32 0.0, %v6579
        %v6581 = vpop.f32.mrf.mxu0
        %v6582 = vadd.f32 0.0, %v6581
        %6583 = vmatmul.bf16.gmra.mxu0 %v5207
        %v6584 = vpop.f32.mrf.mxu0
        %v6585 = vadd.f32 0.0, %v6584
        %v6586 = vpop.f32.mrf.mxu0
        %v6587 = vadd.f32 0.0, %v6586
        %6588 = vmatmul.bf16.gmra.mxu0 %v5999
        %v6589 = vpop.f32.mrf.mxu0
        %v6590 = vadd.f32 0.0, %v6589
        %v6591 = vpop.f32.mrf.mxu0
        %v6592 = vadd.f32 0.0, %v6591
        %6593 = vmatmul.bf16.gmra.mxu0 %v6565
        %v6594 = vpop.f32.mrf.mxu0
        %v6595 = vadd.f32 0.0, %v6594
        %v6596 = vpop.f32.mrf.mxu0
        %v6597 = vadd.f32 0.0, %v6596
        %6598 = vdwg.mxu0
        %v6599 = vadd.f32 %v6540, %v6580
        %v6600 = vadd.f32 %v6541, %v6582
        %v6601 = vadd.f32 %v6542, %v6585
        %v6602 = vadd.f32 %v6543, %v6587
        %v6603 = vadd.f32 %v6544, %v6590
        %v6604 = vadd.f32 %v6545, %v6592
        %v6605 = vadd.f32 %v6546, %v6595
        %v6606 = vadd.f32 %v6547, %v6597
        %v6607 = vrot.slane %v5055, 2
        %v6608 = vrot.slane %v5056, 2
        %v6609 = vsel %vm1062, %v6607, %v6608
        %v6611 = vpack.c.bf16 %v6609, %v6326
        %v6615 = vunpack.c.l.b16 %v5123
        %v6616 = vunpack.c.l.b16 %v5124
        %v6617 = vunpack.c.l.b16 %v5125
        %v6618 = vpack.c.b16 %v6616, %v6615
        %v6619 = vpack.c.b16 %v6617, %v6617
        %v6622 = vsel %vm4671, %v6611, 0
        %v6625 = vsel %vm5209, %v6619, 0
        %6627 = vmatpush.bf16.msra.mxu0 0
        %6628 = vmatpush.bf16.msra.mxu0 0
        %6629 = vmatpush.bf16.msra.mxu0 0
        %6630 = vmatpush.bf16.msra.mxu0 0
        %6631 = vmatpush.bf16.msra.mxu0 0
        %6632 = vmatpush.bf16.msra.mxu0 0
        %6633 = vmatpush.bf16.msra.mxu0 %v6625
        %6634 = vmatpush.bf16.msra.mxu0 %v6618
        %6635 = vmatmul.bf16.gmra.mxu0 %v5347
        %v6636 = vpop.f32.mrf.mxu0
        %v6637 = vadd.f32 0.0, %v6636
        %v6638 = vpop.f32.mrf.mxu0
        %v6639 = vadd.f32 0.0, %v6638
        %6640 = vmatmul.bf16.gmra.mxu0 %v5350
        %v6641 = vpop.f32.mrf.mxu0
        %v6642 = vadd.f32 0.0, %v6641
        %v6643 = vpop.f32.mrf.mxu0
        %v6644 = vadd.f32 0.0, %v6643
        %6645 = vmatmul.bf16.gmra.mxu0 %v6056
        %v6646 = vpop.f32.mrf.mxu0
        %v6647 = vadd.f32 0.0, %v6646
        %v6648 = vpop.f32.mrf.mxu0
        %v6649 = vadd.f32 0.0, %v6648
        %6650 = vmatmul.bf16.gmra.mxu0 %v6622
        %v6651 = vpop.f32.mrf.mxu0
        %v6652 = vadd.f32 0.0, %v6651
        %v6653 = vpop.f32.mrf.mxu0
        %v6654 = vadd.f32 0.0, %v6653
        %6655 = vdwg.mxu0
        %v6656 = vadd.f32 %v6599, %v6637
        %v6657 = vadd.f32 %v6600, %v6639
        %v6658 = vadd.f32 %v6601, %v6642
        %v6659 = vadd.f32 %v6602, %v6644
        %v6660 = vadd.f32 %v6603, %v6647
        %v6661 = vadd.f32 %v6604, %v6649
        %v6662 = vadd.f32 %v6605, %v6652
        %v6663 = vadd.f32 %v6606, %v6654
        %v6664 = vrot.slane %v5055, 3
        %v6665 = vrot.slane %v5056, 3
        %v6666 = vsel %vm1338, %v6664, %v6665
        %v6668 = vpack.c.bf16 %v6666, %v6383
        %v6672 = vunpack.c.l.b16 %v5126
        %v6673 = vunpack.c.l.b16 %v5127
        %v6674 = vunpack.c.l.b16 %v5128
        %v6675 = vpack.c.b16 %v6673, %v6672
        %v6676 = vpack.c.b16 %v6674, %v6674
        %v6679 = vsel %vm4671, %v6668, 0
        %v6682 = vsel %vm5209, %v6676, 0
        %6684 = vmatpush.bf16.msra.mxu0 0
        %6685 = vmatpush.bf16.msra.mxu0 0
        %6686 = vmatpush.bf16.msra.mxu0 0
        %6687 = vmatpush.bf16.msra.mxu0 0
        %6688 = vmatpush.bf16.msra.mxu0 0
        %6689 = vmatpush.bf16.msra.mxu0 0
        %6690 = vmatpush.bf16.msra.mxu0 %v6682
        %6691 = vmatpush.bf16.msra.mxu0 %v6675
        %6692 = vmatmul.bf16.gmra.mxu0 %v5444
        %v6693 = vpop.f32.mrf.mxu0
        %v6694 = vadd.f32 0.0, %v6693
        %v6695 = vpop.f32.mrf.mxu0
        %v6696 = vadd.f32 0.0, %v6695
        %6697 = vmatmul.bf16.gmra.mxu0 %v5447
        %v6698 = vpop.f32.mrf.mxu0
        %v6699 = vadd.f32 0.0, %v6698
        %v6700 = vpop.f32.mrf.mxu0
        %v6701 = vadd.f32 0.0, %v6700
        %6702 = vmatmul.bf16.gmra.mxu0 %v6113
        %v6703 = vpop.f32.mrf.mxu0
        %v6704 = vadd.f32 0.0, %v6703
        %v6705 = vpop.f32.mrf.mxu0
        %v6706 = vadd.f32 0.0, %v6705
        %6707 = vmatmul.bf16.gmra.mxu0 %v6679
        %v6708 = vpop.f32.mrf.mxu0
        %v6709 = vadd.f32 0.0, %v6708
        %v6710 = vpop.f32.mrf.mxu0
        %v6711 = vadd.f32 0.0, %v6710
        %6712 = vdwg.mxu0
        %v6713 = vadd.f32 %v6656, %v6694
        %v6714 = vadd.f32 %v6657, %v6696
        %v6715 = vadd.f32 %v6658, %v6699
        %v6716 = vadd.f32 %v6659, %v6701
        %v6717 = vadd.f32 %v6660, %v6704
        %v6718 = vadd.f32 %v6661, %v6706
        %v6719 = vadd.f32 %v6662, %v6709
        %v6720 = vadd.f32 %v6663, %v6711
        %v6721 = vrot.slane %v5055, 4
        %v6722 = vrot.slane %v5056, 4
        %v6723 = vsel %vm1614, %v6721, %v6722
        %v6725 = vpack.c.bf16 %v6723, %v6440
        %v6729 = vunpack.c.l.b16 %v5129
        %v6730 = vunpack.c.l.b16 %v5130
        %v6731 = vunpack.c.l.b16 %v5131
        %v6732 = vpack.c.b16 %v6730, %v6729
        %v6733 = vpack.c.b16 %v6731, %v6731
        %v6736 = vsel %vm4671, %v6725, 0
        %v6739 = vsel %vm5209, %v6733, 0
        %6741 = vmatpush.bf16.msra.mxu0 0
        %6742 = vmatpush.bf16.msra.mxu0 0
        %6743 = vmatpush.bf16.msra.mxu0 0
        %6744 = vmatpush.bf16.msra.mxu0 0
        %6745 = vmatpush.bf16.msra.mxu0 0
        %6746 = vmatpush.bf16.msra.mxu0 0
        %6747 = vmatpush.bf16.msra.mxu0 %v6739
        %6748 = vmatpush.bf16.msra.mxu0 %v6732
        %6749 = vmatmul.bf16.gmra.mxu0 %v5541
        %v6750 = vpop.f32.mrf.mxu0
        %v6751 = vadd.f32 0.0, %v6750
        %v6752 = vpop.f32.mrf.mxu0
        %v6753 = vadd.f32 0.0, %v6752
        %6754 = vmatmul.bf16.gmra.mxu0 %v5544
        %v6755 = vpop.f32.mrf.mxu0
        %v6756 = vadd.f32 0.0, %v6755
        %v6757 = vpop.f32.mrf.mxu0
        %v6758 = vadd.f32 0.0, %v6757
        %6759 = vmatmul.bf16.gmra.mxu0 %v6170
        %v6760 = vpop.f32.mrf.mxu0
        %v6761 = vadd.f32 0.0, %v6760
        %v6762 = vpop.f32.mrf.mxu0
        %v6763 = vadd.f32 0.0, %v6762
        %6764 = vmatmul.bf16.gmra.mxu0 %v6736
        %v6765 = vpop.f32.mrf.mxu0
        %v6766 = vadd.f32 0.0, %v6765
        %v6767 = vpop.f32.mrf.mxu0
        %v6768 = vadd.f32 0.0, %v6767
        %6769 = vdwg.mxu0
        %v6770 = vadd.f32 %v6713, %v6751
        %v6771 = vadd.f32 %v6714, %v6753
        %v6772 = vadd.f32 %v6715, %v6756
        %v6773 = vadd.f32 %v6716, %v6758
        %v6774 = vadd.f32 %v6717, %v6761
        %v6775 = vadd.f32 %v6718, %v6763
        %v6776 = vadd.f32 %v6719, %v6766
        %v6777 = vadd.f32 %v6720, %v6768
        %v6778 = vld [vmem:[%s4] sm:$0x1]
        %v6780 = vperm.slane %v6778, 0
        %v6782 = vadd.f32 %v6770, %v6780
        %v6783 = vadd.f32 %v6771, %v6780
        %v6784 = vadd.f32 %v6772, %v6780
        %v6785 = vadd.f32 %v6773, %v6780
        %v6786 = vadd.f32 %v6774, %v6780
        %v6787 = vadd.f32 %v6775, %v6780
        %v6788 = vadd.f32 %v6776, %v6780
        %v6789 = vadd.f32 %v6777, %v6780
        %v6790 = vmax.f32 %v6782, 0.0
        %v6791 = vmax.f32 %v6783, 0.0
        %v6792 = vmax.f32 %v6784, 0.0
        %v6793 = vmax.f32 %v6785, 0.0
        %v6794 = vmax.f32 %v6786, 0.0
        %v6795 = vmax.f32 %v6787, 0.0
        %v6796 = vmax.f32 %v6788, 0.0
        %v6797 = vmax.f32 %v6789, 0.0
        %v6806 = vrot.slane %v6790, 2
        %v6807 = vrot.slane %v6790, 4
        %v6808 = vrot.slane %v6790, 6
        %v6809 = vrot.slane %v6791, 2
        %v6810 = vrot.slane %v6791, 4
        %v6811 = vrot.slane %v6791, 6
        %v6812 = vrot.slane %v6792, 2
        %v6813 = vrot.slane %v6792, 4
        %v6814 = vrot.slane %v6792, 6
        %v6815 = vrot.slane %v6793, 2
        %v6816 = vrot.slane %v6793, 4
        %v6817 = vrot.slane %v6793, 6
        %v6818 = vrot.slane %v6794, 2
        %v6819 = vrot.slane %v6794, 4
        %v6820 = vrot.slane %v6794, 6
        %v6821 = vrot.slane %v6795, 2
        %v6822 = vrot.slane %v6795, 4
        %v6823 = vrot.slane %v6795, 6
        %v6824 = vrot.slane %v6796, 2
        %v6825 = vrot.slane %v6796, 4
        %v6826 = vrot.slane %v6796, 6
        %v6827 = vrot.slane %v6797, 2
        %v6828 = vrot.slane %v6797, 4
        %v6829 = vrot.slane %v6797, 6
        %vm6854 = vcmask 402432
        %v6855 = vsel %vm6854, %v6790, -inf
        %v6856 = vrot.slane %v6855, 4
        %v6857 = vmax.f32 %v6855, %v6856
        %v6858 = vrot.slane %v6857, 2
        %v6859 = vmax.f32 %v6857, %v6858
        %v6860 = vrot.slane %v6859, 1
        %v6861 = vmax.f32 %v6859, %v6860
        %v6862 = vsel %vm6854, %v6806, -inf
        %v6863 = vrot.slane %v6862, 4
        %v6864 = vmax.f32 %v6862, %v6863
        %v6865 = vrot.slane %v6864, 2
        %v6866 = vmax.f32 %v6864, %v6865
        %v6867 = vrot.slane %v6866, 1
        %v6868 = vmax.f32 %v6866, %v6867
        %v6869 = vsel %vm6854, %v6807, -inf
        %v6870 = vrot.slane %v6869, 4
        %v6871 = vmax.f32 %v6869, %v6870
        %v6872 = vrot.slane %v6871, 2
        %v6873 = vmax.f32 %v6871, %v6872
        %v6874 = vrot.slane %v6873, 1
        %v6875 = vmax.f32 %v6873, %v6874
        %v6876 = vsel %vm6854, %v6808, -inf
        %v6877 = vrot.slane %v6876, 4
        %v6878 = vmax.f32 %v6876, %v6877
        %v6879 = vrot.slane %v6878, 2
        %v6880 = vmax.f32 %v6878, %v6879
        %v6881 = vrot.slane %v6880, 1
        %v6882 = vmax.f32 %v6880, %v6881
        %v6883 = vsel %vm6854, %v6791, -inf
        %v6884 = vrot.slane %v6883, 4
        %v6885 = vmax.f32 %v6883, %v6884
        %v6886 = vrot.slane %v6885, 2
        %v6887 = vmax.f32 %v6885, %v6886
        %v6888 = vrot.slane %v6887, 1
        %v6889 = vmax.f32 %v6887, %v6888
        %v6890 = vsel %vm6854, %v6809, -inf
        %v6891 = vrot.slane %v6890, 4
        %v6892 = vmax.f32 %v6890, %v6891
        %v6893 = vrot.slane %v6892, 2
        %v6894 = vmax.f32 %v6892, %v6893
        %v6895 = vrot.slane %v6894, 1
        %v6896 = vmax.f32 %v6894, %v6895
        %v6897 = vsel %vm6854, %v6810, -inf
        %v6898 = vrot.slane %v6897, 4
        %v6899 = vmax.f32 %v6897, %v6898
        %v6900 = vrot.slane %v6899, 2
        %v6901 = vmax.f32 %v6899, %v6900
        %v6902 = vrot.slane %v6901, 1
        %v6903 = vmax.f32 %v6901, %v6902
        %v6904 = vsel %vm6854, %v6811, -inf
        %v6905 = vrot.slane %v6904, 4
        %v6906 = vmax.f32 %v6904, %v6905
        %v6907 = vrot.slane %v6906, 2
        %v6908 = vmax.f32 %v6906, %v6907
        %v6909 = vrot.slane %v6908, 1
        %v6910 = vmax.f32 %v6908, %v6909
        %v6911 = vsel %vm6854, %v6792, -inf
        %v6912 = vrot.slane %v6911, 4
        %v6913 = vmax.f32 %v6911, %v6912
        %v6914 = vrot.slane %v6913, 2
        %v6915 = vmax.f32 %v6913, %v6914
        %v6916 = vrot.slane %v6915, 1
        %v6917 = vmax.f32 %v6915, %v6916
        %v6918 = vsel %vm6854, %v6812, -inf
        %v6919 = vrot.slane %v6918, 4
        %v6920 = vmax.f32 %v6918, %v6919
        %v6921 = vrot.slane %v6920, 2
        %v6922 = vmax.f32 %v6920, %v6921
        %v6923 = vrot.slane %v6922, 1
        %v6924 = vmax.f32 %v6922, %v6923
        %v6925 = vsel %vm6854, %v6813, -inf
        %v6926 = vrot.slane %v6925, 4
        %v6927 = vmax.f32 %v6925, %v6926
        %v6928 = vrot.slane %v6927, 2
        %v6929 = vmax.f32 %v6927, %v6928
        %v6930 = vrot.slane %v6929, 1
        %v6931 = vmax.f32 %v6929, %v6930
        %v6932 = vsel %vm6854, %v6814, -inf
        %v6933 = vrot.slane %v6932, 4
        %v6934 = vmax.f32 %v6932, %v6933
        %v6935 = vrot.slane %v6934, 2
        %v6936 = vmax.f32 %v6934, %v6935
        %v6937 = vrot.slane %v6936, 1
        %v6938 = vmax.f32 %v6936, %v6937
        %v6939 = vsel %vm6854, %v6793, -inf
        %v6940 = vrot.slane %v6939, 4
        %v6941 = vmax.f32 %v6939, %v6940
        %v6942 = vrot.slane %v6941, 2
        %v6943 = vmax.f32 %v6941, %v6942
        %v6944 = vrot.slane %v6943, 1
        %v6945 = vmax.f32 %v6943, %v6944
        %v6946 = vsel %vm6854, %v6815, -inf
        %v6947 = vrot.slane %v6946, 4
        %v6948 = vmax.f32 %v6946, %v6947
        %v6949 = vrot.slane %v6948, 2
        %v6950 = vmax.f32 %v6948, %v6949
        %v6951 = vrot.slane %v6950, 1
        %v6952 = vmax.f32 %v6950, %v6951
        %v6953 = vsel %vm6854, %v6816, -inf
        %v6954 = vrot.slane %v6953, 4
        %v6955 = vmax.f32 %v6953, %v6954
        %v6956 = vrot.slane %v6955, 2
        %v6957 = vmax.f32 %v6955, %v6956
        %v6958 = vrot.slane %v6957, 1
        %v6959 = vmax.f32 %v6957, %v6958
        %v6960 = vsel %vm6854, %v6817, -inf
        %v6961 = vrot.slane %v6960, 4
        %v6962 = vmax.f32 %v6960, %v6961
        %v6963 = vrot.slane %v6962, 2
        %v6964 = vmax.f32 %v6962, %v6963
        %v6965 = vrot.slane %v6964, 1
        %v6966 = vmax.f32 %v6964, %v6965
        %v6967 = vsel %vm6854, %v6794, -inf
        %v6968 = vrot.slane %v6967, 4
        %v6969 = vmax.f32 %v6967, %v6968
        %v6970 = vrot.slane %v6969, 2
        %v6971 = vmax.f32 %v6969, %v6970
        %v6972 = vrot.slane %v6971, 1
        %v6973 = vmax.f32 %v6971, %v6972
        %v6974 = vsel %vm6854, %v6818, -inf
        %v6975 = vrot.slane %v6974, 4
        %v6976 = vmax.f32 %v6974, %v6975
        %v6977 = vrot.slane %v6976, 2
        %v6978 = vmax.f32 %v6976, %v6977
        %v6979 = vrot.slane %v6978, 1
        %v6980 = vmax.f32 %v6978, %v6979
        %v6981 = vsel %vm6854, %v6819, -inf
        %v6982 = vrot.slane %v6981, 4
        %v6983 = vmax.f32 %v6981, %v6982
        %v6984 = vrot.slane %v6983, 2
        %v6985 = vmax.f32 %v6983, %v6984
        %v6986 = vrot.slane %v6985, 1
        %v6987 = vmax.f32 %v6985, %v6986
        %v6988 = vsel %vm6854, %v6820, -inf
        %v6989 = vrot.slane %v6988, 4
        %v6990 = vmax.f32 %v6988, %v6989
        %v6991 = vrot.slane %v6990, 2
        %v6992 = vmax.f32 %v6990, %v6991
        %v6993 = vrot.slane %v6992, 1
        %v6994 = vmax.f32 %v6992, %v6993
        %v6995 = vsel %vm6854, %v6795, -inf
        %v6996 = vrot.slane %v6995, 4
        %v6997 = vmax.f32 %v6995, %v6996
        %v6998 = vrot.slane %v6997, 2
        %v6999 = vmax.f32 %v6997, %v6998
        %v7000 = vrot.slane %v6999, 1
        %v7001 = vmax.f32 %v6999, %v7000
        %v7002 = vsel %vm6854, %v6821, -inf
        %v7003 = vrot.slane %v7002, 4
        %v7004 = vmax.f32 %v7002, %v7003
        %v7005 = vrot.slane %v7004, 2
        %v7006 = vmax.f32 %v7004, %v7005
        %v7007 = vrot.slane %v7006, 1
        %v7008 = vmax.f32 %v7006, %v7007
        %v7009 = vsel %vm6854, %v6822, -inf
        %v7010 = vrot.slane %v7009, 4
        %v7011 = vmax.f32 %v7009, %v7010
        %v7012 = vrot.slane %v7011, 2
        %v7013 = vmax.f32 %v7011, %v7012
        %v7014 = vrot.slane %v7013, 1
        %v7015 = vmax.f32 %v7013, %v7014
        %v7016 = vsel %vm6854, %v6823, -inf
        %v7017 = vrot.slane %v7016, 4
        %v7018 = vmax.f32 %v7016, %v7017
        %v7019 = vrot.slane %v7018, 2
        %v7020 = vmax.f32 %v7018, %v7019
        %v7021 = vrot.slane %v7020, 1
        %v7022 = vmax.f32 %v7020, %v7021
        %v7023 = vsel %vm6854, %v6796, -inf
        %v7024 = vrot.slane %v7023, 4
        %v7025 = vmax.f32 %v7023, %v7024
        %v7026 = vrot.slane %v7025, 2
        %v7027 = vmax.f32 %v7025, %v7026
        %v7028 = vrot.slane %v7027, 1
        %v7029 = vmax.f32 %v7027, %v7028
        %v7030 = vsel %vm6854, %v6824, -inf
        %v7031 = vrot.slane %v7030, 4
        %v7032 = vmax.f32 %v7030, %v7031
        %v7033 = vrot.slane %v7032, 2
        %v7034 = vmax.f32 %v7032, %v7033
        %v7035 = vrot.slane %v7034, 1
        %v7036 = vmax.f32 %v7034, %v7035
        %v7037 = vsel %vm6854, %v6825, -inf
        %v7038 = vrot.slane %v7037, 4
        %v7039 = vmax.f32 %v7037, %v7038
        %v7040 = vrot.slane %v7039, 2
        %v7041 = vmax.f32 %v7039, %v7040
        %v7042 = vrot.slane %v7041, 1
        %v7043 = vmax.f32 %v7041, %v7042
        %v7044 = vsel %vm6854, %v6826, -inf
        %v7045 = vrot.slane %v7044, 4
        %v7046 = vmax.f32 %v7044, %v7045
        %v7047 = vrot.slane %v7046, 2
        %v7048 = vmax.f32 %v7046, %v7047
        %v7049 = vrot.slane %v7048, 1
        %v7050 = vmax.f32 %v7048, %v7049
        %v7051 = vsel %vm6854, %v6797, -inf
        %v7052 = vrot.slane %v7051, 4
        %v7053 = vmax.f32 %v7051, %v7052
        %v7054 = vrot.slane %v7053, 2
        %v7055 = vmax.f32 %v7053, %v7054
        %v7056 = vrot.slane %v7055, 1
        %v7057 = vmax.f32 %v7055, %v7056
        %v7058 = vsel %vm6854, %v6827, -inf
        %v7059 = vrot.slane %v7058, 4
        %v7060 = vmax.f32 %v7058, %v7059
        %v7061 = vrot.slane %v7060, 2
        %v7062 = vmax.f32 %v7060, %v7061
        %v7063 = vrot.slane %v7062, 1
        %v7064 = vmax.f32 %v7062, %v7063
        %v7065 = vsel %vm6854, %v6828, -inf
        %v7066 = vrot.slane %v7065, 4
        %v7067 = vmax.f32 %v7065, %v7066
        %v7068 = vrot.slane %v7067, 2
        %v7069 = vmax.f32 %v7067, %v7068
        %v7070 = vrot.slane %v7069, 1
        %v7071 = vmax.f32 %v7069, %v7070
        %v7072 = vsel %vm6854, %v6829, -inf
        %v7073 = vrot.slane %v7072, 4
        %v7074 = vmax.f32 %v7072, %v7073
        %v7075 = vrot.slane %v7074, 2
        %v7076 = vmax.f32 %v7074, %v7075
        %v7077 = vrot.slane %v7076, 1
        %v7078 = vmax.f32 %v7076, %v7077
        %vm7079 = vcmask 408576
        %v7080 = vsel %vm7079, %v6861, -inf
        %v7081 = vsel %vm7079, %v6889, -inf
        %v7082 = vmax.f32 %v7080, %v7081
        %v7083 = vsel %vm7079, %v6868, -inf
        %v7084 = vsel %vm7079, %v6896, -inf
        %v7085 = vmax.f32 %v7083, %v7084
        %v7086 = vsel %vm7079, %v6875, -inf
        %v7087 = vsel %vm7079, %v6903, -inf
        %v7088 = vmax.f32 %v7086, %v7087
        %v7089 = vsel %vm7079, %v6882, -inf
        %v7090 = vsel %vm7079, %v6910, -inf
        %v7091 = vmax.f32 %v7089, %v7090
        %v7092 = vsel %vm7079, %v6917, -inf
        %v7093 = vsel %vm7079, %v6945, -inf
        %v7094 = vmax.f32 %v7092, %v7093
        %v7095 = vsel %vm7079, %v6924, -inf
        %v7096 = vsel %vm7079, %v6952, -inf
        %v7097 = vmax.f32 %v7095, %v7096
        %v7098 = vsel %vm7079, %v6931, -inf
        %v7099 = vsel %vm7079, %v6959, -inf
        %v7100 = vmax.f32 %v7098, %v7099
        %v7101 = vsel %vm7079, %v6938, -inf
        %v7102 = vsel %vm7079, %v6966, -inf
        %v7103 = vmax.f32 %v7101, %v7102
        %v7104 = vsel %vm7079, %v6973, -inf
        %v7105 = vsel %vm7079, %v7001, -inf
        %v7106 = vmax.f32 %v7104, %v7105
        %v7107 = vsel %vm7079, %v6980, -inf
        %v7108 = vsel %vm7079, %v7008, -inf
        %v7109 = vmax.f32 %v7107, %v7108
        %v7110 = vsel %vm7079, %v6987, -inf
        %v7111 = vsel %vm7079, %v7015, -inf
        %v7112 = vmax.f32 %v7110, %v7111
        %v7113 = vsel %vm7079, %v6994, -inf
        %v7114 = vsel %vm7079, %v7022, -inf
        %v7115 = vmax.f32 %v7113, %v7114
        %v7116 = vsel %vm7079, %v7029, -inf
        %v7117 = vsel %vm7079, %v7057, -inf
        %v7118 = vmax.f32 %v7116, %v7117
        %v7119 = vsel %vm7079, %v7036, -inf
        %v7120 = vsel %vm7079, %v7064, -inf
        %v7121 = vmax.f32 %v7119, %v7120
        %v7122 = vsel %vm7079, %v7043, -inf
        %v7123 = vsel %vm7079, %v7071, -inf
        %v7124 = vmax.f32 %v7122, %v7123
        %v7125 = vsel %vm7079, %v7050, -inf
        %v7126 = vsel %vm7079, %v7078, -inf
        %v7127 = vmax.f32 %v7125, %v7126
        %v7128 = vld [vmem:[%s5] sm:$0xff]
        %v7129 = vld [vmem:[%s5 + $0x8] sm:$0xff]
        %v7130 = vld [vmem:[%s5 + $0x10] sm:$0xff]
        %v7131 = vld [vmem:[%s5 + $0x18] sm:$0xff]
        %v7132 = vld [vmem:[%s5 + $0x20] sm:$0xff]
        %v7133 = vld [vmem:[%s5 + $0x28] sm:$0xff]
        %v7134 = vld [vmem:[%s5 + $0x30] sm:$0x11]
        %v7135 = vld [vmem:[%s5 + $0x38] sm:$0xff]
        %v7136 = vld [vmem:[%s5 + $0x40] sm:$0xff]
        %v7137 = vld [vmem:[%s5 + $0x48] sm:$0xff]
        %v7138 = vld [vmem:[%s5 + $0x50] sm:$0xff]
        %v7139 = vld [vmem:[%s5 + $0x58] sm:$0xff]
        %v7140 = vld [vmem:[%s5 + $0x60] sm:$0xff]
        %v7141 = vld [vmem:[%s5 + $0x68] sm:$0x11]
        %v7142 = vld [vmem:[%s5 + $0x70] sm:$0xff]
        %v7143 = vld [vmem:[%s5 + $0x78] sm:$0xff]
        %v7144 = vld [vmem:[%s5 + $0x80] sm:$0xff]
        %v7145 = vld [vmem:[%s5 + $0x88] sm:$0xff]
        %v7146 = vld [vmem:[%s5 + $0x90] sm:$0xff]
        %v7147 = vld [vmem:[%s5 + $0x98] sm:$0xff]
        %v7148 = vld [vmem:[%s5 + $0xa0] sm:$0x11]
        %v7149 = vld [vmem:[%s5 + $0xa8] sm:$0xff]
        %v7150 = vld [vmem:[%s5 + $0xb0] sm:$0xff]
        %v7151 = vld [vmem:[%s5 + $0xb8] sm:$0xff]
        %v7152 = vld [vmem:[%s5 + $0xc0] sm:$0xff]
        %v7153 = vld [vmem:[%s5 + $0xc8] sm:$0xff]
        %v7154 = vld [vmem:[%s5 + $0xd0] sm:$0xff]
        %v7155 = vld [vmem:[%s5 + $0xd8] sm:$0x11]
        %v7156 = vld [vmem:[%s5 + $0xe0] sm:$0xff]
        %v7157 = vld [vmem:[%s5 + $0xe8] sm:$0xff]
        %v7158 = vld [vmem:[%s5 + $0xf0] sm:$0xff]
        %v7159 = vld [vmem:[%s5 + $0xf8] sm:$0xff]
        %v7160 = vld [vmem:[%s5 + $0x100] sm:$0xff]
        %v7161 = vld [vmem:[%s5 + $0x108] sm:$0xff]
        %v7162 = vld [vmem:[%s5 + $0x110] sm:$0x11]
        %v7163 = vld [vmem:[%s5 + $0x118] sm:$0xff]
        %v7164 = vld [vmem:[%s5 + $0x120] sm:$0xff]
        %v7165 = vld [vmem:[%s5 + $0x128] sm:$0xff]
        %v7166 = vld [vmem:[%s5 + $0x130] sm:$0xff]
        %v7167 = vld [vmem:[%s5 + $0x138] sm:$0xff]
        %v7168 = vld [vmem:[%s5 + $0x140] sm:$0xff]
        %v7169 = vld [vmem:[%s5 + $0x148] sm:$0x11]
        %v7170 = vld [vmem:[%s5 + $0x150] sm:$0xff]
        %v7171 = vld [vmem:[%s5 + $0x158] sm:$0xff]
        %v7172 = vld [vmem:[%s5 + $0x160] sm:$0xff]
        %v7173 = vld [vmem:[%s5 + $0x168] sm:$0xff]
        %v7174 = vld [vmem:[%s5 + $0x170] sm:$0xff]
        %v7175 = vld [vmem:[%s5 + $0x178] sm:$0xff]
        %v7176 = vld [vmem:[%s5 + $0x180] sm:$0x11]
        %v7177 = vld [vmem:[%s5 + $0x188] sm:$0xff]
        %v7178 = vld [vmem:[%s5 + $0x190] sm:$0xff]
        %v7179 = vld [vmem:[%s5 + $0x198] sm:$0xff]
        %v7180 = vld [vmem:[%s5 + $0x1a0] sm:$0xff]
        %v7181 = vld [vmem:[%s5 + $0x1a8] sm:$0xff]
        %v7182 = vld [vmem:[%s5 + $0x1b0] sm:$0xff]
        %v7183 = vld [vmem:[%s5 + $0x1b8] sm:$0x11]
        %v7184 = vld [vmem:[%s5 + $0x1c0] sm:$0xff]
        %v7185 = vld [vmem:[%s5 + $0x1c8] sm:$0xff]
        %v7186 = vld [vmem:[%s5 + $0x1d0] sm:$0xff]
        %v7187 = vld [vmem:[%s5 + $0x1d8] sm:$0xff]
        %v7188 = vld [vmem:[%s5 + $0x1e0] sm:$0xff]
        %v7189 = vld [vmem:[%s5 + $0x1e8] sm:$0xff]
        %v7190 = vld [vmem:[%s5 + $0x1f0] sm:$0x11]
        %v7191 = vld [vmem:[%s5 + $0x1f8] sm:$0xff]
        %v7192 = vld [vmem:[%s5 + $0x200] sm:$0xff]
        %v7193 = vld [vmem:[%s5 + $0x208] sm:$0xff]
        %v7194 = vld [vmem:[%s5 + $0x210] sm:$0xff]
        %v7195 = vld [vmem:[%s5 + $0x218] sm:$0xff]
        %v7196 = vld [vmem:[%s5 + $0x220] sm:$0xff]
        %v7197 = vld [vmem:[%s5 + $0x228] sm:$0x11]
        %v7198 = vld [vmem:[%s5 + $0x230] sm:$0xff]
        %v7199 = vld [vmem:[%s5 + $0x238] sm:$0xff]
        %v7200 = vld [vmem:[%s5 + $0x240] sm:$0xff]
        %v7201 = vld [vmem:[%s5 + $0x248] sm:$0xff]
        %v7202 = vld [vmem:[%s5 + $0x250] sm:$0xff]
        %v7203 = vld [vmem:[%s5 + $0x258] sm:$0xff]
        %v7204 = vld [vmem:[%s5 + $0x260] sm:$0x11]
        %v7205 = vld [vmem:[%s5 + $0x268] sm:$0xff]
        %v7206 = vld [vmem:[%s5 + $0x270] sm:$0xff]
        %v7207 = vld [vmem:[%s5 + $0x278] sm:$0xff]
        %v7208 = vld [vmem:[%s5 + $0x280] sm:$0xff]
        %v7209 = vld [vmem:[%s5 + $0x288] sm:$0xff]
        %v7210 = vld [vmem:[%s5 + $0x290] sm:$0xff]
        %v7211 = vld [vmem:[%s5 + $0x298] sm:$0x11]
        %v7212 = vld [vmem:[%s5 + $0x2a0] sm:$0xff]
        %v7213 = vld [vmem:[%s5 + $0x2a8] sm:$0xff]
        %v7214 = vld [vmem:[%s5 + $0x2b0] sm:$0xff]
        %v7215 = vld [vmem:[%s5 + $0x2b8] sm:$0xff]
        %v7216 = vld [vmem:[%s5 + $0x2c0] sm:$0xff]
        %v7217 = vld [vmem:[%s5 + $0x2c8] sm:$0xff]
        %v7218 = vld [vmem:[%s5 + $0x2d0] sm:$0x11]
        %v7219 = vld [vmem:[%s5 + $0x2d8] sm:$0xff]
        %v7220 = vld [vmem:[%s5 + $0x2e0] sm:$0xff]
        %v7221 = vld [vmem:[%s5 + $0x2e8] sm:$0xff]
        %v7222 = vld [vmem:[%s5 + $0x2f0] sm:$0xff]
        %v7223 = vld [vmem:[%s5 + $0x2f8] sm:$0xff]
        %v7224 = vld [vmem:[%s5 + $0x300] sm:$0xff]
        %v7225 = vld [vmem:[%s5 + $0x308] sm:$0x11]
        %v7226 = vld [vmem:[%s5 + $0x310] sm:$0xff]
        %v7227 = vld [vmem:[%s5 + $0x318] sm:$0xff]
        %v7228 = vld [vmem:[%s5 + $0x320] sm:$0xff]
        %v7229 = vld [vmem:[%s5 + $0x328] sm:$0xff]
        %v7230 = vld [vmem:[%s5 + $0x330] sm:$0xff]
        %v7231 = vld [vmem:[%s5 + $0x338] sm:$0xff]
        %v7232 = vld [vmem:[%s5 + $0x340] sm:$0x11]
        %v7233 = vld [vmem:[%s5 + $0x348] sm:$0xff]
        %v7234 = vld [vmem:[%s5 + $0x350] sm:$0xff]
        %v7235 = vld [vmem:[%s5 + $0x358] sm:$0xff]
        %v7236 = vld [vmem:[%s5 + $0x360] sm:$0xff]
        %v7237 = vld [vmem:[%s5 + $0x368] sm:$0xff]
        %v7238 = vld [vmem:[%s5 + $0x370] sm:$0xff]
        %v7239 = vld [vmem:[%s5 + $0x378] sm:$0x11]
        %v7240 = vpack.c.bf16 %v7082, %v7082
        %v7241 = vpack.c.bf16 %v7085, %v7085
        %v7249 = vunpack.c.l.b16 %v7135
        %v7250 = vunpack.c.h.b16 %v7135
        %v7251 = vunpack.c.l.b16 %v7136
        %v7252 = vunpack.c.h.b16 %v7136
        %v7253 = vunpack.c.l.b16 %v7137
        %v7254 = vunpack.c.h.b16 %v7137
        %v7255 = vunpack.c.l.b16 %v7138
        %v7256 = vunpack.c.h.b16 %v7138
        %v7257 = vunpack.c.l.b16 %v7139
        %v7258 = vunpack.c.h.b16 %v7139
        %v7259 = vunpack.c.l.b16 %v7140
        %v7260 = vunpack.c.h.b16 %v7140
        %v7261 = vunpack.c.l.b16 %v7141
        %v7262 = vunpack.c.h.b16 %v7141
        %v7263 = vpack.c.b16 %v7251, %v7249
        %v7264 = vpack.c.b16 %v7252, %v7250
        %v7265 = vpack.c.b16 %v7255, %v7253
        %v7266 = vpack.c.b16 %v7256, %v7254
        %v7267 = vpack.c.b16 %v7259, %v7257
        %v7268 = vpack.c.b16 %v7260, %v7258
        %v7269 = vpack.c.b16 %v7261, %v7261
        %v7270 = vpack.c.b16 %v7262, %v7262
        %v7278 = vsel %vm7079, %v7241, 0
        %vm7280 = vcmask 1040384
        %v7282 = vsel %vm7280, %v7269, 0
        %v7285 = vsel %vm7280, %v7270, 0
        %7287 = vmatpush.bf16.msra.mxu0 0
        %7288 = vmatpush.bf16.msra.mxu0 0
        %7289 = vmatpush.bf16.msra.mxu0 0
        %7290 = vmatpush.bf16.msra.mxu0 0
        %7291 = vmatpush.bf16.msra.mxu0 %v7282
        %7292 = vmatpush.bf16.msra.mxu0 %v7267
        %7293 = vmatpush.bf16.msra.mxu0 %v7265
        %7294 = vmatpush.bf16.msra.mxu0 %v7263
        %7295 = vmatmul.bf16.gmra.mxu0 %v7278
        %v7296 = vpop.f32.mrf.mxu0
        %v7297 = vadd.f32 0.0, %v7296
        %v7298 = vpop.f32.mrf.mxu0
        %7299 = vdwg.mxu0
        %7300 = vmatpush.bf16.msra.mxu0 0
        %7301 = vmatpush.bf16.msra.mxu0 0
        %7302 = vmatpush.bf16.msra.mxu0 0
        %7303 = vmatpush.bf16.msra.mxu0 0
        %7304 = vmatpush.bf16.msra.mxu0 %v7285
        %7305 = vmatpush.bf16.msra.mxu0 %v7268
        %7306 = vmatpush.bf16.msra.mxu0 %v7266
        %7307 = vmatpush.bf16.msra.mxu0 %v7264
        %7308 = vmatmul.bf16.gmra.mxu0 %v7278
        %v7309 = vpop.f32.mrf.mxu0
        %v7310 = vadd.f32 0.0, %v7309
        %v7311 = vpop.f32.mrf.mxu0
        %7312 = vdwg.mxu0
        %v7320 = vunpack.c.l.b16 %v7128
        %v7321 = vunpack.c.h.b16 %v7128
        %v7322 = vunpack.c.l.b16 %v7129
        %v7323 = vunpack.c.h.b16 %v7129
        %v7324 = vunpack.c.l.b16 %v7130
        %v7325 = vunpack.c.h.b16 %v7130
        %v7326 = vunpack.c.l.b16 %v7131
        %v7327 = vunpack.c.h.b16 %v7131
        %v7328 = vunpack.c.l.b16 %v7132
        %v7329 = vunpack.c.h.b16 %v7132
        %v7330 = vunpack.c.l.b16 %v7133
        %v7331 = vunpack.c.h.b16 %v7133
        %v7332 = vunpack.c.l.b16 %v7134
        %v7333 = vunpack.c.h.b16 %v7134
        %v7334 = vpack.c.b16 %v7322, %v7320
        %v7335 = vpack.c.b16 %v7323, %v7321
        %v7336 = vpack.c.b16 %v7326, %v7324
        %v7337 = vpack.c.b16 %v7327, %v7325
        %v7338 = vpack.c.b16 %v7330, %v7328
        %v7339 = vpack.c.b16 %v7331, %v7329
        %v7340 = vpack.c.b16 %v7332, %v7332
        %v7341 = vpack.c.b16 %v7333, %v7333
        %v7349 = vsel %vm7079, %v7240, 0
        %v7352 = vsel %vm7280, %v7340, 0
        %v7355 = vsel %vm7280, %v7341, 0
        %7357 = vmatpush.bf16.msra.mxu0 0
        %7358 = vmatpush.bf16.msra.mxu0 0
        %7359 = vmatpush.bf16.msra.mxu0 0
        %7360 = vmatpush.bf16.msra.mxu0 0
        %7361 = vmatpush.bf16.msra.mxu0 %v7352
        %7362 = vmatpush.bf16.msra.mxu0 %v7338
        %7363 = vmatpush.bf16.msra.mxu0 %v7336
        %7364 = vmatpush.bf16.msra.mxu0 %v7334
        %7365 = vmatmul.bf16.gmra.mxu0 %v7349
        %v7366 = vpop.f32.mrf.mxu0
        %v7367 = vadd.f32 %v7297, %v7366
        %v7368 = vpop.f32.mrf.mxu0
        %7369 = vdwg.mxu0
        %7370 = vmatpush.bf16.msra.mxu0 0
        %7371 = vmatpush.bf16.msra.mxu0 0
        %7372 = vmatpush.bf16.msra.mxu0 0
        %7373 = vmatpush.bf16.msra.mxu0 0
        %7374 = vmatpush.bf16.msra.mxu0 %v7355
        %7375 = vmatpush.bf16.msra.mxu0 %v7339
        %7376 = vmatpush.bf16.msra.mxu0 %v7337
        %7377 = vmatpush.bf16.msra.mxu0 %v7335
        %7378 = vmatmul.bf16.gmra.mxu0 %v7349
        %v7379 = vpop.f32.mrf.mxu0
        %v7380 = vadd.f32 %v7310, %v7379
        %v7381 = vpop.f32.mrf.mxu0
        %7382 = vdwg.mxu0
        %v7383 = vpack.c.bf16 %v7088, %v7088
        %v7391 = vunpack.c.l.b16 %v7142
        %v7392 = vunpack.c.h.b16 %v7142
        %v7393 = vunpack.c.l.b16 %v7143
        %v7394 = vunpack.c.h.b16 %v7143
        %v7395 = vunpack.c.l.b16 %v7144
        %v7396 = vunpack.c.h.b16 %v7144
        %v7397 = vunpack.c.l.b16 %v7145
        %v7398 = vunpack.c.h.b16 %v7145
        %v7399 = vunpack.c.l.b16 %v7146
        %v7400 = vunpack.c.h.b16 %v7146
        %v7401 = vunpack.c.l.b16 %v7147
        %v7402 = vunpack.c.h.b16 %v7147
        %v7403 = vunpack.c.l.b16 %v7148
        %v7404 = vunpack.c.h.b16 %v7148
        %v7405 = vpack.c.b16 %v7393, %v7391
        %v7406 = vpack.c.b16 %v7394, %v7392
        %v7407 = vpack.c.b16 %v7397, %v7395
        %v7408 = vpack.c.b16 %v7398, %v7396
        %v7409 = vpack.c.b16 %v7401, %v7399
        %v7410 = vpack.c.b16 %v7402, %v7400
        %v7411 = vpack.c.b16 %v7403, %v7403
        %v7412 = vpack.c.b16 %v7404, %v7404
        %v7420 = vsel %vm7079, %v7383, 0
        %v7423 = vsel %vm7280, %v7411, 0
        %v7426 = vsel %vm7280, %v7412, 0
        %7428 = vmatpush.bf16.msra.mxu0 0
        %7429 = vmatpush.bf16.msra.mxu0 0
        %7430 = vmatpush.bf16.msra.mxu0 0
        %7431 = vmatpush.bf16.msra.mxu0 0
        %7432 = vmatpush.bf16.msra.mxu0 %v7423
        %7433 = vmatpush.bf16.msra.mxu0 %v7409
        %7434 = vmatpush.bf16.msra.mxu0 %v7407
        %7435 = vmatpush.bf16.msra.mxu0 %v7405
        %7436 = vmatmul.bf16.gmra.mxu0 %v7420
        %v7437 = vpop.f32.mrf.mxu0
        %v7438 = vadd.f32 0.0, %v7437
        %v7439 = vpop.f32.mrf.mxu0
        %7440 = vdwg.mxu0
        %7441 = vmatpush.bf16.msra.mxu0 0
        %7442 = vmatpush.bf16.msra.mxu0 0
        %7443 = vmatpush.bf16.msra.mxu0 0
        %7444 = vmatpush.bf16.msra.mxu0 0
        %7445 = vmatpush.bf16.msra.mxu0 %v7426
        %7446 = vmatpush.bf16.msra.mxu0 %v7410
        %7447 = vmatpush.bf16.msra.mxu0 %v7408
        %7448 = vmatpush.bf16.msra.mxu0 %v7406
        %7449 = vmatmul.bf16.gmra.mxu0 %v7420
        %v7450 = vpop.f32.mrf.mxu0
        %v7451 = vadd.f32 0.0, %v7450
        %v7452 = vpop.f32.mrf.mxu0
        %7453 = vdwg.mxu0
        %v7454 = vadd.f32 %v7367, %v7438
        %v7455 = vadd.f32 %v7380, %v7451
        %v7456 = vpack.c.bf16 %v7091, %v7091
        %v7464 = vunpack.c.l.b16 %v7149
        %v7465 = vunpack.c.h.b16 %v7149
        %v7466 = vunpack.c.l.b16 %v7150
        %v7467 = vunpack.c.h.b16 %v7150
        %v7468 = vunpack.c.l.b16 %v7151
        %v7469 = vunpack.c.h.b16 %v7151
        %v7470 = vunpack.c.l.b16 %v7152
        %v7471 = vunpack.c.h.b16 %v7152
        %v7472 = vunpack.c.l.b16 %v7153
        %v7473 = vunpack.c.h.b16 %v7153
        %v7474 = vunpack.c.l.b16 %v7154
        %v7475 = vunpack.c.h.b16 %v7154
        %v7476 = vunpack.c.l.b16 %v7155
        %v7477 = vunpack.c.h.b16 %v7155
        %v7478 = vpack.c.b16 %v7466, %v7464
        %v7479 = vpack.c.b16 %v7467, %v7465
        %v7480 = vpack.c.b16 %v7470, %v7468
        %v7481 = vpack.c.b16 %v7471, %v7469
        %v7482 = vpack.c.b16 %v7474, %v7472
        %v7483 = vpack.c.b16 %v7475, %v7473
        %v7484 = vpack.c.b16 %v7476, %v7476
        %v7485 = vpack.c.b16 %v7477, %v7477
        %v7493 = vsel %vm7079, %v7456, 0
        %v7496 = vsel %vm7280, %v7484, 0
        %v7499 = vsel %vm7280, %v7485, 0
        %7501 = vmatpush.bf16.msra.mxu0 0
        %7502 = vmatpush.bf16.msra.mxu0 0
        %7503 = vmatpush.bf16.msra.mxu0 0
        %7504 = vmatpush.bf16.msra.mxu0 0
        %7505 = vmatpush.bf16.msra.mxu0 %v7496
        %7506 = vmatpush.bf16.msra.mxu0 %v7482
        %7507 = vmatpush.bf16.msra.mxu0 %v7480
        %7508 = vmatpush.bf16.msra.mxu0 %v7478
        %7509 = vmatmul.bf16.gmra.mxu0 %v7493
        %v7510 = vpop.f32.mrf.mxu0
        %v7511 = vadd.f32 0.0, %v7510
        %v7512 = vpop.f32.mrf.mxu0
        %7513 = vdwg.mxu0
        %7514 = vmatpush.bf16.msra.mxu0 0
        %7515 = vmatpush.bf16.msra.mxu0 0
        %7516 = vmatpush.bf16.msra.mxu0 0
        %7517 = vmatpush.bf16.msra.mxu0 0
        %7518 = vmatpush.bf16.msra.mxu0 %v7499
        %7519 = vmatpush.bf16.msra.mxu0 %v7483
        %7520 = vmatpush.bf16.msra.mxu0 %v7481
        %7521 = vmatpush.bf16.msra.mxu0 %v7479
        %7522 = vmatmul.bf16.gmra.mxu0 %v7493
        %v7523 = vpop.f32.mrf.mxu0
        %v7524 = vadd.f32 0.0, %v7523
        %v7525 = vpop.f32.mrf.mxu0
        %7526 = vdwg.mxu0
        %v7527 = vadd.f32 %v7454, %v7511
        %v7528 = vadd.f32 %v7455, %v7524
        %v7529 = vpack.c.bf16 %v7094, %v7094
        %v7537 = vunpack.c.l.b16 %v7156
        %v7538 = vunpack.c.h.b16 %v7156
        %v7539 = vunpack.c.l.b16 %v7157
        %v7540 = vunpack.c.h.b16 %v7157
        %v7541 = vunpack.c.l.b16 %v7158
        %v7542 = vunpack.c.h.b16 %v7158
        %v7543 = vunpack.c.l.b16 %v7159
        %v7544 = vunpack.c.h.b16 %v7159
        %v7545 = vunpack.c.l.b16 %v7160
        %v7546 = vunpack.c.h.b16 %v7160
        %v7547 = vunpack.c.l.b16 %v7161
        %v7548 = vunpack.c.h.b16 %v7161
        %v7549 = vunpack.c.l.b16 %v7162
        %v7550 = vunpack.c.h.b16 %v7162
        %v7551 = vpack.c.b16 %v7539, %v7537
        %v7552 = vpack.c.b16 %v7540, %v7538
        %v7553 = vpack.c.b16 %v7543, %v7541
        %v7554 = vpack.c.b16 %v7544, %v7542
        %v7555 = vpack.c.b16 %v7547, %v7545
        %v7556 = vpack.c.b16 %v7548, %v7546
        %v7557 = vpack.c.b16 %v7549, %v7549
        %v7558 = vpack.c.b16 %v7550, %v7550
        %v7566 = vsel %vm7079, %v7529, 0
        %v7569 = vsel %vm7280, %v7557, 0
        %v7572 = vsel %vm7280, %v7558, 0
        %7574 = vmatpush.bf16.msra.mxu0 0
        %7575 = vmatpush.bf16.msra.mxu0 0
        %7576 = vmatpush.bf16.msra.mxu0 0
        %7577 = vmatpush.bf16.msra.mxu0 0
        %7578 = vmatpush.bf16.msra.mxu0 %v7569
        %7579 = vmatpush.bf16.msra.mxu0 %v7555
        %7580 = vmatpush.bf16.msra.mxu0 %v7553
        %7581 = vmatpush.bf16.msra.mxu0 %v7551
        %7582 = vmatmul.bf16.gmra.mxu0 %v7566
        %v7583 = vpop.f32.mrf.mxu0
        %v7584 = vadd.f32 0.0, %v7583
        %v7585 = vpop.f32.mrf.mxu0
        %7586 = vdwg.mxu0
        %7587 = vmatpush.bf16.msra.mxu0 0
        %7588 = vmatpush.bf16.msra.mxu0 0
        %7589 = vmatpush.bf16.msra.mxu0 0
        %7590 = vmatpush.bf16.msra.mxu0 0
        %7591 = vmatpush.bf16.msra.mxu0 %v7572
        %7592 = vmatpush.bf16.msra.mxu0 %v7556
        %7593 = vmatpush.bf16.msra.mxu0 %v7554
        %7594 = vmatpush.bf16.msra.mxu0 %v7552
        %7595 = vmatmul.bf16.gmra.mxu0 %v7566
        %v7596 = vpop.f32.mrf.mxu0
        %v7597 = vadd.f32 0.0, %v7596
        %v7598 = vpop.f32.mrf.mxu0
        %7599 = vdwg.mxu0
        %v7600 = vadd.f32 %v7527, %v7584
        %v7601 = vadd.f32 %v7528, %v7597
        %v7602 = vpack.c.bf16 %v7097, %v7097
        %v7610 = vunpack.c.l.b16 %v7163
        %v7611 = vunpack.c.h.b16 %v7163
        %v7612 = vunpack.c.l.b16 %v7164
        %v7613 = vunpack.c.h.b16 %v7164
        %v7614 = vunpack.c.l.b16 %v7165
        %v7615 = vunpack.c.h.b16 %v7165
        %v7616 = vunpack.c.l.b16 %v7166
        %v7617 = vunpack.c.h.b16 %v7166
        %v7618 = vunpack.c.l.b16 %v7167
        %v7619 = vunpack.c.h.b16 %v7167
        %v7620 = vunpack.c.l.b16 %v7168
        %v7621 = vunpack.c.h.b16 %v7168
        %v7622 = vunpack.c.l.b16 %v7169
        %v7623 = vunpack.c.h.b16 %v7169
        %v7624 = vpack.c.b16 %v7612, %v7610
        %v7625 = vpack.c.b16 %v7613, %v7611
        %v7626 = vpack.c.b16 %v7616, %v7614
        %v7627 = vpack.c.b16 %v7617, %v7615
        %v7628 = vpack.c.b16 %v7620, %v7618
        %v7629 = vpack.c.b16 %v7621, %v7619
        %v7630 = vpack.c.b16 %v7622, %v7622
        %v7631 = vpack.c.b16 %v7623, %v7623
        %v7639 = vsel %vm7079, %v7602, 0
        %v7642 = vsel %vm7280, %v7630, 0
        %v7645 = vsel %vm7280, %v7631, 0
        %7647 = vmatpush.bf16.msra.mxu0 0
        %7648 = vmatpush.bf16.msra.mxu0 0
        %7649 = vmatpush.bf16.msra.mxu0 0
        %7650 = vmatpush.bf16.msra.mxu0 0
        %7651 = vmatpush.bf16.msra.mxu0 %v7642
        %7652 = vmatpush.bf16.msra.mxu0 %v7628
        %7653 = vmatpush.bf16.msra.mxu0 %v7626
        %7654 = vmatpush.bf16.msra.mxu0 %v7624
        %7655 = vmatmul.bf16.gmra.mxu0 %v7639
        %v7656 = vpop.f32.mrf.mxu0
        %v7657 = vadd.f32 0.0, %v7656
        %v7658 = vpop.f32.mrf.mxu0
        %7659 = vdwg.mxu0
        %7660 = vmatpush.bf16.msra.mxu0 0
        %7661 = vmatpush.bf16.msra.mxu0 0
        %7662 = vmatpush.bf16.msra.mxu0 0
        %7663 = vmatpush.bf16.msra.mxu0 0
        %7664 = vmatpush.bf16.msra.mxu0 %v7645
        %7665 = vmatpush.bf16.msra.mxu0 %v7629
        %7666 = vmatpush.bf16.msra.mxu0 %v7627
        %7667 = vmatpush.bf16.msra.mxu0 %v7625
        %7668 = vmatmul.bf16.gmra.mxu0 %v7639
        %v7669 = vpop.f32.mrf.mxu0
        %v7670 = vadd.f32 0.0, %v7669
        %v7671 = vpop.f32.mrf.mxu0
        %7672 = vdwg.mxu0
        %v7673 = vadd.f32 %v7600, %v7657
        %v7674 = vadd.f32 %v7601, %v7670
        %v7675 = vpack.c.bf16 %v7100, %v7100
        %v7683 = vunpack.c.l.b16 %v7170
        %v7684 = vunpack.c.h.b16 %v7170
        %v7685 = vunpack.c.l.b16 %v7171
        %v7686 = vunpack.c.h.b16 %v7171
        %v7687 = vunpack.c.l.b16 %v7172
        %v7688 = vunpack.c.h.b16 %v7172
        %v7689 = vunpack.c.l.b16 %v7173
        %v7690 = vunpack.c.h.b16 %v7173
        %v7691 = vunpack.c.l.b16 %v7174
        %v7692 = vunpack.c.h.b16 %v7174
        %v7693 = vunpack.c.l.b16 %v7175
        %v7694 = vunpack.c.h.b16 %v7175
        %v7695 = vunpack.c.l.b16 %v7176
        %v7696 = vunpack.c.h.b16 %v7176
        %v7697 = vpack.c.b16 %v7685, %v7683
        %v7698 = vpack.c.b16 %v7686, %v7684
        %v7699 = vpack.c.b16 %v7689, %v7687
        %v7700 = vpack.c.b16 %v7690, %v7688
        %v7701 = vpack.c.b16 %v7693, %v7691
        %v7702 = vpack.c.b16 %v7694, %v7692
        %v7703 = vpack.c.b16 %v7695, %v7695
        %v7704 = vpack.c.b16 %v7696, %v7696
        %v7712 = vsel %vm7079, %v7675, 0
        %v7715 = vsel %vm7280, %v7703, 0
        %v7718 = vsel %vm7280, %v7704, 0
        %7720 = vmatpush.bf16.msra.mxu0 0
        %7721 = vmatpush.bf16.msra.mxu0 0
        %7722 = vmatpush.bf16.msra.mxu0 0
        %7723 = vmatpush.bf16.msra.mxu0 0
        %7724 = vmatpush.bf16.msra.mxu0 %v7715
        %7725 = vmatpush.bf16.msra.mxu0 %v7701
        %7726 = vmatpush.bf16.msra.mxu0 %v7699
        %7727 = vmatpush.bf16.msra.mxu0 %v7697
        %7728 = vmatmul.bf16.gmra.mxu0 %v7712
        %v7729 = vpop.f32.mrf.mxu0
        %v7730 = vadd.f32 0.0, %v7729
        %v7731 = vpop.f32.mrf.mxu0
        %7732 = vdwg.mxu0
        %7733 = vmatpush.bf16.msra.mxu0 0
        %7734 = vmatpush.bf16.msra.mxu0 0
        %7735 = vmatpush.bf16.msra.mxu0 0
        %7736 = vmatpush.bf16.msra.mxu0 0
        %7737 = vmatpush.bf16.msra.mxu0 %v7718
        %7738 = vmatpush.bf16.msra.mxu0 %v7702
        %7739 = vmatpush.bf16.msra.mxu0 %v7700
        %7740 = vmatpush.bf16.msra.mxu0 %v7698
        %7741 = vmatmul.bf16.gmra.mxu0 %v7712
        %v7742 = vpop.f32.mrf.mxu0
        %v7743 = vadd.f32 0.0, %v7742
        %v7744 = vpop.f32.mrf.mxu0
        %7745 = vdwg.mxu0
        %v7746 = vadd.f32 %v7673, %v7730
        %v7747 = vadd.f32 %v7674, %v7743
        %v7748 = vpack.c.bf16 %v7103, %v7103
        %v7756 = vunpack.c.l.b16 %v7177
        %v7757 = vunpack.c.h.b16 %v7177
        %v7758 = vunpack.c.l.b16 %v7178
        %v7759 = vunpack.c.h.b16 %v7178
        %v7760 = vunpack.c.l.b16 %v7179
        %v7761 = vunpack.c.h.b16 %v7179
        %v7762 = vunpack.c.l.b16 %v7180
        %v7763 = vunpack.c.h.b16 %v7180
        %v7764 = vunpack.c.l.b16 %v7181
        %v7765 = vunpack.c.h.b16 %v7181
        %v7766 = vunpack.c.l.b16 %v7182
        %v7767 = vunpack.c.h.b16 %v7182
        %v7768 = vunpack.c.l.b16 %v7183
        %v7769 = vunpack.c.h.b16 %v7183
        %v7770 = vpack.c.b16 %v7758, %v7756
        %v7771 = vpack.c.b16 %v7759, %v7757
        %v7772 = vpack.c.b16 %v7762, %v7760
        %v7773 = vpack.c.b16 %v7763, %v7761
        %v7774 = vpack.c.b16 %v7766, %v7764
        %v7775 = vpack.c.b16 %v7767, %v7765
        %v7776 = vpack.c.b16 %v7768, %v7768
        %v7777 = vpack.c.b16 %v7769, %v7769
        %v7785 = vsel %vm7079, %v7748, 0
        %v7788 = vsel %vm7280, %v7776, 0
        %v7791 = vsel %vm7280, %v7777, 0
        %7793 = vmatpush.bf16.msra.mxu0 0
        %7794 = vmatpush.bf16.msra.mxu0 0
        %7795 = vmatpush.bf16.msra.mxu0 0
        %7796 = vmatpush.bf16.msra.mxu0 0
        %7797 = vmatpush.bf16.msra.mxu0 %v7788
        %7798 = vmatpush.bf16.msra.mxu0 %v7774
        %7799 = vmatpush.bf16.msra.mxu0 %v7772
        %7800 = vmatpush.bf16.msra.mxu0 %v7770
        %7801 = vmatmul.bf16.gmra.mxu0 %v7785
        %v7802 = vpop.f32.mrf.mxu0
        %v7803 = vadd.f32 0.0, %v7802
        %v7804 = vpop.f32.mrf.mxu0
        %7805 = vdwg.mxu0
        %7806 = vmatpush.bf16.msra.mxu0 0
        %7807 = vmatpush.bf16.msra.mxu0 0
        %7808 = vmatpush.bf16.msra.mxu0 0
        %7809 = vmatpush.bf16.msra.mxu0 0
        %7810 = vmatpush.bf16.msra.mxu0 %v7791
        %7811 = vmatpush.bf16.msra.mxu0 %v7775
        %7812 = vmatpush.bf16.msra.mxu0 %v7773
        %7813 = vmatpush.bf16.msra.mxu0 %v7771
        %7814 = vmatmul.bf16.gmra.mxu0 %v7785
        %v7815 = vpop.f32.mrf.mxu0
        %v7816 = vadd.f32 0.0, %v7815
        %v7817 = vpop.f32.mrf.mxu0
        %7818 = vdwg.mxu0
        %v7819 = vadd.f32 %v7746, %v7803
        %v7820 = vadd.f32 %v7747, %v7816
        %v7821 = vpack.c.bf16 %v7106, %v7106
        %v7829 = vunpack.c.l.b16 %v7184
        %v7830 = vunpack.c.h.b16 %v7184
        %v7831 = vunpack.c.l.b16 %v7185
        %v7832 = vunpack.c.h.b16 %v7185
        %v7833 = vunpack.c.l.b16 %v7186
        %v7834 = vunpack.c.h.b16 %v7186
        %v7835 = vunpack.c.l.b16 %v7187
        %v7836 = vunpack.c.h.b16 %v7187
        %v7837 = vunpack.c.l.b16 %v7188
        %v7838 = vunpack.c.h.b16 %v7188
        %v7839 = vunpack.c.l.b16 %v7189
        %v7840 = vunpack.c.h.b16 %v7189
        %v7841 = vunpack.c.l.b16 %v7190
        %v7842 = vunpack.c.h.b16 %v7190
        %v7843 = vpack.c.b16 %v7831, %v7829
        %v7844 = vpack.c.b16 %v7832, %v7830
        %v7845 = vpack.c.b16 %v7835, %v7833
        %v7846 = vpack.c.b16 %v7836, %v7834
        %v7847 = vpack.c.b16 %v7839, %v7837
        %v7848 = vpack.c.b16 %v7840, %v7838
        %v7849 = vpack.c.b16 %v7841, %v7841
        %v7850 = vpack.c.b16 %v7842, %v7842
        %v7858 = vsel %vm7079, %v7821, 0
        %v7861 = vsel %vm7280, %v7849, 0
        %v7864 = vsel %vm7280, %v7850, 0
        %7866 = vmatpush.bf16.msra.mxu0 0
        %7867 = vmatpush.bf16.msra.mxu0 0
        %7868 = vmatpush.bf16.msra.mxu0 0
        %7869 = vmatpush.bf16.msra.mxu0 0
        %7870 = vmatpush.bf16.msra.mxu0 %v7861
        %7871 = vmatpush.bf16.msra.mxu0 %v7847
        %7872 = vmatpush.bf16.msra.mxu0 %v7845
        %7873 = vmatpush.bf16.msra.mxu0 %v7843
        %7874 = vmatmul.bf16.gmra.mxu0 %v7858
        %v7875 = vpop.f32.mrf.mxu0
        %v7876 = vadd.f32 0.0, %v7875
        %v7877 = vpop.f32.mrf.mxu0
        %7878 = vdwg.mxu0
        %7879 = vmatpush.bf16.msra.mxu0 0
        %7880 = vmatpush.bf16.msra.mxu0 0
        %7881 = vmatpush.bf16.msra.mxu0 0
        %7882 = vmatpush.bf16.msra.mxu0 0
        %7883 = vmatpush.bf16.msra.mxu0 %v7864
        %7884 = vmatpush.bf16.msra.mxu0 %v7848
        %7885 = vmatpush.bf16.msra.mxu0 %v7846
        %7886 = vmatpush.bf16.msra.mxu0 %v7844
        %7887 = vmatmul.bf16.gmra.mxu0 %v7858
        %v7888 = vpop.f32.mrf.mxu0
        %v7889 = vadd.f32 0.0, %v7888
        %v7890 = vpop.f32.mrf.mxu0
        %7891 = vdwg.mxu0
        %v7892 = vadd.f32 %v7819, %v7876
        %v7893 = vadd.f32 %v7820, %v7889
        %v7894 = vpack.c.bf16 %v7109, %v7109
        %v7902 = vunpack.c.l.b16 %v7191
        %v7903 = vunpack.c.h.b16 %v7191
        %v7904 = vunpack.c.l.b16 %v7192
        %v7905 = vunpack.c.h.b16 %v7192
        %v7906 = vunpack.c.l.b16 %v7193
        %v7907 = vunpack.c.h.b16 %v7193
        %v7908 = vunpack.c.l.b16 %v7194
        %v7909 = vunpack.c.h.b16 %v7194
        %v7910 = vunpack.c.l.b16 %v7195
        %v7911 = vunpack.c.h.b16 %v7195
        %v7912 = vunpack.c.l.b16 %v7196
        %v7913 = vunpack.c.h.b16 %v7196
        %v7914 = vunpack.c.l.b16 %v7197
        %v7915 = vunpack.c.h.b16 %v7197
        %v7916 = vpack.c.b16 %v7904, %v7902
        %v7917 = vpack.c.b16 %v7905, %v7903
        %v7918 = vpack.c.b16 %v7908, %v7906
        %v7919 = vpack.c.b16 %v7909, %v7907
        %v7920 = vpack.c.b16 %v7912, %v7910
        %v7921 = vpack.c.b16 %v7913, %v7911
        %v7922 = vpack.c.b16 %v7914, %v7914
        %v7923 = vpack.c.b16 %v7915, %v7915
        %v7931 = vsel %vm7079, %v7894, 0
        %v7934 = vsel %vm7280, %v7922, 0
        %v7937 = vsel %vm7280, %v7923, 0
        %7939 = vmatpush.bf16.msra.mxu0 0
        %7940 = vmatpush.bf16.msra.mxu0 0
        %7941 = vmatpush.bf16.msra.mxu0 0
        %7942 = vmatpush.bf16.msra.mxu0 0
        %7943 = vmatpush.bf16.msra.mxu0 %v7934
        %7944 = vmatpush.bf16.msra.mxu0 %v7920
        %7945 = vmatpush.bf16.msra.mxu0 %v7918
        %7946 = vmatpush.bf16.msra.mxu0 %v7916
        %7947 = vmatmul.bf16.gmra.mxu0 %v7931
        %v7948 = vpop.f32.mrf.mxu0
        %v7949 = vadd.f32 0.0, %v7948
        %v7950 = vpop.f32.mrf.mxu0
        %7951 = vdwg.mxu0
        %7952 = vmatpush.bf16.msra.mxu0 0
        %7953 = vmatpush.bf16.msra.mxu0 0
        %7954 = vmatpush.bf16.msra.mxu0 0
        %7955 = vmatpush.bf16.msra.mxu0 0
        %7956 = vmatpush.bf16.msra.mxu0 %v7937
        %7957 = vmatpush.bf16.msra.mxu0 %v7921
        %7958 = vmatpush.bf16.msra.mxu0 %v7919
        %7959 = vmatpush.bf16.msra.mxu0 %v7917
        %7960 = vmatmul.bf16.gmra.mxu0 %v7931
        %v7961 = vpop.f32.mrf.mxu0
        %v7962 = vadd.f32 0.0, %v7961
        %v7963 = vpop.f32.mrf.mxu0
        %7964 = vdwg.mxu0
        %v7965 = vadd.f32 %v7892, %v7949
        %v7966 = vadd.f32 %v7893, %v7962
        %v7967 = vpack.c.bf16 %v7112, %v7112
        %v7975 = vunpack.c.l.b16 %v7198
        %v7976 = vunpack.c.h.b16 %v7198
        %v7977 = vunpack.c.l.b16 %v7199
        %v7978 = vunpack.c.h.b16 %v7199
        %v7979 = vunpack.c.l.b16 %v7200
        %v7980 = vunpack.c.h.b16 %v7200
        %v7981 = vunpack.c.l.b16 %v7201
        %v7982 = vunpack.c.h.b16 %v7201
        %v7983 = vunpack.c.l.b16 %v7202
        %v7984 = vunpack.c.h.b16 %v7202
        %v7985 = vunpack.c.l.b16 %v7203
        %v7986 = vunpack.c.h.b16 %v7203
        %v7987 = vunpack.c.l.b16 %v7204
        %v7988 = vunpack.c.h.b16 %v7204
        %v7989 = vpack.c.b16 %v7977, %v7975
        %v7990 = vpack.c.b16 %v7978, %v7976
        %v7991 = vpack.c.b16 %v7981, %v7979
        %v7992 = vpack.c.b16 %v7982, %v7980
        %v7993 = vpack.c.b16 %v7985, %v7983
        %v7994 = vpack.c.b16 %v7986, %v7984
        %v7995 = vpack.c.b16 %v7987, %v7987
        %v7996 = vpack.c.b16 %v7988, %v7988
        %v8004 = vsel %vm7079, %v7967, 0
        %v8007 = vsel %vm7280, %v7995, 0
        %v8010 = vsel %vm7280, %v7996, 0
        %8012 = vmatpush.bf16.msra.mxu0 0
        %8013 = vmatpush.bf16.msra.mxu0 0
        %8014 = vmatpush.bf16.msra.mxu0 0
        %8015 = vmatpush.bf16.msra.mxu0 0
        %8016 = vmatpush.bf16.msra.mxu0 %v8007
        %8017 = vmatpush.bf16.msra.mxu0 %v7993
        %8018 = vmatpush.bf16.msra.mxu0 %v7991
        %8019 = vmatpush.bf16.msra.mxu0 %v7989
        %8020 = vmatmul.bf16.gmra.mxu0 %v8004
        %v8021 = vpop.f32.mrf.mxu0
        %v8022 = vadd.f32 0.0, %v8021
        %v8023 = vpop.f32.mrf.mxu0
        %8024 = vdwg.mxu0
        %8025 = vmatpush.bf16.msra.mxu0 0
        %8026 = vmatpush.bf16.msra.mxu0 0
        %8027 = vmatpush.bf16.msra.mxu0 0
        %8028 = vmatpush.bf16.msra.mxu0 0
        %8029 = vmatpush.bf16.msra.mxu0 %v8010
        %8030 = vmatpush.bf16.msra.mxu0 %v7994
        %8031 = vmatpush.bf16.msra.mxu0 %v7992
        %8032 = vmatpush.bf16.msra.mxu0 %v7990
        %8033 = vmatmul.bf16.gmra.mxu0 %v8004
        %v8034 = vpop.f32.mrf.mxu0
        %v8035 = vadd.f32 0.0, %v8034
        %v8036 = vpop.f32.mrf.mxu0
        %8037 = vdwg.mxu0
        %v8038 = vadd.f32 %v7965, %v8022
        %v8039 = vadd.f32 %v7966, %v8035
        %v8040 = vpack.c.bf16 %v7115, %v7115
        %v8048 = vunpack.c.l.b16 %v7205
        %v8049 = vunpack.c.h.b16 %v7205
        %v8050 = vunpack.c.l.b16 %v7206
        %v8051 = vunpack.c.h.b16 %v7206
        %v8052 = vunpack.c.l.b16 %v7207
        %v8053 = vunpack.c.h.b16 %v7207
        %v8054 = vunpack.c.l.b16 %v7208
        %v8055 = vunpack.c.h.b16 %v7208
        %v8056 = vunpack.c.l.b16 %v7209
        %v8057 = vunpack.c.h.b16 %v7209
        %v8058 = vunpack.c.l.b16 %v7210
        %v8059 = vunpack.c.h.b16 %v7210
        %v8060 = vunpack.c.l.b16 %v7211
        %v8061 = vunpack.c.h.b16 %v7211
        %v8062 = vpack.c.b16 %v8050, %v8048
        %v8063 = vpack.c.b16 %v8051, %v8049
        %v8064 = vpack.c.b16 %v8054, %v8052
        %v8065 = vpack.c.b16 %v8055, %v8053
        %v8066 = vpack.c.b16 %v8058, %v8056
        %v8067 = vpack.c.b16 %v8059, %v8057
        %v8068 = vpack.c.b16 %v8060, %v8060
        %v8069 = vpack.c.b16 %v8061, %v8061
        %v8077 = vsel %vm7079, %v8040, 0
        %v8080 = vsel %vm7280, %v8068, 0
        %v8083 = vsel %vm7280, %v8069, 0
        %8085 = vmatpush.bf16.msra.mxu0 0
        %8086 = vmatpush.bf16.msra.mxu0 0
        %8087 = vmatpush.bf16.msra.mxu0 0
        %8088 = vmatpush.bf16.msra.mxu0 0
        %8089 = vmatpush.bf16.msra.mxu0 %v8080
        %8090 = vmatpush.bf16.msra.mxu0 %v8066
        %8091 = vmatpush.bf16.msra.mxu0 %v8064
        %8092 = vmatpush.bf16.msra.mxu0 %v8062
        %8093 = vmatmul.bf16.gmra.mxu0 %v8077
        %v8094 = vpop.f32.mrf.mxu0
        %v8095 = vadd.f32 0.0, %v8094
        %v8096 = vpop.f32.mrf.mxu0
        %8097 = vdwg.mxu0
        %8098 = vmatpush.bf16.msra.mxu0 0
        %8099 = vmatpush.bf16.msra.mxu0 0
        %8100 = vmatpush.bf16.msra.mxu0 0
        %8101 = vmatpush.bf16.msra.mxu0 0
        %8102 = vmatpush.bf16.msra.mxu0 %v8083
        %8103 = vmatpush.bf16.msra.mxu0 %v8067
        %8104 = vmatpush.bf16.msra.mxu0 %v8065
        %8105 = vmatpush.bf16.msra.mxu0 %v8063
        %8106 = vmatmul.bf16.gmra.mxu0 %v8077
        %v8107 = vpop.f32.mrf.mxu0
        %v8108 = vadd.f32 0.0, %v8107
        %v8109 = vpop.f32.mrf.mxu0
        %8110 = vdwg.mxu0
        %v8111 = vadd.f32 %v8038, %v8095
        %v8112 = vadd.f32 %v8039, %v8108
        %v8113 = vpack.c.bf16 %v7118, %v7118
        %v8121 = vunpack.c.l.b16 %v7212
        %v8122 = vunpack.c.h.b16 %v7212
        %v8123 = vunpack.c.l.b16 %v7213
        %v8124 = vunpack.c.h.b16 %v7213
        %v8125 = vunpack.c.l.b16 %v7214
        %v8126 = vunpack.c.h.b16 %v7214
        %v8127 = vunpack.c.l.b16 %v7215
        %v8128 = vunpack.c.h.b16 %v7215
        %v8129 = vunpack.c.l.b16 %v7216
        %v8130 = vunpack.c.h.b16 %v7216
        %v8131 = vunpack.c.l.b16 %v7217
        %v8132 = vunpack.c.h.b16 %v7217
        %v8133 = vunpack.c.l.b16 %v7218
        %v8134 = vunpack.c.h.b16 %v7218
        %v8135 = vpack.c.b16 %v8123, %v8121
        %v8136 = vpack.c.b16 %v8124, %v8122
        %v8137 = vpack.c.b16 %v8127, %v8125
        %v8138 = vpack.c.b16 %v8128, %v8126
        %v8139 = vpack.c.b16 %v8131, %v8129
        %v8140 = vpack.c.b16 %v8132, %v8130
        %v8141 = vpack.c.b16 %v8133, %v8133
        %v8142 = vpack.c.b16 %v8134, %v8134
        %v8150 = vsel %vm7079, %v8113, 0
        %v8153 = vsel %vm7280, %v8141, 0
        %v8156 = vsel %vm7280, %v8142, 0
        %8158 = vmatpush.bf16.msra.mxu0 0
        %8159 = vmatpush.bf16.msra.mxu0 0
        %8160 = vmatpush.bf16.msra.mxu0 0
        %8161 = vmatpush.bf16.msra.mxu0 0
        %8162 = vmatpush.bf16.msra.mxu0 %v8153
        %8163 = vmatpush.bf16.msra.mxu0 %v8139
        %8164 = vmatpush.bf16.msra.mxu0 %v8137
        %8165 = vmatpush.bf16.msra.mxu0 %v8135
        %8166 = vmatmul.bf16.gmra.mxu0 %v8150
        %v8167 = vpop.f32.mrf.mxu0
        %v8168 = vadd.f32 0.0, %v8167
        %v8169 = vpop.f32.mrf.mxu0
        %8170 = vdwg.mxu0
        %8171 = vmatpush.bf16.msra.mxu0 0
        %8172 = vmatpush.bf16.msra.mxu0 0
        %8173 = vmatpush.bf16.msra.mxu0 0
        %8174 = vmatpush.bf16.msra.mxu0 0
        %8175 = vmatpush.bf16.msra.mxu0 %v8156
        %8176 = vmatpush.bf16.msra.mxu0 %v8140
        %8177 = vmatpush.bf16.msra.mxu0 %v8138
        %8178 = vmatpush.bf16.msra.mxu0 %v8136
        %8179 = vmatmul.bf16.gmra.mxu0 %v8150
        %v8180 = vpop.f32.mrf.mxu0
        %v8181 = vadd.f32 0.0, %v8180
        %v8182 = vpop.f32.mrf.mxu0
        %8183 = vdwg.mxu0
        %v8184 = vadd.f32 %v8111, %v8168
        %v8185 = vadd.f32 %v8112, %v8181
        %v8186 = vpack.c.bf16 %v7121, %v7121
        %v8194 = vunpack.c.l.b16 %v7219
        %v8195 = vunpack.c.h.b16 %v7219
        %v8196 = vunpack.c.l.b16 %v7220
        %v8197 = vunpack.c.h.b16 %v7220
        %v8198 = vunpack.c.l.b16 %v7221
        %v8199 = vunpack.c.h.b16 %v7221
        %v8200 = vunpack.c.l.b16 %v7222
        %v8201 = vunpack.c.h.b16 %v7222
        %v8202 = vunpack.c.l.b16 %v7223
        %v8203 = vunpack.c.h.b16 %v7223
        %v8204 = vunpack.c.l.b16 %v7224
        %v8205 = vunpack.c.h.b16 %v7224
        %v8206 = vunpack.c.l.b16 %v7225
        %v8207 = vunpack.c.h.b16 %v7225
        %v8208 = vpack.c.b16 %v8196, %v8194
        %v8209 = vpack.c.b16 %v8197, %v8195
        %v8210 = vpack.c.b16 %v8200, %v8198
        %v8211 = vpack.c.b16 %v8201, %v8199
        %v8212 = vpack.c.b16 %v8204, %v8202
        %v8213 = vpack.c.b16 %v8205, %v8203
        %v8214 = vpack.c.b16 %v8206, %v8206
        %v8215 = vpack.c.b16 %v8207, %v8207
        %v8223 = vsel %vm7079, %v8186, 0
        %v8226 = vsel %vm7280, %v8214, 0
        %v8229 = vsel %vm7280, %v8215, 0
        %8231 = vmatpush.bf16.msra.mxu0 0
        %8232 = vmatpush.bf16.msra.mxu0 0
        %8233 = vmatpush.bf16.msra.mxu0 0
        %8234 = vmatpush.bf16.msra.mxu0 0
        %8235 = vmatpush.bf16.msra.mxu0 %v8226
        %8236 = vmatpush.bf16.msra.mxu0 %v8212
        %8237 = vmatpush.bf16.msra.mxu0 %v8210
        %8238 = vmatpush.bf16.msra.mxu0 %v8208
        %8239 = vmatmul.bf16.gmra.mxu0 %v8223
        %v8240 = vpop.f32.mrf.mxu0
        %v8241 = vadd.f32 0.0, %v8240
        %v8242 = vpop.f32.mrf.mxu0
        %8243 = vdwg.mxu0
        %8244 = vmatpush.bf16.msra.mxu0 0
        %8245 = vmatpush.bf16.msra.mxu0 0
        %8246 = vmatpush.bf16.msra.mxu0 0
        %8247 = vmatpush.bf16.msra.mxu0 0
        %8248 = vmatpush.bf16.msra.mxu0 %v8229
        %8249 = vmatpush.bf16.msra.mxu0 %v8213
        %8250 = vmatpush.bf16.msra.mxu0 %v8211
        %8251 = vmatpush.bf16.msra.mxu0 %v8209
        %8252 = vmatmul.bf16.gmra.mxu0 %v8223
        %v8253 = vpop.f32.mrf.mxu0
        %v8254 = vadd.f32 0.0, %v8253
        %v8255 = vpop.f32.mrf.mxu0
        %8256 = vdwg.mxu0
        %v8257 = vadd.f32 %v8184, %v8241
        %v8258 = vadd.f32 %v8185, %v8254
        %v8259 = vpack.c.bf16 %v7124, %v7124
        %v8267 = vunpack.c.l.b16 %v7226
        %v8268 = vunpack.c.h.b16 %v7226
        %v8269 = vunpack.c.l.b16 %v7227
        %v8270 = vunpack.c.h.b16 %v7227
        %v8271 = vunpack.c.l.b16 %v7228
        %v8272 = vunpack.c.h.b16 %v7228
        %v8273 = vunpack.c.l.b16 %v7229
        %v8274 = vunpack.c.h.b16 %v7229
        %v8275 = vunpack.c.l.b16 %v7230
        %v8276 = vunpack.c.h.b16 %v7230
        %v8277 = vunpack.c.l.b16 %v7231
        %v8278 = vunpack.c.h.b16 %v7231
        %v8279 = vunpack.c.l.b16 %v7232
        %v8280 = vunpack.c.h.b16 %v7232
        %v8281 = vpack.c.b16 %v8269, %v8267
        %v8282 = vpack.c.b16 %v8270, %v8268
        %v8283 = vpack.c.b16 %v8273, %v8271
        %v8284 = vpack.c.b16 %v8274, %v8272
        %v8285 = vpack.c.b16 %v8277, %v8275
        %v8286 = vpack.c.b16 %v8278, %v8276
        %v8287 = vpack.c.b16 %v8279, %v8279
        %v8288 = vpack.c.b16 %v8280, %v8280
        %v8296 = vsel %vm7079, %v8259, 0
        %v8299 = vsel %vm7280, %v8287, 0
        %v8302 = vsel %vm7280, %v8288, 0
        %8304 = vmatpush.bf16.msra.mxu0 0
        %8305 = vmatpush.bf16.msra.mxu0 0
        %8306 = vmatpush.bf16.msra.mxu0 0
        %8307 = vmatpush.bf16.msra.mxu0 0
        %8308 = vmatpush.bf16.msra.mxu0 %v8299
        %8309 = vmatpush.bf16.msra.mxu0 %v8285
        %8310 = vmatpush.bf16.msra.mxu0 %v8283
        %8311 = vmatpush.bf16.msra.mxu0 %v8281
        %8312 = vmatmul.bf16.gmra.mxu0 %v8296
        %v8313 = vpop.f32.mrf.mxu0
        %v8314 = vadd.f32 0.0, %v8313
        %v8315 = vpop.f32.mrf.mxu0
        %8316 = vdwg.mxu0
        %8317 = vmatpush.bf16.msra.mxu0 0
        %8318 = vmatpush.bf16.msra.mxu0 0
        %8319 = vmatpush.bf16.msra.mxu0 0
        %8320 = vmatpush.bf16.msra.mxu0 0
        %8321 = vmatpush.bf16.msra.mxu0 %v8302
        %8322 = vmatpush.bf16.msra.mxu0 %v8286
        %8323 = vmatpush.bf16.msra.mxu0 %v8284
        %8324 = vmatpush.bf16.msra.mxu0 %v8282
        %8325 = vmatmul.bf16.gmra.mxu0 %v8296
        %v8326 = vpop.f32.mrf.mxu0
        %v8327 = vadd.f32 0.0, %v8326
        %v8328 = vpop.f32.mrf.mxu0
        %8329 = vdwg.mxu0
        %v8330 = vadd.f32 %v8257, %v8314
        %v8331 = vadd.f32 %v8258, %v8327
        %v8332 = vpack.c.bf16 %v7127, %v7127
        %v8340 = vunpack.c.l.b16 %v7233
        %v8341 = vunpack.c.h.b16 %v7233
        %v8342 = vunpack.c.l.b16 %v7234
        %v8343 = vunpack.c.h.b16 %v7234
        %v8344 = vunpack.c.l.b16 %v7235
        %v8345 = vunpack.c.h.b16 %v7235
        %v8346 = vunpack.c.l.b16 %v7236
        %v8347 = vunpack.c.h.b16 %v7236
        %v8348 = vunpack.c.l.b16 %v7237
        %v8349 = vunpack.c.h.b16 %v7237
        %v8350 = vunpack.c.l.b16 %v7238
        %v8351 = vunpack.c.h.b16 %v7238
        %v8352 = vunpack.c.l.b16 %v7239
        %v8353 = vunpack.c.h.b16 %v7239
        %v8354 = vpack.c.b16 %v8342, %v8340
        %v8355 = vpack.c.b16 %v8343, %v8341
        %v8356 = vpack.c.b16 %v8346, %v8344
        %v8357 = vpack.c.b16 %v8347, %v8345
        %v8358 = vpack.c.b16 %v8350, %v8348
        %v8359 = vpack.c.b16 %v8351, %v8349
        %v8360 = vpack.c.b16 %v8352, %v8352
        %v8361 = vpack.c.b16 %v8353, %v8353
        %v8369 = vsel %vm7079, %v8332, 0
        %v8372 = vsel %vm7280, %v8360, 0
        %v8375 = vsel %vm7280, %v8361, 0
        %8377 = vmatpush.bf16.msra.mxu0 0
        %8378 = vmatpush.bf16.msra.mxu0 0
        %8379 = vmatpush.bf16.msra.mxu0 0
        %8380 = vmatpush.bf16.msra.mxu0 0
        %8381 = vmatpush.bf16.msra.mxu0 %v8372
        %8382 = vmatpush.bf16.msra.mxu0 %v8358
        %8383 = vmatpush.bf16.msra.mxu0 %v8356
        %8384 = vmatpush.bf16.msra.mxu0 %v8354
        %8385 = vmatmul.bf16.gmra.mxu0 %v8369
        %v8386 = vpop.f32.mrf.mxu0
        %v8387 = vadd.f32 0.0, %v8386
        %v8388 = vpop.f32.mrf.mxu0
        %8389 = vdwg.mxu0
        %8390 = vmatpush.bf16.msra.mxu0 0
        %8391 = vmatpush.bf16.msra.mxu0 0
        %8392 = vmatpush.bf16.msra.mxu0 0
        %8393 = vmatpush.bf16.msra.mxu0 0
        %8394 = vmatpush.bf16.msra.mxu0 %v8375
        %8395 = vmatpush.bf16.msra.mxu0 %v8359
        %8396 = vmatpush.bf16.msra.mxu0 %v8357
        %8397 = vmatpush.bf16.msra.mxu0 %v8355
        %8398 = vmatmul.bf16.gmra.mxu0 %v8369
        %v8399 = vpop.f32.mrf.mxu0
        %v8400 = vadd.f32 0.0, %v8399
        %v8401 = vpop.f32.mrf.mxu0
        %8402 = vdwg.mxu0
        %v8403 = vadd.f32 %v8330, %v8387
        %v8404 = vadd.f32 %v8331, %v8400
        %v8405 = vld [vmem:[%s6] sm:$0x3]
        %v8407 = vperm.slane %v8405, 0
        %v8408 = vperm.slane %v8405, 1
        %v8411 = vadd.f32 %v8403, %v8407
        %v8412 = vadd.f32 %v8404, %v8408
        %v8413 = vld [vmem:[%s7] sm:$0xf]
        %v8414 = vld [vmem:[%s7 + $0x4] sm:$0xf]
        %v8415 = vld [vmem:[%s7 + $0x8] sm:$0xf]
        %v8416 = vld [vmem:[%s7 + $0xc] sm:$0xf]
        %v8417 = vld [vmem:[%s7 + $0x10] sm:$0xf]
        %v8418 = vld [vmem:[%s7 + $0x14] sm:$0xf]
        %v8419 = vld [vmem:[%s7 + $0x18] sm:$0xf]
        %v8420 = vld [vmem:[%s7 + $0x1c] sm:$0xf]
        %v8421 = vld [vmem:[%s7 + $0x20] sm:$0xf]
        %v8422 = vld [vmem:[%s7 + $0x24] sm:$0xf]
        %v8423 = vld [vmem:[%s7 + $0x28] sm:$0xf]
        %v8424 = vld [vmem:[%s7 + $0x2c] sm:$0xf]
        %v8425 = vld [vmem:[%s7 + $0x30] sm:$0xf]
        %v8426 = vld [vmem:[%s7 + $0x34] sm:$0xf]
        %v8427 = vld [vmem:[%s7 + $0x38] sm:$0xf]
        %v8428 = vld [vmem:[%s7 + $0x3c] sm:$0xf]
        %v8429 = vld [vmem:[%s7 + $0x40] sm:$0xf]
        %v8430 = vld [vmem:[%s7 + $0x44] sm:$0xf]
        %v8431 = vld [vmem:[%s7 + $0x48] sm:$0xf]
        %v8432 = vld [vmem:[%s7 + $0x4c] sm:$0xf]
        %v8433 = vld [vmem:[%s7 + $0x50] sm:$0xf]
        %v8434 = vld [vmem:[%s7 + $0x54] sm:$0xf]
        %v8435 = vld [vmem:[%s7 + $0x58] sm:$0xf]
        %v8436 = vld [vmem:[%s7 + $0x5c] sm:$0xf]
        %v8437 = vld [vmem:[%s7 + $0x60] sm:$0xf]
        %v8438 = vld [vmem:[%s7 + $0x64] sm:$0xf]
        %v8439 = vld [vmem:[%s7 + $0x68] sm:$0xf]
        %v8440 = vld [vmem:[%s7 + $0x6c] sm:$0xf]
        %v8441 = vld [vmem:[%s7 + $0x70] sm:$0xf]
        %v8442 = vld [vmem:[%s7 + $0x74] sm:$0xf]
        %v8443 = vld [vmem:[%s7 + $0x78] sm:$0xf]
        %v8444 = vld [vmem:[%s7 + $0x7c] sm:$0xf]
        %v8445 = vpack.c.bf16 %v8411, %v8411
        %v8446 = vpack.c.bf16 %v8412, %v8412
        %v8447 = vld [vmem:[%s8] sm:$0x1]
        %v8480 = vunpack.c.l.b16 %v8413
        %v8481 = vunpack.c.l.b16 %v8414
        %v8482 = vunpack.c.l.b16 %v8415
        %v8483 = vunpack.c.l.b16 %v8416
        %v8484 = vunpack.c.l.b16 %v8417
        %v8485 = vunpack.c.l.b16 %v8418
        %v8486 = vunpack.c.l.b16 %v8419
        %v8487 = vunpack.c.l.b16 %v8420
        %v8488 = vunpack.c.l.b16 %v8421
        %v8489 = vunpack.c.l.b16 %v8422
        %v8490 = vunpack.c.l.b16 %v8423
        %v8491 = vunpack.c.l.b16 %v8424
        %v8492 = vunpack.c.l.b16 %v8425
        %v8493 = vunpack.c.l.b16 %v8426
        %v8494 = vunpack.c.l.b16 %v8427
        %v8495 = vunpack.c.l.b16 %v8428
        %v8496 = vunpack.c.l.b16 %v8429
        %v8497 = vunpack.c.l.b16 %v8430
        %v8498 = vunpack.c.l.b16 %v8431
        %v8499 = vunpack.c.l.b16 %v8432
        %v8500 = vunpack.c.l.b16 %v8433
        %v8501 = vunpack.c.l.b16 %v8434
        %v8502 = vunpack.c.l.b16 %v8435
        %v8503 = vunpack.c.l.b16 %v8436
        %v8504 = vunpack.c.l.b16 %v8437
        %v8505 = vunpack.c.l.b16 %v8438
        %v8506 = vunpack.c.l.b16 %v8439
        %v8507 = vunpack.c.l.b16 %v8440
        %v8508 = vunpack.c.l.b16 %v8441
        %v8509 = vunpack.c.l.b16 %v8442
        %v8510 = vunpack.c.l.b16 %v8443
        %v8511 = vunpack.c.l.b16 %v8444
        %v8512 = vpack.c.b16 %v8481, %v8480
        %v8513 = vpack.c.b16 %v8483, %v8482
        %v8514 = vpack.c.b16 %v8485, %v8484
        %v8515 = vpack.c.b16 %v8487, %v8486
        %v8516 = vpack.c.b16 %v8489, %v8488
        %v8517 = vpack.c.b16 %v8491, %v8490
        %v8518 = vpack.c.b16 %v8493, %v8492
        %v8519 = vpack.c.b16 %v8495, %v8494
        %v8520 = vpack.c.b16 %v8497, %v8496
        %v8521 = vpack.c.b16 %v8499, %v8498
        %v8522 = vpack.c.b16 %v8501, %v8500
        %v8523 = vpack.c.b16 %v8503, %v8502
        %v8524 = vpack.c.b16 %v8505, %v8504
        %v8525 = vpack.c.b16 %v8507, %v8506
        %v8526 = vpack.c.b16 %v8509, %v8508
        %v8527 = vpack.c.b16 %v8511, %v8510
        %8544 = vmatpush.bf16.msra.mxu0 %v8519
        %8545 = vmatpush.bf16.msra.mxu0 %v8518
        %8546 = vmatpush.bf16.msra.mxu0 %v8517
        %8547 = vmatpush.bf16.msra.mxu0 %v8516
        %8548 = vmatpush.bf16.msra.mxu0 %v8515
        %8549 = vmatpush.bf16.msra.mxu0 %v8514
        %8550 = vmatpush.bf16.msra.mxu0 %v8513
        %8551 = vmatpush.bf16.msra.mxu0 %v8512
        %8552 = vmatmul.bf16.gmra.mxu0 %v8445
        %v8553 = vpop.f32.mrf.mxu0
        %v8554 = vadd.f32 %v8447, %v8553
        %v8555 = vpop.f32.mrf.mxu0
        %8556 = vdwg.mxu0
        %8557 = vmatpush.bf16.msra.mxu0 %v8527
        %8558 = vmatpush.bf16.msra.mxu0 %v8526
        %8559 = vmatpush.bf16.msra.mxu0 %v8525
        %8560 = vmatpush.bf16.msra.mxu0 %v8524
        %8561 = vmatpush.bf16.msra.mxu0 %v8523
        %8562 = vmatpush.bf16.msra.mxu0 %v8522
        %8563 = vmatpush.bf16.msra.mxu0 %v8521
        %8564 = vmatpush.bf16.msra.mxu0 %v8520
        %8565 = vmatmul.bf16.gmra.mxu0 %v8446
        %v8566 = vpop.f32.mrf.mxu0
        %v8567 = vadd.f32 %v8554, %v8566
        %v8568 = vpop.f32.mrf.mxu0
        %8569 = vdwg.mxu0
        %v8570 = vsel %vm7280, %v8567, -inf
        %8571 = vmax.xlane.f32.xlu0 %v8570
        %v8572 = vpop.xlane.xlu0 %8571
        %v8573 = vsub.f32 %v8567, %v8572
        %v8574 = vmul.f32 %v8573, 1.442695
        %v8575 = vpow.pop %v8574
        %v8576 = vsel %vm7280, %v8575, 0.0
        %8577 = vadd.xlane.f32.xlu0 %v8576
        %v8578 = vpop.xlane.xlu0 %8577
        %v8579 = vlog2.pop %v8578
        %v8580 = vmul.f32 %v8579, 0.6931472
        %v8581 = vsub.f32 %v8573, %v8580
        %8582 = vst [vmem:[%s324] sm:$0x1] %v8581
        %s8583 = sand.u32 %s225, 1
        %s8584 = scalar_lea.sflag [#allocation5], %s8583
        %s8585 = sand.u32 %s225, 1
        %s8586 = scalar_lea.vmem [#allocation4], %s8585
        // Predicated region
        $region57: #{_lambda_.1} parent=55 // pred_check
          %p8587 = pneg %p235
        $region58: #{_lambda_.1} parent=55 // pred_check_branch
          %8589 = sbr.rel (%p8587) target = $region60
        $region59: #{_lambda_.1} parent=55 // pred_region
          %8591 = vsyncadd %s8584, 0
          %s8592 = scalar_lea.hbm %s9, %s23
          %s8594 = sshll.u32 %s8586, 4
          %s8595 = int_to_ptr.vmem [resolvable:$true] %s8594
          %s8596 = sshll.u32 %s8592, 4
          %s8597 = int_to_ptr.hbm [resolvable:$true] %s8596
          %8599 = dma.vmem_to_hbm [thread:$0]  %s8595, 16, %s8597, %s8584
        $region60: #{_lambda_.1} parent=55 // pred_fallthru
          _
      $region56: #{_lambda_.1} parent=5 // pred_fallthru
        _
      %p8600 = scmp.le.s32.totalorder 2, %s18
      // Predicated region
      $region61: #{_lambda_.1} parent=5 // pred_check
        %p8601 = pneg %p8600
      $region62: #{_lambda_.1} parent=5 // pred_check_branch
        %8603 = sbr.rel (%p8601) target = $region64
      $region63: #{_lambda_.1} parent=5 // pred_region
        %s8604 = ssub.s32 %s18, 2
        // Predicated region
        $region65: #{_lambda_.1} parent=63 // pred_check
          %p8605 = pneg %p241
        $region66: #{_lambda_.1} parent=63 // pred_check_branch
          %8607 = sbr.rel (%p8605) target = $region68
        $region67: #{_lambda_.1} parent=63 // pred_region
          %s8608 = sand.u32 %s226, 1
          %s8609 = scalar_lea.sflag [#allocation5], %s8608
          %s8610 = sand.u32 %s226, 1
          %s8611 = scalar_lea.vmem [#allocation4], %s8610
          %8613 = dma.done %s8609, 16
        $region68: #{_lambda_.1} parent=63 // pred_fallthru
          _
      $region64: #{_lambda_.1} parent=5 // pred_fallthru
        _
    $region6: #{_lambda_.1} parent=1 // loop_footer
      %s22 = sadd.s32 1, %s18
    $region7: #{_lambda_.1} parent=1 // loop_footer_branch
      %17 = sbr.rel target = $region3
    $region8: #{_lambda_.1} parent=1 // loop_exit
      _
    %8614 = vsyncpa [#allocation5], 1
    %s8615 = scalar_lea.sflag [#allocation5], 1
    %8616 = vsyncpa %s8615, 1

</llo_original>
